<compile_context>
chip_gen: v5e
topology: v5e:2x2
jax: 0.10.0
libtpu: 0.0.40
codegen_flags: <defaults>
</compile_context>

<pallas_src>
import jax
import jax.numpy as jnp
from jax.experimental import pallas as pl
from jax.experimental.pallas import tpu as pltpu

_OUT_CHANNELS = 64                 # Decoder.out_channels in the reference
_VMEM_LIMIT = 32 * 1024 * 1024     # explicit scoped-VMEM budget (safe on v5e/v6e/v7x)
_TILE_BUDGET = 4 * 1024 * 1024     # target bytes of one (single-buffered) row tile


def _round_up(x, m):
    return (x + m - 1) // m * m


# ----------------------- Kernel 1: 1x1 conv as matmul -----------------------

def _matmul_bias_kernel(x_ref, w_ref, b_ref, o_ref):
    acc = jnp.dot(x_ref[...], w_ref[...], preferred_element_type=jnp.float32)
    o_ref[...] = (acc + b_ref[...]).astype(o_ref.dtype)


def _pick_tm(m):
    if m >= 512:
        return 256
    if m >= 128:
        return 128
    return _round_up(m, 8)


def matmul_bias(x, w, b):
    """out = x @ w + b.  x:(M,K) bf16, w:(K,N) bf16, b:(1,N) f32 -> (M,N) f32."""
    m, k = x.shape
    _, n = w.shape
    tm = _pick_tm(m)
    mp = _round_up(m, tm)
    if mp != m:                      # only tiny / ragged M ever hits this pad
        x = jnp.pad(x, ((0, mp - m), (0, 0)))
    out = pl.pallas_call(
        _matmul_bias_kernel,
        out_shape=jax.ShapeDtypeStruct((mp, n), jnp.float32),
        grid=(mp // tm,),
        in_specs=[
            pl.BlockSpec((tm, k), lambda i: (i, 0)),
            pl.BlockSpec((k, n), lambda i: (0, 0)),
            pl.BlockSpec((1, n), lambda i: (0, 0)),
        ],
        out_specs=pl.BlockSpec((tm, n), lambda i: (i, 0)),
        compiler_params=pltpu.CompilerParams(
            dimension_semantics=("parallel",),
            vmem_limit_bytes=_VMEM_LIMIT),
    )(x, w, b)
    return out[:m] if mp != m else out


def lateral_conv(src_nhwc, lat_p):
    """1x1 conv (Cin -> 64) of an NHWC map using the pixel-pair packed weight."""
    n, h, w, cin = src_nhwc.shape
    assert w % 2 == 0
    x2 = src_nhwc.reshape(n * h * (w // 2), 2 * cin).astype(jnp.bfloat16)
    out = matmul_bias(x2, lat_p['wbd'], lat_p['b2'])   # (M, 128) f32, lane dense
    return out.reshape(n, h, w, _OUT_CHANNELS)


# --------------- Kernel 2/3: bilinear x2 upsample (+ fused lateral) ---------

def _bilinear_x2_rows_cols(x, x_up, x_dn):
    """x:(TH,W,C), x_up/x_dn:(1,W,C) edge-clamped halo rows.
    Returns (even_rows, odd_rows), each (TH, W, 2C) packed [col-even | col-odd]
    along the last dim.  Weights match F.interpolate(align_corners=False)."""
    th, wx, _ = x.shape
    xm = jnp.concatenate([x_up, x], axis=0)[:th]       # row k-1 (edge clamped)
    xp = jnp.concatenate([x, x_dn], axis=0)[1:]        # row k+1 (edge clamped)
    r_even = 0.75 * x + 0.25 * xm
    r_odd = 0.75 * x + 0.25 * xp

    def cols(y):
        ym = jnp.concatenate([y[:, :1], y], axis=1)[:, :wx]   # col w-1 (clamped)
        yp = jnp.concatenate([y, y[:, -1:]], axis=1)[:, 1:]   # col w+1 (clamped)
        return jnp.concatenate(
            [0.75 * y + 0.25 * ym, 0.75 * y + 0.25 * yp], axis=-1)

    return cols(r_even), cols(r_odd)


def _up2_lat_kernel(x_ref, xu_ref, xd_ref, s_ref, w_ref, b_ref, o_ref):
    # x_ref : (1, TH, W, C)        f32   row tile of the low-res map
    # xu_ref: (1, 1, W, C)         f32   row above the tile (edge clamped)
    # xd_ref: (1, 1, W, C)         f32   row below the tile (edge clamped)
    # s_ref : (1, 2*TH*W, 2*Cin)   bf16  pixel-pair packed high-res source rows
    # w_ref : (2*Cin, 2*C)         bf16  block-diagonal 1x1-conv weight
    # b_ref : (1, 2*C)             f32
    # o_ref : (1, TH, 2, W, 2*C)   f32   (h, row-parity, w, col-parity*C + c)
    x = x_ref[0]
    th, wx, c = x.shape
    up_e, up_o = _bilinear_x2_rows_cols(x, xu_ref[0], xd_ref[0])

    lat = jnp.dot(s_ref[0], w_ref[...], preferred_element_type=jnp.float32)
    lat = (lat + b_ref[...]).reshape(th, 2, wx, 2 * c)
    o_ref[0, :, 0] = up_e + lat[:, 0]
    o_ref[0, :, 1] = up_o + lat[:, 1]


def _up2_kernel(x_ref, xu_ref, xd_ref, o_ref):
    x = x_ref[0]
    up_e, up_o = _bilinear_x2_rows_cols(x, xu_ref[0], xd_ref[0])
    o_ref[0, :, 0] = up_e
    o_ref[0, :, 1] = up_o


def _pick_tile_rows(hx, bytes_per_row):
    cap = max(1, _TILE_BUDGET // max(bytes_per_row, 1))
    best = 1
    for t in range(1, hx + 1):
        if hx % t == 0 and t <= cap:
            best = t
    return best


def upsample2x(x):
    """F.interpolate(x, scale_factor=2, mode='bilinear').  x:(N,H,W,C) f32."""
    n, hx, wx, c = x.shape
    th = _pick_tile_rows(hx, wx * 20 * c)
    grid = (n, hx // th)
    out = pl.pallas_call(
        _up2_kernel,
        out_shape=jax.ShapeDtypeStruct((n, hx, 2, wx, 2 * c), jnp.float32),
        grid=grid,
        in_specs=[
            pl.BlockSpec((1, th, wx, c), lambda b, i: (b, i, 0, 0)),
            pl.BlockSpec((1, 1, wx, c),
                         lambda b, i: (b, jnp.maximum(i * th - 1, 0), 0, 0)),
            pl.BlockSpec((1, 1, wx, c),
                         lambda b, i: (b, jnp.minimum((i + 1) * th, hx - 1), 0, 0)),
        ],
        out_specs=pl.BlockSpec((1, th, 2, wx, 2 * c),
                               lambda b, i: (b, i, 0, 0, 0)),
        compiler_params=pltpu.CompilerParams(
            dimension_semantics=("parallel", "parallel"),
            vmem_limit_bytes=_VMEM_LIMIT),
    )(x, x, x)
    return out.reshape(n, 2 * hx, 2 * wx, c)       # contiguous: free


def upsample2x_add_lateral(x, src_nhwc, lat_p):
    """F.interpolate(x, 2, 'bilinear') + conv1x1(src); lateral conv is fused
    into the upsample kernel (the full-res lateral map never hits HBM).
    x:(N,H,W,64) f32, src:(N,2H,2W,Cin)."""
    n, hx, wx, c = x.shape
    ns, hs, ws, cin = src_nhwc.shape
    assert (ns, hs, ws) == (n, 2 * hx, 2 * wx)
    if wx % 8 != 0:
        # TODO(synk): fused path assumes the low-res width is sublane aligned;
        # fall back to the unfused (extra HBM pass) path for odd widths.
        return upsample2x(x) + lateral_conv(src_nhwc, lat_p)

    k = 2 * cin
    # pixel-pair packed, row-flattened view of the source (contiguous = free).
    s = src_nhwc.reshape(n, hs * wx, k).astype(jnp.bfloat16)

    bytes_per_row = wx * (20 * c + 8 * cin)    # x + out (f32) + src (bf16) rows
    th = _pick_tile_rows(hx, bytes_per_row)
    grid = (n, hx // th)

    out = pl.pallas_call(
        _up2_lat_kernel,
        out_shape=jax.ShapeDtypeStruct((n, hx, 2, wx, 2 * c), jnp.float32),
        grid=grid,
        in_specs=[
            pl.BlockSpec((1, th, wx, c), lambda b, i: (b, i, 0, 0)),
            pl.BlockSpec((1, 1, wx, c),
                         lambda b, i: (b, jnp.maximum(i * th - 1, 0), 0, 0)),
            pl.BlockSpec((1, 1, wx, c),
                         lambda b, i: (b, jnp.minimum((i + 1) * th, hx - 1), 0, 0)),
            pl.BlockSpec((1, 2 * th * wx, k), lambda b, i: (b, i, 0)),
            pl.BlockSpec((k, 2 * c), lambda b, i: (0, 0)),
            pl.BlockSpec((1, 2 * c), lambda b, i: (0, 0)),
        ],
        out_specs=pl.BlockSpec((1, th, 2, wx, 2 * c),
                               lambda b, i: (b, i, 0, 0, 0)),
        compiler_params=pltpu.CompilerParams(
            dimension_semantics=("parallel", "parallel"),
            vmem_limit_bytes=_VMEM_LIMIT),
    )(x, x, x, s, lat_p['wbd'], lat_p['b2'])
    return out.reshape(n, 2 * hx, 2 * wx, c)       # contiguous: free


# ------------------------------ Parameters ----------------------------------

def init_decoder_params(key, src_channels, out_channels=_OUT_CHANNELS):
    """One entry per lateral layer, ordered like the PyTorch ModuleList
    (params[0] acts on src_features[-1]).  The pixel-pair block-diagonal
    bf16 weight is built once here (no per-call packing/padding)."""
    params = []
    for cin in reversed(src_channels):
        key, kw, kb = jax.random.split(key, 3)
        w = jax.random.normal(kw, (out_channels, cin), jnp.float32) / jnp.sqrt(cin)
        b = 0.1 * jax.random.normal(kb, (out_channels,), jnp.float32)
        wt = jnp.transpose(w)                                  # (Cin, 64)
        wbd = jnp.zeros((2 * cin, 2 * out_channels), jnp.float32)
        wbd = wbd.at[:cin, :out_channels].set(wt)
        wbd = wbd.at[cin:, out_channels:].set(wt)
        params.append({
            'w': w, 'b': b,                                    # reference copies
            'wbd': wbd.astype(jnp.bfloat16),                   # packed, bf16
            'b2': jnp.concatenate([b, b]).reshape(1, 2 * out_channels),
        })
    return params


# -------------------------------- Forward -----------------------------------

def decoder_forward(params, src_features_nchw):
    """Pallas Decoder forward.  src_features_nchw: list of NCHW maps, finest
    first (as in the PyTorch module).  Returns NCHW (N, 64, 2*H0, 2*W0)."""
    srcs = [jnp.transpose(s, (0, 2, 3, 1)).astype(jnp.bfloat16)
            for s in src_features_nchw]
    x = lateral_conv(srcs[-1], params[0])                      # deepest level
    for i in range(1, len(srcs)):
        x = upsample2x_add_lateral(x, srcs[-i - 1], params[i])
    x = upsample2x(x)                                          # final x2, no lateral
    return jnp.transpose(x, (0, 3, 1, 2))


# ---------------------------- Pure-JAX reference ----------------------------

def decoder_reference(params, src_features_nchw):
    def conv1x1(s, w, b):
        y = jnp.einsum('nchw,oc->nohw', s, w,
                       precision=jax.lax.Precision.HIGHEST)
        return y + b[None, :, None, None]

    def up2(t):
        n, c, h, w = t.shape
        return jax.image.resize(t, (n, c, 2 * h, 2 * w), method='bilinear')

    x = conv1x1(src_features_nchw[-1], params[0]['w'], params[0]['b'])
    for i in range(1, len(src_features_nchw)):
        lat = conv1x1(src_features_nchw[-i - 1], params[i]['w'], params[i]['b'])
        x = up2(x) + lat
    return up2(x)


# ---------------------------------- Main -------------------------------------

if __name__ == "__main__":
    # Small ResNet/FPN-like pyramid with a range-image-ish aspect ratio.
    src_channels = [64, 128, 256, 512]
    batch, h0, w0 = 2, 16, 64

    key = jax.random.PRNGKey(0)
    key, pkey = jax.random.split(key)
    params = init_decoder_params(pkey, src_channels)

    srcs = []
    h, w = h0, w0
    for cin in src_channels:
        key, skey = jax.random.split(key)
        srcs.append(jax.random.normal(skey, (batch, cin, h, w), jnp.float32))
        h, w = h // 2, w // 2

    fwd = jax.jit(lambda *feats: decoder_forward(params, list(feats)))
    out = fwd(*srcs)
    jax.block_until_ready(out)

    assert out.shape == (batch, _OUT_CHANNELS, 2 * h0, 2 * w0), out.shape
    assert bool(jnp.all(jnp.isfinite(out)))

    ref = decoder_reference(params, srcs)
    max_err = float(jnp.max(jnp.abs(out - ref)))
    assert max_err < 0.15, f"max abs err vs reference = {max_err}"
    print("KERNEL_OK")
</pallas_src>

<mosaic_0001>
module attributes {stable_mosaic.version = 11 : i64} {
  func.func @_matmul_bias_kernel(%arg0: i32, %arg1: memref<16x1024xbf16, #tpu.memory_space<vmem>>, %arg2: memref<1024x128xbf16, #tpu.memory_space<vmem>>, %arg3: memref<1x128xf32, #tpu.memory_space<vmem>>, %arg4: memref<16x128xf32, #tpu.memory_space<vmem>>) attributes {dimension_semantics = [#tpu.dimension_semantics<parallel>], iteration_bounds = array<i64: 1>, scalar_prefetch = 0 : i64, scratch_operands = 0 : i64, tpu.core_type = #tpu.core_type<tc>, window_params = [{transform_indices = @transform_0, window_bounds = array<i64: 16, 1024>}, {pipeline_mode = #tpu.pipeline_mode<synchronous>, transform_indices = @transform_1, window_bounds = array<i64: 1024, 128>}, {pipeline_mode = #tpu.pipeline_mode<synchronous>, transform_indices = @transform_2, window_bounds = array<i64: 1, 128>}, {transform_indices = @transform_3, window_bounds = array<i64: 16, 128>}]} {
    %c0 = arith.constant 0 : index
    %c0_0 = arith.constant 0 : index
    %0 = vector.load %arg1[%c0, %c0_0] : memref<16x1024xbf16, #tpu.memory_space<vmem>>, vector<16x1024xbf16>
    %c0_1 = arith.constant 0 : index
    %c0_2 = arith.constant 0 : index
    %1 = vector.load %arg2[%c0_1, %c0_2] : memref<1024x128xbf16, #tpu.memory_space<vmem>>, vector<1024x128xbf16>
    %cst = arith.constant dense<0.000000e+00> : vector<16x128xf32>
    %2 = tpu.matmul %0, %1, %cst {dimension_numbers = #tpu.dot_dimension_numbers<[1], [0], [0], [1], [0, 0, 1, 1], [], []>} : vector<16x1024xbf16>, vector<1024x128xbf16>, vector<16x128xf32> -> vector<16x128xf32>
    %c0_3 = arith.constant 0 : index
    %c0_4 = arith.constant 0 : index
    %3 = vector.load %arg3[%c0_3, %c0_4] : memref<1x128xf32, #tpu.memory_space<vmem>>, vector<1x128xf32>
    %4 = vector.broadcast %3 : vector<1x128xf32> to vector<16x128xf32>
    %5 = arith.addf %2, %4 : vector<16x128xf32>
    %c0_5 = arith.constant 0 : index
    %c0_6 = arith.constant 0 : index
    %6 = vector.load %arg4[%c0_5, %c0_6] : memref<16x128xf32, #tpu.memory_space<vmem>>, vector<16x128xf32>
    tpu.vector_store %arg4[%c0_5, %c0_6], %5 {strides = array<i32>} : memref<16x128xf32, #tpu.memory_space<vmem>>, vector<16x128xf32>,
    return
  }
  func.func @transform_0(%arg0: i32) -> (i32, i32) {
    %c0_i32 = arith.constant 0 : i32
    %c0_i32_0 = arith.constant 0 : i32
    return %arg0, %c0_i32 : i32, i32
  }
  func.func @transform_1(%arg0: i32) -> (i32, i32) {
    %c0_i32 = arith.constant 0 : i32
    %c0_i32_0 = arith.constant 0 : i32
    %c0_i32_1 = arith.constant 0 : i32
    return %c0_i32, %c0_i32_0 : i32, i32
  }
  func.func @transform_2(%arg0: i32) -> (i32, i32) {
    %c0_i32 = arith.constant 0 : i32
    %c0_i32_0 = arith.constant 0 : i32
    %c0_i32_1 = arith.constant 0 : i32
    return %c0_i32, %c0_i32_0 : i32, i32
  }
  func.func @transform_3(%arg0: i32) -> (i32, i32) {
    %c0_i32 = arith.constant 0 : i32
    %c0_i32_0 = arith.constant 0 : i32
    return %arg0, %c0_i32 : i32, i32
  }
}

module attributes {stable_mosaic.version = 11 : i64} {
  func.func @_up2_lat_kernel(%arg0: i32, %arg1: i32, %arg2: memref<1x2x8x64xf32, #tpu.memory_space<vmem>>, %arg3: memref<1x1x8x64xf32, #tpu.memory_space<vmem>>, %arg4: memref<1x1x8x64xf32, #tpu.memory_space<vmem>>, %arg5: memref<1x32x512xbf16, #tpu.memory_space<vmem>>, %arg6: memref<512x128xbf16, #tpu.memory_space<vmem>>, %arg7: memref<1x128xf32, #tpu.memory_space<vmem>>, %arg8: memref<1x2x2x8x128xf32, #tpu.memory_space<vmem>>) attributes {dimension_semantics = [#tpu.dimension_semantics<parallel>, #tpu.dimension_semantics<parallel>], iteration_bounds = array<i64: 2, 1>, scalar_prefetch = 0 : i64, scratch_operands = 0 : i64, tpu.core_type = #tpu.core_type<tc>, window_params = [{transform_indices = @transform_0, window_bounds = array<i64: 1, 2, 8, 64>}, {transform_indices = @transform_1, window_bounds = array<i64: 1, 1, 8, 64>}, {transform_indices = @transform_2, window_bounds = array<i64: 1, 1, 8, 64>}, {transform_indices = @transform_3, window_bounds = array<i64: 1, 32, 512>}, {pipeline_mode = #tpu.pipeline_mode<synchronous>, transform_indices = @transform_4, window_bounds = array<i64: 512, 128>}, {pipeline_mode = #tpu.pipeline_mode<synchronous>, transform_indices = @transform_5, window_bounds = array<i64: 1, 128>}, {transform_indices = @transform_6, window_bounds = array<i64: 1, 2, 2, 8, 128>}]} {
    %c0 = arith.constant 0 : index
    %c0_0 = arith.constant 0 : index
    %c0_1 = arith.constant 0 : index
    %c0_2 = arith.constant 0 : index
    %0 = vector.load %arg2[%c0, %c0_0, %c0_1, %c0_2] : memref<1x2x8x64xf32, #tpu.memory_space<vmem>>, vector<1x2x8x64xf32>
    %1 = vector.shape_cast %0 : vector<1x2x8x64xf32> to vector<2x8x64xf32>
    %c0_3 = arith.constant 0 : index
    %c0_4 = arith.constant 0 : index
    %c0_5 = arith.constant 0 : index
    %c0_6 = arith.constant 0 : index
    %2 = vector.load %arg3[%c0_3, %c0_4, %c0_5, %c0_6] : memref<1x1x8x64xf32, #tpu.memory_space<vmem>>, vector<1x1x8x64xf32>
    %3 = vector.shape_cast %2 : vector<1x1x8x64xf32> to vector<1x8x64xf32>
    %c0_7 = arith.constant 0 : index
    %c0_8 = arith.constant 0 : index
    %c0_9 = arith.constant 0 : index
    %c0_10 = arith.constant 0 : index
    %4 = vector.load %arg4[%c0_7, %c0_8, %c0_9, %c0_10] : memref<1x1x8x64xf32, #tpu.memory_space<vmem>>, vector<1x1x8x64xf32>
    %5 = vector.shape_cast %4 : vector<1x1x8x64xf32> to vector<1x8x64xf32>
    %6 = tpu.concatenate %3, %1 in 0 : vector<1x8x64xf32>, vector<2x8x64xf32> -> vector<3x8x64xf32>
    %7 = vector.extract_strided_slice %6 {offsets = [0, 0, 0], sizes = [2, 8, 64], strides = [1, 1, 1]} : vector<3x8x64xf32> to vector<2x8x64xf32>
    %8 = tpu.concatenate %1, %5 in 0 : vector<2x8x64xf32>, vector<1x8x64xf32> -> vector<3x8x64xf32>
    %9 = vector.extract_strided_slice %8 {offsets = [1, 0, 0], sizes = [2, 8, 64], strides = [1, 1, 1]} : vector<3x8x64xf32> to vector<2x8x64xf32>
    %cst = arith.constant 7.500000e-01 : f32
    %10 = vector.broadcast %cst : f32 to vector<2x8x64xf32>
    %11 = arith.mulf %10, %1 : vector<2x8x64xf32>
    %cst_11 = arith.constant 2.500000e-01 : f32
    %12 = vector.broadcast %cst_11 : f32 to vector<2x8x64xf32>
    %13 = arith.mulf %12, %7 : vector<2x8x64xf32>
    %14 = arith.addf %11, %13 : vector<2x8x64xf32>
    %cst_12 = arith.constant 7.500000e-01 : f32
    %15 = vector.broadcast %cst_12 : f32 to vector<2x8x64xf32>
    %16 = arith.mulf %15, %1 : vector<2x8x64xf32>
    %cst_13 = arith.constant 2.500000e-01 : f32
    %17 = vector.broadcast %cst_13 : f32 to vector<2x8x64xf32>
    %18 = arith.mulf %17, %9 : vector<2x8x64xf32>
    %19 = arith.addf %16, %18 : vector<2x8x64xf32>
    %20 = vector.extract_strided_slice %14 {offsets = [0, 0, 0], sizes = [2, 1, 64], strides = [1, 1, 1]} : vector<2x8x64xf32> to vector<2x1x64xf32>
    %21 = tpu.concatenate %20, %14 in 1 : vector<2x1x64xf32>, vector<2x8x64xf32> -> vector<2x9x64xf32>
    %22 = vector.extract_strided_slice %21 {offsets = [0, 0, 0], sizes = [2, 8, 64], strides = [1, 1, 1]} : vector<2x9x64xf32> to vector<2x8x64xf32>
    %23 = vector.extract_strided_slice %14 {offsets = [0, 7, 0], sizes = [2, 1, 64], strides = [1, 1, 1]} : vector<2x8x64xf32> to vector<2x1x64xf32>
    %24 = tpu.concatenate %14, %23 in 1 : vector<2x8x64xf32>, vector<2x1x64xf32> -> vector<2x9x64xf32>
    %25 = vector.extract_strided_slice %24 {offsets = [0, 1, 0], sizes = [2, 8, 64], strides = [1, 1, 1]} : vector<2x9x64xf32> to vector<2x8x64xf32>
    %cst_14 = arith.constant 7.500000e-01 : f32
    %26 = vector.broadcast %cst_14 : f32 to vector<2x8x64xf32>
    %27 = arith.mulf %26, %14 : vector<2x8x64xf32>
    %cst_15 = arith.constant 2.500000e-01 : f32
    %28 = vector.broadcast %cst_15 : f32 to vector<2x8x64xf32>
    %29 = arith.mulf %28, %22 : vector<2x8x64xf32>
    %30 = arith.addf %27, %29 : vector<2x8x64xf32>
    %cst_16 = arith.constant 7.500000e-01 : f32
    %31 = vector.broadcast %cst_16 : f32 to vector<2x8x64xf32>
    %32 = arith.mulf %31, %14 : vector<2x8x64xf32>
    %cst_17 = arith.constant 2.500000e-01 : f32
    %33 = vector.broadcast %cst_17 : f32 to vector<2x8x64xf32>
    %34 = arith.mulf %33, %25 : vector<2x8x64xf32>
    %35 = arith.addf %32, %34 : vector<2x8x64xf32>
    %36 = tpu.concatenate %30, %35 in 2 : vector<2x8x64xf32>, vector<2x8x64xf32> -> vector<2x8x128xf32>
    %37 = vector.extract_strided_slice %19 {offsets = [0, 0, 0], sizes = [2, 1, 64], strides = [1, 1, 1]} : vector<2x8x64xf32> to vector<2x1x64xf32>
    %38 = tpu.concatenate %37, %19 in 1 : vector<2x1x64xf32>, vector<2x8x64xf32> -> vector<2x9x64xf32>
    %39 = vector.extract_strided_slice %38 {offsets = [0, 0, 0], sizes = [2, 8, 64], strides = [1, 1, 1]} : vector<2x9x64xf32> to vector<2x8x64xf32>
    %40 = vector.extract_strided_slice %19 {offsets = [0, 7, 0], sizes = [2, 1, 64], strides = [1, 1, 1]} : vector<2x8x64xf32> to vector<2x1x64xf32>
    %41 = tpu.concatenate %19, %40 in 1 : vector<2x8x64xf32>, vector<2x1x64xf32> -> vector<2x9x64xf32>
    %42 = vector.extract_strided_slice %41 {offsets = [0, 1, 0], sizes = [2, 8, 64], strides = [1, 1, 1]} : vector<2x9x64xf32> to vector<2x8x64xf32>
    %cst_18 = arith.constant 7.500000e-01 : f32
    %43 = vector.broadcast %cst_18 : f32 to vector<2x8x64xf32>
    %44 = arith.mulf %43, %19 : vector<2x8x64xf32>
    %cst_19 = arith.constant 2.500000e-01 : f32
    %45 = vector.broadcast %cst_19 : f32 to vector<2x8x64xf32>
    %46 = arith.mulf %45, %39 : vector<2x8x64xf32>
    %47 = arith.addf %44, %46 : vector<2x8x64xf32>
    %cst_20 = arith.constant 7.500000e-01 : f32
    %48 = vector.broadcast %cst_20 : f32 to vector<2x8x64xf32>
    %49 = arith.mulf %48, %19 : vector<2x8x64xf32>
    %cst_21 = arith.constant 2.500000e-01 : f32
    %50 = vector.broadcast %cst_21 : f32 to vector<2x8x64xf32>
    %51 = arith.mulf %50, %42 : vector<2x8x64xf32>
    %52 = arith.addf %49, %51 : vector<2x8x64xf32>
    %53 = tpu.concatenate %47, %52 in 2 : vector<2x8x64xf32>, vector<2x8x64xf32> -> vector<2x8x128xf32>
    %c0_22 = arith.constant 0 : index
    %c0_23 = arith.constant 0 : index
    %c0_24 = arith.constant 0 : index
    %54 = vector.load %arg5[%c0_22, %c0_23, %c0_24] : memref<1x32x512xbf16, #tpu.memory_space<vmem>>, vector<1x32x512xbf16>
    %55 = vector.shape_cast %54 : vector<1x32x512xbf16> to vector<32x512xbf16>
    %c0_25 = arith.constant 0 : index
    %c0_26 = arith.constant 0 : index
    %56 = vector.load %arg6[%c0_25, %c0_26] : memref<512x128xbf16, #tpu.memory_space<vmem>>, vector<512x128xbf16>
    %cst_27 = arith.constant dense<0.000000e+00> : vector<32x128xf32>
    %57 = tpu.matmul %55, %56, %cst_27 {dimension_numbers = #tpu.dot_dimension_numbers<[1], [0], [0], [1], [0, 0, 1, 1], [], []>} : vector<32x512xbf16>, vector<512x128xbf16>, vector<32x128xf32> -> vector<32x128xf32>
    %c0_28 = arith.constant 0 : index
    %c0_29 = arith.constant 0 : index
    %58 = vector.load %arg7[%c0_28, %c0_29] : memref<1x128xf32, #tpu.memory_space<vmem>>, vector<1x128xf32>
    %59 = vector.broadcast %58 : vector<1x128xf32> to vector<32x128xf32>
    %60 = arith.addf %57, %59 : vector<32x128xf32>
    %61 = vector.shape_cast %60 : vector<32x128xf32> to vector<2x2x8x128xf32>
    %62 = vector.extract_strided_slice %61 {offsets = [0, 0, 0, 0], sizes = [2, 1, 8, 128], strides = [1, 1, 1, 1]} : vector<2x2x8x128xf32> to vector<2x1x8x128xf32>
    %63 = vector.shape_cast %62 : vector<2x1x8x128xf32> to vector<2x8x128xf32>
    %64 = arith.addf %36, %63 : vector<2x8x128xf32>
    %c0_30 = arith.constant 0 : index
    %c0_31 = arith.constant 0 : index
    %c0_32 = arith.constant 0 : index
    %c0_33 = arith.constant 0 : index
    %c0_34 = arith.constant 0 : index
    %65 = vector.load %arg8[%c0_30, %c0_31, %c0_32, %c0_33, %c0_34] : memref<1x2x2x8x128xf32, #tpu.memory_space<vmem>>, vector<1x2x1x8x128xf32>
    %66 = vector.shape_cast %65 : vector<1x2x1x8x128xf32> to vector<2x8x128xf32>
    %67 = vector.shape_cast %64 : vector<2x8x128xf32> to vector<1x2x1x8x128xf32>
    tpu.vector_store %arg8[%c0_30, %c0_31, %c0_32, %c0_33, %c0_34], %67 {strides = array<i32>} : memref<1x2x2x8x128xf32, #tpu.memory_space<vmem>>, vector<1x2x1x8x128xf32>,
    %68 = vector.extract_strided_slice %61 {offsets = [0, 1, 0, 0], sizes = [2, 1, 8, 128], strides = [1, 1, 1, 1]} : vector<2x2x8x128xf32> to vector<2x1x8x128xf32>
    %69 = vector.shape_cast %68 : vector<2x1x8x128xf32> to vector<2x8x128xf32>
    %70 = arith.addf %53, %69 : vector<2x8x128xf32>
    %c0_35 = arith.constant 0 : index
    %c0_36 = arith.constant 0 : index
    %c1 = arith.constant 1 : index
    %c0_37 = arith.constant 0 : index
    %c0_38 = arith.constant 0 : index
    %71 = vector.load %arg8[%c0_35, %c0_36, %c1, %c0_37, %c0_38] : memref<1x2x2x8x128xf32, #tpu.memory_space<vmem>>, vector<1x2x1x8x128xf32>
    %72 = vector.shape_cast %71 : vector<1x2x1x8x128xf32> to vector<2x8x128xf32>
    %73 = vector.shape_cast %70 : vector<2x8x128xf32> to vector<1x2x1x8x128xf32>
    tpu.vector_store %arg8[%c0_35, %c0_36, %c1, %c0_37, %c0_38], %73 {strides = array<i32>} : memref<1x2x2x8x128xf32, #tpu.memory_space<vmem>>, vector<1x2x1x8x128xf32>,
    return
  }
  func.func @transform_0(%arg0: i32, %arg1: i32) -> (i32, i32, i32, i32) {
    %c0_i32 = arith.constant 0 : i32
    %c0_i32_0 = arith.constant 0 : i32
    %c0_i32_1 = arith.constant 0 : i32
    return %arg0, %arg1, %c0_i32, %c0_i32_0 : i32, i32, i32, i32
  }
  func.func @transform_1(%arg0: i32, %arg1: i32) -> (i32, i32, i32, i32) {
    %c2_i32 = arith.constant 2 : i32
    %0 = arith.muli %arg1, %c2_i32 : i32
    %c1_i32 = arith.constant 1 : i32
    %1 = arith.subi %0, %c1_i32 : i32
    %c0_i32 = arith.constant 0 : i32
    %2 = arith.maxsi %1, %c0_i32 : i32
    %c0_i32_0 = arith.constant 0 : i32
    %c0_i32_1 = arith.constant 0 : i32
    %c0_i32_2 = arith.constant 0 : i32
    return %arg0, %2, %c0_i32_0, %c0_i32_1 : i32, i32, i32, i32
  }
  func.func @transform_2(%arg0: i32, %arg1: i32) -> (i32, i32, i32, i32) {
    %c1_i32 = arith.constant 1 : i32
    %0 = arith.addi %arg1, %c1_i32 : i32
    %c2_i32 = arith.constant 2 : i32
    %1 = arith.muli %0, %c2_i32 : i32
    %c1_i32_0 = arith.constant 1 : i32
    %2 = arith.minsi %1, %c1_i32_0 : i32
    %c0_i32 = arith.constant 0 : i32
    %c0_i32_1 = arith.constant 0 : i32
    %c0_i32_2 = arith.constant 0 : i32
    return %arg0, %2, %c0_i32, %c0_i32_1 : i32, i32, i32, i32
  }
  func.func @transform_3(%arg0: i32, %arg1: i32) -> (i32, i32, i32) {
    %c0_i32 = arith.constant 0 : i32
    %c0_i32_0 = arith.constant 0 : i32
    return %arg0, %arg1, %c0_i32 : i32, i32, i32
  }
  func.func @transform_4(%arg0: i32, %arg1: i32) -> (i32, i32) {
    %c0_i32 = arith.constant 0 : i32
    %c0_i32_0 = arith.constant 0 : i32
    %c0_i32_1 = arith.constant 0 : i32
    return %c0_i32, %c0_i32_0 : i32, i32
  }
  func.func @transform_5(%arg0: i32, %arg1: i32) -> (i32, i32) {
    %c0_i32 = arith.constant 0 : i32
    %c0_i32_0 = arith.constant 0 : i32
    %c0_i32_1 = arith.constant 0 : i32
    return %c0_i32, %c0_i32_0 : i32, i32
  }
  func.func @transform_6(%arg0: i32, %arg1: i32) -> (i32, i32, i32, i32, i32) {
    %c0_i32 = arith.constant 0 : i32
    %c0_i32_0 = arith.constant 0 : i32
    %c0_i32_1 = arith.constant 0 : i32
    %c0_i32_2 = arith.constant 0 : i32
    return %arg0, %arg1, %c0_i32, %c0_i32_0, %c0_i32_1 : i32, i32, i32, i32, i32
  }
}

module attributes {stable_mosaic.version = 11 : i64} {
  func.func @_up2_lat_kernel(%arg0: i32, %arg1: i32, %arg2: memref<1x4x16x64xf32, #tpu.memory_space<vmem>>, %arg3: memref<1x1x16x64xf32, #tpu.memory_space<vmem>>, %arg4: memref<1x1x16x64xf32, #tpu.memory_space<vmem>>, %arg5: memref<1x128x256xbf16, #tpu.memory_space<vmem>>, %arg6: memref<256x128xbf16, #tpu.memory_space<vmem>>, %arg7: memref<1x128xf32, #tpu.memory_space<vmem>>, %arg8: memref<1x4x2x16x128xf32, #tpu.memory_space<vmem>>) attributes {dimension_semantics = [#tpu.dimension_semantics<parallel>, #tpu.dimension_semantics<parallel>], iteration_bounds = array<i64: 2, 1>, scalar_prefetch = 0 : i64, scratch_operands = 0 : i64, tpu.core_type = #tpu.core_type<tc>, window_params = [{transform_indices = @transform_0, window_bounds = array<i64: 1, 4, 16, 64>}, {transform_indices = @transform_1, window_bounds = array<i64: 1, 1, 16, 64>}, {transform_indices = @transform_2, window_bounds = array<i64: 1, 1, 16, 64>}, {transform_indices = @transform_3, window_bounds = array<i64: 1, 128, 256>}, {pipeline_mode = #tpu.pipeline_mode<synchronous>, transform_indices = @transform_4, window_bounds = array<i64: 256, 128>}, {pipeline_mode = #tpu.pipeline_mode<synchronous>, transform_indices = @transform_5, window_bounds = array<i64: 1, 128>}, {transform_indices = @transform_6, window_bounds = array<i64: 1, 4, 2, 16, 128>}]} {
    %c0 = arith.constant 0 : index
    %c0_0 = arith.constant 0 : index
    %c0_1 = arith.constant 0 : index
    %c0_2 = arith.constant 0 : index
    %0 = vector.load %arg2[%c0, %c0_0, %c0_1, %c0_2] : memref<1x4x16x64xf32, #tpu.memory_space<vmem>>, vector<1x4x16x64xf32>
    %1 = vector.shape_cast %0 : vector<1x4x16x64xf32> to vector<4x16x64xf32>
    %c0_3 = arith.constant 0 : index
    %c0_4 = arith.constant 0 : index
    %c0_5 = arith.constant 0 : index
    %c0_6 = arith.constant 0 : index
    %2 = vector.load %arg3[%c0_3, %c0_4, %c0_5, %c0_6] : memref<1x1x16x64xf32, #tpu.memory_space<vmem>>, vector<1x1x16x64xf32>
    %3 = vector.shape_cast %2 : vector<1x1x16x64xf32> to vector<1x16x64xf32>
    %c0_7 = arith.constant 0 : index
    %c0_8 = arith.constant 0 : index
    %c0_9 = arith.constant 0 : index
    %c0_10 = arith.constant 0 : index
    %4 = vector.load %arg4[%c0_7, %c0_8, %c0_9, %c0_10] : memref<1x1x16x64xf32, #tpu.memory_space<vmem>>, vector<1x1x16x64xf32>
    %5 = vector.shape_cast %4 : vector<1x1x16x64xf32> to vector<1x16x64xf32>
    %6 = tpu.concatenate %3, %1 in 0 : vector<1x16x64xf32>, vector<4x16x64xf32> -> vector<5x16x64xf32>
    %7 = vector.extract_strided_slice %6 {offsets = [0, 0, 0], sizes = [4, 16, 64], strides = [1, 1, 1]} : vector<5x16x64xf32> to vector<4x16x64xf32>
    %8 = tpu.concatenate %1, %5 in 0 : vector<4x16x64xf32>, vector<1x16x64xf32> -> vector<5x16x64xf32>
    %9 = vector.extract_strided_slice %8 {offsets = [1, 0, 0], sizes = [4, 16, 64], strides = [1, 1, 1]} : vector<5x16x64xf32> to vector<4x16x64xf32>
    %cst = arith.constant 7.500000e-01 : f32
    %10 = vector.broadcast %cst : f32 to vector<4x16x64xf32>
    %11 = arith.mulf %10, %1 : vector<4x16x64xf32>
    %cst_11 = arith.constant 2.500000e-01 : f32
    %12 = vector.broadcast %cst_11 : f32 to vector<4x16x64xf32>
    %13 = arith.mulf %12, %7 : vector<4x16x64xf32>
    %14 = arith.addf %11, %13 : vector<4x16x64xf32>
    %cst_12 = arith.constant 7.500000e-01 : f32
    %15 = vector.broadcast %cst_12 : f32 to vector<4x16x64xf32>
    %16 = arith.mulf %15, %1 : vector<4x16x64xf32>
    %cst_13 = arith.constant 2.500000e-01 : f32
    %17 = vector.broadcast %cst_13 : f32 to vector<4x16x64xf32>
    %18 = arith.mulf %17, %9 : vector<4x16x64xf32>
    %19 = arith.addf %16, %18 : vector<4x16x64xf32>
    %20 = vector.extract_strided_slice %14 {offsets = [0, 0, 0], sizes = [4, 1, 64], strides = [1, 1, 1]} : vector<4x16x64xf32> to vector<4x1x64xf32>
    %21 = tpu.concatenate %20, %14 in 1 : vector<4x1x64xf32>, vector<4x16x64xf32> -> vector<4x17x64xf32>
    %22 = vector.extract_strided_slice %21 {offsets = [0, 0, 0], sizes = [4, 16, 64], strides = [1, 1, 1]} : vector<4x17x64xf32> to vector<4x16x64xf32>
    %23 = vector.extract_strided_slice %14 {offsets = [0, 15, 0], sizes = [4, 1, 64], strides = [1, 1, 1]} : vector<4x16x64xf32> to vector<4x1x64xf32>
    %24 = tpu.concatenate %14, %23 in 1 : vector<4x16x64xf32>, vector<4x1x64xf32> -> vector<4x17x64xf32>
    %25 = vector.extract_strided_slice %24 {offsets = [0, 1, 0], sizes = [4, 16, 64], strides = [1, 1, 1]} : vector<4x17x64xf32> to vector<4x16x64xf32>
    %cst_14 = arith.constant 7.500000e-01 : f32
    %26 = vector.broadcast %cst_14 : f32 to vector<4x16x64xf32>
    %27 = arith.mulf %26, %14 : vector<4x16x64xf32>
    %cst_15 = arith.constant 2.500000e-01 : f32
    %28 = vector.broadcast %cst_15 : f32 to vector<4x16x64xf32>
    %29 = arith.mulf %28, %22 : vector<4x16x64xf32>
    %30 = arith.addf %27, %29 : vector<4x16x64xf32>
    %cst_16 = arith.constant 7.500000e-01 : f32
    %31 = vector.broadcast %cst_16 : f32 to vector<4x16x64xf32>
    %32 = arith.mulf %31, %14 : vector<4x16x64xf32>
    %cst_17 = arith.constant 2.500000e-01 : f32
    %33 = vector.broadcast %cst_17 : f32 to vector<4x16x64xf32>
    %34 = arith.mulf %33, %25 : vector<4x16x64xf32>
    %35 = arith.addf %32, %34 : vector<4x16x64xf32>
    %36 = tpu.concatenate %30, %35 in 2 : vector<4x16x64xf32>, vector<4x16x64xf32> -> vector<4x16x128xf32>
    %37 = vector.extract_strided_slice %19 {offsets = [0, 0, 0], sizes = [4, 1, 64], strides = [1, 1, 1]} : vector<4x16x64xf32> to vector<4x1x64xf32>
    %38 = tpu.concatenate %37, %19 in 1 : vector<4x1x64xf32>, vector<4x16x64xf32> -> vector<4x17x64xf32>
    %39 = vector.extract_strided_slice %38 {offsets = [0, 0, 0], sizes = [4, 16, 64], strides = [1, 1, 1]} : vector<4x17x64xf32> to vector<4x16x64xf32>
    %40 = vector.extract_strided_slice %19 {offsets = [0, 15, 0], sizes = [4, 1, 64], strides = [1, 1, 1]} : vector<4x16x64xf32> to vector<4x1x64xf32>
    %41 = tpu.concatenate %19, %40 in 1 : vector<4x16x64xf32>, vector<4x1x64xf32> -> vector<4x17x64xf32>
    %42 = vector.extract_strided_slice %41 {offsets = [0, 1, 0], sizes = [4, 16, 64], strides = [1, 1, 1]} : vector<4x17x64xf32> to vector<4x16x64xf32>
    %cst_18 = arith.constant 7.500000e-01 : f32
    %43 = vector.broadcast %cst_18 : f32 to vector<4x16x64xf32>
    %44 = arith.mulf %43, %19 : vector<4x16x64xf32>
    %cst_19 = arith.constant 2.500000e-01 : f32
    %45 = vector.broadcast %cst_19 : f32 to vector<4x16x64xf32>
    %46 = arith.mulf %45, %39 : vector<4x16x64xf32>
    %47 = arith.addf %44, %46 : vector<4x16x64xf32>
    %cst_20 = arith.constant 7.500000e-01 : f32
    %48 = vector.broadcast %cst_20 : f32 to vector<4x16x64xf32>
    %49 = arith.mulf %48, %19 : vector<4x16x64xf32>
    %cst_21 = arith.constant 2.500000e-01 : f32
    %50 = vector.broadcast %cst_21 : f32 to vector<4x16x64xf32>
    %51 = arith.mulf %50, %42 : vector<4x16x64xf32>
    %52 = arith.addf %49, %51 : vector<4x16x64xf32>
    %53 = tpu.concatenate %47, %52 in 2 : vector<4x16x64xf32>, vector<4x16x64xf32> -> vector<4x16x128xf32>
    %c0_22 = arith.constant 0 : index
    %c0_23 = arith.constant 0 : index
    %c0_24 = arith.constant 0 : index
    %54 = vector.load %arg5[%c0_22, %c0_23, %c0_24] : memref<1x128x256xbf16, #tpu.memory_space<vmem>>, vector<1x128x256xbf16>
    %55 = vector.shape_cast %54 : vector<1x128x256xbf16> to vector<128x256xbf16>
    %c0_25 = arith.constant 0 : index
    %c0_26 = arith.constant 0 : index
    %56 = vector.load %arg6[%c0_25, %c0_26] : memref<256x128xbf16, #tpu.memory_space<vmem>>, vector<256x128xbf16>
    %cst_27 = arith.constant dense<0.000000e+00> : vector<128x128xf32>
    %57 = tpu.matmul %55, %56, %cst_27 {dimension_numbers = #tpu.dot_dimension_numbers<[1], [0], [0], [1], [0, 0, 1, 1], [], []>} : vector<128x256xbf16>, vector<256x128xbf16>, vector<128x128xf32> -> vector<128x128xf32>
    %c0_28 = arith.constant 0 : index
    %c0_29 = arith.constant 0 : index
    %58 = vector.load %arg7[%c0_28, %c0_29] : memref<1x128xf32, #tpu.memory_space<vmem>>, vector<1x128xf32>
    %59 = vector.broadcast %58 : vector<1x128xf32> to vector<128x128xf32>
    %60 = arith.addf %57, %59 : vector<128x128xf32>
    %61 = vector.shape_cast %60 : vector<128x128xf32> to vector<4x2x16x128xf32>
    %62 = vector.extract_strided_slice %61 {offsets = [0, 0, 0, 0], sizes = [4, 1, 16, 128], strides = [1, 1, 1, 1]} : vector<4x2x16x128xf32> to vector<4x1x16x128xf32>
    %63 = vector.shape_cast %62 : vector<4x1x16x128xf32> to vector<4x16x128xf32>
    %64 = arith.addf %36, %63 : vector<4x16x128xf32>
    %c0_30 = arith.constant 0 : index
    %c0_31 = arith.constant 0 : index
    %c0_32 = arith.constant 0 : index
    %c0_33 = arith.constant 0 : index
    %c0_34 = arith.constant 0 : index
    %65 = vector.load %arg8[%c0_30, %c0_31, %c0_32, %c0_33, %c0_34] : memref<1x4x2x16x128xf32, #tpu.memory_space<vmem>>, vector<1x4x1x16x128xf32>
    %66 = vector.shape_cast %65 : vector<1x4x1x16x128xf32> to vector<4x16x128xf32>
    %67 = vector.shape_cast %64 : vector<4x16x128xf32> to vector<1x4x1x16x128xf32>
    tpu.vector_store %arg8[%c0_30, %c0_31, %c0_32, %c0_33, %c0_34], %67 {strides = array<i32>} : memref<1x4x2x16x128xf32, #tpu.memory_space<vmem>>, vector<1x4x1x16x128xf32>,
    %68 = vector.extract_strided_slice %61 {offsets = [0, 1, 0, 0], sizes = [4, 1, 16, 128], strides = [1, 1, 1, 1]} : vector<4x2x16x128xf32> to vector<4x1x16x128xf32>
    %69 = vector.shape_cast %68 : vector<4x1x16x128xf32> to vector<4x16x128xf32>
    %70 = arith.addf %53, %69 : vector<4x16x128xf32>
    %c0_35 = arith.constant 0 : index
    %c0_36 = arith.constant 0 : index
    %c1 = arith.constant 1 : index
    %c0_37 = arith.constant 0 : index
    %c0_38 = arith.constant 0 : index
    %71 = vector.load %arg8[%c0_35, %c0_36, %c1, %c0_37, %c0_38] : memref<1x4x2x16x128xf32, #tpu.memory_space<vmem>>, vector<1x4x1x16x128xf32>
    %72 = vector.shape_cast %71 : vector<1x4x1x16x128xf32> to vector<4x16x128xf32>
    %73 = vector.shape_cast %70 : vector<4x16x128xf32> to vector<1x4x1x16x128xf32>
    tpu.vector_store %arg8[%c0_35, %c0_36, %c1, %c0_37, %c0_38], %73 {strides = array<i32>} : memref<1x4x2x16x128xf32, #tpu.memory_space<vmem>>, vector<1x4x1x16x128xf32>,
    return
  }
  func.func @transform_0(%arg0: i32, %arg1: i32) -> (i32, i32, i32, i32) {
    %c0_i32 = arith.constant 0 : i32
    %c0_i32_0 = arith.constant 0 : i32
    %c0_i32_1 = arith.constant 0 : i32
    return %arg0, %arg1, %c0_i32, %c0_i32_0 : i32, i32, i32, i32
  }
  func.func @transform_1(%arg0: i32, %arg1: i32) -> (i32, i32, i32, i32) {
    %c4_i32 = arith.constant 4 : i32
    %0 = arith.muli %arg1, %c4_i32 : i32
    %c1_i32 = arith.constant 1 : i32
    %1 = arith.subi %0, %c1_i32 : i32
    %c0_i32 = arith.constant 0 : i32
    %2 = arith.maxsi %1, %c0_i32 : i32
    %c0_i32_0 = arith.constant 0 : i32
    %c0_i32_1 = arith.constant 0 : i32
    %c0_i32_2 = arith.constant 0 : i32
    return %arg0, %2, %c0_i32_0, %c0_i32_1 : i32, i32, i32, i32
  }
  func.func @transform_2(%arg0: i32, %arg1: i32) -> (i32, i32, i32, i32) {
    %c1_i32 = arith.constant 1 : i32
    %0 = arith.addi %arg1, %c1_i32 : i32
    %c4_i32 = arith.constant 4 : i32
    %1 = arith.muli %0, %c4_i32 : i32
    %c3_i32 = arith.constant 3 : i32
    %2 = arith.minsi %1, %c3_i32 : i32
    %c0_i32 = arith.constant 0 : i32
    %c0_i32_0 = arith.constant 0 : i32
    %c0_i32_1 = arith.constant 0 : i32
    return %arg0, %2, %c0_i32, %c0_i32_0 : i32, i32, i32, i32
  }
  func.func @transform_3(%arg0: i32, %arg1: i32) -> (i32, i32, i32) {
    %c0_i32 = arith.constant 0 : i32
    %c0_i32_0 = arith.constant 0 : i32
    return %arg0, %arg1, %c0_i32 : i32, i32, i32
  }
  func.func @transform_4(%arg0: i32, %arg1: i32) -> (i32, i32) {
    %c0_i32 = arith.constant 0 : i32
    %c0_i32_0 = arith.constant 0 : i32
    %c0_i32_1 = arith.constant 0 : i32
    return %c0_i32, %c0_i32_0 : i32, i32
  }
  func.func @transform_5(%arg0: i32, %arg1: i32) -> (i32, i32) {
    %c0_i32 = arith.constant 0 : i32
    %c0_i32_0 = arith.constant 0 : i32
    %c0_i32_1 = arith.constant 0 : i32
    return %c0_i32, %c0_i32_0 : i32, i32
  }
  func.func @transform_6(%arg0: i32, %arg1: i32) -> (i32, i32, i32, i32, i32) {
    %c0_i32 = arith.constant 0 : i32
    %c0_i32_0 = arith.constant 0 : i32
    %c0_i32_1 = arith.constant 0 : i32
    %c0_i32_2 = arith.constant 0 : i32
    return %arg0, %arg1, %c0_i32, %c0_i32_0, %c0_i32_1 : i32, i32, i32, i32, i32
  }
}

module attributes {stable_mosaic.version = 11 : i64} {
  func.func @_up2_lat_kernel(%arg0: i32, %arg1: i32, %arg2: memref<1x8x32x64xf32, #tpu.memory_space<vmem>>, %arg3: memref<1x1x32x64xf32, #tpu.memory_space<vmem>>, %arg4: memref<1x1x32x64xf32, #tpu.memory_space<vmem>>, %arg5: memref<1x512x128xbf16, #tpu.memory_space<vmem>>, %arg6: memref<128x128xbf16, #tpu.memory_space<vmem>>, %arg7: memref<1x128xf32, #tpu.memory_space<vmem>>, %arg8: memref<1x8x2x32x128xf32, #tpu.memory_space<vmem>>) attributes {dimension_semantics = [#tpu.dimension_semantics<parallel>, #tpu.dimension_semantics<parallel>], iteration_bounds = array<i64: 2, 1>, scalar_prefetch = 0 : i64, scratch_operands = 0 : i64, tpu.core_type = #tpu.core_type<tc>, window_params = [{transform_indices = @transform_0, window_bounds = array<i64: 1, 8, 32, 64>}, {transform_indices = @transform_1, window_bounds = array<i64: 1, 1, 32, 64>}, {transform_indices = @transform_2, window_bounds = array<i64: 1, 1, 32, 64>}, {transform_indices = @transform_3, window_bounds = array<i64: 1, 512, 128>}, {pipeline_mode = #tpu.pipeline_mode<synchronous>, transform_indices = @transform_4, window_bounds = array<i64: 128, 128>}, {pipeline_mode = #tpu.pipeline_mode<synchronous>, transform_indices = @transform_5, window_bounds = array<i64: 1, 128>}, {transform_indices = @transform_6, window_bounds = array<i64: 1, 8, 2, 32, 128>}]} {
    %c0 = arith.constant 0 : index
    %c0_0 = arith.constant 0 : index
    %c0_1 = arith.constant 0 : index
    %c0_2 = arith.constant 0 : index
    %0 = vector.load %arg2[%c0, %c0_0, %c0_1, %c0_2] : memref<1x8x32x64xf32, #tpu.memory_space<vmem>>, vector<1x8x32x64xf32>
    %1 = vector.shape_cast %0 : vector<1x8x32x64xf32> to vector<8x32x64xf32>
    %c0_3 = arith.constant 0 : index
    %c0_4 = arith.constant 0 : index
    %c0_5 = arith.constant 0 : index
    %c0_6 = arith.constant 0 : index
    %2 = vector.load %arg3[%c0_3, %c0_4, %c0_5, %c0_6] : memref<1x1x32x64xf32, #tpu.memory_space<vmem>>, vector<1x1x32x64xf32>
    %3 = vector.shape_cast %2 : vector<1x1x32x64xf32> to vector<1x32x64xf32>
    %c0_7 = arith.constant 0 : index
    %c0_8 = arith.constant 0 : index
    %c0_9 = arith.constant 0 : index
    %c0_10 = arith.constant 0 : index
    %4 = vector.load %arg4[%c0_7, %c0_8, %c0_9, %c0_10] : memref<1x1x32x64xf32, #tpu.memory_space<vmem>>, vector<1x1x32x64xf32>
    %5 = vector.shape_cast %4 : vector<1x1x32x64xf32> to vector<1x32x64xf32>
    %6 = tpu.concatenate %3, %1 in 0 : vector<1x32x64xf32>, vector<8x32x64xf32> -> vector<9x32x64xf32>
    %7 = vector.extract_strided_slice %6 {offsets = [0, 0, 0], sizes = [8, 32, 64], strides = [1, 1, 1]} : vector<9x32x64xf32> to vector<8x32x64xf32>
    %8 = tpu.concatenate %1, %5 in 0 : vector<8x32x64xf32>, vector<1x32x64xf32> -> vector<9x32x64xf32>
    %9 = vector.extract_strided_slice %8 {offsets = [1, 0, 0], sizes = [8, 32, 64], strides = [1, 1, 1]} : vector<9x32x64xf32> to vector<8x32x64xf32>
    %cst = arith.constant 7.500000e-01 : f32
    %10 = vector.broadcast %cst : f32 to vector<8x32x64xf32>
    %11 = arith.mulf %10, %1 : vector<8x32x64xf32>
    %cst_11 = arith.constant 2.500000e-01 : f32
    %12 = vector.broadcast %cst_11 : f32 to vector<8x32x64xf32>
    %13 = arith.mulf %12, %7 : vector<8x32x64xf32>
    %14 = arith.addf %11, %13 : vector<8x32x64xf32>
    %cst_12 = arith.constant 7.500000e-01 : f32
    %15 = vector.broadcast %cst_12 : f32 to vector<8x32x64xf32>
    %16 = arith.mulf %15, %1 : vector<8x32x64xf32>
    %cst_13 = arith.constant 2.500000e-01 : f32
    %17 = vector.broadcast %cst_13 : f32 to vector<8x32x64xf32>
    %18 = arith.mulf %17, %9 : vector<8x32x64xf32>
    %19 = arith.addf %16, %18 : vector<8x32x64xf32>
    %20 = vector.extract_strided_slice %14 {offsets = [0, 0, 0], sizes = [8, 1, 64], strides = [1, 1, 1]} : vector<8x32x64xf32> to vector<8x1x64xf32>
    %21 = tpu.concatenate %20, %14 in 1 : vector<8x1x64xf32>, vector<8x32x64xf32> -> vector<8x33x64xf32>
    %22 = vector.extract_strided_slice %21 {offsets = [0, 0, 0], sizes = [8, 32, 64], strides = [1, 1, 1]} : vector<8x33x64xf32> to vector<8x32x64xf32>
    %23 = vector.extract_strided_slice %14 {offsets = [0, 31, 0], sizes = [8, 1, 64], strides = [1, 1, 1]} : vector<8x32x64xf32> to vector<8x1x64xf32>
    %24 = tpu.concatenate %14, %23 in 1 : vector<8x32x64xf32>, vector<8x1x64xf32> -> vector<8x33x64xf32>
    %25 = vector.extract_strided_slice %24 {offsets = [0, 1, 0], sizes = [8, 32, 64], strides = [1, 1, 1]} : vector<8x33x64xf32> to vector<8x32x64xf32>
    %cst_14 = arith.constant 7.500000e-01 : f32
    %26 = vector.broadcast %cst_14 : f32 to vector<8x32x64xf32>
    %27 = arith.mulf %26, %14 : vector<8x32x64xf32>
    %cst_15 = arith.constant 2.500000e-01 : f32
    %28 = vector.broadcast %cst_15 : f32 to vector<8x32x64xf32>
    %29 = arith.mulf %28, %22 : vector<8x32x64xf32>
    %30 = arith.addf %27, %29 : vector<8x32x64xf32>
    %cst_16 = arith.constant 7.500000e-01 : f32
    %31 = vector.broadcast %cst_16 : f32 to vector<8x32x64xf32>
    %32 = arith.mulf %31, %14 : vector<8x32x64xf32>
    %cst_17 = arith.constant 2.500000e-01 : f32
    %33 = vector.broadcast %cst_17 : f32 to vector<8x32x64xf32>
    %34 = arith.mulf %33, %25 : vector<8x32x64xf32>
    %35 = arith.addf %32, %34 : vector<8x32x64xf32>
    %36 = tpu.concatenate %30, %35 in 2 : vector<8x32x64xf32>, vector<8x32x64xf32> -> vector<8x32x128xf32>
    %37 = vector.extract_strided_slice %19 {offsets = [0, 0, 0], sizes = [8, 1, 64], strides = [1, 1, 1]} : vector<8x32x64xf32> to vector<8x1x64xf32>
    %38 = tpu.concatenate %37, %19 in 1 : vector<8x1x64xf32>, vector<8x32x64xf32> -> vector<8x33x64xf32>
    %39 = vector.extract_strided_slice %38 {offsets = [0, 0, 0], sizes = [8, 32, 64], strides = [1, 1, 1]} : vector<8x33x64xf32> to vector<8x32x64xf32>
    %40 = vector.extract_strided_slice %19 {offsets = [0, 31, 0], sizes = [8, 1, 64], strides = [1, 1, 1]} : vector<8x32x64xf32> to vector<8x1x64xf32>
    %41 = tpu.concatenate %19, %40 in 1 : vector<8x32x64xf32>, vector<8x1x64xf32> -> vector<8x33x64xf32>
    %42 = vector.extract_strided_slice %41 {offsets = [0, 1, 0], sizes = [8, 32, 64], strides = [1, 1, 1]} : vector<8x33x64xf32> to vector<8x32x64xf32>
    %cst_18 = arith.constant 7.500000e-01 : f32
    %43 = vector.broadcast %cst_18 : f32 to vector<8x32x64xf32>
    %44 = arith.mulf %43, %19 : vector<8x32x64xf32>
    %cst_19 = arith.constant 2.500000e-01 : f32
    %45 = vector.broadcast %cst_19 : f32 to vector<8x32x64xf32>
    %46 = arith.mulf %45, %39 : vector<8x32x64xf32>
    %47 = arith.addf %44, %46 : vector<8x32x64xf32>
    %cst_20 = arith.constant 7.500000e-01 : f32
    %48 = vector.broadcast %cst_20 : f32 to vector<8x32x64xf32>
    %49 = arith.mulf %48, %19 : vector<8x32x64xf32>
    %cst_21 = arith.constant 2.500000e-01 : f32
    %50 = vector.broadcast %cst_21 : f32 to vector<8x32x64xf32>
    %51 = arith.mulf %50, %42 : vector<8x32x64xf32>
    %52 = arith.addf %49, %51 : vector<8x32x64xf32>
    %53 = tpu.concatenate %47, %52 in 2 : vector<8x32x64xf32>, vector<8x32x64xf32> -> vector<8x32x128xf32>
    %c0_22 = arith.constant 0 : index
    %c0_23 = arith.constant 0 : index
    %c0_24 = arith.constant 0 : index
    %54 = vector.load %arg5[%c0_22, %c0_23, %c0_24] : memref<1x512x128xbf16, #tpu.memory_space<vmem>>, vector<1x512x128xbf16>
    %55 = vector.shape_cast %54 : vector<1x512x128xbf16> to vector<512x128xbf16>
    %c0_25 = arith.constant 0 : index
    %c0_26 = arith.constant 0 : index
    %56 = vector.load %arg6[%c0_25, %c0_26] : memref<128x128xbf16, #tpu.memory_space<vmem>>, vector<128x128xbf16>
    %cst_27 = arith.constant dense<0.000000e+00> : vector<512x128xf32>
    %57 = tpu.matmul %55, %56, %cst_27 {dimension_numbers = #tpu.dot_dimension_numbers<[1], [0], [0], [1], [0, 0, 1, 1], [], []>} : vector<512x128xbf16>, vector<128x128xbf16>, vector<512x128xf32> -> vector<512x128xf32>
    %c0_28 = arith.constant 0 : index
    %c0_29 = arith.constant 0 : index
    %58 = vector.load %arg7[%c0_28, %c0_29] : memref<1x128xf32, #tpu.memory_space<vmem>>, vector<1x128xf32>
    %59 = vector.broadcast %58 : vector<1x128xf32> to vector<512x128xf32>
    %60 = arith.addf %57, %59 : vector<512x128xf32>
    %61 = vector.shape_cast %60 : vector<512x128xf32> to vector<8x2x32x128xf32>
    %62 = vector.extract_strided_slice %61 {offsets = [0, 0, 0, 0], sizes = [8, 1, 32, 128], strides = [1, 1, 1, 1]} : vector<8x2x32x128xf32> to vector<8x1x32x128xf32>
    %63 = vector.shape_cast %62 : vector<8x1x32x128xf32> to vector<8x32x128xf32>
    %64 = arith.addf %36, %63 : vector<8x32x128xf32>
    %c0_30 = arith.constant 0 : index
    %c0_31 = arith.constant 0 : index
    %c0_32 = arith.constant 0 : index
    %c0_33 = arith.constant 0 : index
    %c0_34 = arith.constant 0 : index
    %65 = vector.load %arg8[%c0_30, %c0_31, %c0_32, %c0_33, %c0_34] : memref<1x8x2x32x128xf32, #tpu.memory_space<vmem>>, vector<1x8x1x32x128xf32>
    %66 = vector.shape_cast %65 : vector<1x8x1x32x128xf32> to vector<8x32x128xf32>
    %67 = vector.shape_cast %64 : vector<8x32x128xf32> to vector<1x8x1x32x128xf32>
    tpu.vector_store %arg8[%c0_30, %c0_31, %c0_32, %c0_33, %c0_34], %67 {strides = array<i32>} : memref<1x8x2x32x128xf32, #tpu.memory_space<vmem>>, vector<1x8x1x32x128xf32>,
    %68 = vector.extract_strided_slice %61 {offsets = [0, 1, 0, 0], sizes = [8, 1, 32, 128], strides = [1, 1, 1, 1]} : vector<8x2x32x128xf32> to vector<8x1x32x128xf32>
    %69 = vector.shape_cast %68 : vector<8x1x32x128xf32> to vector<8x32x128xf32>
    %70 = arith.addf %53, %69 : vector<8x32x128xf32>
    %c0_35 = arith.constant 0 : index
    %c0_36 = arith.constant 0 : index
    %c1 = arith.constant 1 : index
    %c0_37 = arith.constant 0 : index
    %c0_38 = arith.constant 0 : index
    %71 = vector.load %arg8[%c0_35, %c0_36, %c1, %c0_37, %c0_38] : memref<1x8x2x32x128xf32, #tpu.memory_space<vmem>>, vector<1x8x1x32x128xf32>
    %72 = vector.shape_cast %71 : vector<1x8x1x32x128xf32> to vector<8x32x128xf32>
    %73 = vector.shape_cast %70 : vector<8x32x128xf32> to vector<1x8x1x32x128xf32>
    tpu.vector_store %arg8[%c0_35, %c0_36, %c1, %c0_37, %c0_38], %73 {strides = array<i32>} : memref<1x8x2x32x128xf32, #tpu.memory_space<vmem>>, vector<1x8x1x32x128xf32>,
    return
  }
  func.func @transform_0(%arg0: i32, %arg1: i32) -> (i32, i32, i32, i32) {
    %c0_i32 = arith.constant 0 : i32
    %c0_i32_0 = arith.constant 0 : i32
    %c0_i32_1 = arith.constant 0 : i32
    return %arg0, %arg1, %c0_i32, %c0_i32_0 : i32, i32, i32, i32
  }
  func.func @transform_1(%arg0: i32, %arg1: i32) -> (i32, i32, i32, i32) {
    %c8_i32 = arith.constant 8 : i32
    %0 = arith.muli %arg1, %c8_i32 : i32
    %c1_i32 = arith.constant 1 : i32
    %1 = arith.subi %0, %c1_i32 : i32
    %c0_i32 = arith.constant 0 : i32
    %2 = arith.maxsi %1, %c0_i32 : i32
    %c0_i32_0 = arith.constant 0 : i32
    %c0_i32_1 = arith.constant 0 : i32
    %c0_i32_2 = arith.constant 0 : i32
    return %arg0, %2, %c0_i32_0, %c0_i32_1 : i32, i32, i32, i32
  }
  func.func @transform_2(%arg0: i32, %arg1: i32) -> (i32, i32, i32, i32) {
    %c1_i32 = arith.constant 1 : i32
    %0 = arith.addi %arg1, %c1_i32 : i32
    %c8_i32 = arith.constant 8 : i32
    %1 = arith.muli %0, %c8_i32 : i32
    %c7_i32 = arith.constant 7 : i32
    %2 = arith.minsi %1, %c7_i32 : i32
    %c0_i32 = arith.constant 0 : i32
    %c0_i32_0 = arith.constant 0 : i32
    %c0_i32_1 = arith.constant 0 : i32
    return %arg0, %2, %c0_i32, %c0_i32_0 : i32, i32, i32, i32
  }
  func.func @transform_3(%arg0: i32, %arg1: i32) -> (i32, i32, i32) {
    %c0_i32 = arith.constant 0 : i32
    %c0_i32_0 = arith.constant 0 : i32
    return %arg0, %arg1, %c0_i32 : i32, i32, i32
  }
  func.func @transform_4(%arg0: i32, %arg1: i32) -> (i32, i32) {
    %c0_i32 = arith.constant 0 : i32
    %c0_i32_0 = arith.constant 0 : i32
    %c0_i32_1 = arith.constant 0 : i32
    return %c0_i32, %c0_i32_0 : i32, i32
  }
  func.func @transform_5(%arg0: i32, %arg1: i32) -> (i32, i32) {
    %c0_i32 = arith.constant 0 : i32
    %c0_i32_0 = arith.constant 0 : i32
    %c0_i32_1 = arith.constant 0 : i32
    return %c0_i32, %c0_i32_0 : i32, i32
  }
  func.func @transform_6(%arg0: i32, %arg1: i32) -> (i32, i32, i32, i32, i32) {
    %c0_i32 = arith.constant 0 : i32
    %c0_i32_0 = arith.constant 0 : i32
    %c0_i32_1 = arith.constant 0 : i32
    %c0_i32_2 = arith.constant 0 : i32
    return %arg0, %arg1, %c0_i32, %c0_i32_0, %c0_i32_1 : i32, i32, i32, i32, i32
  }
}

module attributes {stable_mosaic.version = 11 : i64} {
  func.func @_up2_kernel(%arg0: i32, %arg1: i32, %arg2: memref<1x16x64x64xf32, #tpu.memory_space<vmem>>, %arg3: memref<1x1x64x64xf32, #tpu.memory_space<vmem>>, %arg4: memref<1x1x64x64xf32, #tpu.memory_space<vmem>>, %arg5: memref<1x16x2x64x128xf32, #tpu.memory_space<vmem>>) attributes {dimension_semantics = [#tpu.dimension_semantics<parallel>, #tpu.dimension_semantics<parallel>], iteration_bounds = array<i64: 2, 1>, scalar_prefetch = 0 : i64, scratch_operands = 0 : i64, tpu.core_type = #tpu.core_type<tc>, window_params = [{transform_indices = @transform_0, window_bounds = array<i64: 1, 16, 64, 64>}, {transform_indices = @transform_1, window_bounds = array<i64: 1, 1, 64, 64>}, {transform_indices = @transform_2, window_bounds = array<i64: 1, 1, 64, 64>}, {transform_indices = @transform_3, window_bounds = array<i64: 1, 16, 2, 64, 128>}]} {
    %c0 = arith.constant 0 : index
    %c0_0 = arith.constant 0 : index
    %c0_1 = arith.constant 0 : index
    %c0_2 = arith.constant 0 : index
    %0 = vector.load %arg2[%c0, %c0_0, %c0_1, %c0_2] : memref<1x16x64x64xf32, #tpu.memory_space<vmem>>, vector<1x16x64x64xf32>
    %1 = vector.shape_cast %0 : vector<1x16x64x64xf32> to vector<16x64x64xf32>
    %c0_3 = arith.constant 0 : index
    %c0_4 = arith.constant 0 : index
    %c0_5 = arith.constant 0 : index
    %c0_6 = arith.constant 0 : index
    %2 = vector.load %arg3[%c0_3, %c0_4, %c0_5, %c0_6] : memref<1x1x64x64xf32, #tpu.memory_space<vmem>>, vector<1x1x64x64xf32>
    %3 = vector.shape_cast %2 : vector<1x1x64x64xf32> to vector<1x64x64xf32>
    %c0_7 = arith.constant 0 : index
    %c0_8 = arith.constant 0 : index
    %c0_9 = arith.constant 0 : index
    %c0_10 = arith.constant 0 : index
    %4 = vector.load %arg4[%c0_7, %c0_8, %c0_9, %c0_10] : memref<1x1x64x64xf32, #tpu.memory_space<vmem>>, vector<1x1x64x64xf32>
    %5 = vector.shape_cast %4 : vector<1x1x64x64xf32> to vector<1x64x64xf32>
    %6 = tpu.concatenate %3, %1 in 0 : vector<1x64x64xf32>, vector<16x64x64xf32> -> vector<17x64x64xf32>
    %7 = vector.extract_strided_slice %6 {offsets = [0, 0, 0], sizes = [16, 64, 64], strides = [1, 1, 1]} : vector<17x64x64xf32> to vector<16x64x64xf32>
    %8 = tpu.concatenate %1, %5 in 0 : vector<16x64x64xf32>, vector<1x64x64xf32> -> vector<17x64x64xf32>
    %9 = vector.extract_strided_slice %8 {offsets = [1, 0, 0], sizes = [16, 64, 64], strides = [1, 1, 1]} : vector<17x64x64xf32> to vector<16x64x64xf32>
    %cst = arith.constant 7.500000e-01 : f32
    %10 = vector.broadcast %cst : f32 to vector<16x64x64xf32>
    %11 = arith.mulf %10, %1 : vector<16x64x64xf32>
    %cst_11 = arith.constant 2.500000e-01 : f32
    %12 = vector.broadcast %cst_11 : f32 to vector<16x64x64xf32>
    %13 = arith.mulf %12, %7 : vector<16x64x64xf32>
    %14 = arith.addf %11, %13 : vector<16x64x64xf32>
    %cst_12 = arith.constant 7.500000e-01 : f32
    %15 = vector.broadcast %cst_12 : f32 to vector<16x64x64xf32>
    %16 = arith.mulf %15, %1 : vector<16x64x64xf32>
    %cst_13 = arith.constant 2.500000e-01 : f32
    %17 = vector.broadcast %cst_13 : f32 to vector<16x64x64xf32>
    %18 = arith.mulf %17, %9 : vector<16x64x64xf32>
    %19 = arith.addf %16, %18 : vector<16x64x64xf32>
    %20 = vector.extract_strided_slice %14 {offsets = [0, 0, 0], sizes = [16, 1, 64], strides = [1, 1, 1]} : vector<16x64x64xf32> to vector<16x1x64xf32>
    %21 = tpu.concatenate %20, %14 in 1 : vector<16x1x64xf32>, vector<16x64x64xf32> -> vector<16x65x64xf32>
    %22 = vector.extract_strided_slice %21 {offsets = [0, 0, 0], sizes = [16, 64, 64], strides = [1, 1, 1]} : vector<16x65x64xf32> to vector<16x64x64xf32>
    %23 = vector.extract_strided_slice %14 {offsets = [0, 63, 0], sizes = [16, 1, 64], strides = [1, 1, 1]} : vector<16x64x64xf32> to vector<16x1x64xf32>
    %24 = tpu.concatenate %14, %23 in 1 : vector<16x64x64xf32>, vector<16x1x64xf32> -> vector<16x65x64xf32>
    %25 = vector.extract_strided_slice %24 {offsets = [0, 1, 0], sizes = [16, 64, 64], strides = [1, 1, 1]} : vector<16x65x64xf32> to vector<16x64x64xf32>
    %cst_14 = arith.constant 7.500000e-01 : f32
    %26 = vector.broadcast %cst_14 : f32 to vector<16x64x64xf32>
    %27 = arith.mulf %26, %14 : vector<16x64x64xf32>
    %cst_15 = arith.constant 2.500000e-01 : f32
    %28 = vector.broadcast %cst_15 : f32 to vector<16x64x64xf32>
    %29 = arith.mulf %28, %22 : vector<16x64x64xf32>
    %30 = arith.addf %27, %29 : vector<16x64x64xf32>
    %cst_16 = arith.constant 7.500000e-01 : f32
    %31 = vector.broadcast %cst_16 : f32 to vector<16x64x64xf32>
    %32 = arith.mulf %31, %14 : vector<16x64x64xf32>
    %cst_17 = arith.constant 2.500000e-01 : f32
    %33 = vector.broadcast %cst_17 : f32 to vector<16x64x64xf32>
    %34 = arith.mulf %33, %25 : vector<16x64x64xf32>
    %35 = arith.addf %32, %34 : vector<16x64x64xf32>
    %36 = tpu.concatenate %30, %35 in 2 : vector<16x64x64xf32>, vector<16x64x64xf32> -> vector<16x64x128xf32>
    %37 = vector.extract_strided_slice %19 {offsets = [0, 0, 0], sizes = [16, 1, 64], strides = [1, 1, 1]} : vector<16x64x64xf32> to vector<16x1x64xf32>
    %38 = tpu.concatenate %37, %19 in 1 : vector<16x1x64xf32>, vector<16x64x64xf32> -> vector<16x65x64xf32>
    %39 = vector.extract_strided_slice %38 {offsets = [0, 0, 0], sizes = [16, 64, 64], strides = [1, 1, 1]} : vector<16x65x64xf32> to vector<16x64x64xf32>
    %40 = vector.extract_strided_slice %19 {offsets = [0, 63, 0], sizes = [16, 1, 64], strides = [1, 1, 1]} : vector<16x64x64xf32> to vector<16x1x64xf32>
    %41 = tpu.concatenate %19, %40 in 1 : vector<16x64x64xf32>, vector<16x1x64xf32> -> vector<16x65x64xf32>
    %42 = vector.extract_strided_slice %41 {offsets = [0, 1, 0], sizes = [16, 64, 64], strides = [1, 1, 1]} : vector<16x65x64xf32> to vector<16x64x64xf32>
    %cst_18 = arith.constant 7.500000e-01 : f32
    %43 = vector.broadcast %cst_18 : f32 to vector<16x64x64xf32>
    %44 = arith.mulf %43, %19 : vector<16x64x64xf32>
    %cst_19 = arith.constant 2.500000e-01 : f32
    %45 = vector.broadcast %cst_19 : f32 to vector<16x64x64xf32>
    %46 = arith.mulf %45, %39 : vector<16x64x64xf32>
    %47 = arith.addf %44, %46 : vector<16x64x64xf32>
    %cst_20 = arith.constant 7.500000e-01 : f32
    %48 = vector.broadcast %cst_20 : f32 to vector<16x64x64xf32>
    %49 = arith.mulf %48, %19 : vector<16x64x64xf32>
    %cst_21 = arith.constant 2.500000e-01 : f32
    %50 = vector.broadcast %cst_21 : f32 to vector<16x64x64xf32>
    %51 = arith.mulf %50, %42 : vector<16x64x64xf32>
    %52 = arith.addf %49, %51 : vector<16x64x64xf32>
    %53 = tpu.concatenate %47, %52 in 2 : vector<16x64x64xf32>, vector<16x64x64xf32> -> vector<16x64x128xf32>
    %c0_22 = arith.constant 0 : index
    %c0_23 = arith.constant 0 : index
    %c0_24 = arith.constant 0 : index
    %c0_25 = arith.constant 0 : index
    %c0_26 = arith.constant 0 : index
    %54 = vector.load %arg5[%c0_22, %c0_23, %c0_24, %c0_25, %c0_26] : memref<1x16x2x64x128xf32, #tpu.memory_space<vmem>>, vector<1x16x1x64x128xf32>
    %55 = vector.shape_cast %54 : vector<1x16x1x64x128xf32> to vector<16x64x128xf32>
    %56 = vector.shape_cast %36 : vector<16x64x128xf32> to vector<1x16x1x64x128xf32>
    tpu.vector_store %arg5[%c0_22, %c0_23, %c0_24, %c0_25, %c0_26], %56 {strides = array<i32>} : memref<1x16x2x64x128xf32, #tpu.memory_space<vmem>>, vector<1x16x1x64x128xf32>,
    %c0_27 = arith.constant 0 : index
    %c0_28 = arith.constant 0 : index
    %c1 = arith.constant 1 : index
    %c0_29 = arith.constant 0 : index
    %c0_30 = arith.constant 0 : index
    %57 = vector.load %arg5[%c0_27, %c0_28, %c1, %c0_29, %c0_30] : memref<1x16x2x64x128xf32, #tpu.memory_space<vmem>>, vector<1x16x1x64x128xf32>
    %58 = vector.shape_cast %57 : vector<1x16x1x64x128xf32> to vector<16x64x128xf32>
    %59 = vector.shape_cast %53 : vector<16x64x128xf32> to vector<1x16x1x64x128xf32>
    tpu.vector_store %arg5[%c0_27, %c0_28, %c1, %c0_29, %c0_30], %59 {strides = array<i32>} : memref<1x16x2x64x128xf32, #tpu.memory_space<vmem>>, vector<1x16x1x64x128xf32>,
    return
  }
  func.func @transform_0(%arg0: i32, %arg1: i32) -> (i32, i32, i32, i32) {
    %c0_i32 = arith.constant 0 : i32
    %c0_i32_0 = arith.constant 0 : i32
    %c0_i32_1 = arith.constant 0 : i32
    return %arg0, %arg1, %c0_i32, %c0_i32_0 : i32, i32, i32, i32
  }
  func.func @transform_1(%arg0: i32, %arg1: i32) -> (i32, i32, i32, i32) {
    %c16_i32 = arith.constant 16 : i32
    %0 = arith.muli %arg1, %c16_i32 : i32
    %c1_i32 = arith.constant 1 : i32
    %1 = arith.subi %0, %c1_i32 : i32
    %c0_i32 = arith.constant 0 : i32
    %2 = arith.maxsi %1, %c0_i32 : i32
    %c0_i32_0 = arith.constant 0 : i32
    %c0_i32_1 = arith.constant 0 : i32
    %c0_i32_2 = arith.constant 0 : i32
    return %arg0, %2, %c0_i32_0, %c0_i32_1 : i32, i32, i32, i32
  }
  func.func @transform_2(%arg0: i32, %arg1: i32) -> (i32, i32, i32, i32) {
    %c1_i32 = arith.constant 1 : i32
    %0 = arith.addi %arg1, %c1_i32 : i32
    %c16_i32 = arith.constant 16 : i32
    %1 = arith.muli %0, %c16_i32 : i32
    %c15_i32 = arith.constant 15 : i32
    %2 = arith.minsi %1, %c15_i32 : i32
    %c0_i32 = arith.constant 0 : i32
    %c0_i32_0 = arith.constant 0 : i32
    %c0_i32_1 = arith.constant 0 : i32
    return %arg0, %2, %c0_i32, %c0_i32_0 : i32, i32, i32, i32
  }
  func.func @transform_3(%arg0: i32, %arg1: i32) -> (i32, i32, i32, i32, i32) {
    %c0_i32 = arith.constant 0 : i32
    %c0_i32_0 = arith.constant 0 : i32
    %c0_i32_1 = arith.constant 0 : i32
    %c0_i32_2 = arith.constant 0 : i32
    return %arg0, %arg1, %c0_i32, %c0_i32_0, %c0_i32_1 : i32, i32, i32, i32, i32
  }
}

</mosaic_0001>

<llo_original>
// kernel: _lambda_.5
$region0: #{_lambda_.5}
  #allocation0 [shape = 'u32[]', space=smem, size = 0x4, offset = 0x4, fixed_abs, tag = 'smem constant byte address 0x4 - core index']
  #allocation1 [shape = 'u32[72,128]{1,0:T(1,128)}', space=vmem, size = 0x9000, scoped, tag = 'internal scratch']
  %s0 = inlined_call_operand.vmem [shape: bf16[16,1024], index: 0, kind: input, shape index: {}]
  %s1 = inlined_call_operand.hbm [shape: bf16[1024,128], index: 1, kind: input, shape index: {}]
  %s2 = inlined_call_operand.hbm [shape: f32[1,128], index: 2, kind: input, shape index: {}]
  %s3 = inlined_call_operand.vmem [shape: f32[16,128], index: 3, kind: output, shape index: {}]
  %s4 = sld [smem:[#allocation0]]
  $region30: #{_lambda_.5} parent=0
    _
  %s6 = ssub.s32 1, %s4
  %s7 = scalar_select 0, %s6, %s4
  $region1: #{_lambda_.5} parent=0
    #allocation2 [shape = 'u8[262144]{0}', space=vmem, size = 0x40000, scoped, tag = 'input window, operand 1, single buffered']
    #allocation3 [shape = 's32[1]{0}', space=sflag, size = 0x4, scoped, tag = 'scoped memory for _lambda_.5']
    #allocation4 [shape = 'u8[512]{0}', space=vmem, size = 0x400, scoped, tag = 'input window, operand 2, single buffered']
    #allocation5 [shape = 's32[1]{0}', space=sflag, size = 0x4, scoped, tag = 'scoped memory for _lambda_.5']
    %8 = vsyncpa [#allocation3], 0
    %9 = vsyncpa [#allocation5], 0
    // Predicated region
    $region2: #{_lambda_.5} parent=1 // pred_check
      _
    $region3: #{_lambda_.5} parent=1 // pred_check_branch
      %11 = sbr.rel (0) target = $region5
    $region4: #{_lambda_.5} parent=1 // pred_region
      _
    $region5: #{_lambda_.5} parent=1 // pred_fallthru
      _
    // Predicated region
    $region6: #{_lambda_.5} parent=1 // pred_check
      _
    $region7: #{_lambda_.5} parent=1 // pred_check_branch
      %13 = sbr.rel (0) target = $region9
    $region8: #{_lambda_.5} parent=1 // pred_region
      %15 = vsyncadd [#allocation3], 0
      %s16 = sshll.u32 %s1, 4
      %s17 = int_to_ptr.hbm [resolvable:$true] %s16
      %s18 = sshll.u32 [#allocation2], 4
      %s19 = int_to_ptr.vmem [resolvable:$true] %s18
      %24 = dma.hbm_to_vmem [thread:$0]  %s17, 8192, %s19, [#allocation3], 64, 64, 4
    $region9: #{_lambda_.5} parent=1 // pred_fallthru
      _
    // Predicated region
    $region10: #{_lambda_.5} parent=1 // pred_check
      _
    $region11: #{_lambda_.5} parent=1 // pred_check_branch
      %26 = sbr.rel (0) target = $region13
    $region12: #{_lambda_.5} parent=1 // pred_region
      %28 = vsyncadd [#allocation5], 0
      %s30 = sshll.u32 %s2, 4
      %s31 = int_to_ptr.hbm [resolvable:$true] %s30
      %s32 = sshll.u32 [#allocation4], 4
      %s33 = int_to_ptr.vmem [resolvable:$true] %s32
      %35 = dma.hbm_to_vmem [thread:$0]  %s31, 16, %s33, [#allocation5]
    $region13: #{_lambda_.5} parent=1 // pred_fallthru
      _
    // Predicated region
    $region14: #{_lambda_.5} parent=1 // pred_check
      _
    $region15: #{_lambda_.5} parent=1 // pred_check_branch
      %37 = sbr.rel (0) target = $region17
    $region16: #{_lambda_.5} parent=1 // pred_region
      %39 = dma.done [#allocation3], 8192
    $region17: #{_lambda_.5} parent=1 // pred_fallthru
      _
    // Predicated region
    $region18: #{_lambda_.5} parent=1 // pred_check
      _
    $region19: #{_lambda_.5} parent=1 // pred_check_branch
      %41 = sbr.rel (0) target = $region21
    $region20: #{_lambda_.5} parent=1 // pred_region
      %43 = dma.done [#allocation5], 16
    $region21: #{_lambda_.5} parent=1 // pred_fallthru
      _
    %v44 = vld [vmem:[%s0] sm:$0xff]
    %v45 = vld [vmem:[%s0 + $0x8] sm:$0xff]
    %v46 = vld [vmem:[%s0 + $0x10] sm:$0xff]
    %v47 = vld [vmem:[%s0 + $0x18] sm:$0xff]
    %v48 = vld [vmem:[%s0 + $0x20] sm:$0xff]
    %v49 = vld [vmem:[%s0 + $0x28] sm:$0xff]
    %v50 = vld [vmem:[%s0 + $0x30] sm:$0xff]
    %v51 = vld [vmem:[%s0 + $0x38] sm:$0xff]
    %v52 = vld [vmem:[#allocation2] sm:$0xf]
    %v53 = vld [vmem:[#allocation2 + $0x4] sm:$0xf]
    %v54 = vld [vmem:[#allocation2 + $0x8] sm:$0xf]
    %v55 = vld [vmem:[#allocation2 + $0xc] sm:$0xf]
    %v56 = vld [vmem:[#allocation2 + $0x10] sm:$0xf]
    %v57 = vld [vmem:[#allocation2 + $0x14] sm:$0xf]
    %v58 = vld [vmem:[#allocation2 + $0x18] sm:$0xf]
    %v59 = vld [vmem:[#allocation2 + $0x1c] sm:$0xf]
    %v60 = vld [vmem:[#allocation2 + $0x20] sm:$0xf]
    %v61 = vld [vmem:[#allocation2 + $0x24] sm:$0xf]
    %v62 = vld [vmem:[#allocation2 + $0x28] sm:$0xf]
    %v63 = vld [vmem:[#allocation2 + $0x2c] sm:$0xf]
    %v64 = vld [vmem:[#allocation2 + $0x30] sm:$0xf]
    %v65 = vld [vmem:[#allocation2 + $0x34] sm:$0xf]
    %v66 = vld [vmem:[#allocation2 + $0x38] sm:$0xf]
    %v67 = vld [vmem:[#allocation2 + $0x3c] sm:$0xf]
    %v68 = vld [vmem:[#allocation2 + $0x40] sm:$0xf]
    %v69 = vld [vmem:[#allocation2 + $0x44] sm:$0xf]
    %v70 = vld [vmem:[#allocation2 + $0x48] sm:$0xf]
    %v71 = vld [vmem:[#allocation2 + $0x4c] sm:$0xf]
    %v72 = vld [vmem:[#allocation2 + $0x50] sm:$0xf]
    %v73 = vld [vmem:[#allocation2 + $0x54] sm:$0xf]
    %v74 = vld [vmem:[#allocation2 + $0x58] sm:$0xf]
    %v75 = vld [vmem:[#allocation2 + $0x5c] sm:$0xf]
    %v76 = vld [vmem:[#allocation2 + $0x60] sm:$0xf]
    %v77 = vld [vmem:[#allocation2 + $0x64] sm:$0xf]
    %v78 = vld [vmem:[#allocation2 + $0x68] sm:$0xf]
    %v79 = vld [vmem:[#allocation2 + $0x6c] sm:$0xf]
    %v80 = vld [vmem:[#allocation2 + $0x70] sm:$0xf]
    %v81 = vld [vmem:[#allocation2 + $0x74] sm:$0xf]
    %v82 = vld [vmem:[#allocation2 + $0x78] sm:$0xf]
    %v83 = vld [vmem:[#allocation2 + $0x7c] sm:$0xf]
    %v84 = vld [vmem:[#allocation2 + $0x80] sm:$0xf]
    %v85 = vld [vmem:[#allocation2 + $0x84] sm:$0xf]
    %v86 = vld [vmem:[#allocation2 + $0x88] sm:$0xf]
    %v87 = vld [vmem:[#allocation2 + $0x8c] sm:$0xf]
    %v88 = vld [vmem:[#allocation2 + $0x90] sm:$0xf]
    %v89 = vld [vmem:[#allocation2 + $0x94] sm:$0xf]
    %v90 = vld [vmem:[#allocation2 + $0x98] sm:$0xf]
    %v91 = vld [vmem:[#allocation2 + $0x9c] sm:$0xf]
    %v92 = vld [vmem:[#allocation2 + $0xa0] sm:$0xf]
    %v93 = vld [vmem:[#allocation2 + $0xa4] sm:$0xf]
    %v94 = vld [vmem:[#allocation2 + $0xa8] sm:$0xf]
    %v95 = vld [vmem:[#allocation2 + $0xac] sm:$0xf]
    %v96 = vld [vmem:[#allocation2 + $0xb0] sm:$0xf]
    %v97 = vld [vmem:[#allocation2 + $0xb4] sm:$0xf]
    %v98 = vld [vmem:[#allocation2 + $0xb8] sm:$0xf]
    %v99 = vld [vmem:[#allocation2 + $0xbc] sm:$0xf]
    %v100 = vld [vmem:[#allocation2 + $0xc0] sm:$0xf]
    %v101 = vld [vmem:[#allocation2 + $0xc4] sm:$0xf]
    %v102 = vld [vmem:[#allocation2 + $0xc8] sm:$0xf]
    %v103 = vld [vmem:[#allocation2 + $0xcc] sm:$0xf]
    %v104 = vld [vmem:[#allocation2 + $0xd0] sm:$0xf]
    %v105 = vld [vmem:[#allocation2 + $0xd4] sm:$0xf]
    %v106 = vld [vmem:[#allocation2 + $0xd8] sm:$0xf]
    %v107 = vld [vmem:[#allocation2 + $0xdc] sm:$0xf]
    %v108 = vld [vmem:[#allocation2 + $0xe0] sm:$0xf]
    %v109 = vld [vmem:[#allocation2 + $0xe4] sm:$0xf]
    %v110 = vld [vmem:[#allocation2 + $0xe8] sm:$0xf]
    %v111 = vld [vmem:[#allocation2 + $0xec] sm:$0xf]
    %v112 = vld [vmem:[#allocation2 + $0xf0] sm:$0xf]
    %v113 = vld [vmem:[#allocation2 + $0xf4] sm:$0xf]
    %v114 = vld [vmem:[#allocation2 + $0xf8] sm:$0xf]
    %v115 = vld [vmem:[#allocation2 + $0xfc] sm:$0xf]
    %v116 = vld [vmem:[#allocation2 + $0x100] sm:$0xf]
    %v117 = vld [vmem:[#allocation2 + $0x104] sm:$0xf]
    %v118 = vld [vmem:[#allocation2 + $0x108] sm:$0xf]
    %v119 = vld [vmem:[#allocation2 + $0x10c] sm:$0xf]
    %v120 = vld [vmem:[#allocation2 + $0x110] sm:$0xf]
    %v121 = vld [vmem:[#allocation2 + $0x114] sm:$0xf]
    %v122 = vld [vmem:[#allocation2 + $0x118] sm:$0xf]
    %v123 = vld [vmem:[#allocation2 + $0x11c] sm:$0xf]
    %v124 = vld [vmem:[#allocation2 + $0x120] sm:$0xf]
    %v125 = vld [vmem:[#allocation2 + $0x124] sm:$0xf]
    %v126 = vld [vmem:[#allocation2 + $0x128] sm:$0xf]
    %v127 = vld [vmem:[#allocation2 + $0x12c] sm:$0xf]
    %v128 = vld [vmem:[#allocation2 + $0x130] sm:$0xf]
    %v129 = vld [vmem:[#allocation2 + $0x134] sm:$0xf]
    %v130 = vld [vmem:[#allocation2 + $0x138] sm:$0xf]
    %v131 = vld [vmem:[#allocation2 + $0x13c] sm:$0xf]
    %v132 = vld [vmem:[#allocation2 + $0x140] sm:$0xf]
    %v133 = vld [vmem:[#allocation2 + $0x144] sm:$0xf]
    %v134 = vld [vmem:[#allocation2 + $0x148] sm:$0xf]
    %v135 = vld [vmem:[#allocation2 + $0x14c] sm:$0xf]
    %v136 = vld [vmem:[#allocation2 + $0x150] sm:$0xf]
    %v137 = vld [vmem:[#allocation2 + $0x154] sm:$0xf]
    %v138 = vld [vmem:[#allocation2 + $0x158] sm:$0xf]
    %v139 = vld [vmem:[#allocation2 + $0x15c] sm:$0xf]
    %v140 = vld [vmem:[#allocation2 + $0x160] sm:$0xf]
    %v141 = vld [vmem:[#allocation2 + $0x164] sm:$0xf]
    %v142 = vld [vmem:[#allocation2 + $0x168] sm:$0xf]
    %v143 = vld [vmem:[#allocation2 + $0x16c] sm:$0xf]
    %v144 = vld [vmem:[#allocation2 + $0x170] sm:$0xf]
    %v145 = vld [vmem:[#allocation2 + $0x174] sm:$0xf]
    %v146 = vld [vmem:[#allocation2 + $0x178] sm:$0xf]
    %v147 = vld [vmem:[#allocation2 + $0x17c] sm:$0xf]
    %v148 = vld [vmem:[#allocation2 + $0x180] sm:$0xf]
    %v149 = vld [vmem:[#allocation2 + $0x184] sm:$0xf]
    %v150 = vld [vmem:[#allocation2 + $0x188] sm:$0xf]
    %v151 = vld [vmem:[#allocation2 + $0x18c] sm:$0xf]
    %v152 = vld [vmem:[#allocation2 + $0x190] sm:$0xf]
    %v153 = vld [vmem:[#allocation2 + $0x194] sm:$0xf]
    %v154 = vld [vmem:[#allocation2 + $0x198] sm:$0xf]
    %v155 = vld [vmem:[#allocation2 + $0x19c] sm:$0xf]
    %v156 = vld [vmem:[#allocation2 + $0x1a0] sm:$0xf]
    %v157 = vld [vmem:[#allocation2 + $0x1a4] sm:$0xf]
    %v158 = vld [vmem:[#allocation2 + $0x1a8] sm:$0xf]
    %v159 = vld [vmem:[#allocation2 + $0x1ac] sm:$0xf]
    %v160 = vld [vmem:[#allocation2 + $0x1b0] sm:$0xf]
    %v161 = vld [vmem:[#allocation2 + $0x1b4] sm:$0xf]
    %v162 = vld [vmem:[#allocation2 + $0x1b8] sm:$0xf]
    %v163 = vld [vmem:[#allocation2 + $0x1bc] sm:$0xf]
    %v164 = vld [vmem:[#allocation2 + $0x1c0] sm:$0xf]
    %v165 = vld [vmem:[#allocation2 + $0x1c4] sm:$0xf]
    %v166 = vld [vmem:[#allocation2 + $0x1c8] sm:$0xf]
    %v167 = vld [vmem:[#allocation2 + $0x1cc] sm:$0xf]
    %v168 = vld [vmem:[#allocation2 + $0x1d0] sm:$0xf]
    %v169 = vld [vmem:[#allocation2 + $0x1d4] sm:$0xf]
    %v170 = vld [vmem:[#allocation2 + $0x1d8] sm:$0xf]
    %v171 = vld [vmem:[#allocation2 + $0x1dc] sm:$0xf]
    %v172 = vld [vmem:[#allocation2 + $0x1e0] sm:$0xf]
    %v173 = vld [vmem:[#allocation2 + $0x1e4] sm:$0xf]
    %v174 = vld [vmem:[#allocation2 + $0x1e8] sm:$0xf]
    %v175 = vld [vmem:[#allocation2 + $0x1ec] sm:$0xf]
    %v176 = vld [vmem:[#allocation2 + $0x1f0] sm:$0xf]
    %v177 = vld [vmem:[#allocation2 + $0x1f4] sm:$0xf]
    %v178 = vld [vmem:[#allocation2 + $0x1f8] sm:$0xf]
    %v179 = vld [vmem:[#allocation2 + $0x1fc] sm:$0xf]
    %v180 = vld [vmem:[#allocation4] sm:$0x1]
    %v182 = vperm.slane %v180, 0
    %v192 = vunpack.c.l.b16 %v44
    %v193 = vunpack.c.h.b16 %v44
    %v194 = vunpack.c.l.b16 %v45
    %v195 = vunpack.c.h.b16 %v45
    %v196 = vunpack.c.l.b16 %v46
    %v197 = vunpack.c.h.b16 %v46
    %v198 = vunpack.c.l.b16 %v47
    %v199 = vunpack.c.h.b16 %v47
    %v200 = vunpack.c.l.b16 %v48
    %v201 = vunpack.c.h.b16 %v48
    %v202 = vunpack.c.l.b16 %v49
    %v203 = vunpack.c.h.b16 %v49
    %v204 = vunpack.c.l.b16 %v50
    %v205 = vunpack.c.h.b16 %v50
    %v206 = vunpack.c.l.b16 %v51
    %v207 = vunpack.c.h.b16 %v51
    %v208 = vpack.c.b16 %v200, %v192
    %v209 = vpack.c.b16 %v201, %v193
    %v210 = vpack.c.b16 %v202, %v194
    %v211 = vpack.c.b16 %v203, %v195
    %v212 = vpack.c.b16 %v204, %v196
    %v213 = vpack.c.b16 %v205, %v197
    %v214 = vpack.c.b16 %v206, %v198
    %v215 = vpack.c.b16 %v207, %v199
    %v352 = vunpack.c.l.b16 %v52
    %v353 = vunpack.c.l.b16 %v53
    %v354 = vunpack.c.l.b16 %v54
    %v355 = vunpack.c.l.b16 %v55
    %v356 = vunpack.c.l.b16 %v56
    %v357 = vunpack.c.l.b16 %v57
    %v358 = vunpack.c.l.b16 %v58
    %v359 = vunpack.c.l.b16 %v59
    %v360 = vunpack.c.l.b16 %v60
    %v361 = vunpack.c.l.b16 %v61
    %v362 = vunpack.c.l.b16 %v62
    %v363 = vunpack.c.l.b16 %v63
    %v364 = vunpack.c.l.b16 %v64
    %v365 = vunpack.c.l.b16 %v65
    %v366 = vunpack.c.l.b16 %v66
    %v367 = vunpack.c.l.b16 %v67
    %v368 = vunpack.c.l.b16 %v68
    %v369 = vunpack.c.l.b16 %v69
    %v370 = vunpack.c.l.b16 %v70
    %v371 = vunpack.c.l.b16 %v71
    %v372 = vunpack.c.l.b16 %v72
    %v373 = vunpack.c.l.b16 %v73
    %v374 = vunpack.c.l.b16 %v74
    %v375 = vunpack.c.l.b16 %v75
    %v376 = vunpack.c.l.b16 %v76
    %v377 = vunpack.c.l.b16 %v77
    %v378 = vunpack.c.l.b16 %v78
    %v379 = vunpack.c.l.b16 %v79
    %v380 = vunpack.c.l.b16 %v80
    %v381 = vunpack.c.l.b16 %v81
    %v382 = vunpack.c.l.b16 %v82
    %v383 = vunpack.c.l.b16 %v83
    %v384 = vunpack.c.l.b16 %v84
    %v385 = vunpack.c.l.b16 %v85
    %v386 = vunpack.c.l.b16 %v86
    %v387 = vunpack.c.l.b16 %v87
    %v388 = vunpack.c.l.b16 %v88
    %v389 = vunpack.c.l.b16 %v89
    %v390 = vunpack.c.l.b16 %v90
    %v391 = vunpack.c.l.b16 %v91
    %v392 = vunpack.c.l.b16 %v92
    %v393 = vunpack.c.l.b16 %v93
    %v394 = vunpack.c.l.b16 %v94
    %v395 = vunpack.c.l.b16 %v95
    %v396 = vunpack.c.l.b16 %v96
    %v397 = vunpack.c.l.b16 %v97
    %v398 = vunpack.c.l.b16 %v98
    %v399 = vunpack.c.l.b16 %v99
    %v400 = vunpack.c.l.b16 %v100
    %v401 = vunpack.c.l.b16 %v101
    %v402 = vunpack.c.l.b16 %v102
    %v403 = vunpack.c.l.b16 %v103
    %v404 = vunpack.c.l.b16 %v104
    %v405 = vunpack.c.l.b16 %v105
    %v406 = vunpack.c.l.b16 %v106
    %v407 = vunpack.c.l.b16 %v107
    %v408 = vunpack.c.l.b16 %v108
    %v409 = vunpack.c.l.b16 %v109
    %v410 = vunpack.c.l.b16 %v110
    %v411 = vunpack.c.l.b16 %v111
    %v412 = vunpack.c.l.b16 %v112
    %v413 = vunpack.c.l.b16 %v113
    %v414 = vunpack.c.l.b16 %v114
    %v415 = vunpack.c.l.b16 %v115
    %v416 = vunpack.c.l.b16 %v116
    %v417 = vunpack.c.l.b16 %v117
    %v418 = vunpack.c.l.b16 %v118
    %v419 = vunpack.c.l.b16 %v119
    %v420 = vunpack.c.l.b16 %v120
    %v421 = vunpack.c.l.b16 %v121
    %v422 = vunpack.c.l.b16 %v122
    %v423 = vunpack.c.l.b16 %v123
    %v424 = vunpack.c.l.b16 %v124
    %v425 = vunpack.c.l.b16 %v125
    %v426 = vunpack.c.l.b16 %v126
    %v427 = vunpack.c.l.b16 %v127
    %v428 = vunpack.c.l.b16 %v128
    %v429 = vunpack.c.l.b16 %v129
    %v430 = vunpack.c.l.b16 %v130
    %v431 = vunpack.c.l.b16 %v131
    %v432 = vunpack.c.l.b16 %v132
    %v433 = vunpack.c.l.b16 %v133
    %v434 = vunpack.c.l.b16 %v134
    %v435 = vunpack.c.l.b16 %v135
    %v436 = vunpack.c.l.b16 %v136
    %v437 = vunpack.c.l.b16 %v137
    %v438 = vunpack.c.l.b16 %v138
    %v439 = vunpack.c.l.b16 %v139
    %v440 = vunpack.c.l.b16 %v140
    %v441 = vunpack.c.l.b16 %v141
    %v442 = vunpack.c.l.b16 %v142
    %v443 = vunpack.c.l.b16 %v143
    %v444 = vunpack.c.l.b16 %v144
    %v445 = vunpack.c.l.b16 %v145
    %v446 = vunpack.c.l.b16 %v146
    %v447 = vunpack.c.l.b16 %v147
    %v448 = vunpack.c.l.b16 %v148
    %v449 = vunpack.c.l.b16 %v149
    %v450 = vunpack.c.l.b16 %v150
    %v451 = vunpack.c.l.b16 %v151
    %v452 = vunpack.c.l.b16 %v152
    %v453 = vunpack.c.l.b16 %v153
    %v454 = vunpack.c.l.b16 %v154
    %v455 = vunpack.c.l.b16 %v155
    %v456 = vunpack.c.l.b16 %v156
    %v457 = vunpack.c.l.b16 %v157
    %v458 = vunpack.c.l.b16 %v158
    %v459 = vunpack.c.l.b16 %v159
    %v460 = vunpack.c.l.b16 %v160
    %v461 = vunpack.c.l.b16 %v161
    %v462 = vunpack.c.l.b16 %v162
    %v463 = vunpack.c.l.b16 %v163
    %v464 = vunpack.c.l.b16 %v164
    %v465 = vunpack.c.l.b16 %v165
    %v466 = vunpack.c.l.b16 %v166
    %v467 = vunpack.c.l.b16 %v167
    %v468 = vunpack.c.l.b16 %v168
    %v469 = vunpack.c.l.b16 %v169
    %v470 = vunpack.c.l.b16 %v170
    %v471 = vunpack.c.l.b16 %v171
    %v472 = vunpack.c.l.b16 %v172
    %v473 = vunpack.c.l.b16 %v173
    %v474 = vunpack.c.l.b16 %v174
    %v475 = vunpack.c.l.b16 %v175
    %v476 = vunpack.c.l.b16 %v176
    %v477 = vunpack.c.l.b16 %v177
    %v478 = vunpack.c.l.b16 %v178
    %v479 = vunpack.c.l.b16 %v179
    %v480 = vpack.c.b16 %v353, %v352
    %v481 = vpack.c.b16 %v355, %v354
    %v482 = vpack.c.b16 %v357, %v356
    %v483 = vpack.c.b16 %v359, %v358
    %v484 = vpack.c.b16 %v361, %v360
    %v485 = vpack.c.b16 %v363, %v362
    %v486 = vpack.c.b16 %v365, %v364
    %v487 = vpack.c.b16 %v367, %v366
    %v488 = vpack.c.b16 %v369, %v368
    %v489 = vpack.c.b16 %v371, %v370
    %v490 = vpack.c.b16 %v373, %v372
    %v491 = vpack.c.b16 %v375, %v374
    %v492 = vpack.c.b16 %v377, %v376
    %v493 = vpack.c.b16 %v379, %v378
    %v494 = vpack.c.b16 %v381, %v380
    %v495 = vpack.c.b16 %v383, %v382
    %v496 = vpack.c.b16 %v385, %v384
    %v497 = vpack.c.b16 %v387, %v386
    %v498 = vpack.c.b16 %v389, %v388
    %v499 = vpack.c.b16 %v391, %v390
    %v500 = vpack.c.b16 %v393, %v392
    %v501 = vpack.c.b16 %v395, %v394
    %v502 = vpack.c.b16 %v397, %v396
    %v503 = vpack.c.b16 %v399, %v398
    %v504 = vpack.c.b16 %v401, %v400
    %v505 = vpack.c.b16 %v403, %v402
    %v506 = vpack.c.b16 %v405, %v404
    %v507 = vpack.c.b16 %v407, %v406
    %v508 = vpack.c.b16 %v409, %v408
    %v509 = vpack.c.b16 %v411, %v410
    %v510 = vpack.c.b16 %v413, %v412
    %v511 = vpack.c.b16 %v415, %v414
    %v512 = vpack.c.b16 %v417, %v416
    %v513 = vpack.c.b16 %v419, %v418
    %v514 = vpack.c.b16 %v421, %v420
    %v515 = vpack.c.b16 %v423, %v422
    %v516 = vpack.c.b16 %v425, %v424
    %v517 = vpack.c.b16 %v427, %v426
    %v518 = vpack.c.b16 %v429, %v428
    %v519 = vpack.c.b16 %v431, %v430
    %v520 = vpack.c.b16 %v433, %v432
    %v521 = vpack.c.b16 %v435, %v434
    %v522 = vpack.c.b16 %v437, %v436
    %v523 = vpack.c.b16 %v439, %v438
    %v524 = vpack.c.b16 %v441, %v440
    %v525 = vpack.c.b16 %v443, %v442
    %v526 = vpack.c.b16 %v445, %v444
    %v527 = vpack.c.b16 %v447, %v446
    %v528 = vpack.c.b16 %v449, %v448
    %v529 = vpack.c.b16 %v451, %v450
    %v530 = vpack.c.b16 %v453, %v452
    %v531 = vpack.c.b16 %v455, %v454
    %v532 = vpack.c.b16 %v457, %v456
    %v533 = vpack.c.b16 %v459, %v458
    %v534 = vpack.c.b16 %v461, %v460
    %v535 = vpack.c.b16 %v463, %v462
    %v536 = vpack.c.b16 %v465, %v464
    %v537 = vpack.c.b16 %v467, %v466
    %v538 = vpack.c.b16 %v469, %v468
    %v539 = vpack.c.b16 %v471, %v470
    %v540 = vpack.c.b16 %v473, %v472
    %v541 = vpack.c.b16 %v475, %v474
    %v542 = vpack.c.b16 %v477, %v476
    %v543 = vpack.c.b16 %v479, %v478
    %608 = vmatpush.bf16.msra.mxu0 %v487
    %609 = vmatpush.bf16.msra.mxu0 %v486
    %610 = vmatpush.bf16.msra.mxu0 %v485
    %611 = vmatpush.bf16.msra.mxu0 %v484
    %612 = vmatpush.bf16.msra.mxu0 %v483
    %613 = vmatpush.bf16.msra.mxu0 %v482
    %614 = vmatpush.bf16.msra.mxu0 %v481
    %615 = vmatpush.bf16.msra.mxu0 %v480
    %616 = vmatmul.bf16.gmra.mxu0 %v208
    %v617 = vpop.f32.mrf.mxu0
    %v618 = vadd.f32 %v182, %v617
    %v619 = vpop.f32.mrf.mxu0
    %v620 = vadd.f32 %v182, %v619
    %621 = vdwg.mxu0
    %622 = vmatpush.bf16.msra.mxu0 %v495
    %623 = vmatpush.bf16.msra.mxu0 %v494
    %624 = vmatpush.bf16.msra.mxu0 %v493
    %625 = vmatpush.bf16.msra.mxu0 %v492
    %626 = vmatpush.bf16.msra.mxu0 %v491
    %627 = vmatpush.bf16.msra.mxu0 %v490
    %628 = vmatpush.bf16.msra.mxu0 %v489
    %629 = vmatpush.bf16.msra.mxu0 %v488
    %630 = vmatmul.bf16.gmra.mxu0 %v209
    %v631 = vpop.f32.mrf.mxu0
    %v632 = vadd.f32 %v618, %v631
    %v633 = vpop.f32.mrf.mxu0
    %v634 = vadd.f32 %v620, %v633
    %635 = vdwg.mxu0
    %636 = vmatpush.bf16.msra.mxu0 %v503
    %637 = vmatpush.bf16.msra.mxu0 %v502
    %638 = vmatpush.bf16.msra.mxu0 %v501
    %639 = vmatpush.bf16.msra.mxu0 %v500
    %640 = vmatpush.bf16.msra.mxu0 %v499
    %641 = vmatpush.bf16.msra.mxu0 %v498
    %642 = vmatpush.bf16.msra.mxu0 %v497
    %643 = vmatpush.bf16.msra.mxu0 %v496
    %644 = vmatmul.bf16.gmra.mxu0 %v210
    %v645 = vpop.f32.mrf.mxu0
    %v646 = vadd.f32 %v632, %v645
    %v647 = vpop.f32.mrf.mxu0
    %v648 = vadd.f32 %v634, %v647
    %649 = vdwg.mxu0
    %650 = vmatpush.bf16.msra.mxu0 %v511
    %651 = vmatpush.bf16.msra.mxu0 %v510
    %652 = vmatpush.bf16.msra.mxu0 %v509
    %653 = vmatpush.bf16.msra.mxu0 %v508
    %654 = vmatpush.bf16.msra.mxu0 %v507
    %655 = vmatpush.bf16.msra.mxu0 %v506
    %656 = vmatpush.bf16.msra.mxu0 %v505
    %657 = vmatpush.bf16.msra.mxu0 %v504
    %658 = vmatmul.bf16.gmra.mxu0 %v211
    %v659 = vpop.f32.mrf.mxu0
    %v660 = vadd.f32 %v646, %v659
    %v661 = vpop.f32.mrf.mxu0
    %v662 = vadd.f32 %v648, %v661
    %663 = vdwg.mxu0
    %664 = vmatpush.bf16.msra.mxu0 %v519
    %665 = vmatpush.bf16.msra.mxu0 %v518
    %666 = vmatpush.bf16.msra.mxu0 %v517
    %667 = vmatpush.bf16.msra.mxu0 %v516
    %668 = vmatpush.bf16.msra.mxu0 %v515
    %669 = vmatpush.bf16.msra.mxu0 %v514
    %670 = vmatpush.bf16.msra.mxu0 %v513
    %671 = vmatpush.bf16.msra.mxu0 %v512
    %672 = vmatmul.bf16.gmra.mxu0 %v212
    %v673 = vpop.f32.mrf.mxu0
    %v674 = vadd.f32 %v660, %v673
    %v675 = vpop.f32.mrf.mxu0
    %v676 = vadd.f32 %v662, %v675
    %677 = vdwg.mxu0
    %678 = vmatpush.bf16.msra.mxu0 %v527
    %679 = vmatpush.bf16.msra.mxu0 %v526
    %680 = vmatpush.bf16.msra.mxu0 %v525
    %681 = vmatpush.bf16.msra.mxu0 %v524
    %682 = vmatpush.bf16.msra.mxu0 %v523
    %683 = vmatpush.bf16.msra.mxu0 %v522
    %684 = vmatpush.bf16.msra.mxu0 %v521
    %685 = vmatpush.bf16.msra.mxu0 %v520
    %686 = vmatmul.bf16.gmra.mxu0 %v213
    %v687 = vpop.f32.mrf.mxu0
    %v688 = vadd.f32 %v674, %v687
    %v689 = vpop.f32.mrf.mxu0
    %v690 = vadd.f32 %v676, %v689
    %691 = vdwg.mxu0
    %692 = vmatpush.bf16.msra.mxu0 %v535
    %693 = vmatpush.bf16.msra.mxu0 %v534
    %694 = vmatpush.bf16.msra.mxu0 %v533
    %695 = vmatpush.bf16.msra.mxu0 %v532
    %696 = vmatpush.bf16.msra.mxu0 %v531
    %697 = vmatpush.bf16.msra.mxu0 %v530
    %698 = vmatpush.bf16.msra.mxu0 %v529
    %699 = vmatpush.bf16.msra.mxu0 %v528
    %700 = vmatmul.bf16.gmra.mxu0 %v214
    %v701 = vpop.f32.mrf.mxu0
    %v702 = vadd.f32 %v688, %v701
    %v703 = vpop.f32.mrf.mxu0
    %v704 = vadd.f32 %v690, %v703
    %705 = vdwg.mxu0
    %706 = vmatpush.bf16.msra.mxu0 %v543
    %707 = vmatpush.bf16.msra.mxu0 %v542
    %708 = vmatpush.bf16.msra.mxu0 %v541
    %709 = vmatpush.bf16.msra.mxu0 %v540
    %710 = vmatpush.bf16.msra.mxu0 %v539
    %711 = vmatpush.bf16.msra.mxu0 %v538
    %712 = vmatpush.bf16.msra.mxu0 %v537
    %713 = vmatpush.bf16.msra.mxu0 %v536
    %714 = vmatmul.bf16.gmra.mxu0 %v215
    %v715 = vpop.f32.mrf.mxu0
    %v716 = vadd.f32 %v702, %v715
    %v717 = vpop.f32.mrf.mxu0
    %v718 = vadd.f32 %v704, %v717
    %719 = vdwg.mxu0
    %720 = vst [vmem:[%s3] sm:$0xff] %v716
    %721 = vst [vmem:[%s3 + $0x8] sm:$0xff] %v718
    // Predicated region
    $region22: #{_lambda_.5} parent=1 // pred_check
      _
    $region23: #{_lambda_.5} parent=1 // pred_check_branch
      %723 = sbr.rel (0) target = $region25
    $region24: #{_lambda_.5} parent=1 // pred_region
      _
    $region25: #{_lambda_.5} parent=1 // pred_fallthru
      _
    // Predicated region
    $region26: #{_lambda_.5} parent=1 // pred_check
      _
    $region27: #{_lambda_.5} parent=1 // pred_check_branch
      %725 = sbr.rel (0) target = $region29
    $region28: #{_lambda_.5} parent=1 // pred_region
      _
    $region29: #{_lambda_.5} parent=1 // pred_fallthru
      _
    %726 = vsyncpa [#allocation3], 1
    %727 = vsyncpa [#allocation5], 1

// kernel: _lambda_.6
$region0: #{_lambda_.6}
  #allocation0 [shape = 'u32[]', space=smem, size = 0x4, offset = 0x4, fixed_abs, tag = 'smem constant byte address 0x4 - core index']
  #allocation1 [shape = 'u32[72,128]{1,0:T(1,128)}', space=vmem, size = 0x9000, scoped, tag = 'internal scratch']
  %s0 = inlined_call_operand.vmem [shape: f32[2,2,8,64], index: 0, kind: input, shape index: {}, may-alias: {0,1,2}]
  %s1 = inlined_call_operand.vmem [shape: f32[2,2,8,64], index: 1, kind: input, shape index: {}, may-alias: {0,1,2}]
  %s2 = inlined_call_operand.vmem [shape: f32[2,2,8,64], index: 2, kind: input, shape index: {}, may-alias: {0,1,2}]
  %s3 = inlined_call_operand.vmem [shape: bf16[2,32,512], index: 3, kind: input, shape index: {}]
  %s4 = inlined_call_operand.hbm [shape: bf16[512,128], index: 4, kind: input, shape index: {}]
  %s5 = inlined_call_operand.hbm [shape: f32[1,128], index: 5, kind: input, shape index: {}]
  %s6 = inlined_call_operand.vmem [shape: f32[2,2,2,8,128], index: 6, kind: output, shape index: {}]
  %s7 = sld [smem:[#allocation0]]
  $region65: #{_lambda_.6} parent=0
    _
  %s9 = ssub.s32 1, %s7
  %s10 = scalar_select 0, %s9, %s7
  $region1: #{_lambda_.6} parent=0
    #allocation2 [shape = 'u8[131072]{0}', space=vmem, size = 0x20000, scoped, tag = 'input window, operand 4, single buffered']
    #allocation3 [shape = 's32[2]{0}', space=sflag, size = 0x8, scoped, tag = 'scoped memory for _lambda_.6']
    #allocation4 [shape = 'u8[512]{0}', space=vmem, size = 0x400, scoped, tag = 'input window, operand 5, single buffered']
    #allocation5 [shape = 's32[1]{0}', space=sflag, size = 0x4, scoped, tag = 'scoped memory for _lambda_.6']
    %11 = vsyncpa [#allocation3], 0
    %12 = vsyncpa [#allocation5], 0
    loop: start=0, step=1, limit=4
    $region2: #{_lambda_.6} parent=1 // loop_pre_header
      _
    $region3: #{_lambda_.6} parent=1 // loop_header
      %s14 = sphi 0, %s18
      %p15 = scmp.ge.s32.totalorder %s14, 4
      %s21 = sphi 0, %s33
      %s22 = sphi 0, %s29
      %s23 = sphi 0, %s21
      %s24 = sphi 0, %s22
      %s25 = sphi 0, %s23
      %s26 = sphi 0, %s24
      %s38 = sphi 0, %s40
      %s41 = sphi 0, %s38
      %s42 = sphi 0, %s41
      %s58 = sphi 0, %s42
      %s74 = sphi 0, %s76
      %s77 = sphi 0, %s74
      %s78 = sphi 0, %s77
      %s94 = sphi 0, %s78
      %s110 = sphi 0, %s112
      %s113 = sphi 0, %s110
      %s114 = sphi 0, %s113
      %s130 = sphi 0, %s114
      %s138 = sphi 0, %s140
      %s141 = sphi 0, %s138
      %s142 = sphi 0, %s141
      %s158 = sphi 0, %s142
      %s162 = sphi 0, %s162
      %s164 = sphi 0, %s162
      %s165 = sphi 0, %s164
      %s179 = sphi 0, %s165
      %s183 = sphi 0, %s183
      %s185 = sphi 0, %s183
      %s186 = sphi 0, %s185
      %s200 = sphi 0, %s186
      %s208 = sphi 0, %s210
      %s211 = sphi 0, %s208
      %s212 = sphi 0, %s211
      %s228 = sphi 0, %s212
    $region4: #{_lambda_.6} parent=1 // loop_header_branch
      %17 = sbr.rel (%p15) target = $region8
    $region5: #{_lambda_.6} parent=1 // loop_body
      %s19 = ssub.s32 %s14, 1
      %s20 = ssub.s32 %s14, 2
      %s27 = sadd.s32 1, %s22
      %p28 = scmp.ge.s32.totalorder %s27, 1
      %s29 = scalar_select %p28, 0, %s27
      %s30 = sadd.s32 1, %s21
      %s31 = scalar_select %p28, %s30, %s21
      %p32 = scmp.ge.s32.totalorder %s31, 2
      %s33 = scalar_select %p32, 0, %s31
      %s34 = ssub.s32 %s21, %s33
      %s35 = ssub.s32 %s22, %s29
      %s36 = sor.u32 %s34, %s35
      %p37 = scmp.eq.s32.totalorder %s36, 0
      %s39 = sadd.s32 %s38, 1
      %s40 = scalar_select %p37, %s38, %s39
      %p43 = pneg %p37
      %p44 = scmp.eq.s32.totalorder %s14, 1
      %p45 = por %p43, %p44
      %p46 = scmp.ne.s32.totalorder %s38, %s41
      %p47 = scmp.eq.s32.totalorder %s14, 0
      %p48 = por %p46, %p47
      %p49 = scmp.ne.s32.totalorder %s38, %s41
      %p50 = scmp.eq.s32.totalorder %s19, 1
      %p51 = por %p49, %p50
      %p52 = scmp.ne.s32.totalorder %s41, %s42
      %p53 = scmp.eq.s32.totalorder %s19, 0
      %p54 = por %p52, %p53
      %p55 = scmp.ne.s32.totalorder %s41, %s42
      %p56 = scmp.eq.s32.totalorder %s20, 1
      %p57 = por %p55, %p56
      %p59 = scmp.ne.s32.totalorder %s42, %s58
      %p60 = scmp.eq.s32.totalorder %s20, 0
      %p61 = por %p59, %p60
      %s62 = smul.u32 %s22, 2
      %s63 = ssub.s32 %s62, 1
      %p64 = scmp.gt.s32.totalorder %s63, 0
      %s65 = scalar_select %p64, %s63, 0
      %s66 = smul.u32 %s29, 2
      %s67 = ssub.s32 %s66, 1
      %p68 = scmp.gt.s32.totalorder %s67, 0
      %s69 = scalar_select %p68, %s67, 0
      %s70 = ssub.s32 %s21, %s33
      %s71 = ssub.s32 %s65, %s69
      %s72 = sor.u32 %s70, %s71
      %p73 = scmp.eq.s32.totalorder %s72, 0
      %s75 = sadd.s32 %s74, 1
      %s76 = scalar_select %p73, %s74, %s75
      %p79 = pneg %p73
      %p80 = scmp.eq.s32.totalorder %s14, 1
      %p81 = por %p79, %p80
      %p82 = scmp.ne.s32.totalorder %s74, %s77
      %p83 = scmp.eq.s32.totalorder %s14, 0
      %p84 = por %p82, %p83
      %p85 = scmp.ne.s32.totalorder %s74, %s77
      %p86 = scmp.eq.s32.totalorder %s19, 1
      %p87 = por %p85, %p86
      %p88 = scmp.ne.s32.totalorder %s77, %s78
      %p89 = scmp.eq.s32.totalorder %s19, 0
      %p90 = por %p88, %p89
      %p91 = scmp.ne.s32.totalorder %s77, %s78
      %p92 = scmp.eq.s32.totalorder %s20, 1
      %p93 = por %p91, %p92
      %p95 = scmp.ne.s32.totalorder %s78, %s94
      %p96 = scmp.eq.s32.totalorder %s20, 0
      %p97 = por %p95, %p96
      %s98 = sadd.s32 %s22, 1
      %s99 = smul.u32 %s98, 2
      %p100 = scmp.lt.s32.totalorder %s99, 1
      %s101 = scalar_select %p100, %s99, 1
      %s102 = sadd.s32 %s29, 1
      %s103 = smul.u32 %s102, 2
      %p104 = scmp.lt.s32.totalorder %s103, 1
      %s105 = scalar_select %p104, %s103, 1
      %s106 = ssub.s32 %s21, %s33
      %s107 = ssub.s32 %s101, %s105
      %s108 = sor.u32 %s106, %s107
      %p109 = scmp.eq.s32.totalorder %s108, 0
      %s111 = sadd.s32 %s110, 1
      %s112 = scalar_select %p109, %s110, %s111
      %p115 = pneg %p109
      %p116 = scmp.eq.s32.totalorder %s14, 1
      %p117 = por %p115, %p116
      %p118 = scmp.ne.s32.totalorder %s110, %s113
      %p119 = scmp.eq.s32.totalorder %s14, 0
      %p120 = por %p118, %p119
      %p121 = scmp.ne.s32.totalorder %s110, %s113
      %p122 = scmp.eq.s32.totalorder %s19, 1
      %p123 = por %p121, %p122
      %p124 = scmp.ne.s32.totalorder %s113, %s114
      %p125 = scmp.eq.s32.totalorder %s19, 0
      %p126 = por %p124, %p125
      %p127 = scmp.ne.s32.totalorder %s113, %s114
      %p128 = scmp.eq.s32.totalorder %s20, 1
      %p129 = por %p127, %p128
      %p131 = scmp.ne.s32.totalorder %s114, %s130
      %p132 = scmp.eq.s32.totalorder %s20, 0
      %p133 = por %p131, %p132
      %s134 = ssub.s32 %s21, %s33
      %s135 = ssub.s32 %s22, %s29
      %s136 = sor.u32 %s134, %s135
      %p137 = scmp.eq.s32.totalorder %s136, 0
      %s139 = sadd.s32 %s138, 1
      %s140 = scalar_select %p137, %s138, %s139
      %p143 = pneg %p137
      %p144 = scmp.eq.s32.totalorder %s14, 1
      %p145 = por %p143, %p144
      %p146 = scmp.ne.s32.totalorder %s138, %s141
      %p147 = scmp.eq.s32.totalorder %s14, 0
      %p148 = por %p146, %p147
      %p149 = scmp.ne.s32.totalorder %s138, %s141
      %p150 = scmp.eq.s32.totalorder %s19, 1
      %p151 = por %p149, %p150
      %p152 = scmp.ne.s32.totalorder %s141, %s142
      %p153 = scmp.eq.s32.totalorder %s19, 0
      %p154 = por %p152, %p153
      %p155 = scmp.ne.s32.totalorder %s141, %s142
      %p156 = scmp.eq.s32.totalorder %s20, 1
      %p157 = por %p155, %p156
      %p159 = scmp.ne.s32.totalorder %s142, %s158
      %p160 = scmp.eq.s32.totalorder %s20, 0
      %p161 = por %p159, %p160
      %s163 = sadd.s32 %s162, 1
      %p166 = scmp.eq.s32.totalorder %s14, 1
      %p167 = scmp.ne.s32.totalorder %s162, %s164
      %p168 = scmp.eq.s32.totalorder %s14, 0
      %p169 = por %p167, %p168
      %p170 = scmp.ne.s32.totalorder %s162, %s164
      %p171 = scmp.eq.s32.totalorder %s19, 1
      %p172 = por %p170, %p171
      %p173 = scmp.ne.s32.totalorder %s164, %s165
      %p174 = scmp.eq.s32.totalorder %s19, 0
      %p175 = por %p173, %p174
      %p176 = scmp.ne.s32.totalorder %s164, %s165
      %p177 = scmp.eq.s32.totalorder %s20, 1
      %p178 = por %p176, %p177
      %p180 = scmp.ne.s32.totalorder %s165, %s179
      %p181 = scmp.eq.s32.totalorder %s20, 0
      %p182 = por %p180, %p181
      %s184 = sadd.s32 %s183, 1
      %p187 = scmp.eq.s32.totalorder %s14, 1
      %p188 = scmp.ne.s32.totalorder %s183, %s185
      %p189 = scmp.eq.s32.totalorder %s14, 0
      %p190 = por %p188, %p189
      %p191 = scmp.ne.s32.totalorder %s183, %s185
      %p192 = scmp.eq.s32.totalorder %s19, 1
      %p193 = por %p191, %p192
      %p194 = scmp.ne.s32.totalorder %s185, %s186
      %p195 = scmp.eq.s32.totalorder %s19, 0
      %p196 = por %p194, %p195
      %p197 = scmp.ne.s32.totalorder %s185, %s186
      %p198 = scmp.eq.s32.totalorder %s20, 1
      %p199 = por %p197, %p198
      %p201 = scmp.ne.s32.totalorder %s186, %s200
      %p202 = scmp.eq.s32.totalorder %s20, 0
      %p203 = por %p201, %p202
      %s204 = ssub.s32 %s21, %s33
      %s205 = ssub.s32 %s22, %s29
      %s206 = sor.u32 %s204, %s205
      %p207 = scmp.eq.s32.totalorder %s206, 0
      %s209 = sadd.s32 %s208, 1
      %s210 = scalar_select %p207, %s208, %s209
      %p213 = pneg %p207
      %p214 = scmp.eq.s32.totalorder %s14, 1
      %p215 = por %p213, %p214
      %p216 = scmp.ne.s32.totalorder %s208, %s211
      %p217 = scmp.eq.s32.totalorder %s14, 0
      %p218 = por %p216, %p217
      %p219 = scmp.ne.s32.totalorder %s208, %s211
      %p220 = scmp.eq.s32.totalorder %s19, 1
      %p221 = por %p219, %p220
      %p222 = scmp.ne.s32.totalorder %s211, %s212
      %p223 = scmp.eq.s32.totalorder %s19, 0
      %p224 = por %p222, %p223
      %p225 = scmp.ne.s32.totalorder %s211, %s212
      %p226 = scmp.eq.s32.totalorder %s20, 1
      %p227 = por %p225, %p226
      %p229 = scmp.ne.s32.totalorder %s212, %s228
      %p230 = scmp.eq.s32.totalorder %s20, 0
      %p231 = por %p229, %p230
      %p232 = scmp.le.s32.totalorder 1, %s14
      %p233 = scmp.lt.s32.totalorder %s14, 3
      %p234 = pnand %p232, %p233
      %p235 = pneg %p234
      // Predicated region
      $region9: #{_lambda_.6} parent=5 // pred_check
        _
      $region10: #{_lambda_.6} parent=5 // pred_check_branch
        %237 = sbr.rel (%p234) target = $region12
      $region11: #{_lambda_.6} parent=5 // pred_region
        %s238 = ssub.s32 %s14, 1
        // Predicated region
        $region13: #{_lambda_.6} parent=11 // pred_check
          %p239 = pneg %p175
        $region14: #{_lambda_.6} parent=11 // pred_check_branch
          %241 = sbr.rel (%p239) target = $region16
        $region15: #{_lambda_.6} parent=11 // pred_region
          %243 = vsyncadd [#allocation3], 0
          %s244 = sshll.u32 %s4, 4
          %s245 = int_to_ptr.hbm [resolvable:$true] %s244
          %s246 = sshll.u32 [#allocation2], 4
          %s247 = int_to_ptr.vmem [resolvable:$true] %s246
          %252 = dma.hbm_to_vmem [thread:$0]  %s245, 4096, %s247, [#allocation3], 64, 64, 4
        $region16: #{_lambda_.6} parent=11 // pred_fallthru
          _
        // Predicated region
        $region17: #{_lambda_.6} parent=11 // pred_check
          %p253 = pneg %p196
        $region18: #{_lambda_.6} parent=11 // pred_check_branch
          %255 = sbr.rel (%p253) target = $region20
        $region19: #{_lambda_.6} parent=11 // pred_region
          %257 = vsyncadd [#allocation5], 0
          %s259 = sshll.u32 %s5, 4
          %s260 = int_to_ptr.hbm [resolvable:$true] %s259
          %s261 = sshll.u32 [#allocation4], 4
          %s262 = int_to_ptr.vmem [resolvable:$true] %s261
          %264 = dma.hbm_to_vmem [thread:$0]  %s260, 16, %s262, [#allocation5]
        $region20: #{_lambda_.6} parent=11 // pred_fallthru
          _
      $region12: #{_lambda_.6} parent=5 // pred_fallthru
        _
      %p265 = scmp.lt.s32.totalorder %s14, 2
      // Predicated region
      $region21: #{_lambda_.6} parent=5 // pred_check
        %p266 = pneg %p265
      $region22: #{_lambda_.6} parent=5 // pred_check_branch
        %268 = sbr.rel (%p266) target = $region24
      $region23: #{_lambda_.6} parent=5 // pred_region
        // Predicated region
        $region25: #{_lambda_.6} parent=23 // pred_check
          %p269 = pneg %p48
        $region26: #{_lambda_.6} parent=23 // pred_check_branch
          %271 = sbr.rel (%p269) target = $region28
        $region27: #{_lambda_.6} parent=23 // pred_region
          %s272 = smul.u32 2, %s22
          %p273 = scmp.lt.s32.totalorder %s21, 1
          %s274 = scalar_select %p273, %s21, 1
          %p275 = scmp.lt.s32.totalorder %s272, 1
          %s276 = scalar_select %p275, %s272, 1
          %s277 = smul.addr %s274, 2
          %s278 = sadd.s32 %s276, %s277
          %s279 = smul.addr %s278, 8
          %s280 = scalar_lea.vmem %s0, %s279
          %s281 = smul.u32 2, %s22
        $region28: #{_lambda_.6} parent=23 // pred_fallthru
          _
        // Predicated region
        $region29: #{_lambda_.6} parent=23 // pred_check
          %p282 = pneg %p84
        $region30: #{_lambda_.6} parent=23 // pred_check_branch
          %284 = sbr.rel (%p282) target = $region32
        $region31: #{_lambda_.6} parent=23 // pred_region
          %s285 = smul.u32 %s22, 2
          %s286 = ssub.s32 %s285, 1
          %p287 = scmp.gt.s32.totalorder %s286, 0
          %s288 = scalar_select %p287, %s286, 0
          %p289 = scmp.lt.s32.totalorder %s21, 1
          %s290 = scalar_select %p289, %s21, 1
          %p291 = scmp.lt.s32.totalorder %s288, 1
          %s292 = scalar_select %p291, %s288, 1
          %s293 = smul.addr %s290, 2
          %s294 = sadd.s32 %s292, %s293
          %s295 = smul.addr %s294, 8
          %s296 = scalar_lea.vmem %s1, %s295
          %s297 = smul.u32 %s22, 2
          %s298 = ssub.s32 %s297, 1
          %p299 = scmp.gt.s32.totalorder %s298, 0
          %s300 = scalar_select %p299, %s298, 0
        $region32: #{_lambda_.6} parent=23 // pred_fallthru
          _
        // Predicated region
        $region33: #{_lambda_.6} parent=23 // pred_check
          %p301 = pneg %p120
        $region34: #{_lambda_.6} parent=23 // pred_check_branch
          %303 = sbr.rel (%p301) target = $region36
        $region35: #{_lambda_.6} parent=23 // pred_region
          %s304 = sadd.s32 %s22, 1
          %s305 = smul.u32 %s304, 2
          %p306 = scmp.lt.s32.totalorder %s305, 1
          %s307 = scalar_select %p306, %s305, 1
          %p308 = scmp.lt.s32.totalorder %s21, 1
          %s309 = scalar_select %p308, %s21, 1
          %p310 = scmp.lt.s32.totalorder %s307, 1
          %s311 = scalar_select %p310, %s307, 1
          %s312 = smul.addr %s309, 2
          %s313 = sadd.s32 %s311, %s312
          %s314 = smul.addr %s313, 8
          %s315 = scalar_lea.vmem %s2, %s314
          %s316 = sadd.s32 %s22, 1
          %s317 = smul.u32 %s316, 2
          %p318 = scmp.lt.s32.totalorder %s317, 1
          %s319 = scalar_select %p318, %s317, 1
        $region36: #{_lambda_.6} parent=23 // pred_fallthru
          _
        // Predicated region
        $region37: #{_lambda_.6} parent=23 // pred_check
          %p320 = pneg %p148
        $region38: #{_lambda_.6} parent=23 // pred_check_branch
          %322 = sbr.rel (%p320) target = $region40
        $region39: #{_lambda_.6} parent=23 // pred_region
          %s323 = smul.u32 4, %s22
          %p324 = scmp.lt.s32.totalorder %s21, 1
          %s325 = scalar_select %p324, %s21, 1
          %p326 = scmp.lt.s32.totalorder %s323, 3
          %s327 = scalar_select %p326, %s323, 3
          %s328 = smul.addr %s327, 4
          %s329 = smul.addr %s325, 16
          %s330 = sadd.s32 %s328, %s329
          %s331 = smul.addr %s330, 4
          %s332 = scalar_lea.vmem %s3, %s331
          %s333 = smul.u32 4, %s22
        $region40: #{_lambda_.6} parent=23 // pred_fallthru
          _
      $region24: #{_lambda_.6} parent=5 // pred_fallthru
        _
      %p334 = scmp.le.s32.totalorder 1, %s14
      %p335 = scmp.lt.s32.totalorder %s14, 3
      %p336 = pnand %p334, %p335
      %p337 = pneg %p336
      // Predicated region
      $region41: #{_lambda_.6} parent=5 // pred_check
        _
      $region42: #{_lambda_.6} parent=5 // pred_check_branch
        %339 = sbr.rel (%p336) target = $region44
      $region43: #{_lambda_.6} parent=5 // pred_region
        %s340 = ssub.s32 %s14, 1
        // Predicated region
        $region45: #{_lambda_.6} parent=43 // pred_check
          %p341 = pneg %p175
        $region46: #{_lambda_.6} parent=43 // pred_check_branch
          %343 = sbr.rel (%p341) target = $region48
        $region47: #{_lambda_.6} parent=43 // pred_region
          %345 = dma.done [#allocation3], 4096
        $region48: #{_lambda_.6} parent=43 // pred_fallthru
          _
        // Predicated region
        $region49: #{_lambda_.6} parent=43 // pred_check
          %p346 = pneg %p196
        $region50: #{_lambda_.6} parent=43 // pred_check_branch
          %348 = sbr.rel (%p346) target = $region52
        $region51: #{_lambda_.6} parent=43 // pred_region
          %350 = dma.done [#allocation5], 16
        $region52: #{_lambda_.6} parent=43 // pred_fallthru
          _
        %s351 = smul.u32 2, %s24
        %p352 = scmp.lt.s32.totalorder %s23, 1
        %s353 = scalar_select %p352, %s23, 1
        %p354 = scmp.lt.s32.totalorder %s351, 1
        %s355 = scalar_select %p354, %s351, 1
        %s356 = smul.addr %s353, 2
        %s357 = sadd.s32 %s355, %s356
        %s358 = smul.addr %s357, 8
        %s359 = scalar_lea.vmem %s0, %s358
        %p360 = pneg %p54
        %p361 = pneg %p51
        %s362 = smul.u32 %s24, 2
        %s363 = ssub.s32 %s362, 1
        %p364 = scmp.gt.s32.totalorder %s363, 0
        %s365 = scalar_select %p364, %s363, 0
        %p366 = scmp.lt.s32.totalorder %s23, 1
        %s367 = scalar_select %p366, %s23, 1
        %p368 = scmp.lt.s32.totalorder %s365, 1
        %s369 = scalar_select %p368, %s365, 1
        %s370 = smul.addr %s367, 2
        %s371 = sadd.s32 %s369, %s370
        %s372 = smul.addr %s371, 8
        %s373 = scalar_lea.vmem %s1, %s372
        %p374 = pneg %p90
        %p375 = pneg %p87
        %s376 = sadd.s32 %s24, 1
        %s377 = smul.u32 %s376, 2
        %p378 = scmp.lt.s32.totalorder %s377, 1
        %s379 = scalar_select %p378, %s377, 1
        %p380 = scmp.lt.s32.totalorder %s23, 1
        %s381 = scalar_select %p380, %s23, 1
        %p382 = scmp.lt.s32.totalorder %s379, 1
        %s383 = scalar_select %p382, %s379, 1
        %s384 = smul.addr %s381, 2
        %s385 = sadd.s32 %s383, %s384
        %s386 = smul.addr %s385, 8
        %s387 = scalar_lea.vmem %s2, %s386
        %p388 = pneg %p126
        %p389 = pneg %p123
        %s390 = smul.u32 4, %s24
        %p391 = scmp.lt.s32.totalorder %s23, 1
        %s392 = scalar_select %p391, %s23, 1
        %p393 = scmp.lt.s32.totalorder %s390, 3
        %s394 = scalar_select %p393, %s390, 3
        %s395 = smul.addr %s394, 4
        %s396 = smul.addr %s392, 16
        %s397 = sadd.s32 %s395, %s396
        %s398 = smul.addr %s397, 4
        %s399 = scalar_lea.vmem %s3, %s398
        %p400 = pneg %p154
        %p401 = pneg %p151
        %p402 = pneg %p175
        %p403 = pneg %p172
        %p404 = pneg %p196
        %p405 = pneg %p193
        %p406 = pneg %p224
        %p407 = pneg %p221
        %s408 = smul.u32 2, %s24
        %p409 = scmp.lt.s32.totalorder %s23, 1
        %s410 = scalar_select %p409, %s23, 1
        %p411 = scmp.lt.s32.totalorder %s408, 1
        %s412 = scalar_select %p411, %s408, 1
        %s413 = smul.addr %s412, 2
        %s414 = smul.addr %s410, 4
        %s415 = sadd.s32 %s413, %s414
        %s416 = smul.addr %s415, 8
        %s417 = scalar_lea.vmem %s6, %s416
        %s418 = smul.u32 2, %s24
        %p419 = scmp.lt.s32.totalorder %s23, 1
        %s420 = scalar_select %p419, %s23, 1
        %p421 = scmp.lt.s32.totalorder %s418, 1
        %s422 = scalar_select %p421, %s418, 1
        %s423 = smul.addr %s420, 2
        %s424 = sadd.s32 %s422, %s423
        %s425 = smul.addr %s424, 8
        %s426 = scalar_lea.vmem %s0, %s425
        %s427 = smul.u32 2, %s24
        %s428 = smul.u32 %s24, 2
        %s429 = ssub.s32 %s428, 1
        %p430 = scmp.gt.s32.totalorder %s429, 0
        %s431 = scalar_select %p430, %s429, 0
        %p432 = scmp.lt.s32.totalorder %s23, 1
        %s433 = scalar_select %p432, %s23, 1
        %p434 = scmp.lt.s32.totalorder %s431, 1
        %s435 = scalar_select %p434, %s431, 1
        %s436 = smul.addr %s433, 2
        %s437 = sadd.s32 %s435, %s436
        %s438 = smul.addr %s437, 8
        %s439 = scalar_lea.vmem %s1, %s438
        %s440 = smul.u32 %s24, 2
        %s441 = ssub.s32 %s440, 1
        %p442 = scmp.gt.s32.totalorder %s441, 0
        %s443 = scalar_select %p442, %s441, 0
        %s444 = sadd.s32 %s24, 1
        %s445 = smul.u32 %s444, 2
        %p446 = scmp.lt.s32.totalorder %s445, 1
        %s447 = scalar_select %p446, %s445, 1
        %p448 = scmp.lt.s32.totalorder %s23, 1
        %s449 = scalar_select %p448, %s23, 1
        %p450 = scmp.lt.s32.totalorder %s447, 1
        %s451 = scalar_select %p450, %s447, 1
        %s452 = smul.addr %s449, 2
        %s453 = sadd.s32 %s451, %s452
        %s454 = smul.addr %s453, 8
        %s455 = scalar_lea.vmem %s2, %s454
        %s456 = sadd.s32 %s24, 1
        %s457 = smul.u32 %s456, 2
        %p458 = scmp.lt.s32.totalorder %s457, 1
        %s459 = scalar_select %p458, %s457, 1
        %s460 = smul.u32 4, %s24
        %p461 = scmp.lt.s32.totalorder %s23, 1
        %s462 = scalar_select %p461, %s23, 1
        %p463 = scmp.lt.s32.totalorder %s460, 3
        %s464 = scalar_select %p463, %s460, 3
        %s465 = smul.addr %s464, 4
        %s466 = smul.addr %s462, 16
        %s467 = sadd.s32 %s465, %s466
        %s468 = smul.addr %s467, 4
        %s469 = scalar_lea.vmem %s3, %s468
        %s470 = smul.u32 4, %s24
        %s471 = smul.u32 2, %s24
        %p472 = scmp.lt.s32.totalorder %s23, 1
        %s473 = scalar_select %p472, %s23, 1
        %p474 = scmp.lt.s32.totalorder %s471, 1
        %s475 = scalar_select %p474, %s471, 1
        %s476 = smul.addr %s475, 2
        %s477 = smul.addr %s473, 4
        %s478 = sadd.s32 %s476, %s477
        %s479 = smul.addr %s478, 8
        %s480 = scalar_lea.vmem %s6, %s479
        %s481 = smul.u32 2, %s24
        %v482 = vld [vmem:[%s426] sm:$0xff]
        %v483 = vld [vmem:[%s426 + $0x8] sm:$0xff]
        %v484 = vld [vmem:[%s439] sm:$0xff]
        %v485 = vld [vmem:[%s455] sm:$0xff]
        %v486 = vmul.f32 %v482, 0.75
        %v487 = vmul.f32 %v483, 0.75
        %v488 = vmul.f32 %v484, 0.25
        %v489 = vmul.f32 %v482, 0.25
        %v490 = vadd.f32 %v486, %v488
        %v491 = vadd.f32 %v487, %v489
        %v492 = vmul.f32 %v483, 0.25
        %v493 = vmul.f32 %v485, 0.25
        %v494 = vadd.f32 %v486, %v492
        %v495 = vadd.f32 %v487, %v493
        %v498 = vrot.slane %v490, 7
        %v499 = vrot.slane %v491, 7
        %vm502 = vcmask 1040384
        %v503 = vsel %vm502, %v490, %v498
        %v504 = vsel %vm502, %v491, %v499
        %v505 = vmul.f32 %v490, 0.75
        %v506 = vmul.f32 %v491, 0.75
        %v507 = vmul.f32 %v503, 0.25
        %v508 = vmul.f32 %v504, 0.25
        %v509 = vadd.f32 %v505, %v507
        %v510 = vadd.f32 %v506, %v508
        %v511 = vmul.f32 %v490, 0.25
        %v512 = vmul.f32 %v498, 0.25
        %v513 = vmul.f32 %v491, 0.25
        %v514 = vmul.f32 %v499, 0.25
        %vm519 = vcmask 1046528
        %v520 = vrot.slane %v511, 1
        %v521 = vrot.slane %v512, 1
        %v522 = vsel %vm519, %v520, %v521
        %v523 = vrot.slane %v513, 1
        %v524 = vrot.slane %v514, 1
        %v525 = vsel %vm519, %v523, %v524
        %v528 = vadd.f32 %v505, %v522
        %v529 = vadd.f32 %v506, %v525
        %532 = vrot.lane.b32.xlu0 %v528, 64
        %v533 = vpop.permute.xlu0 %532
        %534 = vrot.lane.b32.xlu0 %v529, 64
        %v535 = vpop.permute.xlu0 %534
        %vm538 = vcmask 523264
        %v539 = vsel %vm538, %v509, %v533
        %v540 = vsel %vm538, %v510, %v535
        %v543 = vrot.slane %v494, 7
        %v544 = vrot.slane %v495, 7
        %v547 = vsel %vm502, %v494, %v543
        %v548 = vsel %vm502, %v495, %v544
        %v549 = vmul.f32 %v494, 0.75
        %v550 = vmul.f32 %v495, 0.75
        %v551 = vmul.f32 %v547, 0.25
        %v552 = vmul.f32 %v548, 0.25
        %v553 = vadd.f32 %v549, %v551
        %v554 = vadd.f32 %v550, %v552
        %v555 = vmul.f32 %v494, 0.25
        %v556 = vmul.f32 %v543, 0.25
        %v557 = vmul.f32 %v495, 0.25
        %v558 = vmul.f32 %v544, 0.25
        %v563 = vrot.slane %v555, 1
        %v564 = vrot.slane %v556, 1
        %v565 = vsel %vm519, %v563, %v564
        %v566 = vrot.slane %v557, 1
        %v567 = vrot.slane %v558, 1
        %v568 = vsel %vm519, %v566, %v567
        %v571 = vadd.f32 %v549, %v565
        %v572 = vadd.f32 %v550, %v568
        %575 = vrot.lane.b32.xlu0 %v571, 64
        %v576 = vpop.permute.xlu0 %575
        %577 = vrot.lane.b32.xlu0 %v572, 64
        %v578 = vpop.permute.xlu0 %577
        %v581 = vsel %vm538, %v553, %v576
        %v582 = vsel %vm538, %v554, %v578
        %v583 = vld [vmem:[%s469] sm:$0xff]
        %v584 = vld [vmem:[%s469 + $0x8] sm:$0xff]
        %v585 = vld [vmem:[%s469 + $0x10] sm:$0xff]
        %v586 = vld [vmem:[%s469 + $0x18] sm:$0xff]
        %v587 = vld [vmem:[%s469 + $0x20] sm:$0xff]
        %v588 = vld [vmem:[%s469 + $0x28] sm:$0xff]
        %v589 = vld [vmem:[%s469 + $0x30] sm:$0xff]
        %v590 = vld [vmem:[%s469 + $0x38] sm:$0xff]
        %v591 = vld [vmem:[#allocation2] sm:$0xf]
        %v592 = vld [vmem:[#allocation2 + $0x4] sm:$0xf]
        %v593 = vld [vmem:[#allocation2 + $0x8] sm:$0xf]
        %v594 = vld [vmem:[#allocation2 + $0xc] sm:$0xf]
        %v595 = vld [vmem:[#allocation2 + $0x10] sm:$0xf]
        %v596 = vld [vmem:[#allocation2 + $0x14] sm:$0xf]
        %v597 = vld [vmem:[#allocation2 + $0x18] sm:$0xf]
        %v598 = vld [vmem:[#allocation2 + $0x1c] sm:$0xf]
        %v599 = vld [vmem:[#allocation2 + $0x20] sm:$0xf]
        %v600 = vld [vmem:[#allocation2 + $0x24] sm:$0xf]
        %v601 = vld [vmem:[#allocation2 + $0x28] sm:$0xf]
        %v602 = vld [vmem:[#allocation2 + $0x2c] sm:$0xf]
        %v603 = vld [vmem:[#allocation2 + $0x30] sm:$0xf]
        %v604 = vld [vmem:[#allocation2 + $0x34] sm:$0xf]
        %v605 = vld [vmem:[#allocation2 + $0x38] sm:$0xf]
        %v606 = vld [vmem:[#allocation2 + $0x3c] sm:$0xf]
        %v607 = vld [vmem:[#allocation2 + $0x40] sm:$0xf]
        %v608 = vld [vmem:[#allocation2 + $0x44] sm:$0xf]
        %v609 = vld [vmem:[#allocation2 + $0x48] sm:$0xf]
        %v610 = vld [vmem:[#allocation2 + $0x4c] sm:$0xf]
        %v611 = vld [vmem:[#allocation2 + $0x50] sm:$0xf]
        %v612 = vld [vmem:[#allocation2 + $0x54] sm:$0xf]
        %v613 = vld [vmem:[#allocation2 + $0x58] sm:$0xf]
        %v614 = vld [vmem:[#allocation2 + $0x5c] sm:$0xf]
        %v615 = vld [vmem:[#allocation2 + $0x60] sm:$0xf]
        %v616 = vld [vmem:[#allocation2 + $0x64] sm:$0xf]
        %v617 = vld [vmem:[#allocation2 + $0x68] sm:$0xf]
        %v618 = vld [vmem:[#allocation2 + $0x6c] sm:$0xf]
        %v619 = vld [vmem:[#allocation2 + $0x70] sm:$0xf]
        %v620 = vld [vmem:[#allocation2 + $0x74] sm:$0xf]
        %v621 = vld [vmem:[#allocation2 + $0x78] sm:$0xf]
        %v622 = vld [vmem:[#allocation2 + $0x7c] sm:$0xf]
        %v623 = vld [vmem:[#allocation2 + $0x80] sm:$0xf]
        %v624 = vld [vmem:[#allocation2 + $0x84] sm:$0xf]
        %v625 = vld [vmem:[#allocation2 + $0x88] sm:$0xf]
        %v626 = vld [vmem:[#allocation2 + $0x8c] sm:$0xf]
        %v627 = vld [vmem:[#allocation2 + $0x90] sm:$0xf]
        %v628 = vld [vmem:[#allocation2 + $0x94] sm:$0xf]
        %v629 = vld [vmem:[#allocation2 + $0x98] sm:$0xf]
        %v630 = vld [vmem:[#allocation2 + $0x9c] sm:$0xf]
        %v631 = vld [vmem:[#allocation2 + $0xa0] sm:$0xf]
        %v632 = vld [vmem:[#allocation2 + $0xa4] sm:$0xf]
        %v633 = vld [vmem:[#allocation2 + $0xa8] sm:$0xf]
        %v634 = vld [vmem:[#allocation2 + $0xac] sm:$0xf]
        %v635 = vld [vmem:[#allocation2 + $0xb0] sm:$0xf]
        %v636 = vld [vmem:[#allocation2 + $0xb4] sm:$0xf]
        %v637 = vld [vmem:[#allocation2 + $0xb8] sm:$0xf]
        %v638 = vld [vmem:[#allocation2 + $0xbc] sm:$0xf]
        %v639 = vld [vmem:[#allocation2 + $0xc0] sm:$0xf]
        %v640 = vld [vmem:[#allocation2 + $0xc4] sm:$0xf]
        %v641 = vld [vmem:[#allocation2 + $0xc8] sm:$0xf]
        %v642 = vld [vmem:[#allocation2 + $0xcc] sm:$0xf]
        %v643 = vld [vmem:[#allocation2 + $0xd0] sm:$0xf]
        %v644 = vld [vmem:[#allocation2 + $0xd4] sm:$0xf]
        %v645 = vld [vmem:[#allocation2 + $0xd8] sm:$0xf]
        %v646 = vld [vmem:[#allocation2 + $0xdc] sm:$0xf]
        %v647 = vld [vmem:[#allocation2 + $0xe0] sm:$0xf]
        %v648 = vld [vmem:[#allocation2 + $0xe4] sm:$0xf]
        %v649 = vld [vmem:[#allocation2 + $0xe8] sm:$0xf]
        %v650 = vld [vmem:[#allocation2 + $0xec] sm:$0xf]
        %v651 = vld [vmem:[#allocation2 + $0xf0] sm:$0xf]
        %v652 = vld [vmem:[#allocation2 + $0xf4] sm:$0xf]
        %v653 = vld [vmem:[#allocation2 + $0xf8] sm:$0xf]
        %v654 = vld [vmem:[#allocation2 + $0xfc] sm:$0xf]
        %v655 = vld [vmem:[#allocation4] sm:$0x1]
        %v657 = vperm.slane %v655, 0
        %v667 = vunpack.c.l.b16 %v583
        %v668 = vunpack.c.h.b16 %v583
        %v669 = vunpack.c.l.b16 %v584
        %v670 = vunpack.c.h.b16 %v584
        %v671 = vunpack.c.l.b16 %v585
        %v672 = vunpack.c.h.b16 %v585
        %v673 = vunpack.c.l.b16 %v586
        %v674 = vunpack.c.h.b16 %v586
        %v675 = vunpack.c.l.b16 %v587
        %v676 = vunpack.c.h.b16 %v587
        %v677 = vunpack.c.l.b16 %v588
        %v678 = vunpack.c.h.b16 %v588
        %v679 = vunpack.c.l.b16 %v589
        %v680 = vunpack.c.h.b16 %v589
        %v681 = vunpack.c.l.b16 %v590
        %v682 = vunpack.c.h.b16 %v590
        %v683 = vpack.c.b16 %v671, %v667
        %v684 = vpack.c.b16 %v672, %v668
        %v685 = vpack.c.b16 %v673, %v669
        %v686 = vpack.c.b16 %v674, %v670
        %v687 = vpack.c.b16 %v679, %v675
        %v688 = vpack.c.b16 %v680, %v676
        %v689 = vpack.c.b16 %v681, %v677
        %v690 = vpack.c.b16 %v682, %v678
        %v763 = vunpack.c.l.b16 %v591
        %v764 = vunpack.c.l.b16 %v592
        %v765 = vunpack.c.l.b16 %v593
        %v766 = vunpack.c.l.b16 %v594
        %v767 = vunpack.c.l.b16 %v595
        %v768 = vunpack.c.l.b16 %v596
        %v769 = vunpack.c.l.b16 %v597
        %v770 = vunpack.c.l.b16 %v598
        %v771 = vunpack.c.l.b16 %v599
        %v772 = vunpack.c.l.b16 %v600
        %v773 = vunpack.c.l.b16 %v601
        %v774 = vunpack.c.l.b16 %v602
        %v775 = vunpack.c.l.b16 %v603
        %v776 = vunpack.c.l.b16 %v604
        %v777 = vunpack.c.l.b16 %v605
        %v778 = vunpack.c.l.b16 %v606
        %v779 = vunpack.c.l.b16 %v607
        %v780 = vunpack.c.l.b16 %v608
        %v781 = vunpack.c.l.b16 %v609
        %v782 = vunpack.c.l.b16 %v610
        %v783 = vunpack.c.l.b16 %v611
        %v784 = vunpack.c.l.b16 %v612
        %v785 = vunpack.c.l.b16 %v613
        %v786 = vunpack.c.l.b16 %v614
        %v787 = vunpack.c.l.b16 %v615
        %v788 = vunpack.c.l.b16 %v616
        %v789 = vunpack.c.l.b16 %v617
        %v790 = vunpack.c.l.b16 %v618
        %v791 = vunpack.c.l.b16 %v619
        %v792 = vunpack.c.l.b16 %v620
        %v793 = vunpack.c.l.b16 %v621
        %v794 = vunpack.c.l.b16 %v622
        %v795 = vunpack.c.l.b16 %v623
        %v796 = vunpack.c.l.b16 %v624
        %v797 = vunpack.c.l.b16 %v625
        %v798 = vunpack.c.l.b16 %v626
        %v799 = vunpack.c.l.b16 %v627
        %v800 = vunpack.c.l.b16 %v628
        %v801 = vunpack.c.l.b16 %v629
        %v802 = vunpack.c.l.b16 %v630
        %v803 = vunpack.c.l.b16 %v631
        %v804 = vunpack.c.l.b16 %v632
        %v805 = vunpack.c.l.b16 %v633
        %v806 = vunpack.c.l.b16 %v634
        %v807 = vunpack.c.l.b16 %v635
        %v808 = vunpack.c.l.b16 %v636
        %v809 = vunpack.c.l.b16 %v637
        %v810 = vunpack.c.l.b16 %v638
        %v811 = vunpack.c.l.b16 %v639
        %v812 = vunpack.c.l.b16 %v640
        %v813 = vunpack.c.l.b16 %v641
        %v814 = vunpack.c.l.b16 %v642
        %v815 = vunpack.c.l.b16 %v643
        %v816 = vunpack.c.l.b16 %v644
        %v817 = vunpack.c.l.b16 %v645
        %v818 = vunpack.c.l.b16 %v646
        %v819 = vunpack.c.l.b16 %v647
        %v820 = vunpack.c.l.b16 %v648
        %v821 = vunpack.c.l.b16 %v649
        %v822 = vunpack.c.l.b16 %v650
        %v823 = vunpack.c.l.b16 %v651
        %v824 = vunpack.c.l.b16 %v652
        %v825 = vunpack.c.l.b16 %v653
        %v826 = vunpack.c.l.b16 %v654
        %v827 = vpack.c.b16 %v764, %v763
        %v828 = vpack.c.b16 %v766, %v765
        %v829 = vpack.c.b16 %v768, %v767
        %v830 = vpack.c.b16 %v770, %v769
        %v831 = vpack.c.b16 %v772, %v771
        %v832 = vpack.c.b16 %v774, %v773
        %v833 = vpack.c.b16 %v776, %v775
        %v834 = vpack.c.b16 %v778, %v777
        %v835 = vpack.c.b16 %v780, %v779
        %v836 = vpack.c.b16 %v782, %v781
        %v837 = vpack.c.b16 %v784, %v783
        %v838 = vpack.c.b16 %v786, %v785
        %v839 = vpack.c.b16 %v788, %v787
        %v840 = vpack.c.b16 %v790, %v789
        %v841 = vpack.c.b16 %v792, %v791
        %v842 = vpack.c.b16 %v794, %v793
        %v843 = vpack.c.b16 %v796, %v795
        %v844 = vpack.c.b16 %v798, %v797
        %v845 = vpack.c.b16 %v800, %v799
        %v846 = vpack.c.b16 %v802, %v801
        %v847 = vpack.c.b16 %v804, %v803
        %v848 = vpack.c.b16 %v806, %v805
        %v849 = vpack.c.b16 %v808, %v807
        %v850 = vpack.c.b16 %v810, %v809
        %v851 = vpack.c.b16 %v812, %v811
        %v852 = vpack.c.b16 %v814, %v813
        %v853 = vpack.c.b16 %v816, %v815
        %v854 = vpack.c.b16 %v818, %v817
        %v855 = vpack.c.b16 %v820, %v819
        %v856 = vpack.c.b16 %v822, %v821
        %v857 = vpack.c.b16 %v824, %v823
        %v858 = vpack.c.b16 %v826, %v825
        %891 = vmatpush.bf16.msra.mxu0 %v834
        %892 = vmatpush.bf16.msra.mxu0 %v833
        %893 = vmatpush.bf16.msra.mxu0 %v832
        %894 = vmatpush.bf16.msra.mxu0 %v831
        %895 = vmatpush.bf16.msra.mxu0 %v830
        %896 = vmatpush.bf16.msra.mxu0 %v829
        %897 = vmatpush.bf16.msra.mxu0 %v828
        %898 = vmatpush.bf16.msra.mxu0 %v827
        %899 = vmatmul.bf16.gmra.mxu0 %v683
        %v900 = vpop.f32.mrf.mxu0
        %v901 = vadd.f32 %v657, %v900
        %v902 = vpop.f32.mrf.mxu0
        %v903 = vadd.f32 %v657, %v902
        %904 = vmatmul.bf16.gmra.mxu0 %v687
        %v905 = vpop.f32.mrf.mxu0
        %v906 = vadd.f32 %v657, %v905
        %v907 = vpop.f32.mrf.mxu0
        %v908 = vadd.f32 %v657, %v907
        %909 = vdwg.mxu0
        %910 = vmatpush.bf16.msra.mxu0 %v842
        %911 = vmatpush.bf16.msra.mxu0 %v841
        %912 = vmatpush.bf16.msra.mxu0 %v840
        %913 = vmatpush.bf16.msra.mxu0 %v839
        %914 = vmatpush.bf16.msra.mxu0 %v838
        %915 = vmatpush.bf16.msra.mxu0 %v837
        %916 = vmatpush.bf16.msra.mxu0 %v836
        %917 = vmatpush.bf16.msra.mxu0 %v835
        %918 = vmatmul.bf16.gmra.mxu0 %v684
        %v919 = vpop.f32.mrf.mxu0
        %v920 = vadd.f32 %v901, %v919
        %v921 = vpop.f32.mrf.mxu0
        %v922 = vadd.f32 %v903, %v921
        %923 = vmatmul.bf16.gmra.mxu0 %v688
        %v924 = vpop.f32.mrf.mxu0
        %v925 = vadd.f32 %v906, %v924
        %v926 = vpop.f32.mrf.mxu0
        %v927 = vadd.f32 %v908, %v926
        %928 = vdwg.mxu0
        %929 = vmatpush.bf16.msra.mxu0 %v850
        %930 = vmatpush.bf16.msra.mxu0 %v849
        %931 = vmatpush.bf16.msra.mxu0 %v848
        %932 = vmatpush.bf16.msra.mxu0 %v847
        %933 = vmatpush.bf16.msra.mxu0 %v846
        %934 = vmatpush.bf16.msra.mxu0 %v845
        %935 = vmatpush.bf16.msra.mxu0 %v844
        %936 = vmatpush.bf16.msra.mxu0 %v843
        %937 = vmatmul.bf16.gmra.mxu0 %v685
        %v938 = vpop.f32.mrf.mxu0
        %v939 = vadd.f32 %v920, %v938
        %v940 = vpop.f32.mrf.mxu0
        %v941 = vadd.f32 %v922, %v940
        %942 = vmatmul.bf16.gmra.mxu0 %v689
        %v943 = vpop.f32.mrf.mxu0
        %v944 = vadd.f32 %v925, %v943
        %v945 = vpop.f32.mrf.mxu0
        %v946 = vadd.f32 %v927, %v945
        %947 = vdwg.mxu0
        %948 = vmatpush.bf16.msra.mxu0 %v858
        %949 = vmatpush.bf16.msra.mxu0 %v857
        %950 = vmatpush.bf16.msra.mxu0 %v856
        %951 = vmatpush.bf16.msra.mxu0 %v855
        %952 = vmatpush.bf16.msra.mxu0 %v854
        %953 = vmatpush.bf16.msra.mxu0 %v853
        %954 = vmatpush.bf16.msra.mxu0 %v852
        %955 = vmatpush.bf16.msra.mxu0 %v851
        %956 = vmatmul.bf16.gmra.mxu0 %v686
        %v957 = vpop.f32.mrf.mxu0
        %v958 = vadd.f32 %v939, %v957
        %v959 = vpop.f32.mrf.mxu0
        %v960 = vadd.f32 %v941, %v959
        %961 = vmatmul.bf16.gmra.mxu0 %v690
        %v962 = vpop.f32.mrf.mxu0
        %v963 = vadd.f32 %v944, %v962
        %v964 = vpop.f32.mrf.mxu0
        %v965 = vadd.f32 %v946, %v964
        %966 = vdwg.mxu0
        %v967 = vadd.f32 %v539, %v958
        %v968 = vadd.f32 %v540, %v963
        %969 = vst [vmem:[%s480] sm:$0xff] %v967
        %970 = vst [vmem:[%s480 + $0x10] sm:$0xff] %v968
        %v971 = vadd.f32 %v581, %v960
        %v972 = vadd.f32 %v582, %v965
        %s973 = scalar_lea.vmem %s480, 8
        %974 = vst [vmem:[%s973] sm:$0xff] %v971
        %975 = vst [vmem:[%s973 + $0x10] sm:$0xff] %v972
        %s976 = smul.u32 2, %s24
        %p977 = scmp.lt.s32.totalorder %s23, 1
        %s978 = scalar_select %p977, %s23, 1
        %p979 = scmp.lt.s32.totalorder %s976, 1
        %s980 = scalar_select %p979, %s976, 1
        %s981 = smul.addr %s980, 2
        %s982 = smul.addr %s978, 4
        %s983 = sadd.s32 %s981, %s982
        %s984 = smul.addr %s983, 8
        %s985 = scalar_lea.vmem %s6, %s984
        // Predicated region
        $region53: #{_lambda_.6} parent=43 // pred_check
          %p986 = pneg %p221
        $region54: #{_lambda_.6} parent=43 // pred_check_branch
          %988 = sbr.rel (%p986) target = $region56
        $region55: #{_lambda_.6} parent=43 // pred_region
          %s989 = smul.u32 2, %s24
        $region56: #{_lambda_.6} parent=43 // pred_fallthru
          _
      $region44: #{_lambda_.6} parent=5 // pred_fallthru
        _
      %p990 = scmp.le.s32.totalorder 2, %s14
      // Predicated region
      $region57: #{_lambda_.6} parent=5 // pred_check
        %p991 = pneg %p990
      $region58: #{_lambda_.6} parent=5 // pred_check_branch
        %993 = sbr.rel (%p991) target = $region60
      $region59: #{_lambda_.6} parent=5 // pred_region
        %s994 = ssub.s32 %s14, 2
        // Predicated region
        $region61: #{_lambda_.6} parent=59 // pred_check
          %p995 = pneg %p227
        $region62: #{_lambda_.6} parent=59 // pred_check_branch
          %997 = sbr.rel (%p995) target = $region64
        $region63: #{_lambda_.6} parent=59 // pred_region
          %s998 = smul.u32 2, %s26
          %p999 = scmp.lt.s32.totalorder %s25, 1
          %s1000 = scalar_select %p999, %s25, 1
          %p1001 = scmp.lt.s32.totalorder %s998, 1
          %s1002 = scalar_select %p1001, %s998, 1
          %s1003 = smul.addr %s1002, 2
          %s1004 = smul.addr %s1000, 4
          %s1005 = sadd.s32 %s1003, %s1004
          %s1006 = smul.addr %s1005, 8
          %s1007 = scalar_lea.vmem %s6, %s1006
        $region64: #{_lambda_.6} parent=59 // pred_fallthru
          _
      $region60: #{_lambda_.6} parent=5 // pred_fallthru
        _
    $region6: #{_lambda_.6} parent=1 // loop_footer
      %s18 = sadd.s32 1, %s14
    $region7: #{_lambda_.6} parent=1 // loop_footer_branch
      %13 = sbr.rel target = $region3
    $region8: #{_lambda_.6} parent=1 // loop_exit
      _
    %1008 = vsyncpa [#allocation3], 1
    %s1009 = scalar_lea.sflag [#allocation3], 1
    %1010 = vsyncpa %s1009, 1
    %1011 = vsyncpa [#allocation5], 1

// kernel: _lambda_.7
$region0: #{_lambda_.7}
  #allocation0 [shape = 'u32[]', space=smem, size = 0x4, offset = 0x4, fixed_abs, tag = 'smem constant byte address 0x4 - core index']
  #allocation1 [shape = 'u32[72,128]{1,0:T(1,128)}', space=vmem, size = 0x9000, scoped, tag = 'internal scratch']
  %s0 = inlined_call_operand.vmem [shape: f32[2,4,16,64], index: 0, kind: input, shape index: {}, may-alias: {0,1,2}]
  %s1 = inlined_call_operand.vmem [shape: f32[2,4,16,64], index: 1, kind: input, shape index: {}, may-alias: {0,1,2}]
  %s2 = inlined_call_operand.vmem [shape: f32[2,4,16,64], index: 2, kind: input, shape index: {}, may-alias: {0,1,2}]
  %s3 = inlined_call_operand.vmem [shape: bf16[2,128,256], index: 3, kind: input, shape index: {}]
  %s4 = inlined_call_operand.hbm [shape: bf16[256,128], index: 4, kind: input, shape index: {}]
  %s5 = inlined_call_operand.hbm [shape: f32[1,128], index: 5, kind: input, shape index: {}]
  %s6 = inlined_call_operand.vmem [shape: f32[2,4,2,16,128], index: 6, kind: output, shape index: {}]
  %s7 = sld [smem:[#allocation0]]
  $region65: #{_lambda_.7} parent=0
    _
  %s9 = ssub.s32 1, %s7
  %s10 = scalar_select 0, %s9, %s7
  $region1: #{_lambda_.7} parent=0
    #allocation2 [shape = 'u8[65536]{0}', space=vmem, size = 0x10000, scoped, tag = 'input window, operand 4, single buffered']
    #allocation3 [shape = 's32[2]{0}', space=sflag, size = 0x8, scoped, tag = 'scoped memory for _lambda_.7']
    #allocation4 [shape = 'u8[512]{0}', space=vmem, size = 0x400, scoped, tag = 'input window, operand 5, single buffered']
    #allocation5 [shape = 's32[1]{0}', space=sflag, size = 0x4, scoped, tag = 'scoped memory for _lambda_.7']
    %11 = vsyncpa [#allocation3], 0
    %12 = vsyncpa [#allocation5], 0
    loop: start=0, step=1, limit=4
    $region2: #{_lambda_.7} parent=1 // loop_pre_header
      _
    $region3: #{_lambda_.7} parent=1 // loop_header
      %s14 = sphi 0, %s18
      %p15 = scmp.ge.s32.totalorder %s14, 4
      %s21 = sphi 0, %s33
      %s22 = sphi 0, %s29
      %s23 = sphi 0, %s21
      %s24 = sphi 0, %s22
      %s25 = sphi 0, %s23
      %s26 = sphi 0, %s24
      %s38 = sphi 0, %s40
      %s41 = sphi 0, %s38
      %s42 = sphi 0, %s41
      %s58 = sphi 0, %s42
      %s74 = sphi 0, %s76
      %s77 = sphi 0, %s74
      %s78 = sphi 0, %s77
      %s94 = sphi 0, %s78
      %s110 = sphi 0, %s112
      %s113 = sphi 0, %s110
      %s114 = sphi 0, %s113
      %s130 = sphi 0, %s114
      %s138 = sphi 0, %s140
      %s141 = sphi 0, %s138
      %s142 = sphi 0, %s141
      %s158 = sphi 0, %s142
      %s162 = sphi 0, %s162
      %s164 = sphi 0, %s162
      %s165 = sphi 0, %s164
      %s179 = sphi 0, %s165
      %s183 = sphi 0, %s183
      %s185 = sphi 0, %s183
      %s186 = sphi 0, %s185
      %s200 = sphi 0, %s186
      %s208 = sphi 0, %s210
      %s211 = sphi 0, %s208
      %s212 = sphi 0, %s211
      %s228 = sphi 0, %s212
    $region4: #{_lambda_.7} parent=1 // loop_header_branch
      %17 = sbr.rel (%p15) target = $region8
    $region5: #{_lambda_.7} parent=1 // loop_body
      %s19 = ssub.s32 %s14, 1
      %s20 = ssub.s32 %s14, 2
      %s27 = sadd.s32 1, %s22
      %p28 = scmp.ge.s32.totalorder %s27, 1
      %s29 = scalar_select %p28, 0, %s27
      %s30 = sadd.s32 1, %s21
      %s31 = scalar_select %p28, %s30, %s21
      %p32 = scmp.ge.s32.totalorder %s31, 2
      %s33 = scalar_select %p32, 0, %s31
      %s34 = ssub.s32 %s21, %s33
      %s35 = ssub.s32 %s22, %s29
      %s36 = sor.u32 %s34, %s35
      %p37 = scmp.eq.s32.totalorder %s36, 0
      %s39 = sadd.s32 %s38, 1
      %s40 = scalar_select %p37, %s38, %s39
      %p43 = pneg %p37
      %p44 = scmp.eq.s32.totalorder %s14, 1
      %p45 = por %p43, %p44
      %p46 = scmp.ne.s32.totalorder %s38, %s41
      %p47 = scmp.eq.s32.totalorder %s14, 0
      %p48 = por %p46, %p47
      %p49 = scmp.ne.s32.totalorder %s38, %s41
      %p50 = scmp.eq.s32.totalorder %s19, 1
      %p51 = por %p49, %p50
      %p52 = scmp.ne.s32.totalorder %s41, %s42
      %p53 = scmp.eq.s32.totalorder %s19, 0
      %p54 = por %p52, %p53
      %p55 = scmp.ne.s32.totalorder %s41, %s42
      %p56 = scmp.eq.s32.totalorder %s20, 1
      %p57 = por %p55, %p56
      %p59 = scmp.ne.s32.totalorder %s42, %s58
      %p60 = scmp.eq.s32.totalorder %s20, 0
      %p61 = por %p59, %p60
      %s62 = smul.u32 %s22, 4
      %s63 = ssub.s32 %s62, 1
      %p64 = scmp.gt.s32.totalorder %s63, 0
      %s65 = scalar_select %p64, %s63, 0
      %s66 = smul.u32 %s29, 4
      %s67 = ssub.s32 %s66, 1
      %p68 = scmp.gt.s32.totalorder %s67, 0
      %s69 = scalar_select %p68, %s67, 0
      %s70 = ssub.s32 %s21, %s33
      %s71 = ssub.s32 %s65, %s69
      %s72 = sor.u32 %s70, %s71
      %p73 = scmp.eq.s32.totalorder %s72, 0
      %s75 = sadd.s32 %s74, 1
      %s76 = scalar_select %p73, %s74, %s75
      %p79 = pneg %p73
      %p80 = scmp.eq.s32.totalorder %s14, 1
      %p81 = por %p79, %p80
      %p82 = scmp.ne.s32.totalorder %s74, %s77
      %p83 = scmp.eq.s32.totalorder %s14, 0
      %p84 = por %p82, %p83
      %p85 = scmp.ne.s32.totalorder %s74, %s77
      %p86 = scmp.eq.s32.totalorder %s19, 1
      %p87 = por %p85, %p86
      %p88 = scmp.ne.s32.totalorder %s77, %s78
      %p89 = scmp.eq.s32.totalorder %s19, 0
      %p90 = por %p88, %p89
      %p91 = scmp.ne.s32.totalorder %s77, %s78
      %p92 = scmp.eq.s32.totalorder %s20, 1
      %p93 = por %p91, %p92
      %p95 = scmp.ne.s32.totalorder %s78, %s94
      %p96 = scmp.eq.s32.totalorder %s20, 0
      %p97 = por %p95, %p96
      %s98 = sadd.s32 %s22, 1
      %s99 = smul.u32 %s98, 4
      %p100 = scmp.lt.s32.totalorder %s99, 3
      %s101 = scalar_select %p100, %s99, 3
      %s102 = sadd.s32 %s29, 1
      %s103 = smul.u32 %s102, 4
      %p104 = scmp.lt.s32.totalorder %s103, 3
      %s105 = scalar_select %p104, %s103, 3
      %s106 = ssub.s32 %s21, %s33
      %s107 = ssub.s32 %s101, %s105
      %s108 = sor.u32 %s106, %s107
      %p109 = scmp.eq.s32.totalorder %s108, 0
      %s111 = sadd.s32 %s110, 1
      %s112 = scalar_select %p109, %s110, %s111
      %p115 = pneg %p109
      %p116 = scmp.eq.s32.totalorder %s14, 1
      %p117 = por %p115, %p116
      %p118 = scmp.ne.s32.totalorder %s110, %s113
      %p119 = scmp.eq.s32.totalorder %s14, 0
      %p120 = por %p118, %p119
      %p121 = scmp.ne.s32.totalorder %s110, %s113
      %p122 = scmp.eq.s32.totalorder %s19, 1
      %p123 = por %p121, %p122
      %p124 = scmp.ne.s32.totalorder %s113, %s114
      %p125 = scmp.eq.s32.totalorder %s19, 0
      %p126 = por %p124, %p125
      %p127 = scmp.ne.s32.totalorder %s113, %s114
      %p128 = scmp.eq.s32.totalorder %s20, 1
      %p129 = por %p127, %p128
      %p131 = scmp.ne.s32.totalorder %s114, %s130
      %p132 = scmp.eq.s32.totalorder %s20, 0
      %p133 = por %p131, %p132
      %s134 = ssub.s32 %s21, %s33
      %s135 = ssub.s32 %s22, %s29
      %s136 = sor.u32 %s134, %s135
      %p137 = scmp.eq.s32.totalorder %s136, 0
      %s139 = sadd.s32 %s138, 1
      %s140 = scalar_select %p137, %s138, %s139
      %p143 = pneg %p137
      %p144 = scmp.eq.s32.totalorder %s14, 1
      %p145 = por %p143, %p144
      %p146 = scmp.ne.s32.totalorder %s138, %s141
      %p147 = scmp.eq.s32.totalorder %s14, 0
      %p148 = por %p146, %p147
      %p149 = scmp.ne.s32.totalorder %s138, %s141
      %p150 = scmp.eq.s32.totalorder %s19, 1
      %p151 = por %p149, %p150
      %p152 = scmp.ne.s32.totalorder %s141, %s142
      %p153 = scmp.eq.s32.totalorder %s19, 0
      %p154 = por %p152, %p153
      %p155 = scmp.ne.s32.totalorder %s141, %s142
      %p156 = scmp.eq.s32.totalorder %s20, 1
      %p157 = por %p155, %p156
      %p159 = scmp.ne.s32.totalorder %s142, %s158
      %p160 = scmp.eq.s32.totalorder %s20, 0
      %p161 = por %p159, %p160
      %s163 = sadd.s32 %s162, 1
      %p166 = scmp.eq.s32.totalorder %s14, 1
      %p167 = scmp.ne.s32.totalorder %s162, %s164
      %p168 = scmp.eq.s32.totalorder %s14, 0
      %p169 = por %p167, %p168
      %p170 = scmp.ne.s32.totalorder %s162, %s164
      %p171 = scmp.eq.s32.totalorder %s19, 1
      %p172 = por %p170, %p171
      %p173 = scmp.ne.s32.totalorder %s164, %s165
      %p174 = scmp.eq.s32.totalorder %s19, 0
      %p175 = por %p173, %p174
      %p176 = scmp.ne.s32.totalorder %s164, %s165
      %p177 = scmp.eq.s32.totalorder %s20, 1
      %p178 = por %p176, %p177
      %p180 = scmp.ne.s32.totalorder %s165, %s179
      %p181 = scmp.eq.s32.totalorder %s20, 0
      %p182 = por %p180, %p181
      %s184 = sadd.s32 %s183, 1
      %p187 = scmp.eq.s32.totalorder %s14, 1
      %p188 = scmp.ne.s32.totalorder %s183, %s185
      %p189 = scmp.eq.s32.totalorder %s14, 0
      %p190 = por %p188, %p189
      %p191 = scmp.ne.s32.totalorder %s183, %s185
      %p192 = scmp.eq.s32.totalorder %s19, 1
      %p193 = por %p191, %p192
      %p194 = scmp.ne.s32.totalorder %s185, %s186
      %p195 = scmp.eq.s32.totalorder %s19, 0
      %p196 = por %p194, %p195
      %p197 = scmp.ne.s32.totalorder %s185, %s186
      %p198 = scmp.eq.s32.totalorder %s20, 1
      %p199 = por %p197, %p198
      %p201 = scmp.ne.s32.totalorder %s186, %s200
      %p202 = scmp.eq.s32.totalorder %s20, 0
      %p203 = por %p201, %p202
      %s204 = ssub.s32 %s21, %s33
      %s205 = ssub.s32 %s22, %s29
      %s206 = sor.u32 %s204, %s205
      %p207 = scmp.eq.s32.totalorder %s206, 0
      %s209 = sadd.s32 %s208, 1
      %s210 = scalar_select %p207, %s208, %s209
      %p213 = pneg %p207
      %p214 = scmp.eq.s32.totalorder %s14, 1
      %p215 = por %p213, %p214
      %p216 = scmp.ne.s32.totalorder %s208, %s211
      %p217 = scmp.eq.s32.totalorder %s14, 0
      %p218 = por %p216, %p217
      %p219 = scmp.ne.s32.totalorder %s208, %s211
      %p220 = scmp.eq.s32.totalorder %s19, 1
      %p221 = por %p219, %p220
      %p222 = scmp.ne.s32.totalorder %s211, %s212
      %p223 = scmp.eq.s32.totalorder %s19, 0
      %p224 = por %p222, %p223
      %p225 = scmp.ne.s32.totalorder %s211, %s212
      %p226 = scmp.eq.s32.totalorder %s20, 1
      %p227 = por %p225, %p226
      %p229 = scmp.ne.s32.totalorder %s212, %s228
      %p230 = scmp.eq.s32.totalorder %s20, 0
      %p231 = por %p229, %p230
      %p232 = scmp.le.s32.totalorder 1, %s14
      %p233 = scmp.lt.s32.totalorder %s14, 3
      %p234 = pnand %p232, %p233
      %p235 = pneg %p234
      // Predicated region
      $region9: #{_lambda_.7} parent=5 // pred_check
        _
      $region10: #{_lambda_.7} parent=5 // pred_check_branch
        %237 = sbr.rel (%p234) target = $region12
      $region11: #{_lambda_.7} parent=5 // pred_region
        %s238 = ssub.s32 %s14, 1
        // Predicated region
        $region13: #{_lambda_.7} parent=11 // pred_check
          %p239 = pneg %p175
        $region14: #{_lambda_.7} parent=11 // pred_check_branch
          %241 = sbr.rel (%p239) target = $region16
        $region15: #{_lambda_.7} parent=11 // pred_region
          %243 = vsyncadd [#allocation3], 0
          %s244 = sshll.u32 %s4, 4
          %s245 = int_to_ptr.hbm [resolvable:$true] %s244
          %s246 = sshll.u32 [#allocation2], 4
          %s247 = int_to_ptr.vmem [resolvable:$true] %s246
          %252 = dma.hbm_to_vmem [thread:$0]  %s245, 2048, %s247, [#allocation3], 64, 64, 4
        $region16: #{_lambda_.7} parent=11 // pred_fallthru
          _
        // Predicated region
        $region17: #{_lambda_.7} parent=11 // pred_check
          %p253 = pneg %p196
        $region18: #{_lambda_.7} parent=11 // pred_check_branch
          %255 = sbr.rel (%p253) target = $region20
        $region19: #{_lambda_.7} parent=11 // pred_region
          %257 = vsyncadd [#allocation5], 0
          %s259 = sshll.u32 %s5, 4
          %s260 = int_to_ptr.hbm [resolvable:$true] %s259
          %s261 = sshll.u32 [#allocation4], 4
          %s262 = int_to_ptr.vmem [resolvable:$true] %s261
          %264 = dma.hbm_to_vmem [thread:$0]  %s260, 16, %s262, [#allocation5]
        $region20: #{_lambda_.7} parent=11 // pred_fallthru
          _
      $region12: #{_lambda_.7} parent=5 // pred_fallthru
        _
      %p265 = scmp.lt.s32.totalorder %s14, 2
      // Predicated region
      $region21: #{_lambda_.7} parent=5 // pred_check
        %p266 = pneg %p265
      $region22: #{_lambda_.7} parent=5 // pred_check_branch
        %268 = sbr.rel (%p266) target = $region24
      $region23: #{_lambda_.7} parent=5 // pred_region
        // Predicated region
        $region25: #{_lambda_.7} parent=23 // pred_check
          %p269 = pneg %p48
        $region26: #{_lambda_.7} parent=23 // pred_check_branch
          %271 = sbr.rel (%p269) target = $region28
        $region27: #{_lambda_.7} parent=23 // pred_region
          %s272 = smul.u32 4, %s22
          %p273 = scmp.lt.s32.totalorder %s21, 1
          %s274 = scalar_select %p273, %s21, 1
          %p275 = scmp.lt.s32.totalorder %s272, 3
          %s276 = scalar_select %p275, %s272, 3
          %s277 = smul.addr %s276, 2
          %s278 = smul.addr %s274, 8
          %s279 = sadd.s32 %s277, %s278
          %s280 = smul.addr %s279, 8
          %s281 = scalar_lea.vmem %s0, %s280
          %s282 = smul.u32 4, %s22
        $region28: #{_lambda_.7} parent=23 // pred_fallthru
          _
        // Predicated region
        $region29: #{_lambda_.7} parent=23 // pred_check
          %p283 = pneg %p84
        $region30: #{_lambda_.7} parent=23 // pred_check_branch
          %285 = sbr.rel (%p283) target = $region32
        $region31: #{_lambda_.7} parent=23 // pred_region
          %s286 = smul.u32 %s22, 4
          %s287 = ssub.s32 %s286, 1
          %p288 = scmp.gt.s32.totalorder %s287, 0
          %s289 = scalar_select %p288, %s287, 0
          %p290 = scmp.lt.s32.totalorder %s21, 1
          %s291 = scalar_select %p290, %s21, 1
          %p292 = scmp.lt.s32.totalorder %s289, 3
          %s293 = scalar_select %p292, %s289, 3
          %s294 = smul.addr %s293, 2
          %s295 = smul.addr %s291, 8
          %s296 = sadd.s32 %s294, %s295
          %s297 = smul.addr %s296, 8
          %s298 = scalar_lea.vmem %s1, %s297
          %s299 = smul.u32 %s22, 4
          %s300 = ssub.s32 %s299, 1
          %p301 = scmp.gt.s32.totalorder %s300, 0
          %s302 = scalar_select %p301, %s300, 0
        $region32: #{_lambda_.7} parent=23 // pred_fallthru
          _
        // Predicated region
        $region33: #{_lambda_.7} parent=23 // pred_check
          %p303 = pneg %p120
        $region34: #{_lambda_.7} parent=23 // pred_check_branch
          %305 = sbr.rel (%p303) target = $region36
        $region35: #{_lambda_.7} parent=23 // pred_region
          %s306 = sadd.s32 %s22, 1
          %s307 = smul.u32 %s306, 4
          %p308 = scmp.lt.s32.totalorder %s307, 3
          %s309 = scalar_select %p308, %s307, 3
          %p310 = scmp.lt.s32.totalorder %s21, 1
          %s311 = scalar_select %p310, %s21, 1
          %p312 = scmp.lt.s32.totalorder %s309, 3
          %s313 = scalar_select %p312, %s309, 3
          %s314 = smul.addr %s313, 2
          %s315 = smul.addr %s311, 8
          %s316 = sadd.s32 %s314, %s315
          %s317 = smul.addr %s316, 8
          %s318 = scalar_lea.vmem %s2, %s317
          %s319 = sadd.s32 %s22, 1
          %s320 = smul.u32 %s319, 4
          %p321 = scmp.lt.s32.totalorder %s320, 3
          %s322 = scalar_select %p321, %s320, 3
        $region36: #{_lambda_.7} parent=23 // pred_fallthru
          _
        // Predicated region
        $region37: #{_lambda_.7} parent=23 // pred_check
          %p323 = pneg %p148
        $region38: #{_lambda_.7} parent=23 // pred_check_branch
          %325 = sbr.rel (%p323) target = $region40
        $region39: #{_lambda_.7} parent=23 // pred_region
          %s326 = smul.u32 16, %s22
          %p327 = scmp.lt.s32.totalorder %s21, 1
          %s328 = scalar_select %p327, %s21, 1
          %p329 = scmp.lt.s32.totalorder %s326, 15
          %s330 = scalar_select %p329, %s326, 15
          %s331 = smul.addr %s330, 2
          %s332 = smul.addr %s328, 32
          %s333 = sadd.s32 %s331, %s332
          %s334 = smul.addr %s333, 4
          %s335 = scalar_lea.vmem %s3, %s334
          %s336 = smul.u32 16, %s22
        $region40: #{_lambda_.7} parent=23 // pred_fallthru
          _
      $region24: #{_lambda_.7} parent=5 // pred_fallthru
        _
      %p337 = scmp.le.s32.totalorder 1, %s14
      %p338 = scmp.lt.s32.totalorder %s14, 3
      %p339 = pnand %p337, %p338
      %p340 = pneg %p339
      // Predicated region
      $region41: #{_lambda_.7} parent=5 // pred_check
        _
      $region42: #{_lambda_.7} parent=5 // pred_check_branch
        %342 = sbr.rel (%p339) target = $region44
      $region43: #{_lambda_.7} parent=5 // pred_region
        %s343 = ssub.s32 %s14, 1
        // Predicated region
        $region45: #{_lambda_.7} parent=43 // pred_check
          %p344 = pneg %p175
        $region46: #{_lambda_.7} parent=43 // pred_check_branch
          %346 = sbr.rel (%p344) target = $region48
        $region47: #{_lambda_.7} parent=43 // pred_region
          %348 = dma.done [#allocation3], 2048
        $region48: #{_lambda_.7} parent=43 // pred_fallthru
          _
        // Predicated region
        $region49: #{_lambda_.7} parent=43 // pred_check
          %p349 = pneg %p196
        $region50: #{_lambda_.7} parent=43 // pred_check_branch
          %351 = sbr.rel (%p349) target = $region52
        $region51: #{_lambda_.7} parent=43 // pred_region
          %353 = dma.done [#allocation5], 16
        $region52: #{_lambda_.7} parent=43 // pred_fallthru
          _
        %s354 = smul.u32 4, %s24
        %p355 = scmp.lt.s32.totalorder %s23, 1
        %s356 = scalar_select %p355, %s23, 1
        %p357 = scmp.lt.s32.totalorder %s354, 3
        %s358 = scalar_select %p357, %s354, 3
        %s359 = smul.addr %s358, 2
        %s360 = smul.addr %s356, 8
        %s361 = sadd.s32 %s359, %s360
        %s362 = smul.addr %s361, 8
        %s363 = scalar_lea.vmem %s0, %s362
        %p364 = pneg %p54
        %p365 = pneg %p51
        %s366 = smul.u32 %s24, 4
        %s367 = ssub.s32 %s366, 1
        %p368 = scmp.gt.s32.totalorder %s367, 0
        %s369 = scalar_select %p368, %s367, 0
        %p370 = scmp.lt.s32.totalorder %s23, 1
        %s371 = scalar_select %p370, %s23, 1
        %p372 = scmp.lt.s32.totalorder %s369, 3
        %s373 = scalar_select %p372, %s369, 3
        %s374 = smul.addr %s373, 2
        %s375 = smul.addr %s371, 8
        %s376 = sadd.s32 %s374, %s375
        %s377 = smul.addr %s376, 8
        %s378 = scalar_lea.vmem %s1, %s377
        %p379 = pneg %p90
        %p380 = pneg %p87
        %s381 = sadd.s32 %s24, 1
        %s382 = smul.u32 %s381, 4
        %p383 = scmp.lt.s32.totalorder %s382, 3
        %s384 = scalar_select %p383, %s382, 3
        %p385 = scmp.lt.s32.totalorder %s23, 1
        %s386 = scalar_select %p385, %s23, 1
        %p387 = scmp.lt.s32.totalorder %s384, 3
        %s388 = scalar_select %p387, %s384, 3
        %s389 = smul.addr %s388, 2
        %s390 = smul.addr %s386, 8
        %s391 = sadd.s32 %s389, %s390
        %s392 = smul.addr %s391, 8
        %s393 = scalar_lea.vmem %s2, %s392
        %p394 = pneg %p126
        %p395 = pneg %p123
        %s396 = smul.u32 16, %s24
        %p397 = scmp.lt.s32.totalorder %s23, 1
        %s398 = scalar_select %p397, %s23, 1
        %p399 = scmp.lt.s32.totalorder %s396, 15
        %s400 = scalar_select %p399, %s396, 15
        %s401 = smul.addr %s400, 2
        %s402 = smul.addr %s398, 32
        %s403 = sadd.s32 %s401, %s402
        %s404 = smul.addr %s403, 4
        %s405 = scalar_lea.vmem %s3, %s404
        %p406 = pneg %p154
        %p407 = pneg %p151
        %p408 = pneg %p175
        %p409 = pneg %p172
        %p410 = pneg %p196
        %p411 = pneg %p193
        %p412 = pneg %p224
        %p413 = pneg %p221
        %s414 = smul.u32 4, %s24
        %p415 = scmp.lt.s32.totalorder %s23, 1
        %s416 = scalar_select %p415, %s23, 1
        %p417 = scmp.lt.s32.totalorder %s414, 3
        %s418 = scalar_select %p417, %s414, 3
        %s419 = smul.addr %s418, 4
        %s420 = smul.addr %s416, 16
        %s421 = sadd.s32 %s419, %s420
        %s422 = smul.addr %s421, 8
        %s423 = scalar_lea.vmem %s6, %s422
        %s424 = smul.u32 4, %s24
        %p425 = scmp.lt.s32.totalorder %s23, 1
        %s426 = scalar_select %p425, %s23, 1
        %p427 = scmp.lt.s32.totalorder %s424, 3
        %s428 = scalar_select %p427, %s424, 3
        %s429 = smul.addr %s428, 2
        %s430 = smul.addr %s426, 8
        %s431 = sadd.s32 %s429, %s430
        %s432 = smul.addr %s431, 8
        %s433 = scalar_lea.vmem %s0, %s432
        %s434 = smul.u32 4, %s24
        %s435 = smul.u32 %s24, 4
        %s436 = ssub.s32 %s435, 1
        %p437 = scmp.gt.s32.totalorder %s436, 0
        %s438 = scalar_select %p437, %s436, 0
        %p439 = scmp.lt.s32.totalorder %s23, 1
        %s440 = scalar_select %p439, %s23, 1
        %p441 = scmp.lt.s32.totalorder %s438, 3
        %s442 = scalar_select %p441, %s438, 3
        %s443 = smul.addr %s442, 2
        %s444 = smul.addr %s440, 8
        %s445 = sadd.s32 %s443, %s444
        %s446 = smul.addr %s445, 8
        %s447 = scalar_lea.vmem %s1, %s446
        %s448 = smul.u32 %s24, 4
        %s449 = ssub.s32 %s448, 1
        %p450 = scmp.gt.s32.totalorder %s449, 0
        %s451 = scalar_select %p450, %s449, 0
        %s452 = sadd.s32 %s24, 1
        %s453 = smul.u32 %s452, 4
        %p454 = scmp.lt.s32.totalorder %s453, 3
        %s455 = scalar_select %p454, %s453, 3
        %p456 = scmp.lt.s32.totalorder %s23, 1
        %s457 = scalar_select %p456, %s23, 1
        %p458 = scmp.lt.s32.totalorder %s455, 3
        %s459 = scalar_select %p458, %s455, 3
        %s460 = smul.addr %s459, 2
        %s461 = smul.addr %s457, 8
        %s462 = sadd.s32 %s460, %s461
        %s463 = smul.addr %s462, 8
        %s464 = scalar_lea.vmem %s2, %s463
        %s465 = sadd.s32 %s24, 1
        %s466 = smul.u32 %s465, 4
        %p467 = scmp.lt.s32.totalorder %s466, 3
        %s468 = scalar_select %p467, %s466, 3
        %s469 = smul.u32 16, %s24
        %p470 = scmp.lt.s32.totalorder %s23, 1
        %s471 = scalar_select %p470, %s23, 1
        %p472 = scmp.lt.s32.totalorder %s469, 15
        %s473 = scalar_select %p472, %s469, 15
        %s474 = smul.addr %s473, 2
        %s475 = smul.addr %s471, 32
        %s476 = sadd.s32 %s474, %s475
        %s477 = smul.addr %s476, 4
        %s478 = scalar_lea.vmem %s3, %s477
        %s479 = smul.u32 16, %s24
        %s480 = smul.u32 4, %s24
        %p481 = scmp.lt.s32.totalorder %s23, 1
        %s482 = scalar_select %p481, %s23, 1
        %p483 = scmp.lt.s32.totalorder %s480, 3
        %s484 = scalar_select %p483, %s480, 3
        %s485 = smul.addr %s484, 4
        %s486 = smul.addr %s482, 16
        %s487 = sadd.s32 %s485, %s486
        %s488 = smul.addr %s487, 8
        %s489 = scalar_lea.vmem %s6, %s488
        %s490 = smul.u32 4, %s24
        %v491 = vld [vmem:[%s433] sm:$0xff]
        %v492 = vld [vmem:[%s433 + $0x8] sm:$0xff]
        %v493 = vld [vmem:[%s433 + $0x10] sm:$0xff]
        %v494 = vld [vmem:[%s433 + $0x18] sm:$0xff]
        %v495 = vld [vmem:[%s433 + $0x20] sm:$0xff]
        %v496 = vld [vmem:[%s433 + $0x28] sm:$0xff]
        %v497 = vld [vmem:[%s433 + $0x30] sm:$0xff]
        %v498 = vld [vmem:[%s433 + $0x38] sm:$0xff]
        %v499 = vld [vmem:[%s447] sm:$0xff]
        %v500 = vld [vmem:[%s447 + $0x8] sm:$0xff]
        %v501 = vld [vmem:[%s464] sm:$0xff]
        %v502 = vld [vmem:[%s464 + $0x8] sm:$0xff]
        %v503 = vmul.f32 %v491, 0.75
        %v504 = vmul.f32 %v492, 0.75
        %v505 = vmul.f32 %v493, 0.75
        %v506 = vmul.f32 %v494, 0.75
        %v507 = vmul.f32 %v495, 0.75
        %v508 = vmul.f32 %v496, 0.75
        %v509 = vmul.f32 %v497, 0.75
        %v510 = vmul.f32 %v498, 0.75
        %v511 = vmul.f32 %v499, 0.25
        %v512 = vmul.f32 %v500, 0.25
        %v513 = vmul.f32 %v491, 0.25
        %v514 = vmul.f32 %v492, 0.25
        %v515 = vmul.f32 %v493, 0.25
        %v516 = vmul.f32 %v494, 0.25
        %v517 = vmul.f32 %v495, 0.25
        %v518 = vmul.f32 %v496, 0.25
        %v519 = vadd.f32 %v503, %v511
        %v520 = vadd.f32 %v504, %v512
        %v521 = vadd.f32 %v505, %v513
        %v522 = vadd.f32 %v506, %v514
        %v523 = vadd.f32 %v507, %v515
        %v524 = vadd.f32 %v508, %v516
        %v525 = vadd.f32 %v509, %v517
        %v526 = vadd.f32 %v510, %v518
        %v527 = vmul.f32 %v497, 0.25
        %v528 = vmul.f32 %v498, 0.25
        %v529 = vmul.f32 %v501, 0.25
        %v530 = vmul.f32 %v502, 0.25
        %v531 = vadd.f32 %v503, %v515
        %v532 = vadd.f32 %v504, %v516
        %v533 = vadd.f32 %v505, %v517
        %v534 = vadd.f32 %v506, %v518
        %v535 = vadd.f32 %v507, %v527
        %v536 = vadd.f32 %v508, %v528
        %v537 = vadd.f32 %v509, %v529
        %v538 = vadd.f32 %v510, %v530
        %vm547 = vcmask 1040384
        %v548 = vrot.slane %v519, 7
        %v549 = vrot.slane %v520, 7
        %v550 = vsel %vm547, %v548, %v549
        %v551 = vrot.slane %v521, 7
        %v552 = vrot.slane %v522, 7
        %v553 = vsel %vm547, %v551, %v552
        %v554 = vrot.slane %v523, 7
        %v555 = vrot.slane %v524, 7
        %v556 = vsel %vm547, %v554, %v555
        %v557 = vrot.slane %v525, 7
        %v558 = vrot.slane %v526, 7
        %v559 = vsel %vm547, %v557, %v558
        %v568 = vsel %vm547, %v519, %v548
        %v569 = vsel %vm547, %v521, %v551
        %v570 = vsel %vm547, %v523, %v554
        %v571 = vsel %vm547, %v525, %v557
        %v576 = vmul.f32 %v519, 0.75
        %v577 = vmul.f32 %v520, 0.75
        %v578 = vmul.f32 %v521, 0.75
        %v579 = vmul.f32 %v522, 0.75
        %v580 = vmul.f32 %v523, 0.75
        %v581 = vmul.f32 %v524, 0.75
        %v582 = vmul.f32 %v525, 0.75
        %v583 = vmul.f32 %v526, 0.75
        %v584 = vmul.f32 %v568, 0.25
        %v585 = vmul.f32 %v550, 0.25
        %v586 = vmul.f32 %v569, 0.25
        %v587 = vmul.f32 %v553, 0.25
        %v588 = vmul.f32 %v570, 0.25
        %v589 = vmul.f32 %v556, 0.25
        %v590 = vmul.f32 %v571, 0.25
        %v591 = vmul.f32 %v559, 0.25
        %v592 = vadd.f32 %v576, %v584
        %v593 = vadd.f32 %v577, %v585
        %v594 = vadd.f32 %v578, %v586
        %v595 = vadd.f32 %v579, %v587
        %v596 = vadd.f32 %v580, %v588
        %v597 = vadd.f32 %v581, %v589
        %v598 = vadd.f32 %v582, %v590
        %v599 = vadd.f32 %v583, %v591
        %v600 = vmul.f32 %v519, 0.25
        %v601 = vmul.f32 %v520, 0.25
        %v602 = vmul.f32 %v549, 0.25
        %v603 = vmul.f32 %v521, 0.25
        %v604 = vmul.f32 %v522, 0.25
        %v605 = vmul.f32 %v552, 0.25
        %v606 = vmul.f32 %v523, 0.25
        %v607 = vmul.f32 %v524, 0.25
        %v608 = vmul.f32 %v555, 0.25
        %v609 = vmul.f32 %v525, 0.25
        %v610 = vmul.f32 %v526, 0.25
        %v611 = vmul.f32 %v558, 0.25
        %vm624 = vcmask 1046528
        %v625 = vrot.slane %v600, 1
        %v626 = vrot.slane %v601, 1
        %v627 = vsel %vm624, %v625, %v626
        %v628 = vrot.slane %v602, 1
        %v629 = vsel %vm624, %v626, %v628
        %v630 = vrot.slane %v603, 1
        %v631 = vrot.slane %v604, 1
        %v632 = vsel %vm624, %v630, %v631
        %v633 = vrot.slane %v605, 1
        %v634 = vsel %vm624, %v631, %v633
        %v635 = vrot.slane %v606, 1
        %v636 = vrot.slane %v607, 1
        %v637 = vsel %vm624, %v635, %v636
        %v638 = vrot.slane %v608, 1
        %v639 = vsel %vm624, %v636, %v638
        %v640 = vrot.slane %v609, 1
        %v641 = vrot.slane %v610, 1
        %v642 = vsel %vm624, %v640, %v641
        %v643 = vrot.slane %v611, 1
        %v644 = vsel %vm624, %v641, %v643
        %v653 = vadd.f32 %v576, %v627
        %v654 = vadd.f32 %v577, %v629
        %v655 = vadd.f32 %v578, %v632
        %v656 = vadd.f32 %v579, %v634
        %v657 = vadd.f32 %v580, %v637
        %v658 = vadd.f32 %v581, %v639
        %v659 = vadd.f32 %v582, %v642
        %v660 = vadd.f32 %v583, %v644
        %669 = vrot.lane.b32.xlu0 %v653, 64
        %v670 = vpop.permute.xlu0 %669
        %671 = vrot.lane.b32.xlu0 %v654, 64
        %v672 = vpop.permute.xlu0 %671
        %673 = vrot.lane.b32.xlu0 %v655, 64
        %v674 = vpop.permute.xlu0 %673
        %675 = vrot.lane.b32.xlu0 %v656, 64
        %v676 = vpop.permute.xlu0 %675
        %677 = vrot.lane.b32.xlu0 %v657, 64
        %v678 = vpop.permute.xlu0 %677
        %679 = vrot.lane.b32.xlu0 %v658, 64
        %v680 = vpop.permute.xlu0 %679
        %681 = vrot.lane.b32.xlu0 %v659, 64
        %v682 = vpop.permute.xlu0 %681
        %683 = vrot.lane.b32.xlu0 %v660, 64
        %v684 = vpop.permute.xlu0 %683
        %vm693 = vcmask 523264
        %v694 = vsel %vm693, %v592, %v670
        %v695 = vsel %vm693, %v593, %v672
        %v696 = vsel %vm693, %v594, %v674
        %v697 = vsel %vm693, %v595, %v676
        %v698 = vsel %vm693, %v596, %v678
        %v699 = vsel %vm693, %v597, %v680
        %v700 = vsel %vm693, %v598, %v682
        %v701 = vsel %vm693, %v599, %v684
        %v710 = vrot.slane %v531, 7
        %v711 = vrot.slane %v532, 7
        %v712 = vsel %vm547, %v710, %v711
        %v713 = vrot.slane %v533, 7
        %v714 = vrot.slane %v534, 7
        %v715 = vsel %vm547, %v713, %v714
        %v716 = vrot.slane %v535, 7
        %v717 = vrot.slane %v536, 7
        %v718 = vsel %vm547, %v716, %v717
        %v719 = vrot.slane %v537, 7
        %v720 = vrot.slane %v538, 7
        %v721 = vsel %vm547, %v719, %v720
        %v730 = vsel %vm547, %v531, %v710
        %v731 = vsel %vm547, %v533, %v713
        %v732 = vsel %vm547, %v535, %v716
        %v733 = vsel %vm547, %v537, %v719
        %v738 = vmul.f32 %v531, 0.75
        %v739 = vmul.f32 %v532, 0.75
        %v740 = vmul.f32 %v533, 0.75
        %v741 = vmul.f32 %v534, 0.75
        %v742 = vmul.f32 %v535, 0.75
        %v743 = vmul.f32 %v536, 0.75
        %v744 = vmul.f32 %v537, 0.75
        %v745 = vmul.f32 %v538, 0.75
        %v746 = vmul.f32 %v730, 0.25
        %v747 = vmul.f32 %v712, 0.25
        %v748 = vmul.f32 %v731, 0.25
        %v749 = vmul.f32 %v715, 0.25
        %v750 = vmul.f32 %v732, 0.25
        %v751 = vmul.f32 %v718, 0.25
        %v752 = vmul.f32 %v733, 0.25
        %v753 = vmul.f32 %v721, 0.25
        %v754 = vadd.f32 %v738, %v746
        %v755 = vadd.f32 %v739, %v747
        %v756 = vadd.f32 %v740, %v748
        %v757 = vadd.f32 %v741, %v749
        %v758 = vadd.f32 %v742, %v750
        %v759 = vadd.f32 %v743, %v751
        %v760 = vadd.f32 %v744, %v752
        %v761 = vadd.f32 %v745, %v753
        %v762 = vmul.f32 %v531, 0.25
        %v763 = vmul.f32 %v532, 0.25
        %v764 = vmul.f32 %v711, 0.25
        %v765 = vmul.f32 %v533, 0.25
        %v766 = vmul.f32 %v534, 0.25
        %v767 = vmul.f32 %v714, 0.25
        %v768 = vmul.f32 %v535, 0.25
        %v769 = vmul.f32 %v536, 0.25
        %v770 = vmul.f32 %v717, 0.25
        %v771 = vmul.f32 %v537, 0.25
        %v772 = vmul.f32 %v538, 0.25
        %v773 = vmul.f32 %v720, 0.25
        %v786 = vrot.slane %v762, 1
        %v787 = vrot.slane %v763, 1
        %v788 = vsel %vm624, %v786, %v787
        %v789 = vrot.slane %v764, 1
        %v790 = vsel %vm624, %v787, %v789
        %v791 = vrot.slane %v765, 1
        %v792 = vrot.slane %v766, 1
        %v793 = vsel %vm624, %v791, %v792
        %v794 = vrot.slane %v767, 1
        %v795 = vsel %vm624, %v792, %v794
        %v796 = vrot.slane %v768, 1
        %v797 = vrot.slane %v769, 1
        %v798 = vsel %vm624, %v796, %v797
        %v799 = vrot.slane %v770, 1
        %v800 = vsel %vm624, %v797, %v799
        %v801 = vrot.slane %v771, 1
        %v802 = vrot.slane %v772, 1
        %v803 = vsel %vm624, %v801, %v802
        %v804 = vrot.slane %v773, 1
        %v805 = vsel %vm624, %v802, %v804
        %v814 = vadd.f32 %v738, %v788
        %v815 = vadd.f32 %v739, %v790
        %v816 = vadd.f32 %v740, %v793
        %v817 = vadd.f32 %v741, %v795
        %v818 = vadd.f32 %v742, %v798
        %v819 = vadd.f32 %v743, %v800
        %v820 = vadd.f32 %v744, %v803
        %v821 = vadd.f32 %v745, %v805
        %830 = vrot.lane.b32.xlu0 %v814, 64
        %v831 = vpop.permute.xlu0 %830
        %832 = vrot.lane.b32.xlu0 %v815, 64
        %v833 = vpop.permute.xlu0 %832
        %834 = vrot.lane.b32.xlu0 %v816, 64
        %v835 = vpop.permute.xlu0 %834
        %836 = vrot.lane.b32.xlu0 %v817, 64
        %v837 = vpop.permute.xlu0 %836
        %838 = vrot.lane.b32.xlu0 %v818, 64
        %v839 = vpop.permute.xlu0 %838
        %840 = vrot.lane.b32.xlu0 %v819, 64
        %v841 = vpop.permute.xlu0 %840
        %842 = vrot.lane.b32.xlu0 %v820, 64
        %v843 = vpop.permute.xlu0 %842
        %844 = vrot.lane.b32.xlu0 %v821, 64
        %v845 = vpop.permute.xlu0 %844
        %v854 = vsel %vm693, %v754, %v831
        %v855 = vsel %vm693, %v755, %v833
        %v856 = vsel %vm693, %v756, %v835
        %v857 = vsel %vm693, %v757, %v837
        %v858 = vsel %vm693, %v758, %v839
        %v859 = vsel %vm693, %v759, %v841
        %v860 = vsel %vm693, %v760, %v843
        %v861 = vsel %vm693, %v761, %v845
        %v862 = vld [vmem:[%s478] sm:$0xff]
        %v863 = vld [vmem:[%s478 + $0x8] sm:$0xff]
        %v864 = vld [vmem:[%s478 + $0x10] sm:$0xff]
        %v865 = vld [vmem:[%s478 + $0x18] sm:$0xff]
        %v866 = vld [vmem:[%s478 + $0x20] sm:$0xff]
        %v867 = vld [vmem:[%s478 + $0x28] sm:$0xff]
        %v868 = vld [vmem:[%s478 + $0x30] sm:$0xff]
        %v869 = vld [vmem:[%s478 + $0x38] sm:$0xff]
        %v870 = vld [vmem:[%s478 + $0x40] sm:$0xff]
        %v871 = vld [vmem:[%s478 + $0x48] sm:$0xff]
        %v872 = vld [vmem:[%s478 + $0x50] sm:$0xff]
        %v873 = vld [vmem:[%s478 + $0x58] sm:$0xff]
        %v874 = vld [vmem:[%s478 + $0x60] sm:$0xff]
        %v875 = vld [vmem:[%s478 + $0x68] sm:$0xff]
        %v876 = vld [vmem:[%s478 + $0x70] sm:$0xff]
        %v877 = vld [vmem:[%s478 + $0x78] sm:$0xff]
        %v878 = vld [vmem:[#allocation2] sm:$0xf]
        %v879 = vld [vmem:[#allocation2 + $0x4] sm:$0xf]
        %v880 = vld [vmem:[#allocation2 + $0x8] sm:$0xf]
        %v881 = vld [vmem:[#allocation2 + $0xc] sm:$0xf]
        %v882 = vld [vmem:[#allocation2 + $0x10] sm:$0xf]
        %v883 = vld [vmem:[#allocation2 + $0x14] sm:$0xf]
        %v884 = vld [vmem:[#allocation2 + $0x18] sm:$0xf]
        %v885 = vld [vmem:[#allocation2 + $0x1c] sm:$0xf]
        %v886 = vld [vmem:[#allocation2 + $0x20] sm:$0xf]
        %v887 = vld [vmem:[#allocation2 + $0x24] sm:$0xf]
        %v888 = vld [vmem:[#allocation2 + $0x28] sm:$0xf]
        %v889 = vld [vmem:[#allocation2 + $0x2c] sm:$0xf]
        %v890 = vld [vmem:[#allocation2 + $0x30] sm:$0xf]
        %v891 = vld [vmem:[#allocation2 + $0x34] sm:$0xf]
        %v892 = vld [vmem:[#allocation2 + $0x38] sm:$0xf]
        %v893 = vld [vmem:[#allocation2 + $0x3c] sm:$0xf]
        %v894 = vld [vmem:[#allocation2 + $0x40] sm:$0xf]
        %v895 = vld [vmem:[#allocation2 + $0x44] sm:$0xf]
        %v896 = vld [vmem:[#allocation2 + $0x48] sm:$0xf]
        %v897 = vld [vmem:[#allocation2 + $0x4c] sm:$0xf]
        %v898 = vld [vmem:[#allocation2 + $0x50] sm:$0xf]
        %v899 = vld [vmem:[#allocation2 + $0x54] sm:$0xf]
        %v900 = vld [vmem:[#allocation2 + $0x58] sm:$0xf]
        %v901 = vld [vmem:[#allocation2 + $0x5c] sm:$0xf]
        %v902 = vld [vmem:[#allocation2 + $0x60] sm:$0xf]
        %v903 = vld [vmem:[#allocation2 + $0x64] sm:$0xf]
        %v904 = vld [vmem:[#allocation2 + $0x68] sm:$0xf]
        %v905 = vld [vmem:[#allocation2 + $0x6c] sm:$0xf]
        %v906 = vld [vmem:[#allocation2 + $0x70] sm:$0xf]
        %v907 = vld [vmem:[#allocation2 + $0x74] sm:$0xf]
        %v908 = vld [vmem:[#allocation2 + $0x78] sm:$0xf]
        %v909 = vld [vmem:[#allocation2 + $0x7c] sm:$0xf]
        %v910 = vld [vmem:[#allocation4] sm:$0x1]
        %v912 = vperm.slane %v910, 0
        %v930 = vunpack.c.l.b16 %v862
        %v931 = vunpack.c.h.b16 %v862
        %v932 = vunpack.c.l.b16 %v863
        %v933 = vunpack.c.h.b16 %v863
        %v934 = vunpack.c.l.b16 %v864
        %v935 = vunpack.c.h.b16 %v864
        %v936 = vunpack.c.l.b16 %v865
        %v937 = vunpack.c.h.b16 %v865
        %v938 = vunpack.c.l.b16 %v866
        %v939 = vunpack.c.h.b16 %v866
        %v940 = vunpack.c.l.b16 %v867
        %v941 = vunpack.c.h.b16 %v867
        %v942 = vunpack.c.l.b16 %v868
        %v943 = vunpack.c.h.b16 %v868
        %v944 = vunpack.c.l.b16 %v869
        %v945 = vunpack.c.h.b16 %v869
        %v946 = vunpack.c.l.b16 %v870
        %v947 = vunpack.c.h.b16 %v870
        %v948 = vunpack.c.l.b16 %v871
        %v949 = vunpack.c.h.b16 %v871
        %v950 = vunpack.c.l.b16 %v872
        %v951 = vunpack.c.h.b16 %v872
        %v952 = vunpack.c.l.b16 %v873
        %v953 = vunpack.c.h.b16 %v873
        %v954 = vunpack.c.l.b16 %v874
        %v955 = vunpack.c.h.b16 %v874
        %v956 = vunpack.c.l.b16 %v875
        %v957 = vunpack.c.h.b16 %v875
        %v958 = vunpack.c.l.b16 %v876
        %v959 = vunpack.c.h.b16 %v876
        %v960 = vunpack.c.l.b16 %v877
        %v961 = vunpack.c.h.b16 %v877
        %v962 = vpack.c.b16 %v932, %v930
        %v963 = vpack.c.b16 %v933, %v931
        %v964 = vpack.c.b16 %v936, %v934
        %v965 = vpack.c.b16 %v937, %v935
        %v966 = vpack.c.b16 %v940, %v938
        %v967 = vpack.c.b16 %v941, %v939
        %v968 = vpack.c.b16 %v944, %v942
        %v969 = vpack.c.b16 %v945, %v943
        %v970 = vpack.c.b16 %v948, %v946
        %v971 = vpack.c.b16 %v949, %v947
        %v972 = vpack.c.b16 %v952, %v950
        %v973 = vpack.c.b16 %v953, %v951
        %v974 = vpack.c.b16 %v956, %v954
        %v975 = vpack.c.b16 %v957, %v955
        %v976 = vpack.c.b16 %v960, %v958
        %v977 = vpack.c.b16 %v961, %v959
        %v1026 = vunpack.c.l.b16 %v878
        %v1027 = vunpack.c.l.b16 %v879
        %v1028 = vunpack.c.l.b16 %v880
        %v1029 = vunpack.c.l.b16 %v881
        %v1030 = vunpack.c.l.b16 %v882
        %v1031 = vunpack.c.l.b16 %v883
        %v1032 = vunpack.c.l.b16 %v884
        %v1033 = vunpack.c.l.b16 %v885
        %v1034 = vunpack.c.l.b16 %v886
        %v1035 = vunpack.c.l.b16 %v887
        %v1036 = vunpack.c.l.b16 %v888
        %v1037 = vunpack.c.l.b16 %v889
        %v1038 = vunpack.c.l.b16 %v890
        %v1039 = vunpack.c.l.b16 %v891
        %v1040 = vunpack.c.l.b16 %v892
        %v1041 = vunpack.c.l.b16 %v893
        %v1042 = vunpack.c.l.b16 %v894
        %v1043 = vunpack.c.l.b16 %v895
        %v1044 = vunpack.c.l.b16 %v896
        %v1045 = vunpack.c.l.b16 %v897
        %v1046 = vunpack.c.l.b16 %v898
        %v1047 = vunpack.c.l.b16 %v899
        %v1048 = vunpack.c.l.b16 %v900
        %v1049 = vunpack.c.l.b16 %v901
        %v1050 = vunpack.c.l.b16 %v902
        %v1051 = vunpack.c.l.b16 %v903
        %v1052 = vunpack.c.l.b16 %v904
        %v1053 = vunpack.c.l.b16 %v905
        %v1054 = vunpack.c.l.b16 %v906
        %v1055 = vunpack.c.l.b16 %v907
        %v1056 = vunpack.c.l.b16 %v908
        %v1057 = vunpack.c.l.b16 %v909
        %v1058 = vpack.c.b16 %v1027, %v1026
        %v1059 = vpack.c.b16 %v1029, %v1028
        %v1060 = vpack.c.b16 %v1031, %v1030
        %v1061 = vpack.c.b16 %v1033, %v1032
        %v1062 = vpack.c.b16 %v1035, %v1034
        %v1063 = vpack.c.b16 %v1037, %v1036
        %v1064 = vpack.c.b16 %v1039, %v1038
        %v1065 = vpack.c.b16 %v1041, %v1040
        %v1066 = vpack.c.b16 %v1043, %v1042
        %v1067 = vpack.c.b16 %v1045, %v1044
        %v1068 = vpack.c.b16 %v1047, %v1046
        %v1069 = vpack.c.b16 %v1049, %v1048
        %v1070 = vpack.c.b16 %v1051, %v1050
        %v1071 = vpack.c.b16 %v1053, %v1052
        %v1072 = vpack.c.b16 %v1055, %v1054
        %v1073 = vpack.c.b16 %v1057, %v1056
        %1090 = vmatpush.bf16.msra.mxu0 %v1065
        %1091 = vmatpush.bf16.msra.mxu0 %v1064
        %1092 = vmatpush.bf16.msra.mxu0 %v1063
        %1093 = vmatpush.bf16.msra.mxu0 %v1062
        %1094 = vmatpush.bf16.msra.mxu0 %v1061
        %1095 = vmatpush.bf16.msra.mxu0 %v1060
        %1096 = vmatpush.bf16.msra.mxu0 %v1059
        %1097 = vmatpush.bf16.msra.mxu0 %v1058
        %1098 = vmatmul.bf16.gmra.mxu0 %v962
        %v1099 = vpop.f32.mrf.mxu0
        %v1100 = vadd.f32 %v912, %v1099
        %v1101 = vpop.f32.mrf.mxu0
        %v1102 = vadd.f32 %v912, %v1101
        %1103 = vmatmul.bf16.gmra.mxu0 %v964
        %v1104 = vpop.f32.mrf.mxu0
        %v1105 = vadd.f32 %v912, %v1104
        %v1106 = vpop.f32.mrf.mxu0
        %v1107 = vadd.f32 %v912, %v1106
        %1108 = vmatmul.bf16.gmra.mxu0 %v966
        %v1109 = vpop.f32.mrf.mxu0
        %v1110 = vadd.f32 %v912, %v1109
        %v1111 = vpop.f32.mrf.mxu0
        %v1112 = vadd.f32 %v912, %v1111
        %1113 = vmatmul.bf16.gmra.mxu0 %v968
        %v1114 = vpop.f32.mrf.mxu0
        %v1115 = vadd.f32 %v912, %v1114
        %v1116 = vpop.f32.mrf.mxu0
        %v1117 = vadd.f32 %v912, %v1116
        %1118 = vmatmul.bf16.gmra.mxu0 %v970
        %v1119 = vpop.f32.mrf.mxu0
        %v1120 = vadd.f32 %v912, %v1119
        %v1121 = vpop.f32.mrf.mxu0
        %v1122 = vadd.f32 %v912, %v1121
        %1123 = vmatmul.bf16.gmra.mxu0 %v972
        %v1124 = vpop.f32.mrf.mxu0
        %v1125 = vadd.f32 %v912, %v1124
        %v1126 = vpop.f32.mrf.mxu0
        %v1127 = vadd.f32 %v912, %v1126
        %1128 = vmatmul.bf16.gmra.mxu0 %v974
        %v1129 = vpop.f32.mrf.mxu0
        %v1130 = vadd.f32 %v912, %v1129
        %v1131 = vpop.f32.mrf.mxu0
        %v1132 = vadd.f32 %v912, %v1131
        %1133 = vmatmul.bf16.gmra.mxu0 %v976
        %v1134 = vpop.f32.mrf.mxu0
        %v1135 = vadd.f32 %v912, %v1134
        %v1136 = vpop.f32.mrf.mxu0
        %v1137 = vadd.f32 %v912, %v1136
        %1138 = vdwg.mxu0
        %1139 = vmatpush.bf16.msra.mxu0 %v1073
        %1140 = vmatpush.bf16.msra.mxu0 %v1072
        %1141 = vmatpush.bf16.msra.mxu0 %v1071
        %1142 = vmatpush.bf16.msra.mxu0 %v1070
        %1143 = vmatpush.bf16.msra.mxu0 %v1069
        %1144 = vmatpush.bf16.msra.mxu0 %v1068
        %1145 = vmatpush.bf16.msra.mxu0 %v1067
        %1146 = vmatpush.bf16.msra.mxu0 %v1066
        %1147 = vmatmul.bf16.gmra.mxu0 %v963
        %v1148 = vpop.f32.mrf.mxu0
        %v1149 = vadd.f32 %v1100, %v1148
        %v1150 = vpop.f32.mrf.mxu0
        %v1151 = vadd.f32 %v1102, %v1150
        %1152 = vmatmul.bf16.gmra.mxu0 %v965
        %v1153 = vpop.f32.mrf.mxu0
        %v1154 = vadd.f32 %v1105, %v1153
        %v1155 = vpop.f32.mrf.mxu0
        %v1156 = vadd.f32 %v1107, %v1155
        %1157 = vmatmul.bf16.gmra.mxu0 %v967
        %v1158 = vpop.f32.mrf.mxu0
        %v1159 = vadd.f32 %v1110, %v1158
        %v1160 = vpop.f32.mrf.mxu0
        %v1161 = vadd.f32 %v1112, %v1160
        %1162 = vmatmul.bf16.gmra.mxu0 %v969
        %v1163 = vpop.f32.mrf.mxu0
        %v1164 = vadd.f32 %v1115, %v1163
        %v1165 = vpop.f32.mrf.mxu0
        %v1166 = vadd.f32 %v1117, %v1165
        %1167 = vmatmul.bf16.gmra.mxu0 %v971
        %v1168 = vpop.f32.mrf.mxu0
        %v1169 = vadd.f32 %v1120, %v1168
        %v1170 = vpop.f32.mrf.mxu0
        %v1171 = vadd.f32 %v1122, %v1170
        %1172 = vmatmul.bf16.gmra.mxu0 %v973
        %v1173 = vpop.f32.mrf.mxu0
        %v1174 = vadd.f32 %v1125, %v1173
        %v1175 = vpop.f32.mrf.mxu0
        %v1176 = vadd.f32 %v1127, %v1175
        %1177 = vmatmul.bf16.gmra.mxu0 %v975
        %v1178 = vpop.f32.mrf.mxu0
        %v1179 = vadd.f32 %v1130, %v1178
        %v1180 = vpop.f32.mrf.mxu0
        %v1181 = vadd.f32 %v1132, %v1180
        %1182 = vmatmul.bf16.gmra.mxu0 %v977
        %v1183 = vpop.f32.mrf.mxu0
        %v1184 = vadd.f32 %v1135, %v1183
        %v1185 = vpop.f32.mrf.mxu0
        %v1186 = vadd.f32 %v1137, %v1185
        %1187 = vdwg.mxu0
        %v1188 = vadd.f32 %v694, %v1149
        %v1189 = vadd.f32 %v695, %v1151
        %v1190 = vadd.f32 %v696, %v1159
        %v1191 = vadd.f32 %v697, %v1161
        %v1192 = vadd.f32 %v698, %v1169
        %v1193 = vadd.f32 %v699, %v1171
        %v1194 = vadd.f32 %v700, %v1179
        %v1195 = vadd.f32 %v701, %v1181
        %1196 = vst [vmem:[%s489] sm:$0xff] %v1188
        %1197 = vst [vmem:[%s489 + $0x8] sm:$0xff] %v1189
        %1198 = vst [vmem:[%s489 + $0x20] sm:$0xff] %v1190
        %1199 = vst [vmem:[%s489 + $0x28] sm:$0xff] %v1191
        %1200 = vst [vmem:[%s489 + $0x40] sm:$0xff] %v1192
        %1201 = vst [vmem:[%s489 + $0x48] sm:$0xff] %v1193
        %1202 = vst [vmem:[%s489 + $0x60] sm:$0xff] %v1194
        %1203 = vst [vmem:[%s489 + $0x68] sm:$0xff] %v1195
        %v1204 = vadd.f32 %v854, %v1154
        %v1205 = vadd.f32 %v855, %v1156
        %v1206 = vadd.f32 %v856, %v1164
        %v1207 = vadd.f32 %v857, %v1166
        %v1208 = vadd.f32 %v858, %v1174
        %v1209 = vadd.f32 %v859, %v1176
        %v1210 = vadd.f32 %v860, %v1184
        %v1211 = vadd.f32 %v861, %v1186
        %s1212 = scalar_lea.vmem %s489, 16
        %1213 = vst [vmem:[%s1212] sm:$0xff] %v1204
        %1214 = vst [vmem:[%s1212 + $0x8] sm:$0xff] %v1205
        %1215 = vst [vmem:[%s1212 + $0x20] sm:$0xff] %v1206
        %1216 = vst [vmem:[%s1212 + $0x28] sm:$0xff] %v1207
        %1217 = vst [vmem:[%s1212 + $0x40] sm:$0xff] %v1208
        %1218 = vst [vmem:[%s1212 + $0x48] sm:$0xff] %v1209
        %1219 = vst [vmem:[%s1212 + $0x60] sm:$0xff] %v1210
        %1220 = vst [vmem:[%s1212 + $0x68] sm:$0xff] %v1211
        %s1221 = smul.u32 4, %s24
        %p1222 = scmp.lt.s32.totalorder %s23, 1
        %s1223 = scalar_select %p1222, %s23, 1
        %p1224 = scmp.lt.s32.totalorder %s1221, 3
        %s1225 = scalar_select %p1224, %s1221, 3
        %s1226 = smul.addr %s1225, 4
        %s1227 = smul.addr %s1223, 16
        %s1228 = sadd.s32 %s1226, %s1227
        %s1229 = smul.addr %s1228, 8
        %s1230 = scalar_lea.vmem %s6, %s1229
        // Predicated region
        $region53: #{_lambda_.7} parent=43 // pred_check
          %p1231 = pneg %p221
        $region54: #{_lambda_.7} parent=43 // pred_check_branch
          %1233 = sbr.rel (%p1231) target = $region56
        $region55: #{_lambda_.7} parent=43 // pred_region
          %s1234 = smul.u32 4, %s24
        $region56: #{_lambda_.7} parent=43 // pred_fallthru
          _
      $region44: #{_lambda_.7} parent=5 // pred_fallthru
        _
      %p1235 = scmp.le.s32.totalorder 2, %s14
      // Predicated region
      $region57: #{_lambda_.7} parent=5 // pred_check
        %p1236 = pneg %p1235
      $region58: #{_lambda_.7} parent=5 // pred_check_branch
        %1238 = sbr.rel (%p1236) target = $region60
      $region59: #{_lambda_.7} parent=5 // pred_region
        %s1239 = ssub.s32 %s14, 2
        // Predicated region
        $region61: #{_lambda_.7} parent=59 // pred_check
          %p1240 = pneg %p227
        $region62: #{_lambda_.7} parent=59 // pred_check_branch
          %1242 = sbr.rel (%p1240) target = $region64
        $region63: #{_lambda_.7} parent=59 // pred_region
          %s1243 = smul.u32 4, %s26
          %p1244 = scmp.lt.s32.totalorder %s25, 1
          %s1245 = scalar_select %p1244, %s25, 1
          %p1246 = scmp.lt.s32.totalorder %s1243, 3
          %s1247 = scalar_select %p1246, %s1243, 3
          %s1248 = smul.addr %s1247, 4
          %s1249 = smul.addr %s1245, 16
          %s1250 = sadd.s32 %s1248, %s1249
          %s1251 = smul.addr %s1250, 8
          %s1252 = scalar_lea.vmem %s6, %s1251
        $region64: #{_lambda_.7} parent=59 // pred_fallthru
          _
      $region60: #{_lambda_.7} parent=5 // pred_fallthru
        _
    $region6: #{_lambda_.7} parent=1 // loop_footer
      %s18 = sadd.s32 1, %s14
    $region7: #{_lambda_.7} parent=1 // loop_footer_branch
      %13 = sbr.rel target = $region3
    $region8: #{_lambda_.7} parent=1 // loop_exit
      _
    %1253 = vsyncpa [#allocation3], 1
    %s1254 = scalar_lea.sflag [#allocation3], 1
    %1255 = vsyncpa %s1254, 1
    %1256 = vsyncpa [#allocation5], 1

// kernel: _lambda_.8
$region0: #{_lambda_.8}
  #allocation0 [shape = 'u32[]', space=smem, size = 0x4, offset = 0x4, fixed_abs, tag = 'smem constant byte address 0x4 - core index']
  #allocation1 [shape = 'u32[72,128]{1,0:T(1,128)}', space=vmem, size = 0x9000, scoped, tag = 'internal scratch']
  %s0 = inlined_call_operand.vmem [shape: f32[2,8,32,64], index: 0, kind: input, shape index: {}, may-alias: {0,1,2}]
  %s1 = inlined_call_operand.vmem [shape: f32[2,8,32,64], index: 1, kind: input, shape index: {}, may-alias: {0,1,2}]
  %s2 = inlined_call_operand.vmem [shape: f32[2,8,32,64], index: 2, kind: input, shape index: {}, may-alias: {0,1,2}]
  %s3 = inlined_call_operand.vmem [shape: bf16[2,512,128], index: 3, kind: input, shape index: {}]
  %s4 = inlined_call_operand.vmem [shape: bf16[128,128], index: 4, kind: input, shape index: {}]
  %s5 = inlined_call_operand.vmem [shape: f32[1,128], index: 5, kind: input, shape index: {}]
  %s6 = inlined_call_operand.vmem [shape: f32[2,8,2,32,128], index: 6, kind: output, shape index: {}]
  %s7 = sld [smem:[#allocation0]]
  $region57: #{_lambda_.8} parent=0
    _
  %s9 = ssub.s32 1, %s7
  %s10 = scalar_select 0, %s9, %s7
  loop: start=0, step=1, limit=4
  $region2: #{_lambda_.8} parent=0 // loop_pre_header
    _
  $region3: #{_lambda_.8} parent=0 // loop_header
    %s12 = sphi 0, %s16
    %p13 = scmp.ge.s32.totalorder %s12, 4
    %s19 = sphi 0, %s31
    %s20 = sphi 0, %s27
    %s21 = sphi 0, %s19
    %s22 = sphi 0, %s20
    %s23 = sphi 0, %s21
    %s24 = sphi 0, %s22
    %s36 = sphi 0, %s38
    %s39 = sphi 0, %s36
    %s40 = sphi 0, %s39
    %s56 = sphi 0, %s40
    %s72 = sphi 0, %s74
    %s75 = sphi 0, %s72
    %s76 = sphi 0, %s75
    %s92 = sphi 0, %s76
    %s108 = sphi 0, %s110
    %s111 = sphi 0, %s108
    %s112 = sphi 0, %s111
    %s128 = sphi 0, %s112
    %s136 = sphi 0, %s138
    %s139 = sphi 0, %s136
    %s140 = sphi 0, %s139
    %s156 = sphi 0, %s140
    %s160 = sphi 0, %s160
    %s162 = sphi 0, %s160
    %s163 = sphi 0, %s162
    %s177 = sphi 0, %s163
    %s181 = sphi 0, %s181
    %s183 = sphi 0, %s181
    %s184 = sphi 0, %s183
    %s198 = sphi 0, %s184
    %s206 = sphi 0, %s208
    %s209 = sphi 0, %s206
    %s210 = sphi 0, %s209
    %s226 = sphi 0, %s210
  $region4: #{_lambda_.8} parent=0 // loop_header_branch
    %15 = sbr.rel (%p13) target = $region8
  $region5: #{_lambda_.8} parent=0 // loop_body
    %s17 = ssub.s32 %s12, 1
    %s18 = ssub.s32 %s12, 2
    %s25 = sadd.s32 1, %s20
    %p26 = scmp.ge.s32.totalorder %s25, 1
    %s27 = scalar_select %p26, 0, %s25
    %s28 = sadd.s32 1, %s19
    %s29 = scalar_select %p26, %s28, %s19
    %p30 = scmp.ge.s32.totalorder %s29, 2
    %s31 = scalar_select %p30, 0, %s29
    %s32 = ssub.s32 %s19, %s31
    %s33 = ssub.s32 %s20, %s27
    %s34 = sor.u32 %s32, %s33
    %p35 = scmp.eq.s32.totalorder %s34, 0
    %s37 = sadd.s32 %s36, 1
    %s38 = scalar_select %p35, %s36, %s37
    %p41 = pneg %p35
    %p42 = scmp.eq.s32.totalorder %s12, 1
    %p43 = por %p41, %p42
    %p44 = scmp.ne.s32.totalorder %s36, %s39
    %p45 = scmp.eq.s32.totalorder %s12, 0
    %p46 = por %p44, %p45
    %p47 = scmp.ne.s32.totalorder %s36, %s39
    %p48 = scmp.eq.s32.totalorder %s17, 1
    %p49 = por %p47, %p48
    %p50 = scmp.ne.s32.totalorder %s39, %s40
    %p51 = scmp.eq.s32.totalorder %s17, 0
    %p52 = por %p50, %p51
    %p53 = scmp.ne.s32.totalorder %s39, %s40
    %p54 = scmp.eq.s32.totalorder %s18, 1
    %p55 = por %p53, %p54
    %p57 = scmp.ne.s32.totalorder %s40, %s56
    %p58 = scmp.eq.s32.totalorder %s18, 0
    %p59 = por %p57, %p58
    %s60 = smul.u32 %s20, 8
    %s61 = ssub.s32 %s60, 1
    %p62 = scmp.gt.s32.totalorder %s61, 0
    %s63 = scalar_select %p62, %s61, 0
    %s64 = smul.u32 %s27, 8
    %s65 = ssub.s32 %s64, 1
    %p66 = scmp.gt.s32.totalorder %s65, 0
    %s67 = scalar_select %p66, %s65, 0
    %s68 = ssub.s32 %s19, %s31
    %s69 = ssub.s32 %s63, %s67
    %s70 = sor.u32 %s68, %s69
    %p71 = scmp.eq.s32.totalorder %s70, 0
    %s73 = sadd.s32 %s72, 1
    %s74 = scalar_select %p71, %s72, %s73
    %p77 = pneg %p71
    %p78 = scmp.eq.s32.totalorder %s12, 1
    %p79 = por %p77, %p78
    %p80 = scmp.ne.s32.totalorder %s72, %s75
    %p81 = scmp.eq.s32.totalorder %s12, 0
    %p82 = por %p80, %p81
    %p83 = scmp.ne.s32.totalorder %s72, %s75
    %p84 = scmp.eq.s32.totalorder %s17, 1
    %p85 = por %p83, %p84
    %p86 = scmp.ne.s32.totalorder %s75, %s76
    %p87 = scmp.eq.s32.totalorder %s17, 0
    %p88 = por %p86, %p87
    %p89 = scmp.ne.s32.totalorder %s75, %s76
    %p90 = scmp.eq.s32.totalorder %s18, 1
    %p91 = por %p89, %p90
    %p93 = scmp.ne.s32.totalorder %s76, %s92
    %p94 = scmp.eq.s32.totalorder %s18, 0
    %p95 = por %p93, %p94
    %s96 = sadd.s32 %s20, 1
    %s97 = smul.u32 %s96, 8
    %p98 = scmp.lt.s32.totalorder %s97, 7
    %s99 = scalar_select %p98, %s97, 7
    %s100 = sadd.s32 %s27, 1
    %s101 = smul.u32 %s100, 8
    %p102 = scmp.lt.s32.totalorder %s101, 7
    %s103 = scalar_select %p102, %s101, 7
    %s104 = ssub.s32 %s19, %s31
    %s105 = ssub.s32 %s99, %s103
    %s106 = sor.u32 %s104, %s105
    %p107 = scmp.eq.s32.totalorder %s106, 0
    %s109 = sadd.s32 %s108, 1
    %s110 = scalar_select %p107, %s108, %s109
    %p113 = pneg %p107
    %p114 = scmp.eq.s32.totalorder %s12, 1
    %p115 = por %p113, %p114
    %p116 = scmp.ne.s32.totalorder %s108, %s111
    %p117 = scmp.eq.s32.totalorder %s12, 0
    %p118 = por %p116, %p117
    %p119 = scmp.ne.s32.totalorder %s108, %s111
    %p120 = scmp.eq.s32.totalorder %s17, 1
    %p121 = por %p119, %p120
    %p122 = scmp.ne.s32.totalorder %s111, %s112
    %p123 = scmp.eq.s32.totalorder %s17, 0
    %p124 = por %p122, %p123
    %p125 = scmp.ne.s32.totalorder %s111, %s112
    %p126 = scmp.eq.s32.totalorder %s18, 1
    %p127 = por %p125, %p126
    %p129 = scmp.ne.s32.totalorder %s112, %s128
    %p130 = scmp.eq.s32.totalorder %s18, 0
    %p131 = por %p129, %p130
    %s132 = ssub.s32 %s19, %s31
    %s133 = ssub.s32 %s20, %s27
    %s134 = sor.u32 %s132, %s133
    %p135 = scmp.eq.s32.totalorder %s134, 0
    %s137 = sadd.s32 %s136, 1
    %s138 = scalar_select %p135, %s136, %s137
    %p141 = pneg %p135
    %p142 = scmp.eq.s32.totalorder %s12, 1
    %p143 = por %p141, %p142
    %p144 = scmp.ne.s32.totalorder %s136, %s139
    %p145 = scmp.eq.s32.totalorder %s12, 0
    %p146 = por %p144, %p145
    %p147 = scmp.ne.s32.totalorder %s136, %s139
    %p148 = scmp.eq.s32.totalorder %s17, 1
    %p149 = por %p147, %p148
    %p150 = scmp.ne.s32.totalorder %s139, %s140
    %p151 = scmp.eq.s32.totalorder %s17, 0
    %p152 = por %p150, %p151
    %p153 = scmp.ne.s32.totalorder %s139, %s140
    %p154 = scmp.eq.s32.totalorder %s18, 1
    %p155 = por %p153, %p154
    %p157 = scmp.ne.s32.totalorder %s140, %s156
    %p158 = scmp.eq.s32.totalorder %s18, 0
    %p159 = por %p157, %p158
    %s161 = sadd.s32 %s160, 1
    %p164 = scmp.eq.s32.totalorder %s12, 1
    %p165 = scmp.ne.s32.totalorder %s160, %s162
    %p166 = scmp.eq.s32.totalorder %s12, 0
    %p167 = por %p165, %p166
    %p168 = scmp.ne.s32.totalorder %s160, %s162
    %p169 = scmp.eq.s32.totalorder %s17, 1
    %p170 = por %p168, %p169
    %p171 = scmp.ne.s32.totalorder %s162, %s163
    %p172 = scmp.eq.s32.totalorder %s17, 0
    %p173 = por %p171, %p172
    %p174 = scmp.ne.s32.totalorder %s162, %s163
    %p175 = scmp.eq.s32.totalorder %s18, 1
    %p176 = por %p174, %p175
    %p178 = scmp.ne.s32.totalorder %s163, %s177
    %p179 = scmp.eq.s32.totalorder %s18, 0
    %p180 = por %p178, %p179
    %s182 = sadd.s32 %s181, 1
    %p185 = scmp.eq.s32.totalorder %s12, 1
    %p186 = scmp.ne.s32.totalorder %s181, %s183
    %p187 = scmp.eq.s32.totalorder %s12, 0
    %p188 = por %p186, %p187
    %p189 = scmp.ne.s32.totalorder %s181, %s183
    %p190 = scmp.eq.s32.totalorder %s17, 1
    %p191 = por %p189, %p190
    %p192 = scmp.ne.s32.totalorder %s183, %s184
    %p193 = scmp.eq.s32.totalorder %s17, 0
    %p194 = por %p192, %p193
    %p195 = scmp.ne.s32.totalorder %s183, %s184
    %p196 = scmp.eq.s32.totalorder %s18, 1
    %p197 = por %p195, %p196
    %p199 = scmp.ne.s32.totalorder %s184, %s198
    %p200 = scmp.eq.s32.totalorder %s18, 0
    %p201 = por %p199, %p200
    %s202 = ssub.s32 %s19, %s31
    %s203 = ssub.s32 %s20, %s27
    %s204 = sor.u32 %s202, %s203
    %p205 = scmp.eq.s32.totalorder %s204, 0
    %s207 = sadd.s32 %s206, 1
    %s208 = scalar_select %p205, %s206, %s207
    %p211 = pneg %p205
    %p212 = scmp.eq.s32.totalorder %s12, 1
    %p213 = por %p211, %p212
    %p214 = scmp.ne.s32.totalorder %s206, %s209
    %p215 = scmp.eq.s32.totalorder %s12, 0
    %p216 = por %p214, %p215
    %p217 = scmp.ne.s32.totalorder %s206, %s209
    %p218 = scmp.eq.s32.totalorder %s17, 1
    %p219 = por %p217, %p218
    %p220 = scmp.ne.s32.totalorder %s209, %s210
    %p221 = scmp.eq.s32.totalorder %s17, 0
    %p222 = por %p220, %p221
    %p223 = scmp.ne.s32.totalorder %s209, %s210
    %p224 = scmp.eq.s32.totalorder %s18, 1
    %p225 = por %p223, %p224
    %p227 = scmp.ne.s32.totalorder %s210, %s226
    %p228 = scmp.eq.s32.totalorder %s18, 0
    %p229 = por %p227, %p228
    %p230 = scmp.le.s32.totalorder 1, %s12
    %p231 = scmp.lt.s32.totalorder %s12, 3
    %p232 = pnand %p230, %p231
    %p233 = pneg %p232
    // Predicated region
    $region9: #{_lambda_.8} parent=5 // pred_check
      _
    $region10: #{_lambda_.8} parent=5 // pred_check_branch
      %235 = sbr.rel (%p232) target = $region12
    $region11: #{_lambda_.8} parent=5 // pred_region
      %s236 = ssub.s32 %s12, 1
      // Predicated region
      $region13: #{_lambda_.8} parent=11 // pred_check
        %p237 = pneg %p173
      $region14: #{_lambda_.8} parent=11 // pred_check_branch
        %239 = sbr.rel (%p237) target = $region16
      $region15: #{_lambda_.8} parent=11 // pred_region
        _
      $region16: #{_lambda_.8} parent=11 // pred_fallthru
        _
      // Predicated region
      $region17: #{_lambda_.8} parent=11 // pred_check
        %p240 = pneg %p194
      $region18: #{_lambda_.8} parent=11 // pred_check_branch
        %242 = sbr.rel (%p240) target = $region20
      $region19: #{_lambda_.8} parent=11 // pred_region
        _
      $region20: #{_lambda_.8} parent=11 // pred_fallthru
        _
    $region12: #{_lambda_.8} parent=5 // pred_fallthru
      _
    %p243 = scmp.lt.s32.totalorder %s12, 2
    // Predicated region
    $region21: #{_lambda_.8} parent=5 // pred_check
      %p244 = pneg %p243
    $region22: #{_lambda_.8} parent=5 // pred_check_branch
      %246 = sbr.rel (%p244) target = $region24
    $region23: #{_lambda_.8} parent=5 // pred_region
      // Predicated region
      $region25: #{_lambda_.8} parent=23 // pred_check
        %p247 = pneg %p46
      $region26: #{_lambda_.8} parent=23 // pred_check_branch
        %249 = sbr.rel (%p247) target = $region28
      $region27: #{_lambda_.8} parent=23 // pred_region
        %s250 = smul.u32 8, %s20
        %p251 = scmp.lt.s32.totalorder %s19, 1
        %s252 = scalar_select %p251, %s19, 1
        %p253 = scmp.lt.s32.totalorder %s250, 7
        %s254 = scalar_select %p253, %s250, 7
        %s255 = smul.addr %s254, 4
        %s256 = smul.addr %s252, 32
        %s257 = sadd.s32 %s255, %s256
        %s258 = smul.addr %s257, 8
        %s259 = scalar_lea.vmem %s0, %s258
        %s260 = smul.u32 8, %s20
      $region28: #{_lambda_.8} parent=23 // pred_fallthru
        _
      // Predicated region
      $region29: #{_lambda_.8} parent=23 // pred_check
        %p261 = pneg %p82
      $region30: #{_lambda_.8} parent=23 // pred_check_branch
        %263 = sbr.rel (%p261) target = $region32
      $region31: #{_lambda_.8} parent=23 // pred_region
        %s264 = smul.u32 %s20, 8
        %s265 = ssub.s32 %s264, 1
        %p266 = scmp.gt.s32.totalorder %s265, 0
        %s267 = scalar_select %p266, %s265, 0
        %p268 = scmp.lt.s32.totalorder %s19, 1
        %s269 = scalar_select %p268, %s19, 1
        %p270 = scmp.lt.s32.totalorder %s267, 7
        %s271 = scalar_select %p270, %s267, 7
        %s272 = smul.addr %s271, 4
        %s273 = smul.addr %s269, 32
        %s274 = sadd.s32 %s272, %s273
        %s275 = smul.addr %s274, 8
        %s276 = scalar_lea.vmem %s1, %s275
        %s277 = smul.u32 %s20, 8
        %s278 = ssub.s32 %s277, 1
        %p279 = scmp.gt.s32.totalorder %s278, 0
        %s280 = scalar_select %p279, %s278, 0
      $region32: #{_lambda_.8} parent=23 // pred_fallthru
        _
      // Predicated region
      $region33: #{_lambda_.8} parent=23 // pred_check
        %p281 = pneg %p118
      $region34: #{_lambda_.8} parent=23 // pred_check_branch
        %283 = sbr.rel (%p281) target = $region36
      $region35: #{_lambda_.8} parent=23 // pred_region
        %s284 = sadd.s32 %s20, 1
        %s285 = smul.u32 %s284, 8
        %p286 = scmp.lt.s32.totalorder %s285, 7
        %s287 = scalar_select %p286, %s285, 7
        %p288 = scmp.lt.s32.totalorder %s19, 1
        %s289 = scalar_select %p288, %s19, 1
        %p290 = scmp.lt.s32.totalorder %s287, 7
        %s291 = scalar_select %p290, %s287, 7
        %s292 = smul.addr %s291, 4
        %s293 = smul.addr %s289, 32
        %s294 = sadd.s32 %s292, %s293
        %s295 = smul.addr %s294, 8
        %s296 = scalar_lea.vmem %s2, %s295
        %s297 = sadd.s32 %s20, 1
        %s298 = smul.u32 %s297, 8
        %p299 = scmp.lt.s32.totalorder %s298, 7
        %s300 = scalar_select %p299, %s298, 7
      $region36: #{_lambda_.8} parent=23 // pred_fallthru
        _
      // Predicated region
      $region37: #{_lambda_.8} parent=23 // pred_check
        %p301 = pneg %p146
      $region38: #{_lambda_.8} parent=23 // pred_check_branch
        %303 = sbr.rel (%p301) target = $region40
      $region39: #{_lambda_.8} parent=23 // pred_region
        %s304 = smul.u32 64, %s20
        %p305 = scmp.lt.s32.totalorder %s19, 1
        %s306 = scalar_select %p305, %s19, 1
        %p307 = scmp.lt.s32.totalorder %s304, 63
        %s308 = scalar_select %p307, %s304, 63
        %s309 = smul.addr %s306, 64
        %s310 = sadd.s32 %s308, %s309
        %s311 = smul.addr %s310, 4
        %s312 = scalar_lea.vmem %s3, %s311
        %s313 = smul.u32 64, %s20
      $region40: #{_lambda_.8} parent=23 // pred_fallthru
        _
    $region24: #{_lambda_.8} parent=5 // pred_fallthru
      _
    %p314 = scmp.le.s32.totalorder 1, %s12
    %p315 = scmp.lt.s32.totalorder %s12, 3
    %p316 = pnand %p314, %p315
    %p317 = pneg %p316
    // Predicated region
    $region41: #{_lambda_.8} parent=5 // pred_check
      _
    $region42: #{_lambda_.8} parent=5 // pred_check_branch
      %319 = sbr.rel (%p316) target = $region44
    $region43: #{_lambda_.8} parent=5 // pred_region
      %s320 = ssub.s32 %s12, 1
      %s321 = smul.u32 8, %s22
      %p322 = scmp.lt.s32.totalorder %s21, 1
      %s323 = scalar_select %p322, %s21, 1
      %p324 = scmp.lt.s32.totalorder %s321, 7
      %s325 = scalar_select %p324, %s321, 7
      %s326 = smul.addr %s325, 4
      %s327 = smul.addr %s323, 32
      %s328 = sadd.s32 %s326, %s327
      %s329 = smul.addr %s328, 8
      %s330 = scalar_lea.vmem %s0, %s329
      %p331 = pneg %p52
      %p332 = pneg %p49
      %s333 = smul.u32 %s22, 8
      %s334 = ssub.s32 %s333, 1
      %p335 = scmp.gt.s32.totalorder %s334, 0
      %s336 = scalar_select %p335, %s334, 0
      %p337 = scmp.lt.s32.totalorder %s21, 1
      %s338 = scalar_select %p337, %s21, 1
      %p339 = scmp.lt.s32.totalorder %s336, 7
      %s340 = scalar_select %p339, %s336, 7
      %s341 = smul.addr %s340, 4
      %s342 = smul.addr %s338, 32
      %s343 = sadd.s32 %s341, %s342
      %s344 = smul.addr %s343, 8
      %s345 = scalar_lea.vmem %s1, %s344
      %p346 = pneg %p88
      %p347 = pneg %p85
      %s348 = sadd.s32 %s22, 1
      %s349 = smul.u32 %s348, 8
      %p350 = scmp.lt.s32.totalorder %s349, 7
      %s351 = scalar_select %p350, %s349, 7
      %p352 = scmp.lt.s32.totalorder %s21, 1
      %s353 = scalar_select %p352, %s21, 1
      %p354 = scmp.lt.s32.totalorder %s351, 7
      %s355 = scalar_select %p354, %s351, 7
      %s356 = smul.addr %s355, 4
      %s357 = smul.addr %s353, 32
      %s358 = sadd.s32 %s356, %s357
      %s359 = smul.addr %s358, 8
      %s360 = scalar_lea.vmem %s2, %s359
      %p361 = pneg %p124
      %p362 = pneg %p121
      %s363 = smul.u32 64, %s22
      %p364 = scmp.lt.s32.totalorder %s21, 1
      %s365 = scalar_select %p364, %s21, 1
      %p366 = scmp.lt.s32.totalorder %s363, 63
      %s367 = scalar_select %p366, %s363, 63
      %s368 = smul.addr %s365, 64
      %s369 = sadd.s32 %s367, %s368
      %s370 = smul.addr %s369, 4
      %s371 = scalar_lea.vmem %s3, %s370
      %p372 = pneg %p152
      %p373 = pneg %p149
      %p374 = pneg %p173
      %p375 = pneg %p170
      %p376 = pneg %p194
      %p377 = pneg %p191
      %p378 = pneg %p222
      %p379 = pneg %p219
      %s380 = smul.u32 8, %s22
      %p381 = scmp.lt.s32.totalorder %s21, 1
      %s382 = scalar_select %p381, %s21, 1
      %p383 = scmp.lt.s32.totalorder %s380, 7
      %s384 = scalar_select %p383, %s380, 7
      %s385 = smul.addr %s384, 8
      %s386 = smul.addr %s382, 64
      %s387 = sadd.s32 %s385, %s386
      %s388 = smul.addr %s387, 8
      %s389 = scalar_lea.vmem %s6, %s388
      %s390 = smul.u32 8, %s22
      %p391 = scmp.lt.s32.totalorder %s21, 1
      %s392 = scalar_select %p391, %s21, 1
      %p393 = scmp.lt.s32.totalorder %s390, 7
      %s394 = scalar_select %p393, %s390, 7
      %s395 = smul.addr %s394, 4
      %s396 = smul.addr %s392, 32
      %s397 = sadd.s32 %s395, %s396
      %s398 = smul.addr %s397, 8
      %s399 = scalar_lea.vmem %s0, %s398
      %s400 = smul.u32 8, %s22
      %s401 = smul.u32 %s22, 8
      %s402 = ssub.s32 %s401, 1
      %p403 = scmp.gt.s32.totalorder %s402, 0
      %s404 = scalar_select %p403, %s402, 0
      %p405 = scmp.lt.s32.totalorder %s21, 1
      %s406 = scalar_select %p405, %s21, 1
      %p407 = scmp.lt.s32.totalorder %s404, 7
      %s408 = scalar_select %p407, %s404, 7
      %s409 = smul.addr %s408, 4
      %s410 = smul.addr %s406, 32
      %s411 = sadd.s32 %s409, %s410
      %s412 = smul.addr %s411, 8
      %s413 = scalar_lea.vmem %s1, %s412
      %s414 = smul.u32 %s22, 8
      %s415 = ssub.s32 %s414, 1
      %p416 = scmp.gt.s32.totalorder %s415, 0
      %s417 = scalar_select %p416, %s415, 0
      %s418 = sadd.s32 %s22, 1
      %s419 = smul.u32 %s418, 8
      %p420 = scmp.lt.s32.totalorder %s419, 7
      %s421 = scalar_select %p420, %s419, 7
      %p422 = scmp.lt.s32.totalorder %s21, 1
      %s423 = scalar_select %p422, %s21, 1
      %p424 = scmp.lt.s32.totalorder %s421, 7
      %s425 = scalar_select %p424, %s421, 7
      %s426 = smul.addr %s425, 4
      %s427 = smul.addr %s423, 32
      %s428 = sadd.s32 %s426, %s427
      %s429 = smul.addr %s428, 8
      %s430 = scalar_lea.vmem %s2, %s429
      %s431 = sadd.s32 %s22, 1
      %s432 = smul.u32 %s431, 8
      %p433 = scmp.lt.s32.totalorder %s432, 7
      %s434 = scalar_select %p433, %s432, 7
      %s435 = smul.u32 64, %s22
      %p436 = scmp.lt.s32.totalorder %s21, 1
      %s437 = scalar_select %p436, %s21, 1
      %p438 = scmp.lt.s32.totalorder %s435, 63
      %s439 = scalar_select %p438, %s435, 63
      %s440 = smul.addr %s437, 64
      %s441 = sadd.s32 %s439, %s440
      %s442 = smul.addr %s441, 4
      %s443 = scalar_lea.vmem %s3, %s442
      %s444 = smul.u32 64, %s22
      %s445 = smul.u32 8, %s22
      %p446 = scmp.lt.s32.totalorder %s21, 1
      %s447 = scalar_select %p446, %s21, 1
      %p448 = scmp.lt.s32.totalorder %s445, 7
      %s449 = scalar_select %p448, %s445, 7
      %s450 = smul.addr %s449, 8
      %s451 = smul.addr %s447, 64
      %s452 = sadd.s32 %s450, %s451
      %s453 = smul.addr %s452, 8
      %s454 = scalar_lea.vmem %s6, %s453
      %s455 = smul.u32 8, %s22
      %v456 = vld [vmem:[%s399] sm:$0xff]
      %v457 = vld [vmem:[%s399 + $0x8] sm:$0xff]
      %v458 = vld [vmem:[%s399 + $0x10] sm:$0xff]
      %v459 = vld [vmem:[%s399 + $0x18] sm:$0xff]
      %v460 = vld [vmem:[%s399 + $0x20] sm:$0xff]
      %v461 = vld [vmem:[%s399 + $0x28] sm:$0xff]
      %v462 = vld [vmem:[%s399 + $0x30] sm:$0xff]
      %v463 = vld [vmem:[%s399 + $0x38] sm:$0xff]
      %v464 = vld [vmem:[%s399 + $0x40] sm:$0xff]
      %v465 = vld [vmem:[%s399 + $0x48] sm:$0xff]
      %v466 = vld [vmem:[%s399 + $0x50] sm:$0xff]
      %v467 = vld [vmem:[%s399 + $0x58] sm:$0xff]
      %v468 = vld [vmem:[%s399 + $0x60] sm:$0xff]
      %v469 = vld [vmem:[%s399 + $0x68] sm:$0xff]
      %v470 = vld [vmem:[%s399 + $0x70] sm:$0xff]
      %v471 = vld [vmem:[%s399 + $0x78] sm:$0xff]
      %v472 = vld [vmem:[%s399 + $0x80] sm:$0xff]
      %v473 = vld [vmem:[%s399 + $0x88] sm:$0xff]
      %v474 = vld [vmem:[%s399 + $0x90] sm:$0xff]
      %v475 = vld [vmem:[%s399 + $0x98] sm:$0xff]
      %v476 = vld [vmem:[%s399 + $0xa0] sm:$0xff]
      %v477 = vld [vmem:[%s399 + $0xa8] sm:$0xff]
      %v478 = vld [vmem:[%s399 + $0xb0] sm:$0xff]
      %v479 = vld [vmem:[%s399 + $0xb8] sm:$0xff]
      %v480 = vld [vmem:[%s399 + $0xc0] sm:$0xff]
      %v481 = vld [vmem:[%s399 + $0xc8] sm:$0xff]
      %v482 = vld [vmem:[%s399 + $0xd0] sm:$0xff]
      %v483 = vld [vmem:[%s399 + $0xd8] sm:$0xff]
      %v484 = vld [vmem:[%s399 + $0xe0] sm:$0xff]
      %v485 = vld [vmem:[%s399 + $0xe8] sm:$0xff]
      %v486 = vld [vmem:[%s399 + $0xf0] sm:$0xff]
      %v487 = vld [vmem:[%s399 + $0xf8] sm:$0xff]
      %v488 = vld [vmem:[%s413] sm:$0xff]
      %v489 = vld [vmem:[%s413 + $0x8] sm:$0xff]
      %v490 = vld [vmem:[%s413 + $0x10] sm:$0xff]
      %v491 = vld [vmem:[%s413 + $0x18] sm:$0xff]
      %v492 = vld [vmem:[%s430] sm:$0xff]
      %v493 = vld [vmem:[%s430 + $0x8] sm:$0xff]
      %v494 = vld [vmem:[%s430 + $0x10] sm:$0xff]
      %v495 = vld [vmem:[%s430 + $0x18] sm:$0xff]
      %v496 = vmul.f32 %v456, 0.75
      %v497 = vmul.f32 %v457, 0.75
      %v498 = vmul.f32 %v458, 0.75
      %v499 = vmul.f32 %v459, 0.75
      %v500 = vmul.f32 %v460, 0.75
      %v501 = vmul.f32 %v461, 0.75
      %v502 = vmul.f32 %v462, 0.75
      %v503 = vmul.f32 %v463, 0.75
      %v504 = vmul.f32 %v464, 0.75
      %v505 = vmul.f32 %v465, 0.75
      %v506 = vmul.f32 %v466, 0.75
      %v507 = vmul.f32 %v467, 0.75
      %v508 = vmul.f32 %v468, 0.75
      %v509 = vmul.f32 %v469, 0.75
      %v510 = vmul.f32 %v470, 0.75
      %v511 = vmul.f32 %v471, 0.75
      %v512 = vmul.f32 %v472, 0.75
      %v513 = vmul.f32 %v473, 0.75
      %v514 = vmul.f32 %v474, 0.75
      %v515 = vmul.f32 %v475, 0.75
      %v516 = vmul.f32 %v476, 0.75
      %v517 = vmul.f32 %v477, 0.75
      %v518 = vmul.f32 %v478, 0.75
      %v519 = vmul.f32 %v479, 0.75
      %v520 = vmul.f32 %v480, 0.75
      %v521 = vmul.f32 %v481, 0.75
      %v522 = vmul.f32 %v482, 0.75
      %v523 = vmul.f32 %v483, 0.75
      %v524 = vmul.f32 %v484, 0.75
      %v525 = vmul.f32 %v485, 0.75
      %v526 = vmul.f32 %v486, 0.75
      %v527 = vmul.f32 %v487, 0.75
      %v528 = vmul.f32 %v488, 0.25
      %v529 = vmul.f32 %v489, 0.25
      %v530 = vmul.f32 %v490, 0.25
      %v531 = vmul.f32 %v491, 0.25
      %v532 = vmul.f32 %v456, 0.25
      %v533 = vmul.f32 %v457, 0.25
      %v534 = vmul.f32 %v458, 0.25
      %v535 = vmul.f32 %v459, 0.25
      %v536 = vmul.f32 %v460, 0.25
      %v537 = vmul.f32 %v461, 0.25
      %v538 = vmul.f32 %v462, 0.25
      %v539 = vmul.f32 %v463, 0.25
      %v540 = vmul.f32 %v464, 0.25
      %v541 = vmul.f32 %v465, 0.25
      %v542 = vmul.f32 %v466, 0.25
      %v543 = vmul.f32 %v467, 0.25
      %v544 = vmul.f32 %v468, 0.25
      %v545 = vmul.f32 %v469, 0.25
      %v546 = vmul.f32 %v470, 0.25
      %v547 = vmul.f32 %v471, 0.25
      %v548 = vmul.f32 %v472, 0.25
      %v549 = vmul.f32 %v473, 0.25
      %v550 = vmul.f32 %v474, 0.25
      %v551 = vmul.f32 %v475, 0.25
      %v552 = vmul.f32 %v476, 0.25
      %v553 = vmul.f32 %v477, 0.25
      %v554 = vmul.f32 %v478, 0.25
      %v555 = vmul.f32 %v479, 0.25
      %v556 = vmul.f32 %v480, 0.25
      %v557 = vmul.f32 %v481, 0.25
      %v558 = vmul.f32 %v482, 0.25
      %v559 = vmul.f32 %v483, 0.25
      %v560 = vadd.f32 %v496, %v528
      %v561 = vadd.f32 %v497, %v529
      %v562 = vadd.f32 %v498, %v530
      %v563 = vadd.f32 %v499, %v531
      %v564 = vadd.f32 %v500, %v532
      %v565 = vadd.f32 %v501, %v533
      %v566 = vadd.f32 %v502, %v534
      %v567 = vadd.f32 %v503, %v535
      %v568 = vadd.f32 %v504, %v536
      %v569 = vadd.f32 %v505, %v537
      %v570 = vadd.f32 %v506, %v538
      %v571 = vadd.f32 %v507, %v539
      %v572 = vadd.f32 %v508, %v540
      %v573 = vadd.f32 %v509, %v541
      %v574 = vadd.f32 %v510, %v542
      %v575 = vadd.f32 %v511, %v543
      %v576 = vadd.f32 %v512, %v544
      %v577 = vadd.f32 %v513, %v545
      %v578 = vadd.f32 %v514, %v546
      %v579 = vadd.f32 %v515, %v547
      %v580 = vadd.f32 %v516, %v548
      %v581 = vadd.f32 %v517, %v549
      %v582 = vadd.f32 %v518, %v550
      %v583 = vadd.f32 %v519, %v551
      %v584 = vadd.f32 %v520, %v552
      %v585 = vadd.f32 %v521, %v553
      %v586 = vadd.f32 %v522, %v554
      %v587 = vadd.f32 %v523, %v555
      %v588 = vadd.f32 %v524, %v556
      %v589 = vadd.f32 %v525, %v557
      %v590 = vadd.f32 %v526, %v558
      %v591 = vadd.f32 %v527, %v559
      %v592 = vmul.f32 %v484, 0.25
      %v593 = vmul.f32 %v485, 0.25
      %v594 = vmul.f32 %v486, 0.25
      %v595 = vmul.f32 %v487, 0.25
      %v596 = vmul.f32 %v492, 0.25
      %v597 = vmul.f32 %v493, 0.25
      %v598 = vmul.f32 %v494, 0.25
      %v599 = vmul.f32 %v495, 0.25
      %v600 = vadd.f32 %v496, %v536
      %v601 = vadd.f32 %v497, %v537
      %v602 = vadd.f32 %v498, %v538
      %v603 = vadd.f32 %v499, %v539
      %v604 = vadd.f32 %v500, %v540
      %v605 = vadd.f32 %v501, %v541
      %v606 = vadd.f32 %v502, %v542
      %v607 = vadd.f32 %v503, %v543
      %v608 = vadd.f32 %v504, %v544
      %v609 = vadd.f32 %v505, %v545
      %v610 = vadd.f32 %v506, %v546
      %v611 = vadd.f32 %v507, %v547
      %v612 = vadd.f32 %v508, %v548
      %v613 = vadd.f32 %v509, %v549
      %v614 = vadd.f32 %v510, %v550
      %v615 = vadd.f32 %v511, %v551
      %v616 = vadd.f32 %v512, %v552
      %v617 = vadd.f32 %v513, %v553
      %v618 = vadd.f32 %v514, %v554
      %v619 = vadd.f32 %v515, %v555
      %v620 = vadd.f32 %v516, %v556
      %v621 = vadd.f32 %v517, %v557
      %v622 = vadd.f32 %v518, %v558
      %v623 = vadd.f32 %v519, %v559
      %v624 = vadd.f32 %v520, %v592
      %v625 = vadd.f32 %v521, %v593
      %v626 = vadd.f32 %v522, %v594
      %v627 = vadd.f32 %v523, %v595
      %v628 = vadd.f32 %v524, %v596
      %v629 = vadd.f32 %v525, %v597
      %v630 = vadd.f32 %v526, %v598
      %v631 = vadd.f32 %v527, %v599
      %vm664 = vcmask 1040384
      %v665 = vrot.slane %v560, 7
      %v666 = vrot.slane %v561, 7
      %v667 = vsel %vm664, %v665, %v666
      %v668 = vrot.slane %v562, 7
      %v669 = vsel %vm664, %v666, %v668
      %v670 = vrot.slane %v563, 7
      %v671 = vsel %vm664, %v668, %v670
      %v672 = vrot.slane %v564, 7
      %v673 = vrot.slane %v565, 7
      %v674 = vsel %vm664, %v672, %v673
      %v675 = vrot.slane %v566, 7
      %v676 = vsel %vm664, %v673, %v675
      %v677 = vrot.slane %v567, 7
      %v678 = vsel %vm664, %v675, %v677
      %v679 = vrot.slane %v568, 7
      %v680 = vrot.slane %v569, 7
      %v681 = vsel %vm664, %v679, %v680
      %v682 = vrot.slane %v570, 7
      %v683 = vsel %vm664, %v680, %v682
      %v684 = vrot.slane %v571, 7
      %v685 = vsel %vm664, %v682, %v684
      %v686 = vrot.slane %v572, 7
      %v687 = vrot.slane %v573, 7
      %v688 = vsel %vm664, %v686, %v687
      %v689 = vrot.slane %v574, 7
      %v690 = vsel %vm664, %v687, %v689
      %v691 = vrot.slane %v575, 7
      %v692 = vsel %vm664, %v689, %v691
      %v693 = vrot.slane %v576, 7
      %v694 = vrot.slane %v577, 7
      %v695 = vsel %vm664, %v693, %v694
      %v696 = vrot.slane %v578, 7
      %v697 = vsel %vm664, %v694, %v696
      %v698 = vrot.slane %v579, 7
      %v699 = vsel %vm664, %v696, %v698
      %v700 = vrot.slane %v580, 7
      %v701 = vrot.slane %v581, 7
      %v702 = vsel %vm664, %v700, %v701
      %v703 = vrot.slane %v582, 7
      %v704 = vsel %vm664, %v701, %v703
      %v705 = vrot.slane %v583, 7
      %v706 = vsel %vm664, %v703, %v705
      %v707 = vrot.slane %v584, 7
      %v708 = vrot.slane %v585, 7
      %v709 = vsel %vm664, %v707, %v708
      %v710 = vrot.slane %v586, 7
      %v711 = vsel %vm664, %v708, %v710
      %v712 = vrot.slane %v587, 7
      %v713 = vsel %vm664, %v710, %v712
      %v714 = vrot.slane %v588, 7
      %v715 = vrot.slane %v589, 7
      %v716 = vsel %vm664, %v714, %v715
      %v717 = vrot.slane %v590, 7
      %v718 = vsel %vm664, %v715, %v717
      %v719 = vrot.slane %v591, 7
      %v720 = vsel %vm664, %v717, %v719
      %v753 = vsel %vm664, %v560, %v665
      %v754 = vsel %vm664, %v564, %v672
      %v755 = vsel %vm664, %v568, %v679
      %v756 = vsel %vm664, %v572, %v686
      %v757 = vsel %vm664, %v576, %v693
      %v758 = vsel %vm664, %v580, %v700
      %v759 = vsel %vm664, %v584, %v707
      %v760 = vsel %vm664, %v588, %v714
      %v769 = vmul.f32 %v560, 0.75
      %v770 = vmul.f32 %v561, 0.75
      %v771 = vmul.f32 %v562, 0.75
      %v772 = vmul.f32 %v563, 0.75
      %v773 = vmul.f32 %v564, 0.75
      %v774 = vmul.f32 %v565, 0.75
      %v775 = vmul.f32 %v566, 0.75
      %v776 = vmul.f32 %v567, 0.75
      %v777 = vmul.f32 %v568, 0.75
      %v778 = vmul.f32 %v569, 0.75
      %v779 = vmul.f32 %v570, 0.75
      %v780 = vmul.f32 %v571, 0.75
      %v781 = vmul.f32 %v572, 0.75
      %v782 = vmul.f32 %v573, 0.75
      %v783 = vmul.f32 %v574, 0.75
      %v784 = vmul.f32 %v575, 0.75
      %v785 = vmul.f32 %v576, 0.75
      %v786 = vmul.f32 %v577, 0.75
      %v787 = vmul.f32 %v578, 0.75
      %v788 = vmul.f32 %v579, 0.75
      %v789 = vmul.f32 %v580, 0.75
      %v790 = vmul.f32 %v581, 0.75
      %v791 = vmul.f32 %v582, 0.75
      %v792 = vmul.f32 %v583, 0.75
      %v793 = vmul.f32 %v584, 0.75
      %v794 = vmul.f32 %v585, 0.75
      %v795 = vmul.f32 %v586, 0.75
      %v796 = vmul.f32 %v587, 0.75
      %v797 = vmul.f32 %v588, 0.75
      %v798 = vmul.f32 %v589, 0.75
      %v799 = vmul.f32 %v590, 0.75
      %v800 = vmul.f32 %v591, 0.75
      %v801 = vmul.f32 %v753, 0.25
      %v802 = vmul.f32 %v667, 0.25
      %v803 = vmul.f32 %v669, 0.25
      %v804 = vmul.f32 %v671, 0.25
      %v805 = vmul.f32 %v754, 0.25
      %v806 = vmul.f32 %v674, 0.25
      %v807 = vmul.f32 %v676, 0.25
      %v808 = vmul.f32 %v678, 0.25
      %v809 = vmul.f32 %v755, 0.25
      %v810 = vmul.f32 %v681, 0.25
      %v811 = vmul.f32 %v683, 0.25
      %v812 = vmul.f32 %v685, 0.25
      %v813 = vmul.f32 %v756, 0.25
      %v814 = vmul.f32 %v688, 0.25
      %v815 = vmul.f32 %v690, 0.25
      %v816 = vmul.f32 %v692, 0.25
      %v817 = vmul.f32 %v757, 0.25
      %v818 = vmul.f32 %v695, 0.25
      %v819 = vmul.f32 %v697, 0.25
      %v820 = vmul.f32 %v699, 0.25
      %v821 = vmul.f32 %v758, 0.25
      %v822 = vmul.f32 %v702, 0.25
      %v823 = vmul.f32 %v704, 0.25
      %v824 = vmul.f32 %v706, 0.25
      %v825 = vmul.f32 %v759, 0.25
      %v826 = vmul.f32 %v709, 0.25
      %v827 = vmul.f32 %v711, 0.25
      %v828 = vmul.f32 %v713, 0.25
      %v829 = vmul.f32 %v760, 0.25
      %v830 = vmul.f32 %v716, 0.25
      %v831 = vmul.f32 %v718, 0.25
      %v832 = vmul.f32 %v720, 0.25
      %v833 = vadd.f32 %v769, %v801
      %v834 = vadd.f32 %v770, %v802
      %v835 = vadd.f32 %v771, %v803
      %v836 = vadd.f32 %v772, %v804
      %v837 = vadd.f32 %v773, %v805
      %v838 = vadd.f32 %v774, %v806
      %v839 = vadd.f32 %v775, %v807
      %v840 = vadd.f32 %v776, %v808
      %v841 = vadd.f32 %v777, %v809
      %v842 = vadd.f32 %v778, %v810
      %v843 = vadd.f32 %v779, %v811
      %v844 = vadd.f32 %v780, %v812
      %v845 = vadd.f32 %v781, %v813
      %v846 = vadd.f32 %v782, %v814
      %v847 = vadd.f32 %v783, %v815
      %v848 = vadd.f32 %v784, %v816
      %v849 = vadd.f32 %v785, %v817
      %v850 = vadd.f32 %v786, %v818
      %v851 = vadd.f32 %v787, %v819
      %v852 = vadd.f32 %v788, %v820
      %v853 = vadd.f32 %v789, %v821
      %v854 = vadd.f32 %v790, %v822
      %v855 = vadd.f32 %v791, %v823
      %v856 = vadd.f32 %v792, %v824
      %v857 = vadd.f32 %v793, %v825
      %v858 = vadd.f32 %v794, %v826
      %v859 = vadd.f32 %v795, %v827
      %v860 = vadd.f32 %v796, %v828
      %v861 = vadd.f32 %v797, %v829
      %v862 = vadd.f32 %v798, %v830
      %v863 = vadd.f32 %v799, %v831
      %v864 = vadd.f32 %v800, %v832
      %v865 = vmul.f32 %v560, 0.25
      %v866 = vmul.f32 %v561, 0.25
      %v867 = vmul.f32 %v562, 0.25
      %v868 = vmul.f32 %v563, 0.25
      %v869 = vmul.f32 %v670, 0.25
      %v870 = vmul.f32 %v564, 0.25
      %v871 = vmul.f32 %v565, 0.25
      %v872 = vmul.f32 %v566, 0.25
      %v873 = vmul.f32 %v567, 0.25
      %v874 = vmul.f32 %v677, 0.25
      %v875 = vmul.f32 %v568, 0.25
      %v876 = vmul.f32 %v569, 0.25
      %v877 = vmul.f32 %v570, 0.25
      %v878 = vmul.f32 %v571, 0.25
      %v879 = vmul.f32 %v684, 0.25
      %v880 = vmul.f32 %v572, 0.25
      %v881 = vmul.f32 %v573, 0.25
      %v882 = vmul.f32 %v574, 0.25
      %v883 = vmul.f32 %v575, 0.25
      %v884 = vmul.f32 %v691, 0.25
      %v885 = vmul.f32 %v576, 0.25
      %v886 = vmul.f32 %v577, 0.25
      %v887 = vmul.f32 %v578, 0.25
      %v888 = vmul.f32 %v579, 0.25
      %v889 = vmul.f32 %v698, 0.25
      %v890 = vmul.f32 %v580, 0.25
      %v891 = vmul.f32 %v581, 0.25
      %v892 = vmul.f32 %v582, 0.25
      %v893 = vmul.f32 %v583, 0.25
      %v894 = vmul.f32 %v705, 0.25
      %v895 = vmul.f32 %v584, 0.25
      %v896 = vmul.f32 %v585, 0.25
      %v897 = vmul.f32 %v586, 0.25
      %v898 = vmul.f32 %v587, 0.25
      %v899 = vmul.f32 %v712, 0.25
      %v900 = vmul.f32 %v588, 0.25
      %v901 = vmul.f32 %v589, 0.25
      %v902 = vmul.f32 %v590, 0.25
      %v903 = vmul.f32 %v591, 0.25
      %v904 = vmul.f32 %v719, 0.25
      %vm945 = vcmask 1046528
      %v946 = vrot.slane %v865, 1
      %v947 = vrot.slane %v866, 1
      %v948 = vsel %vm945, %v946, %v947
      %v949 = vrot.slane %v867, 1
      %v950 = vsel %vm945, %v947, %v949
      %v951 = vrot.slane %v868, 1
      %v952 = vsel %vm945, %v949, %v951
      %v953 = vrot.slane %v869, 1
      %v954 = vsel %vm945, %v951, %v953
      %v955 = vrot.slane %v870, 1
      %v956 = vrot.slane %v871, 1
      %v957 = vsel %vm945, %v955, %v956
      %v958 = vrot.slane %v872, 1
      %v959 = vsel %vm945, %v956, %v958
      %v960 = vrot.slane %v873, 1
      %v961 = vsel %vm945, %v958, %v960
      %v962 = vrot.slane %v874, 1
      %v963 = vsel %vm945, %v960, %v962
      %v964 = vrot.slane %v875, 1
      %v965 = vrot.slane %v876, 1
      %v966 = vsel %vm945, %v964, %v965
      %v967 = vrot.slane %v877, 1
      %v968 = vsel %vm945, %v965, %v967
      %v969 = vrot.slane %v878, 1
      %v970 = vsel %vm945, %v967, %v969
      %v971 = vrot.slane %v879, 1
      %v972 = vsel %vm945, %v969, %v971
      %v973 = vrot.slane %v880, 1
      %v974 = vrot.slane %v881, 1
      %v975 = vsel %vm945, %v973, %v974
      %v976 = vrot.slane %v882, 1
      %v977 = vsel %vm945, %v974, %v976
      %v978 = vrot.slane %v883, 1
      %v979 = vsel %vm945, %v976, %v978
      %v980 = vrot.slane %v884, 1
      %v981 = vsel %vm945, %v978, %v980
      %v982 = vrot.slane %v885, 1
      %v983 = vrot.slane %v886, 1
      %v984 = vsel %vm945, %v982, %v983
      %v985 = vrot.slane %v887, 1
      %v986 = vsel %vm945, %v983, %v985
      %v987 = vrot.slane %v888, 1
      %v988 = vsel %vm945, %v985, %v987
      %v989 = vrot.slane %v889, 1
      %v990 = vsel %vm945, %v987, %v989
      %v991 = vrot.slane %v890, 1
      %v992 = vrot.slane %v891, 1
      %v993 = vsel %vm945, %v991, %v992
      %v994 = vrot.slane %v892, 1
      %v995 = vsel %vm945, %v992, %v994
      %v996 = vrot.slane %v893, 1
      %v997 = vsel %vm945, %v994, %v996
      %v998 = vrot.slane %v894, 1
      %v999 = vsel %vm945, %v996, %v998
      %v1000 = vrot.slane %v895, 1
      %v1001 = vrot.slane %v896, 1
      %v1002 = vsel %vm945, %v1000, %v1001
      %v1003 = vrot.slane %v897, 1
      %v1004 = vsel %vm945, %v1001, %v1003
      %v1005 = vrot.slane %v898, 1
      %v1006 = vsel %vm945, %v1003, %v1005
      %v1007 = vrot.slane %v899, 1
      %v1008 = vsel %vm945, %v1005, %v1007
      %v1009 = vrot.slane %v900, 1
      %v1010 = vrot.slane %v901, 1
      %v1011 = vsel %vm945, %v1009, %v1010
      %v1012 = vrot.slane %v902, 1
      %v1013 = vsel %vm945, %v1010, %v1012
      %v1014 = vrot.slane %v903, 1
      %v1015 = vsel %vm945, %v1012, %v1014
      %v1016 = vrot.slane %v904, 1
      %v1017 = vsel %vm945, %v1014, %v1016
      %v1050 = vadd.f32 %v769, %v948
      %v1051 = vadd.f32 %v770, %v950
      %v1052 = vadd.f32 %v771, %v952
      %v1053 = vadd.f32 %v772, %v954
      %v1054 = vadd.f32 %v773, %v957
      %v1055 = vadd.f32 %v774, %v959
      %v1056 = vadd.f32 %v775, %v961
      %v1057 = vadd.f32 %v776, %v963
      %v1058 = vadd.f32 %v777, %v966
      %v1059 = vadd.f32 %v778, %v968
      %v1060 = vadd.f32 %v779, %v970
      %v1061 = vadd.f32 %v780, %v972
      %v1062 = vadd.f32 %v781, %v975
      %v1063 = vadd.f32 %v782, %v977
      %v1064 = vadd.f32 %v783, %v979
      %v1065 = vadd.f32 %v784, %v981
      %v1066 = vadd.f32 %v785, %v984
      %v1067 = vadd.f32 %v786, %v986
      %v1068 = vadd.f32 %v787, %v988
      %v1069 = vadd.f32 %v788, %v990
      %v1070 = vadd.f32 %v789, %v993
      %v1071 = vadd.f32 %v790, %v995
      %v1072 = vadd.f32 %v791, %v997
      %v1073 = vadd.f32 %v792, %v999
      %v1074 = vadd.f32 %v793, %v1002
      %v1075 = vadd.f32 %v794, %v1004
      %v1076 = vadd.f32 %v795, %v1006
      %v1077 = vadd.f32 %v796, %v1008
      %v1078 = vadd.f32 %v797, %v1011
      %v1079 = vadd.f32 %v798, %v1013
      %v1080 = vadd.f32 %v799, %v1015
      %v1081 = vadd.f32 %v800, %v1017
      %1114 = vrot.lane.b32.xlu0 %v1050, 64
      %v1115 = vpop.permute.xlu0 %1114
      %1116 = vrot.lane.b32.xlu0 %v1051, 64
      %v1117 = vpop.permute.xlu0 %1116
      %1118 = vrot.lane.b32.xlu0 %v1052, 64
      %v1119 = vpop.permute.xlu0 %1118
      %1120 = vrot.lane.b32.xlu0 %v1053, 64
      %v1121 = vpop.permute.xlu0 %1120
      %1122 = vrot.lane.b32.xlu0 %v1054, 64
      %v1123 = vpop.permute.xlu0 %1122
      %1124 = vrot.lane.b32.xlu0 %v1055, 64
      %v1125 = vpop.permute.xlu0 %1124
      %1126 = vrot.lane.b32.xlu0 %v1056, 64
      %v1127 = vpop.permute.xlu0 %1126
      %1128 = vrot.lane.b32.xlu0 %v1057, 64
      %v1129 = vpop.permute.xlu0 %1128
      %1130 = vrot.lane.b32.xlu0 %v1058, 64
      %v1131 = vpop.permute.xlu0 %1130
      %1132 = vrot.lane.b32.xlu0 %v1059, 64
      %v1133 = vpop.permute.xlu0 %1132
      %1134 = vrot.lane.b32.xlu0 %v1060, 64
      %v1135 = vpop.permute.xlu0 %1134
      %1136 = vrot.lane.b32.xlu0 %v1061, 64
      %v1137 = vpop.permute.xlu0 %1136
      %1138 = vrot.lane.b32.xlu0 %v1062, 64
      %v1139 = vpop.permute.xlu0 %1138
      %1140 = vrot.lane.b32.xlu0 %v1063, 64
      %v1141 = vpop.permute.xlu0 %1140
      %1142 = vrot.lane.b32.xlu0 %v1064, 64
      %v1143 = vpop.permute.xlu0 %1142
      %1144 = vrot.lane.b32.xlu0 %v1065, 64
      %v1145 = vpop.permute.xlu0 %1144
      %1146 = vrot.lane.b32.xlu0 %v1066, 64
      %v1147 = vpop.permute.xlu0 %1146
      %1148 = vrot.lane.b32.xlu0 %v1067, 64
      %v1149 = vpop.permute.xlu0 %1148
      %1150 = vrot.lane.b32.xlu0 %v1068, 64
      %v1151 = vpop.permute.xlu0 %1150
      %1152 = vrot.lane.b32.xlu0 %v1069, 64
      %v1153 = vpop.permute.xlu0 %1152
      %1154 = vrot.lane.b32.xlu0 %v1070, 64
      %v1155 = vpop.permute.xlu0 %1154
      %1156 = vrot.lane.b32.xlu0 %v1071, 64
      %v1157 = vpop.permute.xlu0 %1156
      %1158 = vrot.lane.b32.xlu0 %v1072, 64
      %v1159 = vpop.permute.xlu0 %1158
      %1160 = vrot.lane.b32.xlu0 %v1073, 64
      %v1161 = vpop.permute.xlu0 %1160
      %1162 = vrot.lane.b32.xlu0 %v1074, 64
      %v1163 = vpop.permute.xlu0 %1162
      %1164 = vrot.lane.b32.xlu0 %v1075, 64
      %v1165 = vpop.permute.xlu0 %1164
      %1166 = vrot.lane.b32.xlu0 %v1076, 64
      %v1167 = vpop.permute.xlu0 %1166
      %1168 = vrot.lane.b32.xlu0 %v1077, 64
      %v1169 = vpop.permute.xlu0 %1168
      %1170 = vrot.lane.b32.xlu0 %v1078, 64
      %v1171 = vpop.permute.xlu0 %1170
      %1172 = vrot.lane.b32.xlu0 %v1079, 64
      %v1173 = vpop.permute.xlu0 %1172
      %1174 = vrot.lane.b32.xlu0 %v1080, 64
      %v1175 = vpop.permute.xlu0 %1174
      %1176 = vrot.lane.b32.xlu0 %v1081, 64
      %v1177 = vpop.permute.xlu0 %1176
      %vm1210 = vcmask 523264
      %v1211 = vsel %vm1210, %v833, %v1115
      %v1212 = vsel %vm1210, %v834, %v1117
      %v1213 = vsel %vm1210, %v835, %v1119
      %v1214 = vsel %vm1210, %v836, %v1121
      %v1215 = vsel %vm1210, %v837, %v1123
      %v1216 = vsel %vm1210, %v838, %v1125
      %v1217 = vsel %vm1210, %v839, %v1127
      %v1218 = vsel %vm1210, %v840, %v1129
      %v1219 = vsel %vm1210, %v841, %v1131
      %v1220 = vsel %vm1210, %v842, %v1133
      %v1221 = vsel %vm1210, %v843, %v1135
      %v1222 = vsel %vm1210, %v844, %v1137
      %v1223 = vsel %vm1210, %v845, %v1139
      %v1224 = vsel %vm1210, %v846, %v1141
      %v1225 = vsel %vm1210, %v847, %v1143
      %v1226 = vsel %vm1210, %v848, %v1145
      %v1227 = vsel %vm1210, %v849, %v1147
      %v1228 = vsel %vm1210, %v850, %v1149
      %v1229 = vsel %vm1210, %v851, %v1151
      %v1230 = vsel %vm1210, %v852, %v1153
      %v1231 = vsel %vm1210, %v853, %v1155
      %v1232 = vsel %vm1210, %v854, %v1157
      %v1233 = vsel %vm1210, %v855, %v1159
      %v1234 = vsel %vm1210, %v856, %v1161
      %v1235 = vsel %vm1210, %v857, %v1163
      %v1236 = vsel %vm1210, %v858, %v1165
      %v1237 = vsel %vm1210, %v859, %v1167
      %v1238 = vsel %vm1210, %v860, %v1169
      %v1239 = vsel %vm1210, %v861, %v1171
      %v1240 = vsel %vm1210, %v862, %v1173
      %v1241 = vsel %vm1210, %v863, %v1175
      %v1242 = vsel %vm1210, %v864, %v1177
      %v1275 = vrot.slane %v600, 7
      %v1276 = vrot.slane %v601, 7
      %v1277 = vsel %vm664, %v1275, %v1276
      %v1278 = vrot.slane %v602, 7
      %v1279 = vsel %vm664, %v1276, %v1278
      %v1280 = vrot.slane %v603, 7
      %v1281 = vsel %vm664, %v1278, %v1280
      %v1282 = vrot.slane %v604, 7
      %v1283 = vrot.slane %v605, 7
      %v1284 = vsel %vm664, %v1282, %v1283
      %v1285 = vrot.slane %v606, 7
      %v1286 = vsel %vm664, %v1283, %v1285
      %v1287 = vrot.slane %v607, 7
      %v1288 = vsel %vm664, %v1285, %v1287
      %v1289 = vrot.slane %v608, 7
      %v1290 = vrot.slane %v609, 7
      %v1291 = vsel %vm664, %v1289, %v1290
      %v1292 = vrot.slane %v610, 7
      %v1293 = vsel %vm664, %v1290, %v1292
      %v1294 = vrot.slane %v611, 7
      %v1295 = vsel %vm664, %v1292, %v1294
      %v1296 = vrot.slane %v612, 7
      %v1297 = vrot.slane %v613, 7
      %v1298 = vsel %vm664, %v1296, %v1297
      %v1299 = vrot.slane %v614, 7
      %v1300 = vsel %vm664, %v1297, %v1299
      %v1301 = vrot.slane %v615, 7
      %v1302 = vsel %vm664, %v1299, %v1301
      %v1303 = vrot.slane %v616, 7
      %v1304 = vrot.slane %v617, 7
      %v1305 = vsel %vm664, %v1303, %v1304
      %v1306 = vrot.slane %v618, 7
      %v1307 = vsel %vm664, %v1304, %v1306
      %v1308 = vrot.slane %v619, 7
      %v1309 = vsel %vm664, %v1306, %v1308
      %v1310 = vrot.slane %v620, 7
      %v1311 = vrot.slane %v621, 7
      %v1312 = vsel %vm664, %v1310, %v1311
      %v1313 = vrot.slane %v622, 7
      %v1314 = vsel %vm664, %v1311, %v1313
      %v1315 = vrot.slane %v623, 7
      %v1316 = vsel %vm664, %v1313, %v1315
      %v1317 = vrot.slane %v624, 7
      %v1318 = vrot.slane %v625, 7
      %v1319 = vsel %vm664, %v1317, %v1318
      %v1320 = vrot.slane %v626, 7
      %v1321 = vsel %vm664, %v1318, %v1320
      %v1322 = vrot.slane %v627, 7
      %v1323 = vsel %vm664, %v1320, %v1322
      %v1324 = vrot.slane %v628, 7
      %v1325 = vrot.slane %v629, 7
      %v1326 = vsel %vm664, %v1324, %v1325
      %v1327 = vrot.slane %v630, 7
      %v1328 = vsel %vm664, %v1325, %v1327
      %v1329 = vrot.slane %v631, 7
      %v1330 = vsel %vm664, %v1327, %v1329
      %v1363 = vsel %vm664, %v600, %v1275
      %v1364 = vsel %vm664, %v604, %v1282
      %v1365 = vsel %vm664, %v608, %v1289
      %v1366 = vsel %vm664, %v612, %v1296
      %v1367 = vsel %vm664, %v616, %v1303
      %v1368 = vsel %vm664, %v620, %v1310
      %v1369 = vsel %vm664, %v624, %v1317
      %v1370 = vsel %vm664, %v628, %v1324
      %v1379 = vmul.f32 %v600, 0.75
      %v1380 = vmul.f32 %v601, 0.75
      %v1381 = vmul.f32 %v602, 0.75
      %v1382 = vmul.f32 %v603, 0.75
      %v1383 = vmul.f32 %v604, 0.75
      %v1384 = vmul.f32 %v605, 0.75
      %v1385 = vmul.f32 %v606, 0.75
      %v1386 = vmul.f32 %v607, 0.75
      %v1387 = vmul.f32 %v608, 0.75
      %v1388 = vmul.f32 %v609, 0.75
      %v1389 = vmul.f32 %v610, 0.75
      %v1390 = vmul.f32 %v611, 0.75
      %v1391 = vmul.f32 %v612, 0.75
      %v1392 = vmul.f32 %v613, 0.75
      %v1393 = vmul.f32 %v614, 0.75
      %v1394 = vmul.f32 %v615, 0.75
      %v1395 = vmul.f32 %v616, 0.75
      %v1396 = vmul.f32 %v617, 0.75
      %v1397 = vmul.f32 %v618, 0.75
      %v1398 = vmul.f32 %v619, 0.75
      %v1399 = vmul.f32 %v620, 0.75
      %v1400 = vmul.f32 %v621, 0.75
      %v1401 = vmul.f32 %v622, 0.75
      %v1402 = vmul.f32 %v623, 0.75
      %v1403 = vmul.f32 %v624, 0.75
      %v1404 = vmul.f32 %v625, 0.75
      %v1405 = vmul.f32 %v626, 0.75
      %v1406 = vmul.f32 %v627, 0.75
      %v1407 = vmul.f32 %v628, 0.75
      %v1408 = vmul.f32 %v629, 0.75
      %v1409 = vmul.f32 %v630, 0.75
      %v1410 = vmul.f32 %v631, 0.75
      %v1411 = vmul.f32 %v1363, 0.25
      %v1412 = vmul.f32 %v1277, 0.25
      %v1413 = vmul.f32 %v1279, 0.25
      %v1414 = vmul.f32 %v1281, 0.25
      %v1415 = vmul.f32 %v1364, 0.25
      %v1416 = vmul.f32 %v1284, 0.25
      %v1417 = vmul.f32 %v1286, 0.25
      %v1418 = vmul.f32 %v1288, 0.25
      %v1419 = vmul.f32 %v1365, 0.25
      %v1420 = vmul.f32 %v1291, 0.25
      %v1421 = vmul.f32 %v1293, 0.25
      %v1422 = vmul.f32 %v1295, 0.25
      %v1423 = vmul.f32 %v1366, 0.25
      %v1424 = vmul.f32 %v1298, 0.25
      %v1425 = vmul.f32 %v1300, 0.25
      %v1426 = vmul.f32 %v1302, 0.25
      %v1427 = vmul.f32 %v1367, 0.25
      %v1428 = vmul.f32 %v1305, 0.25
      %v1429 = vmul.f32 %v1307, 0.25
      %v1430 = vmul.f32 %v1309, 0.25
      %v1431 = vmul.f32 %v1368, 0.25
      %v1432 = vmul.f32 %v1312, 0.25
      %v1433 = vmul.f32 %v1314, 0.25
      %v1434 = vmul.f32 %v1316, 0.25
      %v1435 = vmul.f32 %v1369, 0.25
      %v1436 = vmul.f32 %v1319, 0.25
      %v1437 = vmul.f32 %v1321, 0.25
      %v1438 = vmul.f32 %v1323, 0.25
      %v1439 = vmul.f32 %v1370, 0.25
      %v1440 = vmul.f32 %v1326, 0.25
      %v1441 = vmul.f32 %v1328, 0.25
      %v1442 = vmul.f32 %v1330, 0.25
      %v1443 = vadd.f32 %v1379, %v1411
      %v1444 = vadd.f32 %v1380, %v1412
      %v1445 = vadd.f32 %v1381, %v1413
      %v1446 = vadd.f32 %v1382, %v1414
      %v1447 = vadd.f32 %v1383, %v1415
      %v1448 = vadd.f32 %v1384, %v1416
      %v1449 = vadd.f32 %v1385, %v1417
      %v1450 = vadd.f32 %v1386, %v1418
      %v1451 = vadd.f32 %v1387, %v1419
      %v1452 = vadd.f32 %v1388, %v1420
      %v1453 = vadd.f32 %v1389, %v1421
      %v1454 = vadd.f32 %v1390, %v1422
      %v1455 = vadd.f32 %v1391, %v1423
      %v1456 = vadd.f32 %v1392, %v1424
      %v1457 = vadd.f32 %v1393, %v1425
      %v1458 = vadd.f32 %v1394, %v1426
      %v1459 = vadd.f32 %v1395, %v1427
      %v1460 = vadd.f32 %v1396, %v1428
      %v1461 = vadd.f32 %v1397, %v1429
      %v1462 = vadd.f32 %v1398, %v1430
      %v1463 = vadd.f32 %v1399, %v1431
      %v1464 = vadd.f32 %v1400, %v1432
      %v1465 = vadd.f32 %v1401, %v1433
      %v1466 = vadd.f32 %v1402, %v1434
      %v1467 = vadd.f32 %v1403, %v1435
      %v1468 = vadd.f32 %v1404, %v1436
      %v1469 = vadd.f32 %v1405, %v1437
      %v1470 = vadd.f32 %v1406, %v1438
      %v1471 = vadd.f32 %v1407, %v1439
      %v1472 = vadd.f32 %v1408, %v1440
      %v1473 = vadd.f32 %v1409, %v1441
      %v1474 = vadd.f32 %v1410, %v1442
      %v1475 = vmul.f32 %v600, 0.25
      %v1476 = vmul.f32 %v601, 0.25
      %v1477 = vmul.f32 %v602, 0.25
      %v1478 = vmul.f32 %v603, 0.25
      %v1479 = vmul.f32 %v1280, 0.25
      %v1480 = vmul.f32 %v604, 0.25
      %v1481 = vmul.f32 %v605, 0.25
      %v1482 = vmul.f32 %v606, 0.25
      %v1483 = vmul.f32 %v607, 0.25
      %v1484 = vmul.f32 %v1287, 0.25
      %v1485 = vmul.f32 %v608, 0.25
      %v1486 = vmul.f32 %v609, 0.25
      %v1487 = vmul.f32 %v610, 0.25
      %v1488 = vmul.f32 %v611, 0.25
      %v1489 = vmul.f32 %v1294, 0.25
      %v1490 = vmul.f32 %v612, 0.25
      %v1491 = vmul.f32 %v613, 0.25
      %v1492 = vmul.f32 %v614, 0.25
      %v1493 = vmul.f32 %v615, 0.25
      %v1494 = vmul.f32 %v1301, 0.25
      %v1495 = vmul.f32 %v616, 0.25
      %v1496 = vmul.f32 %v617, 0.25
      %v1497 = vmul.f32 %v618, 0.25
      %v1498 = vmul.f32 %v619, 0.25
      %v1499 = vmul.f32 %v1308, 0.25
      %v1500 = vmul.f32 %v620, 0.25
      %v1501 = vmul.f32 %v621, 0.25
      %v1502 = vmul.f32 %v622, 0.25
      %v1503 = vmul.f32 %v623, 0.25
      %v1504 = vmul.f32 %v1315, 0.25
      %v1505 = vmul.f32 %v624, 0.25
      %v1506 = vmul.f32 %v625, 0.25
      %v1507 = vmul.f32 %v626, 0.25
      %v1508 = vmul.f32 %v627, 0.25
      %v1509 = vmul.f32 %v1322, 0.25
      %v1510 = vmul.f32 %v628, 0.25
      %v1511 = vmul.f32 %v629, 0.25
      %v1512 = vmul.f32 %v630, 0.25
      %v1513 = vmul.f32 %v631, 0.25
      %v1514 = vmul.f32 %v1329, 0.25
      %v1555 = vrot.slane %v1475, 1
      %v1556 = vrot.slane %v1476, 1
      %v1557 = vsel %vm945, %v1555, %v1556
      %v1558 = vrot.slane %v1477, 1
      %v1559 = vsel %vm945, %v1556, %v1558
      %v1560 = vrot.slane %v1478, 1
      %v1561 = vsel %vm945, %v1558, %v1560
      %v1562 = vrot.slane %v1479, 1
      %v1563 = vsel %vm945, %v1560, %v1562
      %v1564 = vrot.slane %v1480, 1
      %v1565 = vrot.slane %v1481, 1
      %v1566 = vsel %vm945, %v1564, %v1565
      %v1567 = vrot.slane %v1482, 1
      %v1568 = vsel %vm945, %v1565, %v1567
      %v1569 = vrot.slane %v1483, 1
      %v1570 = vsel %vm945, %v1567, %v1569
      %v1571 = vrot.slane %v1484, 1
      %v1572 = vsel %vm945, %v1569, %v1571
      %v1573 = vrot.slane %v1485, 1
      %v1574 = vrot.slane %v1486, 1
      %v1575 = vsel %vm945, %v1573, %v1574
      %v1576 = vrot.slane %v1487, 1
      %v1577 = vsel %vm945, %v1574, %v1576
      %v1578 = vrot.slane %v1488, 1
      %v1579 = vsel %vm945, %v1576, %v1578
      %v1580 = vrot.slane %v1489, 1
      %v1581 = vsel %vm945, %v1578, %v1580
      %v1582 = vrot.slane %v1490, 1
      %v1583 = vrot.slane %v1491, 1
      %v1584 = vsel %vm945, %v1582, %v1583
      %v1585 = vrot.slane %v1492, 1
      %v1586 = vsel %vm945, %v1583, %v1585
      %v1587 = vrot.slane %v1493, 1
      %v1588 = vsel %vm945, %v1585, %v1587
      %v1589 = vrot.slane %v1494, 1
      %v1590 = vsel %vm945, %v1587, %v1589
      %v1591 = vrot.slane %v1495, 1
      %v1592 = vrot.slane %v1496, 1
      %v1593 = vsel %vm945, %v1591, %v1592
      %v1594 = vrot.slane %v1497, 1
      %v1595 = vsel %vm945, %v1592, %v1594
      %v1596 = vrot.slane %v1498, 1
      %v1597 = vsel %vm945, %v1594, %v1596
      %v1598 = vrot.slane %v1499, 1
      %v1599 = vsel %vm945, %v1596, %v1598
      %v1600 = vrot.slane %v1500, 1
      %v1601 = vrot.slane %v1501, 1
      %v1602 = vsel %vm945, %v1600, %v1601
      %v1603 = vrot.slane %v1502, 1
      %v1604 = vsel %vm945, %v1601, %v1603
      %v1605 = vrot.slane %v1503, 1
      %v1606 = vsel %vm945, %v1603, %v1605
      %v1607 = vrot.slane %v1504, 1
      %v1608 = vsel %vm945, %v1605, %v1607
      %v1609 = vrot.slane %v1505, 1
      %v1610 = vrot.slane %v1506, 1
      %v1611 = vsel %vm945, %v1609, %v1610
      %v1612 = vrot.slane %v1507, 1
      %v1613 = vsel %vm945, %v1610, %v1612
      %v1614 = vrot.slane %v1508, 1
      %v1615 = vsel %vm945, %v1612, %v1614
      %v1616 = vrot.slane %v1509, 1
      %v1617 = vsel %vm945, %v1614, %v1616
      %v1618 = vrot.slane %v1510, 1
      %v1619 = vrot.slane %v1511, 1
      %v1620 = vsel %vm945, %v1618, %v1619
      %v1621 = vrot.slane %v1512, 1
      %v1622 = vsel %vm945, %v1619, %v1621
      %v1623 = vrot.slane %v1513, 1
      %v1624 = vsel %vm945, %v1621, %v1623
      %v1625 = vrot.slane %v1514, 1
      %v1626 = vsel %vm945, %v1623, %v1625
      %v1659 = vadd.f32 %v1379, %v1557
      %v1660 = vadd.f32 %v1380, %v1559
      %v1661 = vadd.f32 %v1381, %v1561
      %v1662 = vadd.f32 %v1382, %v1563
      %v1663 = vadd.f32 %v1383, %v1566
      %v1664 = vadd.f32 %v1384, %v1568
      %v1665 = vadd.f32 %v1385, %v1570
      %v1666 = vadd.f32 %v1386, %v1572
      %v1667 = vadd.f32 %v1387, %v1575
      %v1668 = vadd.f32 %v1388, %v1577
      %v1669 = vadd.f32 %v1389, %v1579
      %v1670 = vadd.f32 %v1390, %v1581
      %v1671 = vadd.f32 %v1391, %v1584
      %v1672 = vadd.f32 %v1392, %v1586
      %v1673 = vadd.f32 %v1393, %v1588
      %v1674 = vadd.f32 %v1394, %v1590
      %v1675 = vadd.f32 %v1395, %v1593
      %v1676 = vadd.f32 %v1396, %v1595
      %v1677 = vadd.f32 %v1397, %v1597
      %v1678 = vadd.f32 %v1398, %v1599
      %v1679 = vadd.f32 %v1399, %v1602
      %v1680 = vadd.f32 %v1400, %v1604
      %v1681 = vadd.f32 %v1401, %v1606
      %v1682 = vadd.f32 %v1402, %v1608
      %v1683 = vadd.f32 %v1403, %v1611
      %v1684 = vadd.f32 %v1404, %v1613
      %v1685 = vadd.f32 %v1405, %v1615
      %v1686 = vadd.f32 %v1406, %v1617
      %v1687 = vadd.f32 %v1407, %v1620
      %v1688 = vadd.f32 %v1408, %v1622
      %v1689 = vadd.f32 %v1409, %v1624
      %v1690 = vadd.f32 %v1410, %v1626
      %1723 = vrot.lane.b32.xlu0 %v1659, 64
      %v1724 = vpop.permute.xlu0 %1723
      %1725 = vrot.lane.b32.xlu0 %v1660, 64
      %v1726 = vpop.permute.xlu0 %1725
      %1727 = vrot.lane.b32.xlu0 %v1661, 64
      %v1728 = vpop.permute.xlu0 %1727
      %1729 = vrot.lane.b32.xlu0 %v1662, 64
      %v1730 = vpop.permute.xlu0 %1729
      %1731 = vrot.lane.b32.xlu0 %v1663, 64
      %v1732 = vpop.permute.xlu0 %1731
      %1733 = vrot.lane.b32.xlu0 %v1664, 64
      %v1734 = vpop.permute.xlu0 %1733
      %1735 = vrot.lane.b32.xlu0 %v1665, 64
      %v1736 = vpop.permute.xlu0 %1735
      %1737 = vrot.lane.b32.xlu0 %v1666, 64
      %v1738 = vpop.permute.xlu0 %1737
      %1739 = vrot.lane.b32.xlu0 %v1667, 64
      %v1740 = vpop.permute.xlu0 %1739
      %1741 = vrot.lane.b32.xlu0 %v1668, 64
      %v1742 = vpop.permute.xlu0 %1741
      %1743 = vrot.lane.b32.xlu0 %v1669, 64
      %v1744 = vpop.permute.xlu0 %1743
      %1745 = vrot.lane.b32.xlu0 %v1670, 64
      %v1746 = vpop.permute.xlu0 %1745
      %1747 = vrot.lane.b32.xlu0 %v1671, 64
      %v1748 = vpop.permute.xlu0 %1747
      %1749 = vrot.lane.b32.xlu0 %v1672, 64
      %v1750 = vpop.permute.xlu0 %1749
      %1751 = vrot.lane.b32.xlu0 %v1673, 64
      %v1752 = vpop.permute.xlu0 %1751
      %1753 = vrot.lane.b32.xlu0 %v1674, 64
      %v1754 = vpop.permute.xlu0 %1753
      %1755 = vrot.lane.b32.xlu0 %v1675, 64
      %v1756 = vpop.permute.xlu0 %1755
      %1757 = vrot.lane.b32.xlu0 %v1676, 64
      %v1758 = vpop.permute.xlu0 %1757
      %1759 = vrot.lane.b32.xlu0 %v1677, 64
      %v1760 = vpop.permute.xlu0 %1759
      %1761 = vrot.lane.b32.xlu0 %v1678, 64
      %v1762 = vpop.permute.xlu0 %1761
      %1763 = vrot.lane.b32.xlu0 %v1679, 64
      %v1764 = vpop.permute.xlu0 %1763
      %1765 = vrot.lane.b32.xlu0 %v1680, 64
      %v1766 = vpop.permute.xlu0 %1765
      %1767 = vrot.lane.b32.xlu0 %v1681, 64
      %v1768 = vpop.permute.xlu0 %1767
      %1769 = vrot.lane.b32.xlu0 %v1682, 64
      %v1770 = vpop.permute.xlu0 %1769
      %1771 = vrot.lane.b32.xlu0 %v1683, 64
      %v1772 = vpop.permute.xlu0 %1771
      %1773 = vrot.lane.b32.xlu0 %v1684, 64
      %v1774 = vpop.permute.xlu0 %1773
      %1775 = vrot.lane.b32.xlu0 %v1685, 64
      %v1776 = vpop.permute.xlu0 %1775
      %1777 = vrot.lane.b32.xlu0 %v1686, 64
      %v1778 = vpop.permute.xlu0 %1777
      %1779 = vrot.lane.b32.xlu0 %v1687, 64
      %v1780 = vpop.permute.xlu0 %1779
      %1781 = vrot.lane.b32.xlu0 %v1688, 64
      %v1782 = vpop.permute.xlu0 %1781
      %1783 = vrot.lane.b32.xlu0 %v1689, 64
      %v1784 = vpop.permute.xlu0 %1783
      %1785 = vrot.lane.b32.xlu0 %v1690, 64
      %v1786 = vpop.permute.xlu0 %1785
      %v1819 = vsel %vm1210, %v1443, %v1724
      %v1820 = vsel %vm1210, %v1444, %v1726
      %v1821 = vsel %vm1210, %v1445, %v1728
      %v1822 = vsel %vm1210, %v1446, %v1730
      %v1823 = vsel %vm1210, %v1447, %v1732
      %v1824 = vsel %vm1210, %v1448, %v1734
      %v1825 = vsel %vm1210, %v1449, %v1736
      %v1826 = vsel %vm1210, %v1450, %v1738
      %v1827 = vsel %vm1210, %v1451, %v1740
      %v1828 = vsel %vm1210, %v1452, %v1742
      %v1829 = vsel %vm1210, %v1453, %v1744
      %v1830 = vsel %vm1210, %v1454, %v1746
      %v1831 = vsel %vm1210, %v1455, %v1748
      %v1832 = vsel %vm1210, %v1456, %v1750
      %v1833 = vsel %vm1210, %v1457, %v1752
      %v1834 = vsel %vm1210, %v1458, %v1754
      %v1835 = vsel %vm1210, %v1459, %v1756
      %v1836 = vsel %vm1210, %v1460, %v1758
      %v1837 = vsel %vm1210, %v1461, %v1760
      %v1838 = vsel %vm1210, %v1462, %v1762
      %v1839 = vsel %vm1210, %v1463, %v1764
      %v1840 = vsel %vm1210, %v1464, %v1766
      %v1841 = vsel %vm1210, %v1465, %v1768
      %v1842 = vsel %vm1210, %v1466, %v1770
      %v1843 = vsel %vm1210, %v1467, %v1772
      %v1844 = vsel %vm1210, %v1468, %v1774
      %v1845 = vsel %vm1210, %v1469, %v1776
      %v1846 = vsel %vm1210, %v1470, %v1778
      %v1847 = vsel %vm1210, %v1471, %v1780
      %v1848 = vsel %vm1210, %v1472, %v1782
      %v1849 = vsel %vm1210, %v1473, %v1784
      %v1850 = vsel %vm1210, %v1474, %v1786
      %v1851 = vld [vmem:[%s443] sm:$0xf]
      %v1852 = vld [vmem:[%s443 + $0x4] sm:$0xf]
      %v1853 = vld [vmem:[%s443 + $0x8] sm:$0xf]
      %v1854 = vld [vmem:[%s443 + $0xc] sm:$0xf]
      %v1855 = vld [vmem:[%s443 + $0x10] sm:$0xf]
      %v1856 = vld [vmem:[%s443 + $0x14] sm:$0xf]
      %v1857 = vld [vmem:[%s443 + $0x18] sm:$0xf]
      %v1858 = vld [vmem:[%s443 + $0x1c] sm:$0xf]
      %v1859 = vld [vmem:[%s443 + $0x20] sm:$0xf]
      %v1860 = vld [vmem:[%s443 + $0x24] sm:$0xf]
      %v1861 = vld [vmem:[%s443 + $0x28] sm:$0xf]
      %v1862 = vld [vmem:[%s443 + $0x2c] sm:$0xf]
      %v1863 = vld [vmem:[%s443 + $0x30] sm:$0xf]
      %v1864 = vld [vmem:[%s443 + $0x34] sm:$0xf]
      %v1865 = vld [vmem:[%s443 + $0x38] sm:$0xf]
      %v1866 = vld [vmem:[%s443 + $0x3c] sm:$0xf]
      %v1867 = vld [vmem:[%s443 + $0x40] sm:$0xf]
      %v1868 = vld [vmem:[%s443 + $0x44] sm:$0xf]
      %v1869 = vld [vmem:[%s443 + $0x48] sm:$0xf]
      %v1870 = vld [vmem:[%s443 + $0x4c] sm:$0xf]
      %v1871 = vld [vmem:[%s443 + $0x50] sm:$0xf]
      %v1872 = vld [vmem:[%s443 + $0x54] sm:$0xf]
      %v1873 = vld [vmem:[%s443 + $0x58] sm:$0xf]
      %v1874 = vld [vmem:[%s443 + $0x5c] sm:$0xf]
      %v1875 = vld [vmem:[%s443 + $0x60] sm:$0xf]
      %v1876 = vld [vmem:[%s443 + $0x64] sm:$0xf]
      %v1877 = vld [vmem:[%s443 + $0x68] sm:$0xf]
      %v1878 = vld [vmem:[%s443 + $0x6c] sm:$0xf]
      %v1879 = vld [vmem:[%s443 + $0x70] sm:$0xf]
      %v1880 = vld [vmem:[%s443 + $0x74] sm:$0xf]
      %v1881 = vld [vmem:[%s443 + $0x78] sm:$0xf]
      %v1882 = vld [vmem:[%s443 + $0x7c] sm:$0xf]
      %v1883 = vld [vmem:[%s443 + $0x80] sm:$0xf]
      %v1884 = vld [vmem:[%s443 + $0x84] sm:$0xf]
      %v1885 = vld [vmem:[%s443 + $0x88] sm:$0xf]
      %v1886 = vld [vmem:[%s443 + $0x8c] sm:$0xf]
      %v1887 = vld [vmem:[%s443 + $0x90] sm:$0xf]
      %v1888 = vld [vmem:[%s443 + $0x94] sm:$0xf]
      %v1889 = vld [vmem:[%s443 + $0x98] sm:$0xf]
      %v1890 = vld [vmem:[%s443 + $0x9c] sm:$0xf]
      %v1891 = vld [vmem:[%s443 + $0xa0] sm:$0xf]
      %v1892 = vld [vmem:[%s443 + $0xa4] sm:$0xf]
      %v1893 = vld [vmem:[%s443 + $0xa8] sm:$0xf]
      %v1894 = vld [vmem:[%s443 + $0xac] sm:$0xf]
      %v1895 = vld [vmem:[%s443 + $0xb0] sm:$0xf]
      %v1896 = vld [vmem:[%s443 + $0xb4] sm:$0xf]
      %v1897 = vld [vmem:[%s443 + $0xb8] sm:$0xf]
      %v1898 = vld [vmem:[%s443 + $0xbc] sm:$0xf]
      %v1899 = vld [vmem:[%s443 + $0xc0] sm:$0xf]
      %v1900 = vld [vmem:[%s443 + $0xc4] sm:$0xf]
      %v1901 = vld [vmem:[%s443 + $0xc8] sm:$0xf]
      %v1902 = vld [vmem:[%s443 + $0xcc] sm:$0xf]
      %v1903 = vld [vmem:[%s443 + $0xd0] sm:$0xf]
      %v1904 = vld [vmem:[%s443 + $0xd4] sm:$0xf]
      %v1905 = vld [vmem:[%s443 + $0xd8] sm:$0xf]
      %v1906 = vld [vmem:[%s443 + $0xdc] sm:$0xf]
      %v1907 = vld [vmem:[%s443 + $0xe0] sm:$0xf]
      %v1908 = vld [vmem:[%s443 + $0xe4] sm:$0xf]
      %v1909 = vld [vmem:[%s443 + $0xe8] sm:$0xf]
      %v1910 = vld [vmem:[%s443 + $0xec] sm:$0xf]
      %v1911 = vld [vmem:[%s443 + $0xf0] sm:$0xf]
      %v1912 = vld [vmem:[%s443 + $0xf4] sm:$0xf]
      %v1913 = vld [vmem:[%s443 + $0xf8] sm:$0xf]
      %v1914 = vld [vmem:[%s443 + $0xfc] sm:$0xf]
      %v1915 = vld [vmem:[%s4] sm:$0xf]
      %v1916 = vld [vmem:[%s4 + $0x4] sm:$0xf]
      %v1917 = vld [vmem:[%s4 + $0x8] sm:$0xf]
      %v1918 = vld [vmem:[%s4 + $0xc] sm:$0xf]
      %v1919 = vld [vmem:[%s4 + $0x10] sm:$0xf]
      %v1920 = vld [vmem:[%s4 + $0x14] sm:$0xf]
      %v1921 = vld [vmem:[%s4 + $0x18] sm:$0xf]
      %v1922 = vld [vmem:[%s4 + $0x1c] sm:$0xf]
      %v1923 = vld [vmem:[%s4 + $0x20] sm:$0xf]
      %v1924 = vld [vmem:[%s4 + $0x24] sm:$0xf]
      %v1925 = vld [vmem:[%s4 + $0x28] sm:$0xf]
      %v1926 = vld [vmem:[%s4 + $0x2c] sm:$0xf]
      %v1927 = vld [vmem:[%s4 + $0x30] sm:$0xf]
      %v1928 = vld [vmem:[%s4 + $0x34] sm:$0xf]
      %v1929 = vld [vmem:[%s4 + $0x38] sm:$0xf]
      %v1930 = vld [vmem:[%s4 + $0x3c] sm:$0xf]
      %v1931 = vld [vmem:[%s5] sm:$0x1]
      %v1933 = vperm.slane %v1931, 0
      %v1999 = vunpack.c.l.b16 %v1851
      %v2000 = vunpack.c.l.b16 %v1852
      %v2001 = vunpack.c.l.b16 %v1853
      %v2002 = vunpack.c.l.b16 %v1854
      %v2003 = vunpack.c.l.b16 %v1855
      %v2004 = vunpack.c.l.b16 %v1856
      %v2005 = vunpack.c.l.b16 %v1857
      %v2006 = vunpack.c.l.b16 %v1858
      %v2007 = vunpack.c.l.b16 %v1859
      %v2008 = vunpack.c.l.b16 %v1860
      %v2009 = vunpack.c.l.b16 %v1861
      %v2010 = vunpack.c.l.b16 %v1862
      %v2011 = vunpack.c.l.b16 %v1863
      %v2012 = vunpack.c.l.b16 %v1864
      %v2013 = vunpack.c.l.b16 %v1865
      %v2014 = vunpack.c.l.b16 %v1866
      %v2015 = vunpack.c.l.b16 %v1867
      %v2016 = vunpack.c.l.b16 %v1868
      %v2017 = vunpack.c.l.b16 %v1869
      %v2018 = vunpack.c.l.b16 %v1870
      %v2019 = vunpack.c.l.b16 %v1871
      %v2020 = vunpack.c.l.b16 %v1872
      %v2021 = vunpack.c.l.b16 %v1873
      %v2022 = vunpack.c.l.b16 %v1874
      %v2023 = vunpack.c.l.b16 %v1875
      %v2024 = vunpack.c.l.b16 %v1876
      %v2025 = vunpack.c.l.b16 %v1877
      %v2026 = vunpack.c.l.b16 %v1878
      %v2027 = vunpack.c.l.b16 %v1879
      %v2028 = vunpack.c.l.b16 %v1880
      %v2029 = vunpack.c.l.b16 %v1881
      %v2030 = vunpack.c.l.b16 %v1882
      %v2031 = vunpack.c.l.b16 %v1883
      %v2032 = vunpack.c.l.b16 %v1884
      %v2033 = vunpack.c.l.b16 %v1885
      %v2034 = vunpack.c.l.b16 %v1886
      %v2035 = vunpack.c.l.b16 %v1887
      %v2036 = vunpack.c.l.b16 %v1888
      %v2037 = vunpack.c.l.b16 %v1889
      %v2038 = vunpack.c.l.b16 %v1890
      %v2039 = vunpack.c.l.b16 %v1891
      %v2040 = vunpack.c.l.b16 %v1892
      %v2041 = vunpack.c.l.b16 %v1893
      %v2042 = vunpack.c.l.b16 %v1894
      %v2043 = vunpack.c.l.b16 %v1895
      %v2044 = vunpack.c.l.b16 %v1896
      %v2045 = vunpack.c.l.b16 %v1897
      %v2046 = vunpack.c.l.b16 %v1898
      %v2047 = vunpack.c.l.b16 %v1899
      %v2048 = vunpack.c.l.b16 %v1900
      %v2049 = vunpack.c.l.b16 %v1901
      %v2050 = vunpack.c.l.b16 %v1902
      %v2051 = vunpack.c.l.b16 %v1903
      %v2052 = vunpack.c.l.b16 %v1904
      %v2053 = vunpack.c.l.b16 %v1905
      %v2054 = vunpack.c.l.b16 %v1906
      %v2055 = vunpack.c.l.b16 %v1907
      %v2056 = vunpack.c.l.b16 %v1908
      %v2057 = vunpack.c.l.b16 %v1909
      %v2058 = vunpack.c.l.b16 %v1910
      %v2059 = vunpack.c.l.b16 %v1911
      %v2060 = vunpack.c.l.b16 %v1912
      %v2061 = vunpack.c.l.b16 %v1913
      %v2062 = vunpack.c.l.b16 %v1914
      %v2063 = vpack.c.b16 %v2000, %v1999
      %v2064 = vpack.c.b16 %v2002, %v2001
      %v2065 = vpack.c.b16 %v2004, %v2003
      %v2066 = vpack.c.b16 %v2006, %v2005
      %v2067 = vpack.c.b16 %v2008, %v2007
      %v2068 = vpack.c.b16 %v2010, %v2009
      %v2069 = vpack.c.b16 %v2012, %v2011
      %v2070 = vpack.c.b16 %v2014, %v2013
      %v2071 = vpack.c.b16 %v2016, %v2015
      %v2072 = vpack.c.b16 %v2018, %v2017
      %v2073 = vpack.c.b16 %v2020, %v2019
      %v2074 = vpack.c.b16 %v2022, %v2021
      %v2075 = vpack.c.b16 %v2024, %v2023
      %v2076 = vpack.c.b16 %v2026, %v2025
      %v2077 = vpack.c.b16 %v2028, %v2027
      %v2078 = vpack.c.b16 %v2030, %v2029
      %v2079 = vpack.c.b16 %v2032, %v2031
      %v2080 = vpack.c.b16 %v2034, %v2033
      %v2081 = vpack.c.b16 %v2036, %v2035
      %v2082 = vpack.c.b16 %v2038, %v2037
      %v2083 = vpack.c.b16 %v2040, %v2039
      %v2084 = vpack.c.b16 %v2042, %v2041
      %v2085 = vpack.c.b16 %v2044, %v2043
      %v2086 = vpack.c.b16 %v2046, %v2045
      %v2087 = vpack.c.b16 %v2048, %v2047
      %v2088 = vpack.c.b16 %v2050, %v2049
      %v2089 = vpack.c.b16 %v2052, %v2051
      %v2090 = vpack.c.b16 %v2054, %v2053
      %v2091 = vpack.c.b16 %v2056, %v2055
      %v2092 = vpack.c.b16 %v2058, %v2057
      %v2093 = vpack.c.b16 %v2060, %v2059
      %v2094 = vpack.c.b16 %v2062, %v2061
      %v2143 = vunpack.c.l.b16 %v1915
      %v2144 = vunpack.c.l.b16 %v1916
      %v2145 = vunpack.c.l.b16 %v1917
      %v2146 = vunpack.c.l.b16 %v1918
      %v2147 = vunpack.c.l.b16 %v1919
      %v2148 = vunpack.c.l.b16 %v1920
      %v2149 = vunpack.c.l.b16 %v1921
      %v2150 = vunpack.c.l.b16 %v1922
      %v2151 = vunpack.c.l.b16 %v1923
      %v2152 = vunpack.c.l.b16 %v1924
      %v2153 = vunpack.c.l.b16 %v1925
      %v2154 = vunpack.c.l.b16 %v1926
      %v2155 = vunpack.c.l.b16 %v1927
      %v2156 = vunpack.c.l.b16 %v1928
      %v2157 = vunpack.c.l.b16 %v1929
      %v2158 = vunpack.c.l.b16 %v1930
      %v2159 = vpack.c.b16 %v2144, %v2143
      %v2160 = vpack.c.b16 %v2146, %v2145
      %v2161 = vpack.c.b16 %v2148, %v2147
      %v2162 = vpack.c.b16 %v2150, %v2149
      %v2163 = vpack.c.b16 %v2152, %v2151
      %v2164 = vpack.c.b16 %v2154, %v2153
      %v2165 = vpack.c.b16 %v2156, %v2155
      %v2166 = vpack.c.b16 %v2158, %v2157
      %2175 = vmatpush.bf16.msra.mxu0 %v2166
      %2176 = vmatpush.bf16.msra.mxu0 %v2165
      %2177 = vmatpush.bf16.msra.mxu0 %v2164
      %2178 = vmatpush.bf16.msra.mxu0 %v2163
      %2179 = vmatpush.bf16.msra.mxu0 %v2162
      %2180 = vmatpush.bf16.msra.mxu0 %v2161
      %2181 = vmatpush.bf16.msra.mxu0 %v2160
      %2182 = vmatpush.bf16.msra.mxu0 %v2159
      %2183 = vmatmul.bf16.gmra.mxu0 %v2063
      %v2184 = vpop.f32.mrf.mxu0
      %v2185 = vadd.f32 %v1933, %v2184
      %v2186 = vpop.f32.mrf.mxu0
      %v2187 = vadd.f32 %v1933, %v2186
      %2188 = vmatmul.bf16.gmra.mxu0 %v2064
      %v2189 = vpop.f32.mrf.mxu0
      %v2190 = vadd.f32 %v1933, %v2189
      %v2191 = vpop.f32.mrf.mxu0
      %v2192 = vadd.f32 %v1933, %v2191
      %2193 = vmatmul.bf16.gmra.mxu0 %v2065
      %v2194 = vpop.f32.mrf.mxu0
      %v2195 = vadd.f32 %v1933, %v2194
      %v2196 = vpop.f32.mrf.mxu0
      %v2197 = vadd.f32 %v1933, %v2196
      %2198 = vmatmul.bf16.gmra.mxu0 %v2066
      %v2199 = vpop.f32.mrf.mxu0
      %v2200 = vadd.f32 %v1933, %v2199
      %v2201 = vpop.f32.mrf.mxu0
      %v2202 = vadd.f32 %v1933, %v2201
      %2203 = vmatmul.bf16.gmra.mxu0 %v2067
      %v2204 = vpop.f32.mrf.mxu0
      %v2205 = vadd.f32 %v1933, %v2204
      %v2206 = vpop.f32.mrf.mxu0
      %v2207 = vadd.f32 %v1933, %v2206
      %2208 = vmatmul.bf16.gmra.mxu0 %v2068
      %v2209 = vpop.f32.mrf.mxu0
      %v2210 = vadd.f32 %v1933, %v2209
      %v2211 = vpop.f32.mrf.mxu0
      %v2212 = vadd.f32 %v1933, %v2211
      %2213 = vmatmul.bf16.gmra.mxu0 %v2069
      %v2214 = vpop.f32.mrf.mxu0
      %v2215 = vadd.f32 %v1933, %v2214
      %v2216 = vpop.f32.mrf.mxu0
      %v2217 = vadd.f32 %v1933, %v2216
      %2218 = vmatmul.bf16.gmra.mxu0 %v2070
      %v2219 = vpop.f32.mrf.mxu0
      %v2220 = vadd.f32 %v1933, %v2219
      %v2221 = vpop.f32.mrf.mxu0
      %v2222 = vadd.f32 %v1933, %v2221
      %2223 = vmatmul.bf16.gmra.mxu0 %v2071
      %v2224 = vpop.f32.mrf.mxu0
      %v2225 = vadd.f32 %v1933, %v2224
      %v2226 = vpop.f32.mrf.mxu0
      %v2227 = vadd.f32 %v1933, %v2226
      %2228 = vmatmul.bf16.gmra.mxu0 %v2072
      %v2229 = vpop.f32.mrf.mxu0
      %v2230 = vadd.f32 %v1933, %v2229
      %v2231 = vpop.f32.mrf.mxu0
      %v2232 = vadd.f32 %v1933, %v2231
      %2233 = vmatmul.bf16.gmra.mxu0 %v2073
      %v2234 = vpop.f32.mrf.mxu0
      %v2235 = vadd.f32 %v1933, %v2234
      %v2236 = vpop.f32.mrf.mxu0
      %v2237 = vadd.f32 %v1933, %v2236
      %2238 = vmatmul.bf16.gmra.mxu0 %v2074
      %v2239 = vpop.f32.mrf.mxu0
      %v2240 = vadd.f32 %v1933, %v2239
      %v2241 = vpop.f32.mrf.mxu0
      %v2242 = vadd.f32 %v1933, %v2241
      %2243 = vmatmul.bf16.gmra.mxu0 %v2075
      %v2244 = vpop.f32.mrf.mxu0
      %v2245 = vadd.f32 %v1933, %v2244
      %v2246 = vpop.f32.mrf.mxu0
      %v2247 = vadd.f32 %v1933, %v2246
      %2248 = vmatmul.bf16.gmra.mxu0 %v2076
      %v2249 = vpop.f32.mrf.mxu0
      %v2250 = vadd.f32 %v1933, %v2249
      %v2251 = vpop.f32.mrf.mxu0
      %v2252 = vadd.f32 %v1933, %v2251
      %2253 = vmatmul.bf16.gmra.mxu0 %v2077
      %v2254 = vpop.f32.mrf.mxu0
      %v2255 = vadd.f32 %v1933, %v2254
      %v2256 = vpop.f32.mrf.mxu0
      %v2257 = vadd.f32 %v1933, %v2256
      %2258 = vmatmul.bf16.gmra.mxu0 %v2078
      %v2259 = vpop.f32.mrf.mxu0
      %v2260 = vadd.f32 %v1933, %v2259
      %v2261 = vpop.f32.mrf.mxu0
      %v2262 = vadd.f32 %v1933, %v2261
      %2263 = vmatmul.bf16.gmra.mxu0 %v2079
      %v2264 = vpop.f32.mrf.mxu0
      %v2265 = vadd.f32 %v1933, %v2264
      %v2266 = vpop.f32.mrf.mxu0
      %v2267 = vadd.f32 %v1933, %v2266
      %2268 = vmatmul.bf16.gmra.mxu0 %v2080
      %v2269 = vpop.f32.mrf.mxu0
      %v2270 = vadd.f32 %v1933, %v2269
      %v2271 = vpop.f32.mrf.mxu0
      %v2272 = vadd.f32 %v1933, %v2271
      %2273 = vmatmul.bf16.gmra.mxu0 %v2081
      %v2274 = vpop.f32.mrf.mxu0
      %v2275 = vadd.f32 %v1933, %v2274
      %v2276 = vpop.f32.mrf.mxu0
      %v2277 = vadd.f32 %v1933, %v2276
      %2278 = vmatmul.bf16.gmra.mxu0 %v2082
      %v2279 = vpop.f32.mrf.mxu0
      %v2280 = vadd.f32 %v1933, %v2279
      %v2281 = vpop.f32.mrf.mxu0
      %v2282 = vadd.f32 %v1933, %v2281
      %2283 = vmatmul.bf16.gmra.mxu0 %v2083
      %v2284 = vpop.f32.mrf.mxu0
      %v2285 = vadd.f32 %v1933, %v2284
      %v2286 = vpop.f32.mrf.mxu0
      %v2287 = vadd.f32 %v1933, %v2286
      %2288 = vmatmul.bf16.gmra.mxu0 %v2084
      %v2289 = vpop.f32.mrf.mxu0
      %v2290 = vadd.f32 %v1933, %v2289
      %v2291 = vpop.f32.mrf.mxu0
      %v2292 = vadd.f32 %v1933, %v2291
      %2293 = vmatmul.bf16.gmra.mxu0 %v2085
      %v2294 = vpop.f32.mrf.mxu0
      %v2295 = vadd.f32 %v1933, %v2294
      %v2296 = vpop.f32.mrf.mxu0
      %v2297 = vadd.f32 %v1933, %v2296
      %2298 = vmatmul.bf16.gmra.mxu0 %v2086
      %v2299 = vpop.f32.mrf.mxu0
      %v2300 = vadd.f32 %v1933, %v2299
      %v2301 = vpop.f32.mrf.mxu0
      %v2302 = vadd.f32 %v1933, %v2301
      %2303 = vmatmul.bf16.gmra.mxu0 %v2087
      %v2304 = vpop.f32.mrf.mxu0
      %v2305 = vadd.f32 %v1933, %v2304
      %v2306 = vpop.f32.mrf.mxu0
      %v2307 = vadd.f32 %v1933, %v2306
      %2308 = vmatmul.bf16.gmra.mxu0 %v2088
      %v2309 = vpop.f32.mrf.mxu0
      %v2310 = vadd.f32 %v1933, %v2309
      %v2311 = vpop.f32.mrf.mxu0
      %v2312 = vadd.f32 %v1933, %v2311
      %2313 = vmatmul.bf16.gmra.mxu0 %v2089
      %v2314 = vpop.f32.mrf.mxu0
      %v2315 = vadd.f32 %v1933, %v2314
      %v2316 = vpop.f32.mrf.mxu0
      %v2317 = vadd.f32 %v1933, %v2316
      %2318 = vmatmul.bf16.gmra.mxu0 %v2090
      %v2319 = vpop.f32.mrf.mxu0
      %v2320 = vadd.f32 %v1933, %v2319
      %v2321 = vpop.f32.mrf.mxu0
      %v2322 = vadd.f32 %v1933, %v2321
      %2323 = vmatmul.bf16.gmra.mxu0 %v2091
      %v2324 = vpop.f32.mrf.mxu0
      %v2325 = vadd.f32 %v1933, %v2324
      %v2326 = vpop.f32.mrf.mxu0
      %v2327 = vadd.f32 %v1933, %v2326
      %2328 = vmatmul.bf16.gmra.mxu0 %v2092
      %v2329 = vpop.f32.mrf.mxu0
      %v2330 = vadd.f32 %v1933, %v2329
      %v2331 = vpop.f32.mrf.mxu0
      %v2332 = vadd.f32 %v1933, %v2331
      %2333 = vmatmul.bf16.gmra.mxu0 %v2093
      %v2334 = vpop.f32.mrf.mxu0
      %v2335 = vadd.f32 %v1933, %v2334
      %v2336 = vpop.f32.mrf.mxu0
      %v2337 = vadd.f32 %v1933, %v2336
      %2338 = vmatmul.bf16.gmra.mxu0 %v2094
      %v2339 = vpop.f32.mrf.mxu0
      %v2340 = vadd.f32 %v1933, %v2339
      %v2341 = vpop.f32.mrf.mxu0
      %v2342 = vadd.f32 %v1933, %v2341
      %2343 = vdwg.mxu0
      %v2344 = vadd.f32 %v1211, %v2185
      %v2345 = vadd.f32 %v1212, %v2187
      %v2346 = vadd.f32 %v1213, %v2190
      %v2347 = vadd.f32 %v1214, %v2192
      %v2348 = vadd.f32 %v1215, %v2205
      %v2349 = vadd.f32 %v1216, %v2207
      %v2350 = vadd.f32 %v1217, %v2210
      %v2351 = vadd.f32 %v1218, %v2212
      %v2352 = vadd.f32 %v1219, %v2225
      %v2353 = vadd.f32 %v1220, %v2227
      %v2354 = vadd.f32 %v1221, %v2230
      %v2355 = vadd.f32 %v1222, %v2232
      %v2356 = vadd.f32 %v1223, %v2245
      %v2357 = vadd.f32 %v1224, %v2247
      %v2358 = vadd.f32 %v1225, %v2250
      %v2359 = vadd.f32 %v1226, %v2252
      %v2360 = vadd.f32 %v1227, %v2265
      %v2361 = vadd.f32 %v1228, %v2267
      %v2362 = vadd.f32 %v1229, %v2270
      %v2363 = vadd.f32 %v1230, %v2272
      %v2364 = vadd.f32 %v1231, %v2285
      %v2365 = vadd.f32 %v1232, %v2287
      %v2366 = vadd.f32 %v1233, %v2290
      %v2367 = vadd.f32 %v1234, %v2292
      %v2368 = vadd.f32 %v1235, %v2305
      %v2369 = vadd.f32 %v1236, %v2307
      %v2370 = vadd.f32 %v1237, %v2310
      %v2371 = vadd.f32 %v1238, %v2312
      %v2372 = vadd.f32 %v1239, %v2325
      %v2373 = vadd.f32 %v1240, %v2327
      %v2374 = vadd.f32 %v1241, %v2330
      %v2375 = vadd.f32 %v1242, %v2332
      %2376 = vst [vmem:[%s454] sm:$0xff] %v2344
      %2377 = vst [vmem:[%s454 + $0x8] sm:$0xff] %v2345
      %2378 = vst [vmem:[%s454 + $0x10] sm:$0xff] %v2346
      %2379 = vst [vmem:[%s454 + $0x18] sm:$0xff] %v2347
      %2380 = vst [vmem:[%s454 + $0x40] sm:$0xff] %v2348
      %2381 = vst [vmem:[%s454 + $0x48] sm:$0xff] %v2349
      %2382 = vst [vmem:[%s454 + $0x50] sm:$0xff] %v2350
      %2383 = vst [vmem:[%s454 + $0x58] sm:$0xff] %v2351
      %2384 = vst [vmem:[%s454 + $0x80] sm:$0xff] %v2352
      %2385 = vst [vmem:[%s454 + $0x88] sm:$0xff] %v2353
      %2386 = vst [vmem:[%s454 + $0x90] sm:$0xff] %v2354
      %2387 = vst [vmem:[%s454 + $0x98] sm:$0xff] %v2355
      %2388 = vst [vmem:[%s454 + $0xc0] sm:$0xff] %v2356
      %2389 = vst [vmem:[%s454 + $0xc8] sm:$0xff] %v2357
      %2390 = vst [vmem:[%s454 + $0xd0] sm:$0xff] %v2358
      %2391 = vst [vmem:[%s454 + $0xd8] sm:$0xff] %v2359
      %2392 = vst [vmem:[%s454 + $0x100] sm:$0xff] %v2360
      %2393 = vst [vmem:[%s454 + $0x108] sm:$0xff] %v2361
      %2394 = vst [vmem:[%s454 + $0x110] sm:$0xff] %v2362
      %2395 = vst [vmem:[%s454 + $0x118] sm:$0xff] %v2363
      %2396 = vst [vmem:[%s454 + $0x140] sm:$0xff] %v2364
      %2397 = vst [vmem:[%s454 + $0x148] sm:$0xff] %v2365
      %2398 = vst [vmem:[%s454 + $0x150] sm:$0xff] %v2366
      %2399 = vst [vmem:[%s454 + $0x158] sm:$0xff] %v2367
      %2400 = vst [vmem:[%s454 + $0x180] sm:$0xff] %v2368
      %2401 = vst [vmem:[%s454 + $0x188] sm:$0xff] %v2369
      %2402 = vst [vmem:[%s454 + $0x190] sm:$0xff] %v2370
      %2403 = vst [vmem:[%s454 + $0x198] sm:$0xff] %v2371
      %2404 = vst [vmem:[%s454 + $0x1c0] sm:$0xff] %v2372
      %2405 = vst [vmem:[%s454 + $0x1c8] sm:$0xff] %v2373
      %2406 = vst [vmem:[%s454 + $0x1d0] sm:$0xff] %v2374
      %2407 = vst [vmem:[%s454 + $0x1d8] sm:$0xff] %v2375
      %v2408 = vadd.f32 %v1819, %v2195
      %v2409 = vadd.f32 %v1820, %v2197
      %v2410 = vadd.f32 %v1821, %v2200
      %v2411 = vadd.f32 %v1822, %v2202
      %v2412 = vadd.f32 %v1823, %v2215
      %v2413 = vadd.f32 %v1824, %v2217
      %v2414 = vadd.f32 %v1825, %v2220
      %v2415 = vadd.f32 %v1826, %v2222
      %v2416 = vadd.f32 %v1827, %v2235
      %v2417 = vadd.f32 %v1828, %v2237
      %v2418 = vadd.f32 %v1829, %v2240
      %v2419 = vadd.f32 %v1830, %v2242
      %v2420 = vadd.f32 %v1831, %v2255
      %v2421 = vadd.f32 %v1832, %v2257
      %v2422 = vadd.f32 %v1833, %v2260
      %v2423 = vadd.f32 %v1834, %v2262
      %v2424 = vadd.f32 %v1835, %v2275
      %v2425 = vadd.f32 %v1836, %v2277
      %v2426 = vadd.f32 %v1837, %v2280
      %v2427 = vadd.f32 %v1838, %v2282
      %v2428 = vadd.f32 %v1839, %v2295
      %v2429 = vadd.f32 %v1840, %v2297
      %v2430 = vadd.f32 %v1841, %v2300
      %v2431 = vadd.f32 %v1842, %v2302
      %v2432 = vadd.f32 %v1843, %v2315
      %v2433 = vadd.f32 %v1844, %v2317
      %v2434 = vadd.f32 %v1845, %v2320
      %v2435 = vadd.f32 %v1846, %v2322
      %v2436 = vadd.f32 %v1847, %v2335
      %v2437 = vadd.f32 %v1848, %v2337
      %v2438 = vadd.f32 %v1849, %v2340
      %v2439 = vadd.f32 %v1850, %v2342
      %s2440 = scalar_lea.vmem %s454, 32
      %2441 = vst [vmem:[%s2440] sm:$0xff] %v2408
      %2442 = vst [vmem:[%s2440 + $0x8] sm:$0xff] %v2409
      %2443 = vst [vmem:[%s2440 + $0x10] sm:$0xff] %v2410
      %2444 = vst [vmem:[%s2440 + $0x18] sm:$0xff] %v2411
      %2445 = vst [vmem:[%s2440 + $0x40] sm:$0xff] %v2412
      %2446 = vst [vmem:[%s2440 + $0x48] sm:$0xff] %v2413
      %2447 = vst [vmem:[%s2440 + $0x50] sm:$0xff] %v2414
      %2448 = vst [vmem:[%s2440 + $0x58] sm:$0xff] %v2415
      %2449 = vst [vmem:[%s2440 + $0x80] sm:$0xff] %v2416
      %2450 = vst [vmem:[%s2440 + $0x88] sm:$0xff] %v2417
      %2451 = vst [vmem:[%s2440 + $0x90] sm:$0xff] %v2418
      %2452 = vst [vmem:[%s2440 + $0x98] sm:$0xff] %v2419
      %2453 = vst [vmem:[%s2440 + $0xc0] sm:$0xff] %v2420
      %2454 = vst [vmem:[%s2440 + $0xc8] sm:$0xff] %v2421
      %2455 = vst [vmem:[%s2440 + $0xd0] sm:$0xff] %v2422
      %2456 = vst [vmem:[%s2440 + $0xd8] sm:$0xff] %v2423
      %2457 = vst [vmem:[%s2440 + $0x100] sm:$0xff] %v2424
      %2458 = vst [vmem:[%s2440 + $0x108] sm:$0xff] %v2425
      %2459 = vst [vmem:[%s2440 + $0x110] sm:$0xff] %v2426
      %2460 = vst [vmem:[%s2440 + $0x118] sm:$0xff] %v2427
      %2461 = vst [vmem:[%s2440 + $0x140] sm:$0xff] %v2428
      %2462 = vst [vmem:[%s2440 + $0x148] sm:$0xff] %v2429
      %2463 = vst [vmem:[%s2440 + $0x150] sm:$0xff] %v2430
      %2464 = vst [vmem:[%s2440 + $0x158] sm:$0xff] %v2431
      %2465 = vst [vmem:[%s2440 + $0x180] sm:$0xff] %v2432
      %2466 = vst [vmem:[%s2440 + $0x188] sm:$0xff] %v2433
      %2467 = vst [vmem:[%s2440 + $0x190] sm:$0xff] %v2434
      %2468 = vst [vmem:[%s2440 + $0x198] sm:$0xff] %v2435
      %2469 = vst [vmem:[%s2440 + $0x1c0] sm:$0xff] %v2436
      %2470 = vst [vmem:[%s2440 + $0x1c8] sm:$0xff] %v2437
      %2471 = vst [vmem:[%s2440 + $0x1d0] sm:$0xff] %v2438
      %2472 = vst [vmem:[%s2440 + $0x1d8] sm:$0xff] %v2439
      %s2473 = smul.u32 8, %s22
      %p2474 = scmp.lt.s32.totalorder %s21, 1
      %s2475 = scalar_select %p2474, %s21, 1
      %p2476 = scmp.lt.s32.totalorder %s2473, 7
      %s2477 = scalar_select %p2476, %s2473, 7
      %s2478 = smul.addr %s2477, 8
      %s2479 = smul.addr %s2475, 64
      %s2480 = sadd.s32 %s2478, %s2479
      %s2481 = smul.addr %s2480, 8
      %s2482 = scalar_lea.vmem %s6, %s2481
      // Predicated region
      $region45: #{_lambda_.8} parent=43 // pred_check
        %p2483 = pneg %p219
      $region46: #{_lambda_.8} parent=43 // pred_check_branch
        %2485 = sbr.rel (%p2483) target = $region48
      $region47: #{_lambda_.8} parent=43 // pred_region
        %s2486 = smul.u32 8, %s22
      $region48: #{_lambda_.8} parent=43 // pred_fallthru
        _
    $region44: #{_lambda_.8} parent=5 // pred_fallthru
      _
    %p2487 = scmp.le.s32.totalorder 2, %s12
    // Predicated region
    $region49: #{_lambda_.8} parent=5 // pred_check
      %p2488 = pneg %p2487
    $region50: #{_lambda_.8} parent=5 // pred_check_branch
      %2490 = sbr.rel (%p2488) target = $region52
    $region51: #{_lambda_.8} parent=5 // pred_region
      %s2491 = ssub.s32 %s12, 2
      // Predicated region
      $region53: #{_lambda_.8} parent=51 // pred_check
        %p2492 = pneg %p225
      $region54: #{_lambda_.8} parent=51 // pred_check_branch
        %2494 = sbr.rel (%p2492) target = $region56
      $region55: #{_lambda_.8} parent=51 // pred_region
        %s2495 = smul.u32 8, %s24
        %p2496 = scmp.lt.s32.totalorder %s23, 1
        %s2497 = scalar_select %p2496, %s23, 1
        %p2498 = scmp.lt.s32.totalorder %s2495, 7
        %s2499 = scalar_select %p2498, %s2495, 7
        %s2500 = smul.addr %s2499, 8
        %s2501 = smul.addr %s2497, 64
        %s2502 = sadd.s32 %s2500, %s2501
        %s2503 = smul.addr %s2502, 8
        %s2504 = scalar_lea.vmem %s6, %s2503
      $region56: #{_lambda_.8} parent=51 // pred_fallthru
        _
    $region52: #{_lambda_.8} parent=5 // pred_fallthru
      _
  $region6: #{_lambda_.8} parent=0 // loop_footer
    %s16 = sadd.s32 1, %s12
  $region7: #{_lambda_.8} parent=0 // loop_footer_branch
    %11 = sbr.rel target = $region3
  $region8: #{_lambda_.8} parent=0 // loop_exit
    _

// kernel: _lambda_.9
$region0: #{_lambda_.9}
  #allocation0 [shape = 'u32[]', space=smem, size = 0x4, offset = 0x4, fixed_abs, tag = 'smem constant byte address 0x4 - core index']
  #allocation1 [shape = 'u32[72,128]{1,0:T(1,128)}', space=vmem, size = 0x9000, scoped, tag = 'internal scratch']
  %s0 = inlined_call_operand.vmem [shape: f32[2,16,64,64], index: 0, kind: input, shape index: {}, may-alias: {0,1,2}]
  %s1 = inlined_call_operand.vmem [shape: f32[2,16,64,64], index: 1, kind: input, shape index: {}, may-alias: {0,1,2}]
  %s2 = inlined_call_operand.vmem [shape: f32[2,16,64,64], index: 2, kind: input, shape index: {}, may-alias: {0,1,2}]
  %s3 = inlined_call_operand.vmem [shape: f32[2,16,2,64,128], index: 3, kind: output, shape index: {}]
  %s4 = sld [smem:[#allocation0]]
  $region45: #{_lambda_.9} parent=0
    _
  %s6 = ssub.s32 1, %s4
  %s7 = scalar_select 0, %s6, %s4
  loop: start=0, step=1, limit=4
  $region2: #{_lambda_.9} parent=0 // loop_pre_header
    _
  $region3: #{_lambda_.9} parent=0 // loop_header
    %s9 = sphi 0, %s13
    %p10 = scmp.ge.s32.totalorder %s9, 4
    %s16 = sphi 0, %s28
    %s17 = sphi 0, %s24
    %s18 = sphi 0, %s16
    %s19 = sphi 0, %s17
    %s20 = sphi 0, %s18
    %s21 = sphi 0, %s19
    %s33 = sphi 0, %s35
    %s36 = sphi 0, %s33
    %s37 = sphi 0, %s36
    %s53 = sphi 0, %s37
    %s69 = sphi 0, %s71
    %s72 = sphi 0, %s69
    %s73 = sphi 0, %s72
    %s89 = sphi 0, %s73
    %s105 = sphi 0, %s107
    %s108 = sphi 0, %s105
    %s109 = sphi 0, %s108
    %s125 = sphi 0, %s109
    %s133 = sphi 0, %s135
    %s136 = sphi 0, %s133
    %s137 = sphi 0, %s136
    %s153 = sphi 0, %s137
  $region4: #{_lambda_.9} parent=0 // loop_header_branch
    %12 = sbr.rel (%p10) target = $region8
  $region5: #{_lambda_.9} parent=0 // loop_body
    %s14 = ssub.s32 %s9, 1
    %s15 = ssub.s32 %s9, 2
    %s22 = sadd.s32 1, %s17
    %p23 = scmp.ge.s32.totalorder %s22, 1
    %s24 = scalar_select %p23, 0, %s22
    %s25 = sadd.s32 1, %s16
    %s26 = scalar_select %p23, %s25, %s16
    %p27 = scmp.ge.s32.totalorder %s26, 2
    %s28 = scalar_select %p27, 0, %s26
    %s29 = ssub.s32 %s16, %s28
    %s30 = ssub.s32 %s17, %s24
    %s31 = sor.u32 %s29, %s30
    %p32 = scmp.eq.s32.totalorder %s31, 0
    %s34 = sadd.s32 %s33, 1
    %s35 = scalar_select %p32, %s33, %s34
    %p38 = pneg %p32
    %p39 = scmp.eq.s32.totalorder %s9, 1
    %p40 = por %p38, %p39
    %p41 = scmp.ne.s32.totalorder %s33, %s36
    %p42 = scmp.eq.s32.totalorder %s9, 0
    %p43 = por %p41, %p42
    %p44 = scmp.ne.s32.totalorder %s33, %s36
    %p45 = scmp.eq.s32.totalorder %s14, 1
    %p46 = por %p44, %p45
    %p47 = scmp.ne.s32.totalorder %s36, %s37
    %p48 = scmp.eq.s32.totalorder %s14, 0
    %p49 = por %p47, %p48
    %p50 = scmp.ne.s32.totalorder %s36, %s37
    %p51 = scmp.eq.s32.totalorder %s15, 1
    %p52 = por %p50, %p51
    %p54 = scmp.ne.s32.totalorder %s37, %s53
    %p55 = scmp.eq.s32.totalorder %s15, 0
    %p56 = por %p54, %p55
    %s57 = smul.u32 %s17, 16
    %s58 = ssub.s32 %s57, 1
    %p59 = scmp.gt.s32.totalorder %s58, 0
    %s60 = scalar_select %p59, %s58, 0
    %s61 = smul.u32 %s24, 16
    %s62 = ssub.s32 %s61, 1
    %p63 = scmp.gt.s32.totalorder %s62, 0
    %s64 = scalar_select %p63, %s62, 0
    %s65 = ssub.s32 %s16, %s28
    %s66 = ssub.s32 %s60, %s64
    %s67 = sor.u32 %s65, %s66
    %p68 = scmp.eq.s32.totalorder %s67, 0
    %s70 = sadd.s32 %s69, 1
    %s71 = scalar_select %p68, %s69, %s70
    %p74 = pneg %p68
    %p75 = scmp.eq.s32.totalorder %s9, 1
    %p76 = por %p74, %p75
    %p77 = scmp.ne.s32.totalorder %s69, %s72
    %p78 = scmp.eq.s32.totalorder %s9, 0
    %p79 = por %p77, %p78
    %p80 = scmp.ne.s32.totalorder %s69, %s72
    %p81 = scmp.eq.s32.totalorder %s14, 1
    %p82 = por %p80, %p81
    %p83 = scmp.ne.s32.totalorder %s72, %s73
    %p84 = scmp.eq.s32.totalorder %s14, 0
    %p85 = por %p83, %p84
    %p86 = scmp.ne.s32.totalorder %s72, %s73
    %p87 = scmp.eq.s32.totalorder %s15, 1
    %p88 = por %p86, %p87
    %p90 = scmp.ne.s32.totalorder %s73, %s89
    %p91 = scmp.eq.s32.totalorder %s15, 0
    %p92 = por %p90, %p91
    %s93 = sadd.s32 %s17, 1
    %s94 = smul.u32 %s93, 16
    %p95 = scmp.lt.s32.totalorder %s94, 15
    %s96 = scalar_select %p95, %s94, 15
    %s97 = sadd.s32 %s24, 1
    %s98 = smul.u32 %s97, 16
    %p99 = scmp.lt.s32.totalorder %s98, 15
    %s100 = scalar_select %p99, %s98, 15
    %s101 = ssub.s32 %s16, %s28
    %s102 = ssub.s32 %s96, %s100
    %s103 = sor.u32 %s101, %s102
    %p104 = scmp.eq.s32.totalorder %s103, 0
    %s106 = sadd.s32 %s105, 1
    %s107 = scalar_select %p104, %s105, %s106
    %p110 = pneg %p104
    %p111 = scmp.eq.s32.totalorder %s9, 1
    %p112 = por %p110, %p111
    %p113 = scmp.ne.s32.totalorder %s105, %s108
    %p114 = scmp.eq.s32.totalorder %s9, 0
    %p115 = por %p113, %p114
    %p116 = scmp.ne.s32.totalorder %s105, %s108
    %p117 = scmp.eq.s32.totalorder %s14, 1
    %p118 = por %p116, %p117
    %p119 = scmp.ne.s32.totalorder %s108, %s109
    %p120 = scmp.eq.s32.totalorder %s14, 0
    %p121 = por %p119, %p120
    %p122 = scmp.ne.s32.totalorder %s108, %s109
    %p123 = scmp.eq.s32.totalorder %s15, 1
    %p124 = por %p122, %p123
    %p126 = scmp.ne.s32.totalorder %s109, %s125
    %p127 = scmp.eq.s32.totalorder %s15, 0
    %p128 = por %p126, %p127
    %s129 = ssub.s32 %s16, %s28
    %s130 = ssub.s32 %s17, %s24
    %s131 = sor.u32 %s129, %s130
    %p132 = scmp.eq.s32.totalorder %s131, 0
    %s134 = sadd.s32 %s133, 1
    %s135 = scalar_select %p132, %s133, %s134
    %p138 = pneg %p132
    %p139 = scmp.eq.s32.totalorder %s9, 1
    %p140 = por %p138, %p139
    %p141 = scmp.ne.s32.totalorder %s133, %s136
    %p142 = scmp.eq.s32.totalorder %s9, 0
    %p143 = por %p141, %p142
    %p144 = scmp.ne.s32.totalorder %s133, %s136
    %p145 = scmp.eq.s32.totalorder %s14, 1
    %p146 = por %p144, %p145
    %p147 = scmp.ne.s32.totalorder %s136, %s137
    %p148 = scmp.eq.s32.totalorder %s14, 0
    %p149 = por %p147, %p148
    %p150 = scmp.ne.s32.totalorder %s136, %s137
    %p151 = scmp.eq.s32.totalorder %s15, 1
    %p152 = por %p150, %p151
    %p154 = scmp.ne.s32.totalorder %s137, %s153
    %p155 = scmp.eq.s32.totalorder %s15, 0
    %p156 = por %p154, %p155
    %p157 = scmp.le.s32.totalorder 1, %s9
    %p158 = scmp.lt.s32.totalorder %s9, 3
    %p159 = pnand %p157, %p158
    %p160 = pneg %p159
    // Predicated region
    $region9: #{_lambda_.9} parent=5 // pred_check
      _
    $region10: #{_lambda_.9} parent=5 // pred_check_branch
      %162 = sbr.rel (%p159) target = $region12
    $region11: #{_lambda_.9} parent=5 // pred_region
      %s163 = ssub.s32 %s9, 1
    $region12: #{_lambda_.9} parent=5 // pred_fallthru
      _
    %p164 = scmp.lt.s32.totalorder %s9, 2
    // Predicated region
    $region13: #{_lambda_.9} parent=5 // pred_check
      %p165 = pneg %p164
    $region14: #{_lambda_.9} parent=5 // pred_check_branch
      %167 = sbr.rel (%p165) target = $region16
    $region15: #{_lambda_.9} parent=5 // pred_region
      // Predicated region
      $region17: #{_lambda_.9} parent=15 // pred_check
        %p168 = pneg %p43
      $region18: #{_lambda_.9} parent=15 // pred_check_branch
        %170 = sbr.rel (%p168) target = $region20
      $region19: #{_lambda_.9} parent=15 // pred_region
        %s171 = smul.u32 16, %s17
        %p172 = scmp.lt.s32.totalorder %s16, 1
        %s173 = scalar_select %p172, %s16, 1
        %p174 = scmp.lt.s32.totalorder %s171, 15
        %s175 = scalar_select %p174, %s171, 15
        %s176 = smul.addr %s175, 8
        %s177 = smul.addr %s173, 128
        %s178 = sadd.s32 %s176, %s177
        %s179 = smul.addr %s178, 8
        %s180 = scalar_lea.vmem %s0, %s179
        %s181 = smul.u32 16, %s17
      $region20: #{_lambda_.9} parent=15 // pred_fallthru
        _
      // Predicated region
      $region21: #{_lambda_.9} parent=15 // pred_check
        %p182 = pneg %p79
      $region22: #{_lambda_.9} parent=15 // pred_check_branch
        %184 = sbr.rel (%p182) target = $region24
      $region23: #{_lambda_.9} parent=15 // pred_region
        %s185 = smul.u32 %s17, 16
        %s186 = ssub.s32 %s185, 1
        %p187 = scmp.gt.s32.totalorder %s186, 0
        %s188 = scalar_select %p187, %s186, 0
        %p189 = scmp.lt.s32.totalorder %s16, 1
        %s190 = scalar_select %p189, %s16, 1
        %p191 = scmp.lt.s32.totalorder %s188, 15
        %s192 = scalar_select %p191, %s188, 15
        %s193 = smul.addr %s192, 8
        %s194 = smul.addr %s190, 128
        %s195 = sadd.s32 %s193, %s194
        %s196 = smul.addr %s195, 8
        %s197 = scalar_lea.vmem %s1, %s196
        %s198 = smul.u32 %s17, 16
        %s199 = ssub.s32 %s198, 1
        %p200 = scmp.gt.s32.totalorder %s199, 0
        %s201 = scalar_select %p200, %s199, 0
      $region24: #{_lambda_.9} parent=15 // pred_fallthru
        _
      // Predicated region
      $region25: #{_lambda_.9} parent=15 // pred_check
        %p202 = pneg %p115
      $region26: #{_lambda_.9} parent=15 // pred_check_branch
        %204 = sbr.rel (%p202) target = $region28
      $region27: #{_lambda_.9} parent=15 // pred_region
        %s205 = sadd.s32 %s17, 1
        %s206 = smul.u32 %s205, 16
        %p207 = scmp.lt.s32.totalorder %s206, 15
        %s208 = scalar_select %p207, %s206, 15
        %p209 = scmp.lt.s32.totalorder %s16, 1
        %s210 = scalar_select %p209, %s16, 1
        %p211 = scmp.lt.s32.totalorder %s208, 15
        %s212 = scalar_select %p211, %s208, 15
        %s213 = smul.addr %s212, 8
        %s214 = smul.addr %s210, 128
        %s215 = sadd.s32 %s213, %s214
        %s216 = smul.addr %s215, 8
        %s217 = scalar_lea.vmem %s2, %s216
        %s218 = sadd.s32 %s17, 1
        %s219 = smul.u32 %s218, 16
        %p220 = scmp.lt.s32.totalorder %s219, 15
        %s221 = scalar_select %p220, %s219, 15
      $region28: #{_lambda_.9} parent=15 // pred_fallthru
        _
    $region16: #{_lambda_.9} parent=5 // pred_fallthru
      _
    %p222 = scmp.le.s32.totalorder 1, %s9
    %p223 = scmp.lt.s32.totalorder %s9, 3
    %p224 = pnand %p222, %p223
    %p225 = pneg %p224
    // Predicated region
    $region29: #{_lambda_.9} parent=5 // pred_check
      _
    $region30: #{_lambda_.9} parent=5 // pred_check_branch
      %227 = sbr.rel (%p224) target = $region32
    $region31: #{_lambda_.9} parent=5 // pred_region
      %s228 = ssub.s32 %s9, 1
      %s229 = smul.u32 16, %s19
      %p230 = scmp.lt.s32.totalorder %s18, 1
      %s231 = scalar_select %p230, %s18, 1
      %p232 = scmp.lt.s32.totalorder %s229, 15
      %s233 = scalar_select %p232, %s229, 15
      %s234 = smul.addr %s233, 8
      %s235 = smul.addr %s231, 128
      %s236 = sadd.s32 %s234, %s235
      %s237 = smul.addr %s236, 8
      %s238 = scalar_lea.vmem %s0, %s237
      %p239 = pneg %p49
      %p240 = pneg %p46
      %s241 = smul.u32 %s19, 16
      %s242 = ssub.s32 %s241, 1
      %p243 = scmp.gt.s32.totalorder %s242, 0
      %s244 = scalar_select %p243, %s242, 0
      %p245 = scmp.lt.s32.totalorder %s18, 1
      %s246 = scalar_select %p245, %s18, 1
      %p247 = scmp.lt.s32.totalorder %s244, 15
      %s248 = scalar_select %p247, %s244, 15
      %s249 = smul.addr %s248, 8
      %s250 = smul.addr %s246, 128
      %s251 = sadd.s32 %s249, %s250
      %s252 = smul.addr %s251, 8
      %s253 = scalar_lea.vmem %s1, %s252
      %p254 = pneg %p85
      %p255 = pneg %p82
      %s256 = sadd.s32 %s19, 1
      %s257 = smul.u32 %s256, 16
      %p258 = scmp.lt.s32.totalorder %s257, 15
      %s259 = scalar_select %p258, %s257, 15
      %p260 = scmp.lt.s32.totalorder %s18, 1
      %s261 = scalar_select %p260, %s18, 1
      %p262 = scmp.lt.s32.totalorder %s259, 15
      %s263 = scalar_select %p262, %s259, 15
      %s264 = smul.addr %s263, 8
      %s265 = smul.addr %s261, 128
      %s266 = sadd.s32 %s264, %s265
      %s267 = smul.addr %s266, 8
      %s268 = scalar_lea.vmem %s2, %s267
      %p269 = pneg %p121
      %p270 = pneg %p118
      %p271 = pneg %p149
      %p272 = pneg %p146
      %s273 = smul.u32 16, %s19
      %p274 = scmp.lt.s32.totalorder %s18, 1
      %s275 = scalar_select %p274, %s18, 1
      %p276 = scmp.lt.s32.totalorder %s273, 15
      %s277 = scalar_select %p276, %s273, 15
      %s278 = smul.addr %s277, 16
      %s279 = smul.addr %s275, 256
      %s280 = sadd.s32 %s278, %s279
      %s281 = smul.addr %s280, 8
      %s282 = scalar_lea.vmem %s3, %s281
      %s283 = smul.u32 16, %s19
      %p284 = scmp.lt.s32.totalorder %s18, 1
      %s285 = scalar_select %p284, %s18, 1
      %p286 = scmp.lt.s32.totalorder %s283, 15
      %s287 = scalar_select %p286, %s283, 15
      %s288 = smul.addr %s287, 8
      %s289 = smul.addr %s285, 128
      %s290 = sadd.s32 %s288, %s289
      %s291 = smul.addr %s290, 8
      %s292 = scalar_lea.vmem %s0, %s291
      %s293 = smul.u32 16, %s19
      %s294 = smul.u32 %s19, 16
      %s295 = ssub.s32 %s294, 1
      %p296 = scmp.gt.s32.totalorder %s295, 0
      %s297 = scalar_select %p296, %s295, 0
      %p298 = scmp.lt.s32.totalorder %s18, 1
      %s299 = scalar_select %p298, %s18, 1
      %p300 = scmp.lt.s32.totalorder %s297, 15
      %s301 = scalar_select %p300, %s297, 15
      %s302 = smul.addr %s301, 8
      %s303 = smul.addr %s299, 128
      %s304 = sadd.s32 %s302, %s303
      %s305 = smul.addr %s304, 8
      %s306 = scalar_lea.vmem %s1, %s305
      %s307 = smul.u32 %s19, 16
      %s308 = ssub.s32 %s307, 1
      %p309 = scmp.gt.s32.totalorder %s308, 0
      %s310 = scalar_select %p309, %s308, 0
      %s311 = sadd.s32 %s19, 1
      %s312 = smul.u32 %s311, 16
      %p313 = scmp.lt.s32.totalorder %s312, 15
      %s314 = scalar_select %p313, %s312, 15
      %p315 = scmp.lt.s32.totalorder %s18, 1
      %s316 = scalar_select %p315, %s18, 1
      %p317 = scmp.lt.s32.totalorder %s314, 15
      %s318 = scalar_select %p317, %s314, 15
      %s319 = smul.addr %s318, 8
      %s320 = smul.addr %s316, 128
      %s321 = sadd.s32 %s319, %s320
      %s322 = smul.addr %s321, 8
      %s323 = scalar_lea.vmem %s2, %s322
      %s324 = sadd.s32 %s19, 1
      %s325 = smul.u32 %s324, 16
      %p326 = scmp.lt.s32.totalorder %s325, 15
      %s327 = scalar_select %p326, %s325, 15
      %s328 = smul.u32 16, %s19
      %p329 = scmp.lt.s32.totalorder %s18, 1
      %s330 = scalar_select %p329, %s18, 1
      %p331 = scmp.lt.s32.totalorder %s328, 15
      %s332 = scalar_select %p331, %s328, 15
      %s333 = smul.addr %s332, 16
      %s334 = smul.addr %s330, 256
      %s335 = sadd.s32 %s333, %s334
      %s336 = smul.addr %s335, 8
      %s337 = scalar_lea.vmem %s3, %s336
      %s338 = smul.u32 16, %s19
      %v339 = vld [vmem:[%s292] sm:$0xff]
      %v340 = vld [vmem:[%s292 + $0x8] sm:$0xff]
      %v341 = vld [vmem:[%s292 + $0x10] sm:$0xff]
      %v342 = vld [vmem:[%s292 + $0x18] sm:$0xff]
      %v343 = vld [vmem:[%s292 + $0x20] sm:$0xff]
      %v344 = vld [vmem:[%s292 + $0x28] sm:$0xff]
      %v345 = vld [vmem:[%s292 + $0x30] sm:$0xff]
      %v346 = vld [vmem:[%s292 + $0x38] sm:$0xff]
      %v347 = vld [vmem:[%s292 + $0x40] sm:$0xff]
      %v348 = vld [vmem:[%s292 + $0x48] sm:$0xff]
      %v349 = vld [vmem:[%s292 + $0x50] sm:$0xff]
      %v350 = vld [vmem:[%s292 + $0x58] sm:$0xff]
      %v351 = vld [vmem:[%s292 + $0x60] sm:$0xff]
      %v352 = vld [vmem:[%s292 + $0x68] sm:$0xff]
      %v353 = vld [vmem:[%s292 + $0x70] sm:$0xff]
      %v354 = vld [vmem:[%s292 + $0x78] sm:$0xff]
      %v355 = vld [vmem:[%s292 + $0x80] sm:$0xff]
      %v356 = vld [vmem:[%s292 + $0x88] sm:$0xff]
      %v357 = vld [vmem:[%s292 + $0x90] sm:$0xff]
      %v358 = vld [vmem:[%s292 + $0x98] sm:$0xff]
      %v359 = vld [vmem:[%s292 + $0xa0] sm:$0xff]
      %v360 = vld [vmem:[%s292 + $0xa8] sm:$0xff]
      %v361 = vld [vmem:[%s292 + $0xb0] sm:$0xff]
      %v362 = vld [vmem:[%s292 + $0xb8] sm:$0xff]
      %v363 = vld [vmem:[%s292 + $0xc0] sm:$0xff]
      %v364 = vld [vmem:[%s292 + $0xc8] sm:$0xff]
      %v365 = vld [vmem:[%s292 + $0xd0] sm:$0xff]
      %v366 = vld [vmem:[%s292 + $0xd8] sm:$0xff]
      %v367 = vld [vmem:[%s292 + $0xe0] sm:$0xff]
      %v368 = vld [vmem:[%s292 + $0xe8] sm:$0xff]
      %v369 = vld [vmem:[%s292 + $0xf0] sm:$0xff]
      %v370 = vld [vmem:[%s292 + $0xf8] sm:$0xff]
      %v371 = vld [vmem:[%s292 + $0x100] sm:$0xff]
      %v372 = vld [vmem:[%s292 + $0x108] sm:$0xff]
      %v373 = vld [vmem:[%s292 + $0x110] sm:$0xff]
      %v374 = vld [vmem:[%s292 + $0x118] sm:$0xff]
      %v375 = vld [vmem:[%s292 + $0x120] sm:$0xff]
      %v376 = vld [vmem:[%s292 + $0x128] sm:$0xff]
      %v377 = vld [vmem:[%s292 + $0x130] sm:$0xff]
      %v378 = vld [vmem:[%s292 + $0x138] sm:$0xff]
      %v379 = vld [vmem:[%s292 + $0x140] sm:$0xff]
      %v380 = vld [vmem:[%s292 + $0x148] sm:$0xff]
      %v381 = vld [vmem:[%s292 + $0x150] sm:$0xff]
      %v382 = vld [vmem:[%s292 + $0x158] sm:$0xff]
      %v383 = vld [vmem:[%s292 + $0x160] sm:$0xff]
      %v384 = vld [vmem:[%s292 + $0x168] sm:$0xff]
      %v385 = vld [vmem:[%s292 + $0x170] sm:$0xff]
      %v386 = vld [vmem:[%s292 + $0x178] sm:$0xff]
      %v387 = vld [vmem:[%s292 + $0x180] sm:$0xff]
      %v388 = vld [vmem:[%s292 + $0x188] sm:$0xff]
      %v389 = vld [vmem:[%s292 + $0x190] sm:$0xff]
      %v390 = vld [vmem:[%s292 + $0x198] sm:$0xff]
      %v391 = vld [vmem:[%s292 + $0x1a0] sm:$0xff]
      %v392 = vld [vmem:[%s292 + $0x1a8] sm:$0xff]
      %v393 = vld [vmem:[%s292 + $0x1b0] sm:$0xff]
      %v394 = vld [vmem:[%s292 + $0x1b8] sm:$0xff]
      %v395 = vld [vmem:[%s292 + $0x1c0] sm:$0xff]
      %v396 = vld [vmem:[%s292 + $0x1c8] sm:$0xff]
      %v397 = vld [vmem:[%s292 + $0x1d0] sm:$0xff]
      %v398 = vld [vmem:[%s292 + $0x1d8] sm:$0xff]
      %v399 = vld [vmem:[%s292 + $0x1e0] sm:$0xff]
      %v400 = vld [vmem:[%s292 + $0x1e8] sm:$0xff]
      %v401 = vld [vmem:[%s292 + $0x1f0] sm:$0xff]
      %v402 = vld [vmem:[%s292 + $0x1f8] sm:$0xff]
      %v403 = vld [vmem:[%s292 + $0x200] sm:$0xff]
      %v404 = vld [vmem:[%s292 + $0x208] sm:$0xff]
      %v405 = vld [vmem:[%s292 + $0x210] sm:$0xff]
      %v406 = vld [vmem:[%s292 + $0x218] sm:$0xff]
      %v407 = vld [vmem:[%s292 + $0x220] sm:$0xff]
      %v408 = vld [vmem:[%s292 + $0x228] sm:$0xff]
      %v409 = vld [vmem:[%s292 + $0x230] sm:$0xff]
      %v410 = vld [vmem:[%s292 + $0x238] sm:$0xff]
      %v411 = vld [vmem:[%s292 + $0x240] sm:$0xff]
      %v412 = vld [vmem:[%s292 + $0x248] sm:$0xff]
      %v413 = vld [vmem:[%s292 + $0x250] sm:$0xff]
      %v414 = vld [vmem:[%s292 + $0x258] sm:$0xff]
      %v415 = vld [vmem:[%s292 + $0x260] sm:$0xff]
      %v416 = vld [vmem:[%s292 + $0x268] sm:$0xff]
      %v417 = vld [vmem:[%s292 + $0x270] sm:$0xff]
      %v418 = vld [vmem:[%s292 + $0x278] sm:$0xff]
      %v419 = vld [vmem:[%s292 + $0x280] sm:$0xff]
      %v420 = vld [vmem:[%s292 + $0x288] sm:$0xff]
      %v421 = vld [vmem:[%s292 + $0x290] sm:$0xff]
      %v422 = vld [vmem:[%s292 + $0x298] sm:$0xff]
      %v423 = vld [vmem:[%s292 + $0x2a0] sm:$0xff]
      %v424 = vld [vmem:[%s292 + $0x2a8] sm:$0xff]
      %v425 = vld [vmem:[%s292 + $0x2b0] sm:$0xff]
      %v426 = vld [vmem:[%s292 + $0x2b8] sm:$0xff]
      %v427 = vld [vmem:[%s292 + $0x2c0] sm:$0xff]
      %v428 = vld [vmem:[%s292 + $0x2c8] sm:$0xff]
      %v429 = vld [vmem:[%s292 + $0x2d0] sm:$0xff]
      %v430 = vld [vmem:[%s292 + $0x2d8] sm:$0xff]
      %v431 = vld [vmem:[%s292 + $0x2e0] sm:$0xff]
      %v432 = vld [vmem:[%s292 + $0x2e8] sm:$0xff]
      %v433 = vld [vmem:[%s292 + $0x2f0] sm:$0xff]
      %v434 = vld [vmem:[%s292 + $0x2f8] sm:$0xff]
      %v435 = vld [vmem:[%s292 + $0x300] sm:$0xff]
      %v436 = vld [vmem:[%s292 + $0x308] sm:$0xff]
      %v437 = vld [vmem:[%s292 + $0x310] sm:$0xff]
      %v438 = vld [vmem:[%s292 + $0x318] sm:$0xff]
      %v439 = vld [vmem:[%s292 + $0x320] sm:$0xff]
      %v440 = vld [vmem:[%s292 + $0x328] sm:$0xff]
      %v441 = vld [vmem:[%s292 + $0x330] sm:$0xff]
      %v442 = vld [vmem:[%s292 + $0x338] sm:$0xff]
      %v443 = vld [vmem:[%s292 + $0x340] sm:$0xff]
      %v444 = vld [vmem:[%s292 + $0x348] sm:$0xff]
      %v445 = vld [vmem:[%s292 + $0x350] sm:$0xff]
      %v446 = vld [vmem:[%s292 + $0x358] sm:$0xff]
      %v447 = vld [vmem:[%s292 + $0x360] sm:$0xff]
      %v448 = vld [vmem:[%s292 + $0x368] sm:$0xff]
      %v449 = vld [vmem:[%s292 + $0x370] sm:$0xff]
      %v450 = vld [vmem:[%s292 + $0x378] sm:$0xff]
      %v451 = vld [vmem:[%s292 + $0x380] sm:$0xff]
      %v452 = vld [vmem:[%s292 + $0x388] sm:$0xff]
      %v453 = vld [vmem:[%s292 + $0x390] sm:$0xff]
      %v454 = vld [vmem:[%s292 + $0x398] sm:$0xff]
      %v455 = vld [vmem:[%s292 + $0x3a0] sm:$0xff]
      %v456 = vld [vmem:[%s292 + $0x3a8] sm:$0xff]
      %v457 = vld [vmem:[%s292 + $0x3b0] sm:$0xff]
      %v458 = vld [vmem:[%s292 + $0x3b8] sm:$0xff]
      %v459 = vld [vmem:[%s292 + $0x3c0] sm:$0xff]
      %v460 = vld [vmem:[%s292 + $0x3c8] sm:$0xff]
      %v461 = vld [vmem:[%s292 + $0x3d0] sm:$0xff]
      %v462 = vld [vmem:[%s292 + $0x3d8] sm:$0xff]
      %v463 = vld [vmem:[%s292 + $0x3e0] sm:$0xff]
      %v464 = vld [vmem:[%s292 + $0x3e8] sm:$0xff]
      %v465 = vld [vmem:[%s292 + $0x3f0] sm:$0xff]
      %v466 = vld [vmem:[%s292 + $0x3f8] sm:$0xff]
      %v467 = vld [vmem:[%s306] sm:$0xff]
      %v468 = vld [vmem:[%s306 + $0x8] sm:$0xff]
      %v469 = vld [vmem:[%s306 + $0x10] sm:$0xff]
      %v470 = vld [vmem:[%s306 + $0x18] sm:$0xff]
      %v471 = vld [vmem:[%s306 + $0x20] sm:$0xff]
      %v472 = vld [vmem:[%s306 + $0x28] sm:$0xff]
      %v473 = vld [vmem:[%s306 + $0x30] sm:$0xff]
      %v474 = vld [vmem:[%s306 + $0x38] sm:$0xff]
      %v475 = vld [vmem:[%s323] sm:$0xff]
      %v476 = vld [vmem:[%s323 + $0x8] sm:$0xff]
      %v477 = vld [vmem:[%s323 + $0x10] sm:$0xff]
      %v478 = vld [vmem:[%s323 + $0x18] sm:$0xff]
      %v479 = vld [vmem:[%s323 + $0x20] sm:$0xff]
      %v480 = vld [vmem:[%s323 + $0x28] sm:$0xff]
      %v481 = vld [vmem:[%s323 + $0x30] sm:$0xff]
      %v482 = vld [vmem:[%s323 + $0x38] sm:$0xff]
      %v483 = vmul.f32 %v339, 0.75
      %v484 = vmul.f32 %v340, 0.75
      %v485 = vmul.f32 %v341, 0.75
      %v486 = vmul.f32 %v342, 0.75
      %v487 = vmul.f32 %v343, 0.75
      %v488 = vmul.f32 %v344, 0.75
      %v489 = vmul.f32 %v345, 0.75
      %v490 = vmul.f32 %v346, 0.75
      %v491 = vmul.f32 %v347, 0.75
      %v492 = vmul.f32 %v348, 0.75
      %v493 = vmul.f32 %v349, 0.75
      %v494 = vmul.f32 %v350, 0.75
      %v495 = vmul.f32 %v351, 0.75
      %v496 = vmul.f32 %v352, 0.75
      %v497 = vmul.f32 %v353, 0.75
      %v498 = vmul.f32 %v354, 0.75
      %v499 = vmul.f32 %v355, 0.75
      %v500 = vmul.f32 %v356, 0.75
      %v501 = vmul.f32 %v357, 0.75
      %v502 = vmul.f32 %v358, 0.75
      %v503 = vmul.f32 %v359, 0.75
      %v504 = vmul.f32 %v360, 0.75
      %v505 = vmul.f32 %v361, 0.75
      %v506 = vmul.f32 %v362, 0.75
      %v507 = vmul.f32 %v363, 0.75
      %v508 = vmul.f32 %v364, 0.75
      %v509 = vmul.f32 %v365, 0.75
      %v510 = vmul.f32 %v366, 0.75
      %v511 = vmul.f32 %v367, 0.75
      %v512 = vmul.f32 %v368, 0.75
      %v513 = vmul.f32 %v369, 0.75
      %v514 = vmul.f32 %v370, 0.75
      %v515 = vmul.f32 %v371, 0.75
      %v516 = vmul.f32 %v372, 0.75
      %v517 = vmul.f32 %v373, 0.75
      %v518 = vmul.f32 %v374, 0.75
      %v519 = vmul.f32 %v375, 0.75
      %v520 = vmul.f32 %v376, 0.75
      %v521 = vmul.f32 %v377, 0.75
      %v522 = vmul.f32 %v378, 0.75
      %v523 = vmul.f32 %v379, 0.75
      %v524 = vmul.f32 %v380, 0.75
      %v525 = vmul.f32 %v381, 0.75
      %v526 = vmul.f32 %v382, 0.75
      %v527 = vmul.f32 %v383, 0.75
      %v528 = vmul.f32 %v384, 0.75
      %v529 = vmul.f32 %v385, 0.75
      %v530 = vmul.f32 %v386, 0.75
      %v531 = vmul.f32 %v387, 0.75
      %v532 = vmul.f32 %v388, 0.75
      %v533 = vmul.f32 %v389, 0.75
      %v534 = vmul.f32 %v390, 0.75
      %v535 = vmul.f32 %v391, 0.75
      %v536 = vmul.f32 %v392, 0.75
      %v537 = vmul.f32 %v393, 0.75
      %v538 = vmul.f32 %v394, 0.75
      %v539 = vmul.f32 %v395, 0.75
      %v540 = vmul.f32 %v396, 0.75
      %v541 = vmul.f32 %v397, 0.75
      %v542 = vmul.f32 %v398, 0.75
      %v543 = vmul.f32 %v399, 0.75
      %v544 = vmul.f32 %v400, 0.75
      %v545 = vmul.f32 %v401, 0.75
      %v546 = vmul.f32 %v402, 0.75
      %v547 = vmul.f32 %v403, 0.75
      %v548 = vmul.f32 %v404, 0.75
      %v549 = vmul.f32 %v405, 0.75
      %v550 = vmul.f32 %v406, 0.75
      %v551 = vmul.f32 %v407, 0.75
      %v552 = vmul.f32 %v408, 0.75
      %v553 = vmul.f32 %v409, 0.75
      %v554 = vmul.f32 %v410, 0.75
      %v555 = vmul.f32 %v411, 0.75
      %v556 = vmul.f32 %v412, 0.75
      %v557 = vmul.f32 %v413, 0.75
      %v558 = vmul.f32 %v414, 0.75
      %v559 = vmul.f32 %v415, 0.75
      %v560 = vmul.f32 %v416, 0.75
      %v561 = vmul.f32 %v417, 0.75
      %v562 = vmul.f32 %v418, 0.75
      %v563 = vmul.f32 %v419, 0.75
      %v564 = vmul.f32 %v420, 0.75
      %v565 = vmul.f32 %v421, 0.75
      %v566 = vmul.f32 %v422, 0.75
      %v567 = vmul.f32 %v423, 0.75
      %v568 = vmul.f32 %v424, 0.75
      %v569 = vmul.f32 %v425, 0.75
      %v570 = vmul.f32 %v426, 0.75
      %v571 = vmul.f32 %v427, 0.75
      %v572 = vmul.f32 %v428, 0.75
      %v573 = vmul.f32 %v429, 0.75
      %v574 = vmul.f32 %v430, 0.75
      %v575 = vmul.f32 %v431, 0.75
      %v576 = vmul.f32 %v432, 0.75
      %v577 = vmul.f32 %v433, 0.75
      %v578 = vmul.f32 %v434, 0.75
      %v579 = vmul.f32 %v435, 0.75
      %v580 = vmul.f32 %v436, 0.75
      %v581 = vmul.f32 %v437, 0.75
      %v582 = vmul.f32 %v438, 0.75
      %v583 = vmul.f32 %v439, 0.75
      %v584 = vmul.f32 %v440, 0.75
      %v585 = vmul.f32 %v441, 0.75
      %v586 = vmul.f32 %v442, 0.75
      %v587 = vmul.f32 %v443, 0.75
      %v588 = vmul.f32 %v444, 0.75
      %v589 = vmul.f32 %v445, 0.75
      %v590 = vmul.f32 %v446, 0.75
      %v591 = vmul.f32 %v447, 0.75
      %v592 = vmul.f32 %v448, 0.75
      %v593 = vmul.f32 %v449, 0.75
      %v594 = vmul.f32 %v450, 0.75
      %v595 = vmul.f32 %v451, 0.75
      %v596 = vmul.f32 %v452, 0.75
      %v597 = vmul.f32 %v453, 0.75
      %v598 = vmul.f32 %v454, 0.75
      %v599 = vmul.f32 %v455, 0.75
      %v600 = vmul.f32 %v456, 0.75
      %v601 = vmul.f32 %v457, 0.75
      %v602 = vmul.f32 %v458, 0.75
      %v603 = vmul.f32 %v459, 0.75
      %v604 = vmul.f32 %v460, 0.75
      %v605 = vmul.f32 %v461, 0.75
      %v606 = vmul.f32 %v462, 0.75
      %v607 = vmul.f32 %v463, 0.75
      %v608 = vmul.f32 %v464, 0.75
      %v609 = vmul.f32 %v465, 0.75
      %v610 = vmul.f32 %v466, 0.75
      %v611 = vmul.f32 %v467, 0.25
      %v612 = vmul.f32 %v468, 0.25
      %v613 = vmul.f32 %v469, 0.25
      %v614 = vmul.f32 %v470, 0.25
      %v615 = vmul.f32 %v471, 0.25
      %v616 = vmul.f32 %v472, 0.25
      %v617 = vmul.f32 %v473, 0.25
      %v618 = vmul.f32 %v474, 0.25
      %v619 = vmul.f32 %v339, 0.25
      %v620 = vmul.f32 %v340, 0.25
      %v621 = vmul.f32 %v341, 0.25
      %v622 = vmul.f32 %v342, 0.25
      %v623 = vmul.f32 %v343, 0.25
      %v624 = vmul.f32 %v344, 0.25
      %v625 = vmul.f32 %v345, 0.25
      %v626 = vmul.f32 %v346, 0.25
      %v627 = vmul.f32 %v347, 0.25
      %v628 = vmul.f32 %v348, 0.25
      %v629 = vmul.f32 %v349, 0.25
      %v630 = vmul.f32 %v350, 0.25
      %v631 = vmul.f32 %v351, 0.25
      %v632 = vmul.f32 %v352, 0.25
      %v633 = vmul.f32 %v353, 0.25
      %v634 = vmul.f32 %v354, 0.25
      %v635 = vmul.f32 %v355, 0.25
      %v636 = vmul.f32 %v356, 0.25
      %v637 = vmul.f32 %v357, 0.25
      %v638 = vmul.f32 %v358, 0.25
      %v639 = vmul.f32 %v359, 0.25
      %v640 = vmul.f32 %v360, 0.25
      %v641 = vmul.f32 %v361, 0.25
      %v642 = vmul.f32 %v362, 0.25
      %v643 = vmul.f32 %v363, 0.25
      %v644 = vmul.f32 %v364, 0.25
      %v645 = vmul.f32 %v365, 0.25
      %v646 = vmul.f32 %v366, 0.25
      %v647 = vmul.f32 %v367, 0.25
      %v648 = vmul.f32 %v368, 0.25
      %v649 = vmul.f32 %v369, 0.25
      %v650 = vmul.f32 %v370, 0.25
      %v651 = vmul.f32 %v371, 0.25
      %v652 = vmul.f32 %v372, 0.25
      %v653 = vmul.f32 %v373, 0.25
      %v654 = vmul.f32 %v374, 0.25
      %v655 = vmul.f32 %v375, 0.25
      %v656 = vmul.f32 %v376, 0.25
      %v657 = vmul.f32 %v377, 0.25
      %v658 = vmul.f32 %v378, 0.25
      %v659 = vmul.f32 %v379, 0.25
      %v660 = vmul.f32 %v380, 0.25
      %v661 = vmul.f32 %v381, 0.25
      %v662 = vmul.f32 %v382, 0.25
      %v663 = vmul.f32 %v383, 0.25
      %v664 = vmul.f32 %v384, 0.25
      %v665 = vmul.f32 %v385, 0.25
      %v666 = vmul.f32 %v386, 0.25
      %v667 = vmul.f32 %v387, 0.25
      %v668 = vmul.f32 %v388, 0.25
      %v669 = vmul.f32 %v389, 0.25
      %v670 = vmul.f32 %v390, 0.25
      %v671 = vmul.f32 %v391, 0.25
      %v672 = vmul.f32 %v392, 0.25
      %v673 = vmul.f32 %v393, 0.25
      %v674 = vmul.f32 %v394, 0.25
      %v675 = vmul.f32 %v395, 0.25
      %v676 = vmul.f32 %v396, 0.25
      %v677 = vmul.f32 %v397, 0.25
      %v678 = vmul.f32 %v398, 0.25
      %v679 = vmul.f32 %v399, 0.25
      %v680 = vmul.f32 %v400, 0.25
      %v681 = vmul.f32 %v401, 0.25
      %v682 = vmul.f32 %v402, 0.25
      %v683 = vmul.f32 %v403, 0.25
      %v684 = vmul.f32 %v404, 0.25
      %v685 = vmul.f32 %v405, 0.25
      %v686 = vmul.f32 %v406, 0.25
      %v687 = vmul.f32 %v407, 0.25
      %v688 = vmul.f32 %v408, 0.25
      %v689 = vmul.f32 %v409, 0.25
      %v690 = vmul.f32 %v410, 0.25
      %v691 = vmul.f32 %v411, 0.25
      %v692 = vmul.f32 %v412, 0.25
      %v693 = vmul.f32 %v413, 0.25
      %v694 = vmul.f32 %v414, 0.25
      %v695 = vmul.f32 %v415, 0.25
      %v696 = vmul.f32 %v416, 0.25
      %v697 = vmul.f32 %v417, 0.25
      %v698 = vmul.f32 %v418, 0.25
      %v699 = vmul.f32 %v419, 0.25
      %v700 = vmul.f32 %v420, 0.25
      %v701 = vmul.f32 %v421, 0.25
      %v702 = vmul.f32 %v422, 0.25
      %v703 = vmul.f32 %v423, 0.25
      %v704 = vmul.f32 %v424, 0.25
      %v705 = vmul.f32 %v425, 0.25
      %v706 = vmul.f32 %v426, 0.25
      %v707 = vmul.f32 %v427, 0.25
      %v708 = vmul.f32 %v428, 0.25
      %v709 = vmul.f32 %v429, 0.25
      %v710 = vmul.f32 %v430, 0.25
      %v711 = vmul.f32 %v431, 0.25
      %v712 = vmul.f32 %v432, 0.25
      %v713 = vmul.f32 %v433, 0.25
      %v714 = vmul.f32 %v434, 0.25
      %v715 = vmul.f32 %v435, 0.25
      %v716 = vmul.f32 %v436, 0.25
      %v717 = vmul.f32 %v437, 0.25
      %v718 = vmul.f32 %v438, 0.25
      %v719 = vmul.f32 %v439, 0.25
      %v720 = vmul.f32 %v440, 0.25
      %v721 = vmul.f32 %v441, 0.25
      %v722 = vmul.f32 %v442, 0.25
      %v723 = vmul.f32 %v443, 0.25
      %v724 = vmul.f32 %v444, 0.25
      %v725 = vmul.f32 %v445, 0.25
      %v726 = vmul.f32 %v446, 0.25
      %v727 = vmul.f32 %v447, 0.25
      %v728 = vmul.f32 %v448, 0.25
      %v729 = vmul.f32 %v449, 0.25
      %v730 = vmul.f32 %v450, 0.25
      %v731 = vmul.f32 %v451, 0.25
      %v732 = vmul.f32 %v452, 0.25
      %v733 = vmul.f32 %v453, 0.25
      %v734 = vmul.f32 %v454, 0.25
      %v735 = vmul.f32 %v455, 0.25
      %v736 = vmul.f32 %v456, 0.25
      %v737 = vmul.f32 %v457, 0.25
      %v738 = vmul.f32 %v458, 0.25
      %v739 = vadd.f32 %v483, %v611
      %v740 = vadd.f32 %v484, %v612
      %v741 = vadd.f32 %v485, %v613
      %v742 = vadd.f32 %v486, %v614
      %v743 = vadd.f32 %v487, %v615
      %v744 = vadd.f32 %v488, %v616
      %v745 = vadd.f32 %v489, %v617
      %v746 = vadd.f32 %v490, %v618
      %v747 = vadd.f32 %v491, %v619
      %v748 = vadd.f32 %v492, %v620
      %v749 = vadd.f32 %v493, %v621
      %v750 = vadd.f32 %v494, %v622
      %v751 = vadd.f32 %v495, %v623
      %v752 = vadd.f32 %v496, %v624
      %v753 = vadd.f32 %v497, %v625
      %v754 = vadd.f32 %v498, %v626
      %v755 = vadd.f32 %v499, %v627
      %v756 = vadd.f32 %v500, %v628
      %v757 = vadd.f32 %v501, %v629
      %v758 = vadd.f32 %v502, %v630
      %v759 = vadd.f32 %v503, %v631
      %v760 = vadd.f32 %v504, %v632
      %v761 = vadd.f32 %v505, %v633
      %v762 = vadd.f32 %v506, %v634
      %v763 = vadd.f32 %v507, %v635
      %v764 = vadd.f32 %v508, %v636
      %v765 = vadd.f32 %v509, %v637
      %v766 = vadd.f32 %v510, %v638
      %v767 = vadd.f32 %v511, %v639
      %v768 = vadd.f32 %v512, %v640
      %v769 = vadd.f32 %v513, %v641
      %v770 = vadd.f32 %v514, %v642
      %v771 = vadd.f32 %v515, %v643
      %v772 = vadd.f32 %v516, %v644
      %v773 = vadd.f32 %v517, %v645
      %v774 = vadd.f32 %v518, %v646
      %v775 = vadd.f32 %v519, %v647
      %v776 = vadd.f32 %v520, %v648
      %v777 = vadd.f32 %v521, %v649
      %v778 = vadd.f32 %v522, %v650
      %v779 = vadd.f32 %v523, %v651
      %v780 = vadd.f32 %v524, %v652
      %v781 = vadd.f32 %v525, %v653
      %v782 = vadd.f32 %v526, %v654
      %v783 = vadd.f32 %v527, %v655
      %v784 = vadd.f32 %v528, %v656
      %v785 = vadd.f32 %v529, %v657
      %v786 = vadd.f32 %v530, %v658
      %v787 = vadd.f32 %v531, %v659
      %v788 = vadd.f32 %v532, %v660
      %v789 = vadd.f32 %v533, %v661
      %v790 = vadd.f32 %v534, %v662
      %v791 = vadd.f32 %v535, %v663
      %v792 = vadd.f32 %v536, %v664
      %v793 = vadd.f32 %v537, %v665
      %v794 = vadd.f32 %v538, %v666
      %v795 = vadd.f32 %v539, %v667
      %v796 = vadd.f32 %v540, %v668
      %v797 = vadd.f32 %v541, %v669
      %v798 = vadd.f32 %v542, %v670
      %v799 = vadd.f32 %v543, %v671
      %v800 = vadd.f32 %v544, %v672
      %v801 = vadd.f32 %v545, %v673
      %v802 = vadd.f32 %v546, %v674
      %v803 = vadd.f32 %v547, %v675
      %v804 = vadd.f32 %v548, %v676
      %v805 = vadd.f32 %v549, %v677
      %v806 = vadd.f32 %v550, %v678
      %v807 = vadd.f32 %v551, %v679
      %v808 = vadd.f32 %v552, %v680
      %v809 = vadd.f32 %v553, %v681
      %v810 = vadd.f32 %v554, %v682
      %v811 = vadd.f32 %v555, %v683
      %v812 = vadd.f32 %v556, %v684
      %v813 = vadd.f32 %v557, %v685
      %v814 = vadd.f32 %v558, %v686
      %v815 = vadd.f32 %v559, %v687
      %v816 = vadd.f32 %v560, %v688
      %v817 = vadd.f32 %v561, %v689
      %v818 = vadd.f32 %v562, %v690
      %v819 = vadd.f32 %v563, %v691
      %v820 = vadd.f32 %v564, %v692
      %v821 = vadd.f32 %v565, %v693
      %v822 = vadd.f32 %v566, %v694
      %v823 = vadd.f32 %v567, %v695
      %v824 = vadd.f32 %v568, %v696
      %v825 = vadd.f32 %v569, %v697
      %v826 = vadd.f32 %v570, %v698
      %v827 = vadd.f32 %v571, %v699
      %v828 = vadd.f32 %v572, %v700
      %v829 = vadd.f32 %v573, %v701
      %v830 = vadd.f32 %v574, %v702
      %v831 = vadd.f32 %v575, %v703
      %v832 = vadd.f32 %v576, %v704
      %v833 = vadd.f32 %v577, %v705
      %v834 = vadd.f32 %v578, %v706
      %v835 = vadd.f32 %v579, %v707
      %v836 = vadd.f32 %v580, %v708
      %v837 = vadd.f32 %v581, %v709
      %v838 = vadd.f32 %v582, %v710
      %v839 = vadd.f32 %v583, %v711
      %v840 = vadd.f32 %v584, %v712
      %v841 = vadd.f32 %v585, %v713
      %v842 = vadd.f32 %v586, %v714
      %v843 = vadd.f32 %v587, %v715
      %v844 = vadd.f32 %v588, %v716
      %v845 = vadd.f32 %v589, %v717
      %v846 = vadd.f32 %v590, %v718
      %v847 = vadd.f32 %v591, %v719
      %v848 = vadd.f32 %v592, %v720
      %v849 = vadd.f32 %v593, %v721
      %v850 = vadd.f32 %v594, %v722
      %v851 = vadd.f32 %v595, %v723
      %v852 = vadd.f32 %v596, %v724
      %v853 = vadd.f32 %v597, %v725
      %v854 = vadd.f32 %v598, %v726
      %v855 = vadd.f32 %v599, %v727
      %v856 = vadd.f32 %v600, %v728
      %v857 = vadd.f32 %v601, %v729
      %v858 = vadd.f32 %v602, %v730
      %v859 = vadd.f32 %v603, %v731
      %v860 = vadd.f32 %v604, %v732
      %v861 = vadd.f32 %v605, %v733
      %v862 = vadd.f32 %v606, %v734
      %v863 = vadd.f32 %v607, %v735
      %v864 = vadd.f32 %v608, %v736
      %v865 = vadd.f32 %v609, %v737
      %v866 = vadd.f32 %v610, %v738
      %v867 = vmul.f32 %v459, 0.25
      %v868 = vmul.f32 %v460, 0.25
      %v869 = vmul.f32 %v461, 0.25
      %v870 = vmul.f32 %v462, 0.25
      %v871 = vmul.f32 %v463, 0.25
      %v872 = vmul.f32 %v464, 0.25
      %v873 = vmul.f32 %v465, 0.25
      %v874 = vmul.f32 %v466, 0.25
      %v875 = vmul.f32 %v475, 0.25
      %v876 = vmul.f32 %v476, 0.25
      %v877 = vmul.f32 %v477, 0.25
      %v878 = vmul.f32 %v478, 0.25
      %v879 = vmul.f32 %v479, 0.25
      %v880 = vmul.f32 %v480, 0.25
      %v881 = vmul.f32 %v481, 0.25
      %v882 = vmul.f32 %v482, 0.25
      %v883 = vadd.f32 %v483, %v627
      %v884 = vadd.f32 %v484, %v628
      %v885 = vadd.f32 %v485, %v629
      %v886 = vadd.f32 %v486, %v630
      %v887 = vadd.f32 %v487, %v631
      %v888 = vadd.f32 %v488, %v632
      %v889 = vadd.f32 %v489, %v633
      %v890 = vadd.f32 %v490, %v634
      %v891 = vadd.f32 %v491, %v635
      %v892 = vadd.f32 %v492, %v636
      %v893 = vadd.f32 %v493, %v637
      %v894 = vadd.f32 %v494, %v638
      %v895 = vadd.f32 %v495, %v639
      %v896 = vadd.f32 %v496, %v640
      %v897 = vadd.f32 %v497, %v641
      %v898 = vadd.f32 %v498, %v642
      %v899 = vadd.f32 %v499, %v643
      %v900 = vadd.f32 %v500, %v644
      %v901 = vadd.f32 %v501, %v645
      %v902 = vadd.f32 %v502, %v646
      %v903 = vadd.f32 %v503, %v647
      %v904 = vadd.f32 %v504, %v648
      %v905 = vadd.f32 %v505, %v649
      %v906 = vadd.f32 %v506, %v650
      %v907 = vadd.f32 %v507, %v651
      %v908 = vadd.f32 %v508, %v652
      %v909 = vadd.f32 %v509, %v653
      %v910 = vadd.f32 %v510, %v654
      %v911 = vadd.f32 %v511, %v655
      %v912 = vadd.f32 %v512, %v656
      %v913 = vadd.f32 %v513, %v657
      %v914 = vadd.f32 %v514, %v658
      %v915 = vadd.f32 %v515, %v659
      %v916 = vadd.f32 %v516, %v660
      %v917 = vadd.f32 %v517, %v661
      %v918 = vadd.f32 %v518, %v662
      %v919 = vadd.f32 %v519, %v663
      %v920 = vadd.f32 %v520, %v664
      %v921 = vadd.f32 %v521, %v665
      %v922 = vadd.f32 %v522, %v666
      %v923 = vadd.f32 %v523, %v667
      %v924 = vadd.f32 %v524, %v668
      %v925 = vadd.f32 %v525, %v669
      %v926 = vadd.f32 %v526, %v670
      %v927 = vadd.f32 %v527, %v671
      %v928 = vadd.f32 %v528, %v672
      %v929 = vadd.f32 %v529, %v673
      %v930 = vadd.f32 %v530, %v674
      %v931 = vadd.f32 %v531, %v675
      %v932 = vadd.f32 %v532, %v676
      %v933 = vadd.f32 %v533, %v677
      %v934 = vadd.f32 %v534, %v678
      %v935 = vadd.f32 %v535, %v679
      %v936 = vadd.f32 %v536, %v680
      %v937 = vadd.f32 %v537, %v681
      %v938 = vadd.f32 %v538, %v682
      %v939 = vadd.f32 %v539, %v683
      %v940 = vadd.f32 %v540, %v684
      %v941 = vadd.f32 %v541, %v685
      %v942 = vadd.f32 %v542, %v686
      %v943 = vadd.f32 %v543, %v687
      %v944 = vadd.f32 %v544, %v688
      %v945 = vadd.f32 %v545, %v689
      %v946 = vadd.f32 %v546, %v690
      %v947 = vadd.f32 %v547, %v691
      %v948 = vadd.f32 %v548, %v692
      %v949 = vadd.f32 %v549, %v693
      %v950 = vadd.f32 %v550, %v694
      %v951 = vadd.f32 %v551, %v695
      %v952 = vadd.f32 %v552, %v696
      %v953 = vadd.f32 %v553, %v697
      %v954 = vadd.f32 %v554, %v698
      %v955 = vadd.f32 %v555, %v699
      %v956 = vadd.f32 %v556, %v700
      %v957 = vadd.f32 %v557, %v701
      %v958 = vadd.f32 %v558, %v702
      %v959 = vadd.f32 %v559, %v703
      %v960 = vadd.f32 %v560, %v704
      %v961 = vadd.f32 %v561, %v705
      %v962 = vadd.f32 %v562, %v706
      %v963 = vadd.f32 %v563, %v707
      %v964 = vadd.f32 %v564, %v708
      %v965 = vadd.f32 %v565, %v709
      %v966 = vadd.f32 %v566, %v710
      %v967 = vadd.f32 %v567, %v711
      %v968 = vadd.f32 %v568, %v712
      %v969 = vadd.f32 %v569, %v713
      %v970 = vadd.f32 %v570, %v714
      %v971 = vadd.f32 %v571, %v715
      %v972 = vadd.f32 %v572, %v716
      %v973 = vadd.f32 %v573, %v717
      %v974 = vadd.f32 %v574, %v718
      %v975 = vadd.f32 %v575, %v719
      %v976 = vadd.f32 %v576, %v720
      %v977 = vadd.f32 %v577, %v721
      %v978 = vadd.f32 %v578, %v722
      %v979 = vadd.f32 %v579, %v723
      %v980 = vadd.f32 %v580, %v724
      %v981 = vadd.f32 %v581, %v725
      %v982 = vadd.f32 %v582, %v726
      %v983 = vadd.f32 %v583, %v727
      %v984 = vadd.f32 %v584, %v728
      %v985 = vadd.f32 %v585, %v729
      %v986 = vadd.f32 %v586, %v730
      %v987 = vadd.f32 %v587, %v731
      %v988 = vadd.f32 %v588, %v732
      %v989 = vadd.f32 %v589, %v733
      %v990 = vadd.f32 %v590, %v734
      %v991 = vadd.f32 %v591, %v735
      %v992 = vadd.f32 %v592, %v736
      %v993 = vadd.f32 %v593, %v737
      %v994 = vadd.f32 %v594, %v738
      %v995 = vadd.f32 %v595, %v867
      %v996 = vadd.f32 %v596, %v868
      %v997 = vadd.f32 %v597, %v869
      %v998 = vadd.f32 %v598, %v870
      %v999 = vadd.f32 %v599, %v871
      %v1000 = vadd.f32 %v600, %v872
      %v1001 = vadd.f32 %v601, %v873
      %v1002 = vadd.f32 %v602, %v874
      %v1003 = vadd.f32 %v603, %v875
      %v1004 = vadd.f32 %v604, %v876
      %v1005 = vadd.f32 %v605, %v877
      %v1006 = vadd.f32 %v606, %v878
      %v1007 = vadd.f32 %v607, %v879
      %v1008 = vadd.f32 %v608, %v880
      %v1009 = vadd.f32 %v609, %v881
      %v1010 = vadd.f32 %v610, %v882
      %vm1139 = vcmask 1040384
      %v1140 = vrot.slane %v739, 7
      %v1141 = vrot.slane %v740, 7
      %v1142 = vsel %vm1139, %v1140, %v1141
      %v1143 = vrot.slane %v741, 7
      %v1144 = vsel %vm1139, %v1141, %v1143
      %v1145 = vrot.slane %v742, 7
      %v1146 = vsel %vm1139, %v1143, %v1145
      %v1147 = vrot.slane %v743, 7
      %v1148 = vsel %vm1139, %v1145, %v1147
      %v1149 = vrot.slane %v744, 7
      %v1150 = vsel %vm1139, %v1147, %v1149
      %v1151 = vrot.slane %v745, 7
      %v1152 = vsel %vm1139, %v1149, %v1151
      %v1153 = vrot.slane %v746, 7
      %v1154 = vsel %vm1139, %v1151, %v1153
      %v1155 = vrot.slane %v747, 7
      %v1156 = vrot.slane %v748, 7
      %v1157 = vsel %vm1139, %v1155, %v1156
      %v1158 = vrot.slane %v749, 7
      %v1159 = vsel %vm1139, %v1156, %v1158
      %v1160 = vrot.slane %v750, 7
      %v1161 = vsel %vm1139, %v1158, %v1160
      %v1162 = vrot.slane %v751, 7
      %v1163 = vsel %vm1139, %v1160, %v1162
      %v1164 = vrot.slane %v752, 7
      %v1165 = vsel %vm1139, %v1162, %v1164
      %v1166 = vrot.slane %v753, 7
      %v1167 = vsel %vm1139, %v1164, %v1166
      %v1168 = vrot.slane %v754, 7
      %v1169 = vsel %vm1139, %v1166, %v1168
      %v1170 = vrot.slane %v755, 7
      %v1171 = vrot.slane %v756, 7
      %v1172 = vsel %vm1139, %v1170, %v1171
      %v1173 = vrot.slane %v757, 7
      %v1174 = vsel %vm1139, %v1171, %v1173
      %v1175 = vrot.slane %v758, 7
      %v1176 = vsel %vm1139, %v1173, %v1175
      %v1177 = vrot.slane %v759, 7
      %v1178 = vsel %vm1139, %v1175, %v1177
      %v1179 = vrot.slane %v760, 7
      %v1180 = vsel %vm1139, %v1177, %v1179
      %v1181 = vrot.slane %v761, 7
      %v1182 = vsel %vm1139, %v1179, %v1181
      %v1183 = vrot.slane %v762, 7
      %v1184 = vsel %vm1139, %v1181, %v1183
      %v1185 = vrot.slane %v763, 7
      %v1186 = vrot.slane %v764, 7
      %v1187 = vsel %vm1139, %v1185, %v1186
      %v1188 = vrot.slane %v765, 7
      %v1189 = vsel %vm1139, %v1186, %v1188
      %v1190 = vrot.slane %v766, 7
      %v1191 = vsel %vm1139, %v1188, %v1190
      %v1192 = vrot.slane %v767, 7
      %v1193 = vsel %vm1139, %v1190, %v1192
      %v1194 = vrot.slane %v768, 7
      %v1195 = vsel %vm1139, %v1192, %v1194
      %v1196 = vrot.slane %v769, 7
      %v1197 = vsel %vm1139, %v1194, %v1196
      %v1198 = vrot.slane %v770, 7
      %v1199 = vsel %vm1139, %v1196, %v1198
      %v1200 = vrot.slane %v771, 7
      %v1201 = vrot.slane %v772, 7
      %v1202 = vsel %vm1139, %v1200, %v1201
      %v1203 = vrot.slane %v773, 7
      %v1204 = vsel %vm1139, %v1201, %v1203
      %v1205 = vrot.slane %v774, 7
      %v1206 = vsel %vm1139, %v1203, %v1205
      %v1207 = vrot.slane %v775, 7
      %v1208 = vsel %vm1139, %v1205, %v1207
      %v1209 = vrot.slane %v776, 7
      %v1210 = vsel %vm1139, %v1207, %v1209
      %v1211 = vrot.slane %v777, 7
      %v1212 = vsel %vm1139, %v1209, %v1211
      %v1213 = vrot.slane %v778, 7
      %v1214 = vsel %vm1139, %v1211, %v1213
      %v1215 = vrot.slane %v779, 7
      %v1216 = vrot.slane %v780, 7
      %v1217 = vsel %vm1139, %v1215, %v1216
      %v1218 = vrot.slane %v781, 7
      %v1219 = vsel %vm1139, %v1216, %v1218
      %v1220 = vrot.slane %v782, 7
      %v1221 = vsel %vm1139, %v1218, %v1220
      %v1222 = vrot.slane %v783, 7
      %v1223 = vsel %vm1139, %v1220, %v1222
      %v1224 = vrot.slane %v784, 7
      %v1225 = vsel %vm1139, %v1222, %v1224
      %v1226 = vrot.slane %v785, 7
      %v1227 = vsel %vm1139, %v1224, %v1226
      %v1228 = vrot.slane %v786, 7
      %v1229 = vsel %vm1139, %v1226, %v1228
      %v1230 = vrot.slane %v787, 7
      %v1231 = vrot.slane %v788, 7
      %v1232 = vsel %vm1139, %v1230, %v1231
      %v1233 = vrot.slane %v789, 7
      %v1234 = vsel %vm1139, %v1231, %v1233
      %v1235 = vrot.slane %v790, 7
      %v1236 = vsel %vm1139, %v1233, %v1235
      %v1237 = vrot.slane %v791, 7
      %v1238 = vsel %vm1139, %v1235, %v1237
      %v1239 = vrot.slane %v792, 7
      %v1240 = vsel %vm1139, %v1237, %v1239
      %v1241 = vrot.slane %v793, 7
      %v1242 = vsel %vm1139, %v1239, %v1241
      %v1243 = vrot.slane %v794, 7
      %v1244 = vsel %vm1139, %v1241, %v1243
      %v1245 = vrot.slane %v795, 7
      %v1246 = vrot.slane %v796, 7
      %v1247 = vsel %vm1139, %v1245, %v1246
      %v1248 = vrot.slane %v797, 7
      %v1249 = vsel %vm1139, %v1246, %v1248
      %v1250 = vrot.slane %v798, 7
      %v1251 = vsel %vm1139, %v1248, %v1250
      %v1252 = vrot.slane %v799, 7
      %v1253 = vsel %vm1139, %v1250, %v1252
      %v1254 = vrot.slane %v800, 7
      %v1255 = vsel %vm1139, %v1252, %v1254
      %v1256 = vrot.slane %v801, 7
      %v1257 = vsel %vm1139, %v1254, %v1256
      %v1258 = vrot.slane %v802, 7
      %v1259 = vsel %vm1139, %v1256, %v1258
      %v1260 = vrot.slane %v803, 7
      %v1261 = vrot.slane %v804, 7
      %v1262 = vsel %vm1139, %v1260, %v1261
      %v1263 = vrot.slane %v805, 7
      %v1264 = vsel %vm1139, %v1261, %v1263
      %v1265 = vrot.slane %v806, 7
      %v1266 = vsel %vm1139, %v1263, %v1265
      %v1267 = vrot.slane %v807, 7
      %v1268 = vsel %vm1139, %v1265, %v1267
      %v1269 = vrot.slane %v808, 7
      %v1270 = vsel %vm1139, %v1267, %v1269
      %v1271 = vrot.slane %v809, 7
      %v1272 = vsel %vm1139, %v1269, %v1271
      %v1273 = vrot.slane %v810, 7
      %v1274 = vsel %vm1139, %v1271, %v1273
      %v1275 = vrot.slane %v811, 7
      %v1276 = vrot.slane %v812, 7
      %v1277 = vsel %vm1139, %v1275, %v1276
      %v1278 = vrot.slane %v813, 7
      %v1279 = vsel %vm1139, %v1276, %v1278
      %v1280 = vrot.slane %v814, 7
      %v1281 = vsel %vm1139, %v1278, %v1280
      %v1282 = vrot.slane %v815, 7
      %v1283 = vsel %vm1139, %v1280, %v1282
      %v1284 = vrot.slane %v816, 7
      %v1285 = vsel %vm1139, %v1282, %v1284
      %v1286 = vrot.slane %v817, 7
      %v1287 = vsel %vm1139, %v1284, %v1286
      %v1288 = vrot.slane %v818, 7
      %v1289 = vsel %vm1139, %v1286, %v1288
      %v1290 = vrot.slane %v819, 7
      %v1291 = vrot.slane %v820, 7
      %v1292 = vsel %vm1139, %v1290, %v1291
      %v1293 = vrot.slane %v821, 7
      %v1294 = vsel %vm1139, %v1291, %v1293
      %v1295 = vrot.slane %v822, 7
      %v1296 = vsel %vm1139, %v1293, %v1295
      %v1297 = vrot.slane %v823, 7
      %v1298 = vsel %vm1139, %v1295, %v1297
      %v1299 = vrot.slane %v824, 7
      %v1300 = vsel %vm1139, %v1297, %v1299
      %v1301 = vrot.slane %v825, 7
      %v1302 = vsel %vm1139, %v1299, %v1301
      %v1303 = vrot.slane %v826, 7
      %v1304 = vsel %vm1139, %v1301, %v1303
      %v1305 = vrot.slane %v827, 7
      %v1306 = vrot.slane %v828, 7
      %v1307 = vsel %vm1139, %v1305, %v1306
      %v1308 = vrot.slane %v829, 7
      %v1309 = vsel %vm1139, %v1306, %v1308
      %v1310 = vrot.slane %v830, 7
      %v1311 = vsel %vm1139, %v1308, %v1310
      %v1312 = vrot.slane %v831, 7
      %v1313 = vsel %vm1139, %v1310, %v1312
      %v1314 = vrot.slane %v832, 7
      %v1315 = vsel %vm1139, %v1312, %v1314
      %v1316 = vrot.slane %v833, 7
      %v1317 = vsel %vm1139, %v1314, %v1316
      %v1318 = vrot.slane %v834, 7
      %v1319 = vsel %vm1139, %v1316, %v1318
      %v1320 = vrot.slane %v835, 7
      %v1321 = vrot.slane %v836, 7
      %v1322 = vsel %vm1139, %v1320, %v1321
      %v1323 = vrot.slane %v837, 7
      %v1324 = vsel %vm1139, %v1321, %v1323
      %v1325 = vrot.slane %v838, 7
      %v1326 = vsel %vm1139, %v1323, %v1325
      %v1327 = vrot.slane %v839, 7
      %v1328 = vsel %vm1139, %v1325, %v1327
      %v1329 = vrot.slane %v840, 7
      %v1330 = vsel %vm1139, %v1327, %v1329
      %v1331 = vrot.slane %v841, 7
      %v1332 = vsel %vm1139, %v1329, %v1331
      %v1333 = vrot.slane %v842, 7
      %v1334 = vsel %vm1139, %v1331, %v1333
      %v1335 = vrot.slane %v843, 7
      %v1336 = vrot.slane %v844, 7
      %v1337 = vsel %vm1139, %v1335, %v1336
      %v1338 = vrot.slane %v845, 7
      %v1339 = vsel %vm1139, %v1336, %v1338
      %v1340 = vrot.slane %v846, 7
      %v1341 = vsel %vm1139, %v1338, %v1340
      %v1342 = vrot.slane %v847, 7
      %v1343 = vsel %vm1139, %v1340, %v1342
      %v1344 = vrot.slane %v848, 7
      %v1345 = vsel %vm1139, %v1342, %v1344
      %v1346 = vrot.slane %v849, 7
      %v1347 = vsel %vm1139, %v1344, %v1346
      %v1348 = vrot.slane %v850, 7
      %v1349 = vsel %vm1139, %v1346, %v1348
      %v1350 = vrot.slane %v851, 7
      %v1351 = vrot.slane %v852, 7
      %v1352 = vsel %vm1139, %v1350, %v1351
      %v1353 = vrot.slane %v853, 7
      %v1354 = vsel %vm1139, %v1351, %v1353
      %v1355 = vrot.slane %v854, 7
      %v1356 = vsel %vm1139, %v1353, %v1355
      %v1357 = vrot.slane %v855, 7
      %v1358 = vsel %vm1139, %v1355, %v1357
      %v1359 = vrot.slane %v856, 7
      %v1360 = vsel %vm1139, %v1357, %v1359
      %v1361 = vrot.slane %v857, 7
      %v1362 = vsel %vm1139, %v1359, %v1361
      %v1363 = vrot.slane %v858, 7
      %v1364 = vsel %vm1139, %v1361, %v1363
      %v1365 = vrot.slane %v859, 7
      %v1366 = vrot.slane %v860, 7
      %v1367 = vsel %vm1139, %v1365, %v1366
      %v1368 = vrot.slane %v861, 7
      %v1369 = vsel %vm1139, %v1366, %v1368
      %v1370 = vrot.slane %v862, 7
      %v1371 = vsel %vm1139, %v1368, %v1370
      %v1372 = vrot.slane %v863, 7
      %v1373 = vsel %vm1139, %v1370, %v1372
      %v1374 = vrot.slane %v864, 7
      %v1375 = vsel %vm1139, %v1372, %v1374
      %v1376 = vrot.slane %v865, 7
      %v1377 = vsel %vm1139, %v1374, %v1376
      %v1378 = vrot.slane %v866, 7
      %v1379 = vsel %vm1139, %v1376, %v1378
      %v1508 = vsel %vm1139, %v739, %v1140
      %v1509 = vsel %vm1139, %v747, %v1155
      %v1510 = vsel %vm1139, %v755, %v1170
      %v1511 = vsel %vm1139, %v763, %v1185
      %v1512 = vsel %vm1139, %v771, %v1200
      %v1513 = vsel %vm1139, %v779, %v1215
      %v1514 = vsel %vm1139, %v787, %v1230
      %v1515 = vsel %vm1139, %v795, %v1245
      %v1516 = vsel %vm1139, %v803, %v1260
      %v1517 = vsel %vm1139, %v811, %v1275
      %v1518 = vsel %vm1139, %v819, %v1290
      %v1519 = vsel %vm1139, %v827, %v1305
      %v1520 = vsel %vm1139, %v835, %v1320
      %v1521 = vsel %vm1139, %v843, %v1335
      %v1522 = vsel %vm1139, %v851, %v1350
      %v1523 = vsel %vm1139, %v859, %v1365
      %v1540 = vmul.f32 %v739, 0.75
      %v1541 = vmul.f32 %v740, 0.75
      %v1542 = vmul.f32 %v741, 0.75
      %v1543 = vmul.f32 %v742, 0.75
      %v1544 = vmul.f32 %v743, 0.75
      %v1545 = vmul.f32 %v744, 0.75
      %v1546 = vmul.f32 %v745, 0.75
      %v1547 = vmul.f32 %v746, 0.75
      %v1548 = vmul.f32 %v747, 0.75
      %v1549 = vmul.f32 %v748, 0.75
      %v1550 = vmul.f32 %v749, 0.75
      %v1551 = vmul.f32 %v750, 0.75
      %v1552 = vmul.f32 %v751, 0.75
      %v1553 = vmul.f32 %v752, 0.75
      %v1554 = vmul.f32 %v753, 0.75
      %v1555 = vmul.f32 %v754, 0.75
      %v1556 = vmul.f32 %v755, 0.75
      %v1557 = vmul.f32 %v756, 0.75
      %v1558 = vmul.f32 %v757, 0.75
      %v1559 = vmul.f32 %v758, 0.75
      %v1560 = vmul.f32 %v759, 0.75
      %v1561 = vmul.f32 %v760, 0.75
      %v1562 = vmul.f32 %v761, 0.75
      %v1563 = vmul.f32 %v762, 0.75
      %v1564 = vmul.f32 %v763, 0.75
      %v1565 = vmul.f32 %v764, 0.75
      %v1566 = vmul.f32 %v765, 0.75
      %v1567 = vmul.f32 %v766, 0.75
      %v1568 = vmul.f32 %v767, 0.75
      %v1569 = vmul.f32 %v768, 0.75
      %v1570 = vmul.f32 %v769, 0.75
      %v1571 = vmul.f32 %v770, 0.75
      %v1572 = vmul.f32 %v771, 0.75
      %v1573 = vmul.f32 %v772, 0.75
      %v1574 = vmul.f32 %v773, 0.75
      %v1575 = vmul.f32 %v774, 0.75
      %v1576 = vmul.f32 %v775, 0.75
      %v1577 = vmul.f32 %v776, 0.75
      %v1578 = vmul.f32 %v777, 0.75
      %v1579 = vmul.f32 %v778, 0.75
      %v1580 = vmul.f32 %v779, 0.75
      %v1581 = vmul.f32 %v780, 0.75
      %v1582 = vmul.f32 %v781, 0.75
      %v1583 = vmul.f32 %v782, 0.75
      %v1584 = vmul.f32 %v783, 0.75
      %v1585 = vmul.f32 %v784, 0.75
      %v1586 = vmul.f32 %v785, 0.75
      %v1587 = vmul.f32 %v786, 0.75
      %v1588 = vmul.f32 %v787, 0.75
      %v1589 = vmul.f32 %v788, 0.75
      %v1590 = vmul.f32 %v789, 0.75
      %v1591 = vmul.f32 %v790, 0.75
      %v1592 = vmul.f32 %v791, 0.75
      %v1593 = vmul.f32 %v792, 0.75
      %v1594 = vmul.f32 %v793, 0.75
      %v1595 = vmul.f32 %v794, 0.75
      %v1596 = vmul.f32 %v795, 0.75
      %v1597 = vmul.f32 %v796, 0.75
      %v1598 = vmul.f32 %v797, 0.75
      %v1599 = vmul.f32 %v798, 0.75
      %v1600 = vmul.f32 %v799, 0.75
      %v1601 = vmul.f32 %v800, 0.75
      %v1602 = vmul.f32 %v801, 0.75
      %v1603 = vmul.f32 %v802, 0.75
      %v1604 = vmul.f32 %v803, 0.75
      %v1605 = vmul.f32 %v804, 0.75
      %v1606 = vmul.f32 %v805, 0.75
      %v1607 = vmul.f32 %v806, 0.75
      %v1608 = vmul.f32 %v807, 0.75
      %v1609 = vmul.f32 %v808, 0.75
      %v1610 = vmul.f32 %v809, 0.75
      %v1611 = vmul.f32 %v810, 0.75
      %v1612 = vmul.f32 %v811, 0.75
      %v1613 = vmul.f32 %v812, 0.75
      %v1614 = vmul.f32 %v813, 0.75
      %v1615 = vmul.f32 %v814, 0.75
      %v1616 = vmul.f32 %v815, 0.75
      %v1617 = vmul.f32 %v816, 0.75
      %v1618 = vmul.f32 %v817, 0.75
      %v1619 = vmul.f32 %v818, 0.75
      %v1620 = vmul.f32 %v819, 0.75
      %v1621 = vmul.f32 %v820, 0.75
      %v1622 = vmul.f32 %v821, 0.75
      %v1623 = vmul.f32 %v822, 0.75
      %v1624 = vmul.f32 %v823, 0.75
      %v1625 = vmul.f32 %v824, 0.75
      %v1626 = vmul.f32 %v825, 0.75
      %v1627 = vmul.f32 %v826, 0.75
      %v1628 = vmul.f32 %v827, 0.75
      %v1629 = vmul.f32 %v828, 0.75
      %v1630 = vmul.f32 %v829, 0.75
      %v1631 = vmul.f32 %v830, 0.75
      %v1632 = vmul.f32 %v831, 0.75
      %v1633 = vmul.f32 %v832, 0.75
      %v1634 = vmul.f32 %v833, 0.75
      %v1635 = vmul.f32 %v834, 0.75
      %v1636 = vmul.f32 %v835, 0.75
      %v1637 = vmul.f32 %v836, 0.75
      %v1638 = vmul.f32 %v837, 0.75
      %v1639 = vmul.f32 %v838, 0.75
      %v1640 = vmul.f32 %v839, 0.75
      %v1641 = vmul.f32 %v840, 0.75
      %v1642 = vmul.f32 %v841, 0.75
      %v1643 = vmul.f32 %v842, 0.75
      %v1644 = vmul.f32 %v843, 0.75
      %v1645 = vmul.f32 %v844, 0.75
      %v1646 = vmul.f32 %v845, 0.75
      %v1647 = vmul.f32 %v846, 0.75
      %v1648 = vmul.f32 %v847, 0.75
      %v1649 = vmul.f32 %v848, 0.75
      %v1650 = vmul.f32 %v849, 0.75
      %v1651 = vmul.f32 %v850, 0.75
      %v1652 = vmul.f32 %v851, 0.75
      %v1653 = vmul.f32 %v852, 0.75
      %v1654 = vmul.f32 %v853, 0.75
      %v1655 = vmul.f32 %v854, 0.75
      %v1656 = vmul.f32 %v855, 0.75
      %v1657 = vmul.f32 %v856, 0.75
      %v1658 = vmul.f32 %v857, 0.75
      %v1659 = vmul.f32 %v858, 0.75
      %v1660 = vmul.f32 %v859, 0.75
      %v1661 = vmul.f32 %v860, 0.75
      %v1662 = vmul.f32 %v861, 0.75
      %v1663 = vmul.f32 %v862, 0.75
      %v1664 = vmul.f32 %v863, 0.75
      %v1665 = vmul.f32 %v864, 0.75
      %v1666 = vmul.f32 %v865, 0.75
      %v1667 = vmul.f32 %v866, 0.75
      %v1668 = vmul.f32 %v1508, 0.25
      %v1669 = vmul.f32 %v1142, 0.25
      %v1670 = vmul.f32 %v1144, 0.25
      %v1671 = vmul.f32 %v1146, 0.25
      %v1672 = vmul.f32 %v1148, 0.25
      %v1673 = vmul.f32 %v1150, 0.25
      %v1674 = vmul.f32 %v1152, 0.25
      %v1675 = vmul.f32 %v1154, 0.25
      %v1676 = vmul.f32 %v1509, 0.25
      %v1677 = vmul.f32 %v1157, 0.25
      %v1678 = vmul.f32 %v1159, 0.25
      %v1679 = vmul.f32 %v1161, 0.25
      %v1680 = vmul.f32 %v1163, 0.25
      %v1681 = vmul.f32 %v1165, 0.25
      %v1682 = vmul.f32 %v1167, 0.25
      %v1683 = vmul.f32 %v1169, 0.25
      %v1684 = vmul.f32 %v1510, 0.25
      %v1685 = vmul.f32 %v1172, 0.25
      %v1686 = vmul.f32 %v1174, 0.25
      %v1687 = vmul.f32 %v1176, 0.25
      %v1688 = vmul.f32 %v1178, 0.25
      %v1689 = vmul.f32 %v1180, 0.25
      %v1690 = vmul.f32 %v1182, 0.25
      %v1691 = vmul.f32 %v1184, 0.25
      %v1692 = vmul.f32 %v1511, 0.25
      %v1693 = vmul.f32 %v1187, 0.25
      %v1694 = vmul.f32 %v1189, 0.25
      %v1695 = vmul.f32 %v1191, 0.25
      %v1696 = vmul.f32 %v1193, 0.25
      %v1697 = vmul.f32 %v1195, 0.25
      %v1698 = vmul.f32 %v1197, 0.25
      %v1699 = vmul.f32 %v1199, 0.25
      %v1700 = vmul.f32 %v1512, 0.25
      %v1701 = vmul.f32 %v1202, 0.25
      %v1702 = vmul.f32 %v1204, 0.25
      %v1703 = vmul.f32 %v1206, 0.25
      %v1704 = vmul.f32 %v1208, 0.25
      %v1705 = vmul.f32 %v1210, 0.25
      %v1706 = vmul.f32 %v1212, 0.25
      %v1707 = vmul.f32 %v1214, 0.25
      %v1708 = vmul.f32 %v1513, 0.25
      %v1709 = vmul.f32 %v1217, 0.25
      %v1710 = vmul.f32 %v1219, 0.25
      %v1711 = vmul.f32 %v1221, 0.25
      %v1712 = vmul.f32 %v1223, 0.25
      %v1713 = vmul.f32 %v1225, 0.25
      %v1714 = vmul.f32 %v1227, 0.25
      %v1715 = vmul.f32 %v1229, 0.25
      %v1716 = vmul.f32 %v1514, 0.25
      %v1717 = vmul.f32 %v1232, 0.25
      %v1718 = vmul.f32 %v1234, 0.25
      %v1719 = vmul.f32 %v1236, 0.25
      %v1720 = vmul.f32 %v1238, 0.25
      %v1721 = vmul.f32 %v1240, 0.25
      %v1722 = vmul.f32 %v1242, 0.25
      %v1723 = vmul.f32 %v1244, 0.25
      %v1724 = vmul.f32 %v1515, 0.25
      %v1725 = vmul.f32 %v1247, 0.25
      %v1726 = vmul.f32 %v1249, 0.25
      %v1727 = vmul.f32 %v1251, 0.25
      %v1728 = vmul.f32 %v1253, 0.25
      %v1729 = vmul.f32 %v1255, 0.25
      %v1730 = vmul.f32 %v1257, 0.25
      %v1731 = vmul.f32 %v1259, 0.25
      %v1732 = vmul.f32 %v1516, 0.25
      %v1733 = vmul.f32 %v1262, 0.25
      %v1734 = vmul.f32 %v1264, 0.25
      %v1735 = vmul.f32 %v1266, 0.25
      %v1736 = vmul.f32 %v1268, 0.25
      %v1737 = vmul.f32 %v1270, 0.25
      %v1738 = vmul.f32 %v1272, 0.25
      %v1739 = vmul.f32 %v1274, 0.25
      %v1740 = vmul.f32 %v1517, 0.25
      %v1741 = vmul.f32 %v1277, 0.25
      %v1742 = vmul.f32 %v1279, 0.25
      %v1743 = vmul.f32 %v1281, 0.25
      %v1744 = vmul.f32 %v1283, 0.25
      %v1745 = vmul.f32 %v1285, 0.25
      %v1746 = vmul.f32 %v1287, 0.25
      %v1747 = vmul.f32 %v1289, 0.25
      %v1748 = vmul.f32 %v1518, 0.25
      %v1749 = vmul.f32 %v1292, 0.25
      %v1750 = vmul.f32 %v1294, 0.25
      %v1751 = vmul.f32 %v1296, 0.25
      %v1752 = vmul.f32 %v1298, 0.25
      %v1753 = vmul.f32 %v1300, 0.25
      %v1754 = vmul.f32 %v1302, 0.25
      %v1755 = vmul.f32 %v1304, 0.25
      %v1756 = vmul.f32 %v1519, 0.25
      %v1757 = vmul.f32 %v1307, 0.25
      %v1758 = vmul.f32 %v1309, 0.25
      %v1759 = vmul.f32 %v1311, 0.25
      %v1760 = vmul.f32 %v1313, 0.25
      %v1761 = vmul.f32 %v1315, 0.25
      %v1762 = vmul.f32 %v1317, 0.25
      %v1763 = vmul.f32 %v1319, 0.25
      %v1764 = vmul.f32 %v1520, 0.25
      %v1765 = vmul.f32 %v1322, 0.25
      %v1766 = vmul.f32 %v1324, 0.25
      %v1767 = vmul.f32 %v1326, 0.25
      %v1768 = vmul.f32 %v1328, 0.25
      %v1769 = vmul.f32 %v1330, 0.25
      %v1770 = vmul.f32 %v1332, 0.25
      %v1771 = vmul.f32 %v1334, 0.25
      %v1772 = vmul.f32 %v1521, 0.25
      %v1773 = vmul.f32 %v1337, 0.25
      %v1774 = vmul.f32 %v1339, 0.25
      %v1775 = vmul.f32 %v1341, 0.25
      %v1776 = vmul.f32 %v1343, 0.25
      %v1777 = vmul.f32 %v1345, 0.25
      %v1778 = vmul.f32 %v1347, 0.25
      %v1779 = vmul.f32 %v1349, 0.25
      %v1780 = vmul.f32 %v1522, 0.25
      %v1781 = vmul.f32 %v1352, 0.25
      %v1782 = vmul.f32 %v1354, 0.25
      %v1783 = vmul.f32 %v1356, 0.25
      %v1784 = vmul.f32 %v1358, 0.25
      %v1785 = vmul.f32 %v1360, 0.25
      %v1786 = vmul.f32 %v1362, 0.25
      %v1787 = vmul.f32 %v1364, 0.25
      %v1788 = vmul.f32 %v1523, 0.25
      %v1789 = vmul.f32 %v1367, 0.25
      %v1790 = vmul.f32 %v1369, 0.25
      %v1791 = vmul.f32 %v1371, 0.25
      %v1792 = vmul.f32 %v1373, 0.25
      %v1793 = vmul.f32 %v1375, 0.25
      %v1794 = vmul.f32 %v1377, 0.25
      %v1795 = vmul.f32 %v1379, 0.25
      %v1796 = vadd.f32 %v1540, %v1668
      %v1797 = vadd.f32 %v1541, %v1669
      %v1798 = vadd.f32 %v1542, %v1670
      %v1799 = vadd.f32 %v1543, %v1671
      %v1800 = vadd.f32 %v1544, %v1672
      %v1801 = vadd.f32 %v1545, %v1673
      %v1802 = vadd.f32 %v1546, %v1674
      %v1803 = vadd.f32 %v1547, %v1675
      %v1804 = vadd.f32 %v1548, %v1676
      %v1805 = vadd.f32 %v1549, %v1677
      %v1806 = vadd.f32 %v1550, %v1678
      %v1807 = vadd.f32 %v1551, %v1679
      %v1808 = vadd.f32 %v1552, %v1680
      %v1809 = vadd.f32 %v1553, %v1681
      %v1810 = vadd.f32 %v1554, %v1682
      %v1811 = vadd.f32 %v1555, %v1683
      %v1812 = vadd.f32 %v1556, %v1684
      %v1813 = vadd.f32 %v1557, %v1685
      %v1814 = vadd.f32 %v1558, %v1686
      %v1815 = vadd.f32 %v1559, %v1687
      %v1816 = vadd.f32 %v1560, %v1688
      %v1817 = vadd.f32 %v1561, %v1689
      %v1818 = vadd.f32 %v1562, %v1690
      %v1819 = vadd.f32 %v1563, %v1691
      %v1820 = vadd.f32 %v1564, %v1692
      %v1821 = vadd.f32 %v1565, %v1693
      %v1822 = vadd.f32 %v1566, %v1694
      %v1823 = vadd.f32 %v1567, %v1695
      %v1824 = vadd.f32 %v1568, %v1696
      %v1825 = vadd.f32 %v1569, %v1697
      %v1826 = vadd.f32 %v1570, %v1698
      %v1827 = vadd.f32 %v1571, %v1699
      %v1828 = vadd.f32 %v1572, %v1700
      %v1829 = vadd.f32 %v1573, %v1701
      %v1830 = vadd.f32 %v1574, %v1702
      %v1831 = vadd.f32 %v1575, %v1703
      %v1832 = vadd.f32 %v1576, %v1704
      %v1833 = vadd.f32 %v1577, %v1705
      %v1834 = vadd.f32 %v1578, %v1706
      %v1835 = vadd.f32 %v1579, %v1707
      %v1836 = vadd.f32 %v1580, %v1708
      %v1837 = vadd.f32 %v1581, %v1709
      %v1838 = vadd.f32 %v1582, %v1710
      %v1839 = vadd.f32 %v1583, %v1711
      %v1840 = vadd.f32 %v1584, %v1712
      %v1841 = vadd.f32 %v1585, %v1713
      %v1842 = vadd.f32 %v1586, %v1714
      %v1843 = vadd.f32 %v1587, %v1715
      %v1844 = vadd.f32 %v1588, %v1716
      %v1845 = vadd.f32 %v1589, %v1717
      %v1846 = vadd.f32 %v1590, %v1718
      %v1847 = vadd.f32 %v1591, %v1719
      %v1848 = vadd.f32 %v1592, %v1720
      %v1849 = vadd.f32 %v1593, %v1721
      %v1850 = vadd.f32 %v1594, %v1722
      %v1851 = vadd.f32 %v1595, %v1723
      %v1852 = vadd.f32 %v1596, %v1724
      %v1853 = vadd.f32 %v1597, %v1725
      %v1854 = vadd.f32 %v1598, %v1726
      %v1855 = vadd.f32 %v1599, %v1727
      %v1856 = vadd.f32 %v1600, %v1728
      %v1857 = vadd.f32 %v1601, %v1729
      %v1858 = vadd.f32 %v1602, %v1730
      %v1859 = vadd.f32 %v1603, %v1731
      %v1860 = vadd.f32 %v1604, %v1732
      %v1861 = vadd.f32 %v1605, %v1733
      %v1862 = vadd.f32 %v1606, %v1734
      %v1863 = vadd.f32 %v1607, %v1735
      %v1864 = vadd.f32 %v1608, %v1736
      %v1865 = vadd.f32 %v1609, %v1737
      %v1866 = vadd.f32 %v1610, %v1738
      %v1867 = vadd.f32 %v1611, %v1739
      %v1868 = vadd.f32 %v1612, %v1740
      %v1869 = vadd.f32 %v1613, %v1741
      %v1870 = vadd.f32 %v1614, %v1742
      %v1871 = vadd.f32 %v1615, %v1743
      %v1872 = vadd.f32 %v1616, %v1744
      %v1873 = vadd.f32 %v1617, %v1745
      %v1874 = vadd.f32 %v1618, %v1746
      %v1875 = vadd.f32 %v1619, %v1747
      %v1876 = vadd.f32 %v1620, %v1748
      %v1877 = vadd.f32 %v1621, %v1749
      %v1878 = vadd.f32 %v1622, %v1750
      %v1879 = vadd.f32 %v1623, %v1751
      %v1880 = vadd.f32 %v1624, %v1752
      %v1881 = vadd.f32 %v1625, %v1753
      %v1882 = vadd.f32 %v1626, %v1754
      %v1883 = vadd.f32 %v1627, %v1755
      %v1884 = vadd.f32 %v1628, %v1756
      %v1885 = vadd.f32 %v1629, %v1757
      %v1886 = vadd.f32 %v1630, %v1758
      %v1887 = vadd.f32 %v1631, %v1759
      %v1888 = vadd.f32 %v1632, %v1760
      %v1889 = vadd.f32 %v1633, %v1761
      %v1890 = vadd.f32 %v1634, %v1762
      %v1891 = vadd.f32 %v1635, %v1763
      %v1892 = vadd.f32 %v1636, %v1764
      %v1893 = vadd.f32 %v1637, %v1765
      %v1894 = vadd.f32 %v1638, %v1766
      %v1895 = vadd.f32 %v1639, %v1767
      %v1896 = vadd.f32 %v1640, %v1768
      %v1897 = vadd.f32 %v1641, %v1769
      %v1898 = vadd.f32 %v1642, %v1770
      %v1899 = vadd.f32 %v1643, %v1771
      %v1900 = vadd.f32 %v1644, %v1772
      %v1901 = vadd.f32 %v1645, %v1773
      %v1902 = vadd.f32 %v1646, %v1774
      %v1903 = vadd.f32 %v1647, %v1775
      %v1904 = vadd.f32 %v1648, %v1776
      %v1905 = vadd.f32 %v1649, %v1777
      %v1906 = vadd.f32 %v1650, %v1778
      %v1907 = vadd.f32 %v1651, %v1779
      %v1908 = vadd.f32 %v1652, %v1780
      %v1909 = vadd.f32 %v1653, %v1781
      %v1910 = vadd.f32 %v1654, %v1782
      %v1911 = vadd.f32 %v1655, %v1783
      %v1912 = vadd.f32 %v1656, %v1784
      %v1913 = vadd.f32 %v1657, %v1785
      %v1914 = vadd.f32 %v1658, %v1786
      %v1915 = vadd.f32 %v1659, %v1787
      %v1916 = vadd.f32 %v1660, %v1788
      %v1917 = vadd.f32 %v1661, %v1789
      %v1918 = vadd.f32 %v1662, %v1790
      %v1919 = vadd.f32 %v1663, %v1791
      %v1920 = vadd.f32 %v1664, %v1792
      %v1921 = vadd.f32 %v1665, %v1793
      %v1922 = vadd.f32 %v1666, %v1794
      %v1923 = vadd.f32 %v1667, %v1795
      %v1924 = vmul.f32 %v739, 0.25
      %v1925 = vmul.f32 %v740, 0.25
      %v1926 = vmul.f32 %v741, 0.25
      %v1927 = vmul.f32 %v742, 0.25
      %v1928 = vmul.f32 %v743, 0.25
      %v1929 = vmul.f32 %v744, 0.25
      %v1930 = vmul.f32 %v745, 0.25
      %v1931 = vmul.f32 %v746, 0.25
      %v1932 = vmul.f32 %v1153, 0.25
      %v1933 = vmul.f32 %v747, 0.25
      %v1934 = vmul.f32 %v748, 0.25
      %v1935 = vmul.f32 %v749, 0.25
      %v1936 = vmul.f32 %v750, 0.25
      %v1937 = vmul.f32 %v751, 0.25
      %v1938 = vmul.f32 %v752, 0.25
      %v1939 = vmul.f32 %v753, 0.25
      %v1940 = vmul.f32 %v754, 0.25
      %v1941 = vmul.f32 %v1168, 0.25
      %v1942 = vmul.f32 %v755, 0.25
      %v1943 = vmul.f32 %v756, 0.25
      %v1944 = vmul.f32 %v757, 0.25
      %v1945 = vmul.f32 %v758, 0.25
      %v1946 = vmul.f32 %v759, 0.25
      %v1947 = vmul.f32 %v760, 0.25
      %v1948 = vmul.f32 %v761, 0.25
      %v1949 = vmul.f32 %v762, 0.25
      %v1950 = vmul.f32 %v1183, 0.25
      %v1951 = vmul.f32 %v763, 0.25
      %v1952 = vmul.f32 %v764, 0.25
      %v1953 = vmul.f32 %v765, 0.25
      %v1954 = vmul.f32 %v766, 0.25
      %v1955 = vmul.f32 %v767, 0.25
      %v1956 = vmul.f32 %v768, 0.25
      %v1957 = vmul.f32 %v769, 0.25
      %v1958 = vmul.f32 %v770, 0.25
      %v1959 = vmul.f32 %v1198, 0.25
      %v1960 = vmul.f32 %v771, 0.25
      %v1961 = vmul.f32 %v772, 0.25
      %v1962 = vmul.f32 %v773, 0.25
      %v1963 = vmul.f32 %v774, 0.25
      %v1964 = vmul.f32 %v775, 0.25
      %v1965 = vmul.f32 %v776, 0.25
      %v1966 = vmul.f32 %v777, 0.25
      %v1967 = vmul.f32 %v778, 0.25
      %v1968 = vmul.f32 %v1213, 0.25
      %v1969 = vmul.f32 %v779, 0.25
      %v1970 = vmul.f32 %v780, 0.25
      %v1971 = vmul.f32 %v781, 0.25
      %v1972 = vmul.f32 %v782, 0.25
      %v1973 = vmul.f32 %v783, 0.25
      %v1974 = vmul.f32 %v784, 0.25
      %v1975 = vmul.f32 %v785, 0.25
      %v1976 = vmul.f32 %v786, 0.25
      %v1977 = vmul.f32 %v1228, 0.25
      %v1978 = vmul.f32 %v787, 0.25
      %v1979 = vmul.f32 %v788, 0.25
      %v1980 = vmul.f32 %v789, 0.25
      %v1981 = vmul.f32 %v790, 0.25
      %v1982 = vmul.f32 %v791, 0.25
      %v1983 = vmul.f32 %v792, 0.25
      %v1984 = vmul.f32 %v793, 0.25
      %v1985 = vmul.f32 %v794, 0.25
      %v1986 = vmul.f32 %v1243, 0.25
      %v1987 = vmul.f32 %v795, 0.25
      %v1988 = vmul.f32 %v796, 0.25
      %v1989 = vmul.f32 %v797, 0.25
      %v1990 = vmul.f32 %v798, 0.25
      %v1991 = vmul.f32 %v799, 0.25
      %v1992 = vmul.f32 %v800, 0.25
      %v1993 = vmul.f32 %v801, 0.25
      %v1994 = vmul.f32 %v802, 0.25
      %v1995 = vmul.f32 %v1258, 0.25
      %v1996 = vmul.f32 %v803, 0.25
      %v1997 = vmul.f32 %v804, 0.25
      %v1998 = vmul.f32 %v805, 0.25
      %v1999 = vmul.f32 %v806, 0.25
      %v2000 = vmul.f32 %v807, 0.25
      %v2001 = vmul.f32 %v808, 0.25
      %v2002 = vmul.f32 %v809, 0.25
      %v2003 = vmul.f32 %v810, 0.25
      %v2004 = vmul.f32 %v1273, 0.25
      %v2005 = vmul.f32 %v811, 0.25
      %v2006 = vmul.f32 %v812, 0.25
      %v2007 = vmul.f32 %v813, 0.25
      %v2008 = vmul.f32 %v814, 0.25
      %v2009 = vmul.f32 %v815, 0.25
      %v2010 = vmul.f32 %v816, 0.25
      %v2011 = vmul.f32 %v817, 0.25
      %v2012 = vmul.f32 %v818, 0.25
      %v2013 = vmul.f32 %v1288, 0.25
      %v2014 = vmul.f32 %v819, 0.25
      %v2015 = vmul.f32 %v820, 0.25
      %v2016 = vmul.f32 %v821, 0.25
      %v2017 = vmul.f32 %v822, 0.25
      %v2018 = vmul.f32 %v823, 0.25
      %v2019 = vmul.f32 %v824, 0.25
      %v2020 = vmul.f32 %v825, 0.25
      %v2021 = vmul.f32 %v826, 0.25
      %v2022 = vmul.f32 %v1303, 0.25
      %v2023 = vmul.f32 %v827, 0.25
      %v2024 = vmul.f32 %v828, 0.25
      %v2025 = vmul.f32 %v829, 0.25
      %v2026 = vmul.f32 %v830, 0.25
      %v2027 = vmul.f32 %v831, 0.25
      %v2028 = vmul.f32 %v832, 0.25
      %v2029 = vmul.f32 %v833, 0.25
      %v2030 = vmul.f32 %v834, 0.25
      %v2031 = vmul.f32 %v1318, 0.25
      %v2032 = vmul.f32 %v835, 0.25
      %v2033 = vmul.f32 %v836, 0.25
      %v2034 = vmul.f32 %v837, 0.25
      %v2035 = vmul.f32 %v838, 0.25
      %v2036 = vmul.f32 %v839, 0.25
      %v2037 = vmul.f32 %v840, 0.25
      %v2038 = vmul.f32 %v841, 0.25
      %v2039 = vmul.f32 %v842, 0.25
      %v2040 = vmul.f32 %v1333, 0.25
      %v2041 = vmul.f32 %v843, 0.25
      %v2042 = vmul.f32 %v844, 0.25
      %v2043 = vmul.f32 %v845, 0.25
      %v2044 = vmul.f32 %v846, 0.25
      %v2045 = vmul.f32 %v847, 0.25
      %v2046 = vmul.f32 %v848, 0.25
      %v2047 = vmul.f32 %v849, 0.25
      %v2048 = vmul.f32 %v850, 0.25
      %v2049 = vmul.f32 %v1348, 0.25
      %v2050 = vmul.f32 %v851, 0.25
      %v2051 = vmul.f32 %v852, 0.25
      %v2052 = vmul.f32 %v853, 0.25
      %v2053 = vmul.f32 %v854, 0.25
      %v2054 = vmul.f32 %v855, 0.25
      %v2055 = vmul.f32 %v856, 0.25
      %v2056 = vmul.f32 %v857, 0.25
      %v2057 = vmul.f32 %v858, 0.25
      %v2058 = vmul.f32 %v1363, 0.25
      %v2059 = vmul.f32 %v859, 0.25
      %v2060 = vmul.f32 %v860, 0.25
      %v2061 = vmul.f32 %v861, 0.25
      %v2062 = vmul.f32 %v862, 0.25
      %v2063 = vmul.f32 %v863, 0.25
      %v2064 = vmul.f32 %v864, 0.25
      %v2065 = vmul.f32 %v865, 0.25
      %v2066 = vmul.f32 %v866, 0.25
      %v2067 = vmul.f32 %v1378, 0.25
      %vm2212 = vcmask 1046528
      %v2213 = vrot.slane %v1924, 1
      %v2214 = vrot.slane %v1925, 1
      %v2215 = vsel %vm2212, %v2213, %v2214
      %v2216 = vrot.slane %v1926, 1
      %v2217 = vsel %vm2212, %v2214, %v2216
      %v2218 = vrot.slane %v1927, 1
      %v2219 = vsel %vm2212, %v2216, %v2218
      %v2220 = vrot.slane %v1928, 1
      %v2221 = vsel %vm2212, %v2218, %v2220
      %v2222 = vrot.slane %v1929, 1
      %v2223 = vsel %vm2212, %v2220, %v2222
      %v2224 = vrot.slane %v1930, 1
      %v2225 = vsel %vm2212, %v2222, %v2224
      %v2226 = vrot.slane %v1931, 1
      %v2227 = vsel %vm2212, %v2224, %v2226
      %v2228 = vrot.slane %v1932, 1
      %v2229 = vsel %vm2212, %v2226, %v2228
      %v2230 = vrot.slane %v1933, 1
      %v2231 = vrot.slane %v1934, 1
      %v2232 = vsel %vm2212, %v2230, %v2231
      %v2233 = vrot.slane %v1935, 1
      %v2234 = vsel %vm2212, %v2231, %v2233
      %v2235 = vrot.slane %v1936, 1
      %v2236 = vsel %vm2212, %v2233, %v2235
      %v2237 = vrot.slane %v1937, 1
      %v2238 = vsel %vm2212, %v2235, %v2237
      %v2239 = vrot.slane %v1938, 1
      %v2240 = vsel %vm2212, %v2237, %v2239
      %v2241 = vrot.slane %v1939, 1
      %v2242 = vsel %vm2212, %v2239, %v2241
      %v2243 = vrot.slane %v1940, 1
      %v2244 = vsel %vm2212, %v2241, %v2243
      %v2245 = vrot.slane %v1941, 1
      %v2246 = vsel %vm2212, %v2243, %v2245
      %v2247 = vrot.slane %v1942, 1
      %v2248 = vrot.slane %v1943, 1
      %v2249 = vsel %vm2212, %v2247, %v2248
      %v2250 = vrot.slane %v1944, 1
      %v2251 = vsel %vm2212, %v2248, %v2250
      %v2252 = vrot.slane %v1945, 1
      %v2253 = vsel %vm2212, %v2250, %v2252
      %v2254 = vrot.slane %v1946, 1
      %v2255 = vsel %vm2212, %v2252, %v2254
      %v2256 = vrot.slane %v1947, 1
      %v2257 = vsel %vm2212, %v2254, %v2256
      %v2258 = vrot.slane %v1948, 1
      %v2259 = vsel %vm2212, %v2256, %v2258
      %v2260 = vrot.slane %v1949, 1
      %v2261 = vsel %vm2212, %v2258, %v2260
      %v2262 = vrot.slane %v1950, 1
      %v2263 = vsel %vm2212, %v2260, %v2262
      %v2264 = vrot.slane %v1951, 1
      %v2265 = vrot.slane %v1952, 1
      %v2266 = vsel %vm2212, %v2264, %v2265
      %v2267 = vrot.slane %v1953, 1
      %v2268 = vsel %vm2212, %v2265, %v2267
      %v2269 = vrot.slane %v1954, 1
      %v2270 = vsel %vm2212, %v2267, %v2269
      %v2271 = vrot.slane %v1955, 1
      %v2272 = vsel %vm2212, %v2269, %v2271
      %v2273 = vrot.slane %v1956, 1
      %v2274 = vsel %vm2212, %v2271, %v2273
      %v2275 = vrot.slane %v1957, 1
      %v2276 = vsel %vm2212, %v2273, %v2275
      %v2277 = vrot.slane %v1958, 1
      %v2278 = vsel %vm2212, %v2275, %v2277
      %v2279 = vrot.slane %v1959, 1
      %v2280 = vsel %vm2212, %v2277, %v2279
      %v2281 = vrot.slane %v1960, 1
      %v2282 = vrot.slane %v1961, 1
      %v2283 = vsel %vm2212, %v2281, %v2282
      %v2284 = vrot.slane %v1962, 1
      %v2285 = vsel %vm2212, %v2282, %v2284
      %v2286 = vrot.slane %v1963, 1
      %v2287 = vsel %vm2212, %v2284, %v2286
      %v2288 = vrot.slane %v1964, 1
      %v2289 = vsel %vm2212, %v2286, %v2288
      %v2290 = vrot.slane %v1965, 1
      %v2291 = vsel %vm2212, %v2288, %v2290
      %v2292 = vrot.slane %v1966, 1
      %v2293 = vsel %vm2212, %v2290, %v2292
      %v2294 = vrot.slane %v1967, 1
      %v2295 = vsel %vm2212, %v2292, %v2294
      %v2296 = vrot.slane %v1968, 1
      %v2297 = vsel %vm2212, %v2294, %v2296
      %v2298 = vrot.slane %v1969, 1
      %v2299 = vrot.slane %v1970, 1
      %v2300 = vsel %vm2212, %v2298, %v2299
      %v2301 = vrot.slane %v1971, 1
      %v2302 = vsel %vm2212, %v2299, %v2301
      %v2303 = vrot.slane %v1972, 1
      %v2304 = vsel %vm2212, %v2301, %v2303
      %v2305 = vrot.slane %v1973, 1
      %v2306 = vsel %vm2212, %v2303, %v2305
      %v2307 = vrot.slane %v1974, 1
      %v2308 = vsel %vm2212, %v2305, %v2307
      %v2309 = vrot.slane %v1975, 1
      %v2310 = vsel %vm2212, %v2307, %v2309
      %v2311 = vrot.slane %v1976, 1
      %v2312 = vsel %vm2212, %v2309, %v2311
      %v2313 = vrot.slane %v1977, 1
      %v2314 = vsel %vm2212, %v2311, %v2313
      %v2315 = vrot.slane %v1978, 1
      %v2316 = vrot.slane %v1979, 1
      %v2317 = vsel %vm2212, %v2315, %v2316
      %v2318 = vrot.slane %v1980, 1
      %v2319 = vsel %vm2212, %v2316, %v2318
      %v2320 = vrot.slane %v1981, 1
      %v2321 = vsel %vm2212, %v2318, %v2320
      %v2322 = vrot.slane %v1982, 1
      %v2323 = vsel %vm2212, %v2320, %v2322
      %v2324 = vrot.slane %v1983, 1
      %v2325 = vsel %vm2212, %v2322, %v2324
      %v2326 = vrot.slane %v1984, 1
      %v2327 = vsel %vm2212, %v2324, %v2326
      %v2328 = vrot.slane %v1985, 1
      %v2329 = vsel %vm2212, %v2326, %v2328
      %v2330 = vrot.slane %v1986, 1
      %v2331 = vsel %vm2212, %v2328, %v2330
      %v2332 = vrot.slane %v1987, 1
      %v2333 = vrot.slane %v1988, 1
      %v2334 = vsel %vm2212, %v2332, %v2333
      %v2335 = vrot.slane %v1989, 1
      %v2336 = vsel %vm2212, %v2333, %v2335
      %v2337 = vrot.slane %v1990, 1
      %v2338 = vsel %vm2212, %v2335, %v2337
      %v2339 = vrot.slane %v1991, 1
      %v2340 = vsel %vm2212, %v2337, %v2339
      %v2341 = vrot.slane %v1992, 1
      %v2342 = vsel %vm2212, %v2339, %v2341
      %v2343 = vrot.slane %v1993, 1
      %v2344 = vsel %vm2212, %v2341, %v2343
      %v2345 = vrot.slane %v1994, 1
      %v2346 = vsel %vm2212, %v2343, %v2345
      %v2347 = vrot.slane %v1995, 1
      %v2348 = vsel %vm2212, %v2345, %v2347
      %v2349 = vrot.slane %v1996, 1
      %v2350 = vrot.slane %v1997, 1
      %v2351 = vsel %vm2212, %v2349, %v2350
      %v2352 = vrot.slane %v1998, 1
      %v2353 = vsel %vm2212, %v2350, %v2352
      %v2354 = vrot.slane %v1999, 1
      %v2355 = vsel %vm2212, %v2352, %v2354
      %v2356 = vrot.slane %v2000, 1
      %v2357 = vsel %vm2212, %v2354, %v2356
      %v2358 = vrot.slane %v2001, 1
      %v2359 = vsel %vm2212, %v2356, %v2358
      %v2360 = vrot.slane %v2002, 1
      %v2361 = vsel %vm2212, %v2358, %v2360
      %v2362 = vrot.slane %v2003, 1
      %v2363 = vsel %vm2212, %v2360, %v2362
      %v2364 = vrot.slane %v2004, 1
      %v2365 = vsel %vm2212, %v2362, %v2364
      %v2366 = vrot.slane %v2005, 1
      %v2367 = vrot.slane %v2006, 1
      %v2368 = vsel %vm2212, %v2366, %v2367
      %v2369 = vrot.slane %v2007, 1
      %v2370 = vsel %vm2212, %v2367, %v2369
      %v2371 = vrot.slane %v2008, 1
      %v2372 = vsel %vm2212, %v2369, %v2371
      %v2373 = vrot.slane %v2009, 1
      %v2374 = vsel %vm2212, %v2371, %v2373
      %v2375 = vrot.slane %v2010, 1
      %v2376 = vsel %vm2212, %v2373, %v2375
      %v2377 = vrot.slane %v2011, 1
      %v2378 = vsel %vm2212, %v2375, %v2377
      %v2379 = vrot.slane %v2012, 1
      %v2380 = vsel %vm2212, %v2377, %v2379
      %v2381 = vrot.slane %v2013, 1
      %v2382 = vsel %vm2212, %v2379, %v2381
      %v2383 = vrot.slane %v2014, 1
      %v2384 = vrot.slane %v2015, 1
      %v2385 = vsel %vm2212, %v2383, %v2384
      %v2386 = vrot.slane %v2016, 1
      %v2387 = vsel %vm2212, %v2384, %v2386
      %v2388 = vrot.slane %v2017, 1
      %v2389 = vsel %vm2212, %v2386, %v2388
      %v2390 = vrot.slane %v2018, 1
      %v2391 = vsel %vm2212, %v2388, %v2390
      %v2392 = vrot.slane %v2019, 1
      %v2393 = vsel %vm2212, %v2390, %v2392
      %v2394 = vrot.slane %v2020, 1
      %v2395 = vsel %vm2212, %v2392, %v2394
      %v2396 = vrot.slane %v2021, 1
      %v2397 = vsel %vm2212, %v2394, %v2396
      %v2398 = vrot.slane %v2022, 1
      %v2399 = vsel %vm2212, %v2396, %v2398
      %v2400 = vrot.slane %v2023, 1
      %v2401 = vrot.slane %v2024, 1
      %v2402 = vsel %vm2212, %v2400, %v2401
      %v2403 = vrot.slane %v2025, 1
      %v2404 = vsel %vm2212, %v2401, %v2403
      %v2405 = vrot.slane %v2026, 1
      %v2406 = vsel %vm2212, %v2403, %v2405
      %v2407 = vrot.slane %v2027, 1
      %v2408 = vsel %vm2212, %v2405, %v2407
      %v2409 = vrot.slane %v2028, 1
      %v2410 = vsel %vm2212, %v2407, %v2409
      %v2411 = vrot.slane %v2029, 1
      %v2412 = vsel %vm2212, %v2409, %v2411
      %v2413 = vrot.slane %v2030, 1
      %v2414 = vsel %vm2212, %v2411, %v2413
      %v2415 = vrot.slane %v2031, 1
      %v2416 = vsel %vm2212, %v2413, %v2415
      %v2417 = vrot.slane %v2032, 1
      %v2418 = vrot.slane %v2033, 1
      %v2419 = vsel %vm2212, %v2417, %v2418
      %v2420 = vrot.slane %v2034, 1
      %v2421 = vsel %vm2212, %v2418, %v2420
      %v2422 = vrot.slane %v2035, 1
      %v2423 = vsel %vm2212, %v2420, %v2422
      %v2424 = vrot.slane %v2036, 1
      %v2425 = vsel %vm2212, %v2422, %v2424
      %v2426 = vrot.slane %v2037, 1
      %v2427 = vsel %vm2212, %v2424, %v2426
      %v2428 = vrot.slane %v2038, 1
      %v2429 = vsel %vm2212, %v2426, %v2428
      %v2430 = vrot.slane %v2039, 1
      %v2431 = vsel %vm2212, %v2428, %v2430
      %v2432 = vrot.slane %v2040, 1
      %v2433 = vsel %vm2212, %v2430, %v2432
      %v2434 = vrot.slane %v2041, 1
      %v2435 = vrot.slane %v2042, 1
      %v2436 = vsel %vm2212, %v2434, %v2435
      %v2437 = vrot.slane %v2043, 1
      %v2438 = vsel %vm2212, %v2435, %v2437
      %v2439 = vrot.slane %v2044, 1
      %v2440 = vsel %vm2212, %v2437, %v2439
      %v2441 = vrot.slane %v2045, 1
      %v2442 = vsel %vm2212, %v2439, %v2441
      %v2443 = vrot.slane %v2046, 1
      %v2444 = vsel %vm2212, %v2441, %v2443
      %v2445 = vrot.slane %v2047, 1
      %v2446 = vsel %vm2212, %v2443, %v2445
      %v2447 = vrot.slane %v2048, 1
      %v2448 = vsel %vm2212, %v2445, %v2447
      %v2449 = vrot.slane %v2049, 1
      %v2450 = vsel %vm2212, %v2447, %v2449
      %v2451 = vrot.slane %v2050, 1
      %v2452 = vrot.slane %v2051, 1
      %v2453 = vsel %vm2212, %v2451, %v2452
      %v2454 = vrot.slane %v2052, 1
      %v2455 = vsel %vm2212, %v2452, %v2454
      %v2456 = vrot.slane %v2053, 1
      %v2457 = vsel %vm2212, %v2454, %v2456
      %v2458 = vrot.slane %v2054, 1
      %v2459 = vsel %vm2212, %v2456, %v2458
      %v2460 = vrot.slane %v2055, 1
      %v2461 = vsel %vm2212, %v2458, %v2460
      %v2462 = vrot.slane %v2056, 1
      %v2463 = vsel %vm2212, %v2460, %v2462
      %v2464 = vrot.slane %v2057, 1
      %v2465 = vsel %vm2212, %v2462, %v2464
      %v2466 = vrot.slane %v2058, 1
      %v2467 = vsel %vm2212, %v2464, %v2466
      %v2468 = vrot.slane %v2059, 1
      %v2469 = vrot.slane %v2060, 1
      %v2470 = vsel %vm2212, %v2468, %v2469
      %v2471 = vrot.slane %v2061, 1
      %v2472 = vsel %vm2212, %v2469, %v2471
      %v2473 = vrot.slane %v2062, 1
      %v2474 = vsel %vm2212, %v2471, %v2473
      %v2475 = vrot.slane %v2063, 1
      %v2476 = vsel %vm2212, %v2473, %v2475
      %v2477 = vrot.slane %v2064, 1
      %v2478 = vsel %vm2212, %v2475, %v2477
      %v2479 = vrot.slane %v2065, 1
      %v2480 = vsel %vm2212, %v2477, %v2479
      %v2481 = vrot.slane %v2066, 1
      %v2482 = vsel %vm2212, %v2479, %v2481
      %v2483 = vrot.slane %v2067, 1
      %v2484 = vsel %vm2212, %v2481, %v2483
      %v2613 = vadd.f32 %v1540, %v2215
      %v2614 = vadd.f32 %v1541, %v2217
      %v2615 = vadd.f32 %v1542, %v2219
      %v2616 = vadd.f32 %v1543, %v2221
      %v2617 = vadd.f32 %v1544, %v2223
      %v2618 = vadd.f32 %v1545, %v2225
      %v2619 = vadd.f32 %v1546, %v2227
      %v2620 = vadd.f32 %v1547, %v2229
      %v2621 = vadd.f32 %v1548, %v2232
      %v2622 = vadd.f32 %v1549, %v2234
      %v2623 = vadd.f32 %v1550, %v2236
      %v2624 = vadd.f32 %v1551, %v2238
      %v2625 = vadd.f32 %v1552, %v2240
      %v2626 = vadd.f32 %v1553, %v2242
      %v2627 = vadd.f32 %v1554, %v2244
      %v2628 = vadd.f32 %v1555, %v2246
      %v2629 = vadd.f32 %v1556, %v2249
      %v2630 = vadd.f32 %v1557, %v2251
      %v2631 = vadd.f32 %v1558, %v2253
      %v2632 = vadd.f32 %v1559, %v2255
      %v2633 = vadd.f32 %v1560, %v2257
      %v2634 = vadd.f32 %v1561, %v2259
      %v2635 = vadd.f32 %v1562, %v2261
      %v2636 = vadd.f32 %v1563, %v2263
      %v2637 = vadd.f32 %v1564, %v2266
      %v2638 = vadd.f32 %v1565, %v2268
      %v2639 = vadd.f32 %v1566, %v2270
      %v2640 = vadd.f32 %v1567, %v2272
      %v2641 = vadd.f32 %v1568, %v2274
      %v2642 = vadd.f32 %v1569, %v2276
      %v2643 = vadd.f32 %v1570, %v2278
      %v2644 = vadd.f32 %v1571, %v2280
      %v2645 = vadd.f32 %v1572, %v2283
      %v2646 = vadd.f32 %v1573, %v2285
      %v2647 = vadd.f32 %v1574, %v2287
      %v2648 = vadd.f32 %v1575, %v2289
      %v2649 = vadd.f32 %v1576, %v2291
      %v2650 = vadd.f32 %v1577, %v2293
      %v2651 = vadd.f32 %v1578, %v2295
      %v2652 = vadd.f32 %v1579, %v2297
      %v2653 = vadd.f32 %v1580, %v2300
      %v2654 = vadd.f32 %v1581, %v2302
      %v2655 = vadd.f32 %v1582, %v2304
      %v2656 = vadd.f32 %v1583, %v2306
      %v2657 = vadd.f32 %v1584, %v2308
      %v2658 = vadd.f32 %v1585, %v2310
      %v2659 = vadd.f32 %v1586, %v2312
      %v2660 = vadd.f32 %v1587, %v2314
      %v2661 = vadd.f32 %v1588, %v2317
      %v2662 = vadd.f32 %v1589, %v2319
      %v2663 = vadd.f32 %v1590, %v2321
      %v2664 = vadd.f32 %v1591, %v2323
      %v2665 = vadd.f32 %v1592, %v2325
      %v2666 = vadd.f32 %v1593, %v2327
      %v2667 = vadd.f32 %v1594, %v2329
      %v2668 = vadd.f32 %v1595, %v2331
      %v2669 = vadd.f32 %v1596, %v2334
      %v2670 = vadd.f32 %v1597, %v2336
      %v2671 = vadd.f32 %v1598, %v2338
      %v2672 = vadd.f32 %v1599, %v2340
      %v2673 = vadd.f32 %v1600, %v2342
      %v2674 = vadd.f32 %v1601, %v2344
      %v2675 = vadd.f32 %v1602, %v2346
      %v2676 = vadd.f32 %v1603, %v2348
      %v2677 = vadd.f32 %v1604, %v2351
      %v2678 = vadd.f32 %v1605, %v2353
      %v2679 = vadd.f32 %v1606, %v2355
      %v2680 = vadd.f32 %v1607, %v2357
      %v2681 = vadd.f32 %v1608, %v2359
      %v2682 = vadd.f32 %v1609, %v2361
      %v2683 = vadd.f32 %v1610, %v2363
      %v2684 = vadd.f32 %v1611, %v2365
      %v2685 = vadd.f32 %v1612, %v2368
      %v2686 = vadd.f32 %v1613, %v2370
      %v2687 = vadd.f32 %v1614, %v2372
      %v2688 = vadd.f32 %v1615, %v2374
      %v2689 = vadd.f32 %v1616, %v2376
      %v2690 = vadd.f32 %v1617, %v2378
      %v2691 = vadd.f32 %v1618, %v2380
      %v2692 = vadd.f32 %v1619, %v2382
      %v2693 = vadd.f32 %v1620, %v2385
      %v2694 = vadd.f32 %v1621, %v2387
      %v2695 = vadd.f32 %v1622, %v2389
      %v2696 = vadd.f32 %v1623, %v2391
      %v2697 = vadd.f32 %v1624, %v2393
      %v2698 = vadd.f32 %v1625, %v2395
      %v2699 = vadd.f32 %v1626, %v2397
      %v2700 = vadd.f32 %v1627, %v2399
      %v2701 = vadd.f32 %v1628, %v2402
      %v2702 = vadd.f32 %v1629, %v2404
      %v2703 = vadd.f32 %v1630, %v2406
      %v2704 = vadd.f32 %v1631, %v2408
      %v2705 = vadd.f32 %v1632, %v2410
      %v2706 = vadd.f32 %v1633, %v2412
      %v2707 = vadd.f32 %v1634, %v2414
      %v2708 = vadd.f32 %v1635, %v2416
      %v2709 = vadd.f32 %v1636, %v2419
      %v2710 = vadd.f32 %v1637, %v2421
      %v2711 = vadd.f32 %v1638, %v2423
      %v2712 = vadd.f32 %v1639, %v2425
      %v2713 = vadd.f32 %v1640, %v2427
      %v2714 = vadd.f32 %v1641, %v2429
      %v2715 = vadd.f32 %v1642, %v2431
      %v2716 = vadd.f32 %v1643, %v2433
      %v2717 = vadd.f32 %v1644, %v2436
      %v2718 = vadd.f32 %v1645, %v2438
      %v2719 = vadd.f32 %v1646, %v2440
      %v2720 = vadd.f32 %v1647, %v2442
      %v2721 = vadd.f32 %v1648, %v2444
      %v2722 = vadd.f32 %v1649, %v2446
      %v2723 = vadd.f32 %v1650, %v2448
      %v2724 = vadd.f32 %v1651, %v2450
      %v2725 = vadd.f32 %v1652, %v2453
      %v2726 = vadd.f32 %v1653, %v2455
      %v2727 = vadd.f32 %v1654, %v2457
      %v2728 = vadd.f32 %v1655, %v2459
      %v2729 = vadd.f32 %v1656, %v2461
      %v2730 = vadd.f32 %v1657, %v2463
      %v2731 = vadd.f32 %v1658, %v2465
      %v2732 = vadd.f32 %v1659, %v2467
      %v2733 = vadd.f32 %v1660, %v2470
      %v2734 = vadd.f32 %v1661, %v2472
      %v2735 = vadd.f32 %v1662, %v2474
      %v2736 = vadd.f32 %v1663, %v2476
      %v2737 = vadd.f32 %v1664, %v2478
      %v2738 = vadd.f32 %v1665, %v2480
      %v2739 = vadd.f32 %v1666, %v2482
      %v2740 = vadd.f32 %v1667, %v2484
      %2869 = vrot.lane.b32.xlu0 %v2613, 64
      %v2870 = vpop.permute.xlu0 %2869
      %2871 = vrot.lane.b32.xlu0 %v2614, 64
      %v2872 = vpop.permute.xlu0 %2871
      %2873 = vrot.lane.b32.xlu0 %v2615, 64
      %v2874 = vpop.permute.xlu0 %2873
      %2875 = vrot.lane.b32.xlu0 %v2616, 64
      %v2876 = vpop.permute.xlu0 %2875
      %2877 = vrot.lane.b32.xlu0 %v2617, 64
      %v2878 = vpop.permute.xlu0 %2877
      %2879 = vrot.lane.b32.xlu0 %v2618, 64
      %v2880 = vpop.permute.xlu0 %2879
      %2881 = vrot.lane.b32.xlu0 %v2619, 64
      %v2882 = vpop.permute.xlu0 %2881
      %2883 = vrot.lane.b32.xlu0 %v2620, 64
      %v2884 = vpop.permute.xlu0 %2883
      %2885 = vrot.lane.b32.xlu0 %v2621, 64
      %v2886 = vpop.permute.xlu0 %2885
      %2887 = vrot.lane.b32.xlu0 %v2622, 64
      %v2888 = vpop.permute.xlu0 %2887
      %2889 = vrot.lane.b32.xlu0 %v2623, 64
      %v2890 = vpop.permute.xlu0 %2889
      %2891 = vrot.lane.b32.xlu0 %v2624, 64
      %v2892 = vpop.permute.xlu0 %2891
      %2893 = vrot.lane.b32.xlu0 %v2625, 64
      %v2894 = vpop.permute.xlu0 %2893
      %2895 = vrot.lane.b32.xlu0 %v2626, 64
      %v2896 = vpop.permute.xlu0 %2895
      %2897 = vrot.lane.b32.xlu0 %v2627, 64
      %v2898 = vpop.permute.xlu0 %2897
      %2899 = vrot.lane.b32.xlu0 %v2628, 64
      %v2900 = vpop.permute.xlu0 %2899
      %2901 = vrot.lane.b32.xlu0 %v2629, 64
      %v2902 = vpop.permute.xlu0 %2901
      %2903 = vrot.lane.b32.xlu0 %v2630, 64
      %v2904 = vpop.permute.xlu0 %2903
      %2905 = vrot.lane.b32.xlu0 %v2631, 64
      %v2906 = vpop.permute.xlu0 %2905
      %2907 = vrot.lane.b32.xlu0 %v2632, 64
      %v2908 = vpop.permute.xlu0 %2907
      %2909 = vrot.lane.b32.xlu0 %v2633, 64
      %v2910 = vpop.permute.xlu0 %2909
      %2911 = vrot.lane.b32.xlu0 %v2634, 64
      %v2912 = vpop.permute.xlu0 %2911
      %2913 = vrot.lane.b32.xlu0 %v2635, 64
      %v2914 = vpop.permute.xlu0 %2913
      %2915 = vrot.lane.b32.xlu0 %v2636, 64
      %v2916 = vpop.permute.xlu0 %2915
      %2917 = vrot.lane.b32.xlu0 %v2637, 64
      %v2918 = vpop.permute.xlu0 %2917
      %2919 = vrot.lane.b32.xlu0 %v2638, 64
      %v2920 = vpop.permute.xlu0 %2919
      %2921 = vrot.lane.b32.xlu0 %v2639, 64
      %v2922 = vpop.permute.xlu0 %2921
      %2923 = vrot.lane.b32.xlu0 %v2640, 64
      %v2924 = vpop.permute.xlu0 %2923
      %2925 = vrot.lane.b32.xlu0 %v2641, 64
      %v2926 = vpop.permute.xlu0 %2925
      %2927 = vrot.lane.b32.xlu0 %v2642, 64
      %v2928 = vpop.permute.xlu0 %2927
      %2929 = vrot.lane.b32.xlu0 %v2643, 64
      %v2930 = vpop.permute.xlu0 %2929
      %2931 = vrot.lane.b32.xlu0 %v2644, 64
      %v2932 = vpop.permute.xlu0 %2931
      %2933 = vrot.lane.b32.xlu0 %v2645, 64
      %v2934 = vpop.permute.xlu0 %2933
      %2935 = vrot.lane.b32.xlu0 %v2646, 64
      %v2936 = vpop.permute.xlu0 %2935
      %2937 = vrot.lane.b32.xlu0 %v2647, 64
      %v2938 = vpop.permute.xlu0 %2937
      %2939 = vrot.lane.b32.xlu0 %v2648, 64
      %v2940 = vpop.permute.xlu0 %2939
      %2941 = vrot.lane.b32.xlu0 %v2649, 64
      %v2942 = vpop.permute.xlu0 %2941
      %2943 = vrot.lane.b32.xlu0 %v2650, 64
      %v2944 = vpop.permute.xlu0 %2943
      %2945 = vrot.lane.b32.xlu0 %v2651, 64
      %v2946 = vpop.permute.xlu0 %2945
      %2947 = vrot.lane.b32.xlu0 %v2652, 64
      %v2948 = vpop.permute.xlu0 %2947
      %2949 = vrot.lane.b32.xlu0 %v2653, 64
      %v2950 = vpop.permute.xlu0 %2949
      %2951 = vrot.lane.b32.xlu0 %v2654, 64
      %v2952 = vpop.permute.xlu0 %2951
      %2953 = vrot.lane.b32.xlu0 %v2655, 64
      %v2954 = vpop.permute.xlu0 %2953
      %2955 = vrot.lane.b32.xlu0 %v2656, 64
      %v2956 = vpop.permute.xlu0 %2955
      %2957 = vrot.lane.b32.xlu0 %v2657, 64
      %v2958 = vpop.permute.xlu0 %2957
      %2959 = vrot.lane.b32.xlu0 %v2658, 64
      %v2960 = vpop.permute.xlu0 %2959
      %2961 = vrot.lane.b32.xlu0 %v2659, 64
      %v2962 = vpop.permute.xlu0 %2961
      %2963 = vrot.lane.b32.xlu0 %v2660, 64
      %v2964 = vpop.permute.xlu0 %2963
      %2965 = vrot.lane.b32.xlu0 %v2661, 64
      %v2966 = vpop.permute.xlu0 %2965
      %2967 = vrot.lane.b32.xlu0 %v2662, 64
      %v2968 = vpop.permute.xlu0 %2967
      %2969 = vrot.lane.b32.xlu0 %v2663, 64
      %v2970 = vpop.permute.xlu0 %2969
      %2971 = vrot.lane.b32.xlu0 %v2664, 64
      %v2972 = vpop.permute.xlu0 %2971
      %2973 = vrot.lane.b32.xlu0 %v2665, 64
      %v2974 = vpop.permute.xlu0 %2973
      %2975 = vrot.lane.b32.xlu0 %v2666, 64
      %v2976 = vpop.permute.xlu0 %2975
      %2977 = vrot.lane.b32.xlu0 %v2667, 64
      %v2978 = vpop.permute.xlu0 %2977
      %2979 = vrot.lane.b32.xlu0 %v2668, 64
      %v2980 = vpop.permute.xlu0 %2979
      %2981 = vrot.lane.b32.xlu0 %v2669, 64
      %v2982 = vpop.permute.xlu0 %2981
      %2983 = vrot.lane.b32.xlu0 %v2670, 64
      %v2984 = vpop.permute.xlu0 %2983
      %2985 = vrot.lane.b32.xlu0 %v2671, 64
      %v2986 = vpop.permute.xlu0 %2985
      %2987 = vrot.lane.b32.xlu0 %v2672, 64
      %v2988 = vpop.permute.xlu0 %2987
      %2989 = vrot.lane.b32.xlu0 %v2673, 64
      %v2990 = vpop.permute.xlu0 %2989
      %2991 = vrot.lane.b32.xlu0 %v2674, 64
      %v2992 = vpop.permute.xlu0 %2991
      %2993 = vrot.lane.b32.xlu0 %v2675, 64
      %v2994 = vpop.permute.xlu0 %2993
      %2995 = vrot.lane.b32.xlu0 %v2676, 64
      %v2996 = vpop.permute.xlu0 %2995
      %2997 = vrot.lane.b32.xlu0 %v2677, 64
      %v2998 = vpop.permute.xlu0 %2997
      %2999 = vrot.lane.b32.xlu0 %v2678, 64
      %v3000 = vpop.permute.xlu0 %2999
      %3001 = vrot.lane.b32.xlu0 %v2679, 64
      %v3002 = vpop.permute.xlu0 %3001
      %3003 = vrot.lane.b32.xlu0 %v2680, 64
      %v3004 = vpop.permute.xlu0 %3003
      %3005 = vrot.lane.b32.xlu0 %v2681, 64
      %v3006 = vpop.permute.xlu0 %3005
      %3007 = vrot.lane.b32.xlu0 %v2682, 64
      %v3008 = vpop.permute.xlu0 %3007
      %3009 = vrot.lane.b32.xlu0 %v2683, 64
      %v3010 = vpop.permute.xlu0 %3009
      %3011 = vrot.lane.b32.xlu0 %v2684, 64
      %v3012 = vpop.permute.xlu0 %3011
      %3013 = vrot.lane.b32.xlu0 %v2685, 64
      %v3014 = vpop.permute.xlu0 %3013
      %3015 = vrot.lane.b32.xlu0 %v2686, 64
      %v3016 = vpop.permute.xlu0 %3015
      %3017 = vrot.lane.b32.xlu0 %v2687, 64
      %v3018 = vpop.permute.xlu0 %3017
      %3019 = vrot.lane.b32.xlu0 %v2688, 64
      %v3020 = vpop.permute.xlu0 %3019
      %3021 = vrot.lane.b32.xlu0 %v2689, 64
      %v3022 = vpop.permute.xlu0 %3021
      %3023 = vrot.lane.b32.xlu0 %v2690, 64
      %v3024 = vpop.permute.xlu0 %3023
      %3025 = vrot.lane.b32.xlu0 %v2691, 64
      %v3026 = vpop.permute.xlu0 %3025
      %3027 = vrot.lane.b32.xlu0 %v2692, 64
      %v3028 = vpop.permute.xlu0 %3027
      %3029 = vrot.lane.b32.xlu0 %v2693, 64
      %v3030 = vpop.permute.xlu0 %3029
      %3031 = vrot.lane.b32.xlu0 %v2694, 64
      %v3032 = vpop.permute.xlu0 %3031
      %3033 = vrot.lane.b32.xlu0 %v2695, 64
      %v3034 = vpop.permute.xlu0 %3033
      %3035 = vrot.lane.b32.xlu0 %v2696, 64
      %v3036 = vpop.permute.xlu0 %3035
      %3037 = vrot.lane.b32.xlu0 %v2697, 64
      %v3038 = vpop.permute.xlu0 %3037
      %3039 = vrot.lane.b32.xlu0 %v2698, 64
      %v3040 = vpop.permute.xlu0 %3039
      %3041 = vrot.lane.b32.xlu0 %v2699, 64
      %v3042 = vpop.permute.xlu0 %3041
      %3043 = vrot.lane.b32.xlu0 %v2700, 64
      %v3044 = vpop.permute.xlu0 %3043
      %3045 = vrot.lane.b32.xlu0 %v2701, 64
      %v3046 = vpop.permute.xlu0 %3045
      %3047 = vrot.lane.b32.xlu0 %v2702, 64
      %v3048 = vpop.permute.xlu0 %3047
      %3049 = vrot.lane.b32.xlu0 %v2703, 64
      %v3050 = vpop.permute.xlu0 %3049
      %3051 = vrot.lane.b32.xlu0 %v2704, 64
      %v3052 = vpop.permute.xlu0 %3051
      %3053 = vrot.lane.b32.xlu0 %v2705, 64
      %v3054 = vpop.permute.xlu0 %3053
      %3055 = vrot.lane.b32.xlu0 %v2706, 64
      %v3056 = vpop.permute.xlu0 %3055
      %3057 = vrot.lane.b32.xlu0 %v2707, 64
      %v3058 = vpop.permute.xlu0 %3057
      %3059 = vrot.lane.b32.xlu0 %v2708, 64
      %v3060 = vpop.permute.xlu0 %3059
      %3061 = vrot.lane.b32.xlu0 %v2709, 64
      %v3062 = vpop.permute.xlu0 %3061
      %3063 = vrot.lane.b32.xlu0 %v2710, 64
      %v3064 = vpop.permute.xlu0 %3063
      %3065 = vrot.lane.b32.xlu0 %v2711, 64
      %v3066 = vpop.permute.xlu0 %3065
      %3067 = vrot.lane.b32.xlu0 %v2712, 64
      %v3068 = vpop.permute.xlu0 %3067
      %3069 = vrot.lane.b32.xlu0 %v2713, 64
      %v3070 = vpop.permute.xlu0 %3069
      %3071 = vrot.lane.b32.xlu0 %v2714, 64
      %v3072 = vpop.permute.xlu0 %3071
      %3073 = vrot.lane.b32.xlu0 %v2715, 64
      %v3074 = vpop.permute.xlu0 %3073
      %3075 = vrot.lane.b32.xlu0 %v2716, 64
      %v3076 = vpop.permute.xlu0 %3075
      %3077 = vrot.lane.b32.xlu0 %v2717, 64
      %v3078 = vpop.permute.xlu0 %3077
      %3079 = vrot.lane.b32.xlu0 %v2718, 64
      %v3080 = vpop.permute.xlu0 %3079
      %3081 = vrot.lane.b32.xlu0 %v2719, 64
      %v3082 = vpop.permute.xlu0 %3081
      %3083 = vrot.lane.b32.xlu0 %v2720, 64
      %v3084 = vpop.permute.xlu0 %3083
      %3085 = vrot.lane.b32.xlu0 %v2721, 64
      %v3086 = vpop.permute.xlu0 %3085
      %3087 = vrot.lane.b32.xlu0 %v2722, 64
      %v3088 = vpop.permute.xlu0 %3087
      %3089 = vrot.lane.b32.xlu0 %v2723, 64
      %v3090 = vpop.permute.xlu0 %3089
      %3091 = vrot.lane.b32.xlu0 %v2724, 64
      %v3092 = vpop.permute.xlu0 %3091
      %3093 = vrot.lane.b32.xlu0 %v2725, 64
      %v3094 = vpop.permute.xlu0 %3093
      %3095 = vrot.lane.b32.xlu0 %v2726, 64
      %v3096 = vpop.permute.xlu0 %3095
      %3097 = vrot.lane.b32.xlu0 %v2727, 64
      %v3098 = vpop.permute.xlu0 %3097
      %3099 = vrot.lane.b32.xlu0 %v2728, 64
      %v3100 = vpop.permute.xlu0 %3099
      %3101 = vrot.lane.b32.xlu0 %v2729, 64
      %v3102 = vpop.permute.xlu0 %3101
      %3103 = vrot.lane.b32.xlu0 %v2730, 64
      %v3104 = vpop.permute.xlu0 %3103
      %3105 = vrot.lane.b32.xlu0 %v2731, 64
      %v3106 = vpop.permute.xlu0 %3105
      %3107 = vrot.lane.b32.xlu0 %v2732, 64
      %v3108 = vpop.permute.xlu0 %3107
      %3109 = vrot.lane.b32.xlu0 %v2733, 64
      %v3110 = vpop.permute.xlu0 %3109
      %3111 = vrot.lane.b32.xlu0 %v2734, 64
      %v3112 = vpop.permute.xlu0 %3111
      %3113 = vrot.lane.b32.xlu0 %v2735, 64
      %v3114 = vpop.permute.xlu0 %3113
      %3115 = vrot.lane.b32.xlu0 %v2736, 64
      %v3116 = vpop.permute.xlu0 %3115
      %3117 = vrot.lane.b32.xlu0 %v2737, 64
      %v3118 = vpop.permute.xlu0 %3117
      %3119 = vrot.lane.b32.xlu0 %v2738, 64
      %v3120 = vpop.permute.xlu0 %3119
      %3121 = vrot.lane.b32.xlu0 %v2739, 64
      %v3122 = vpop.permute.xlu0 %3121
      %3123 = vrot.lane.b32.xlu0 %v2740, 64
      %v3124 = vpop.permute.xlu0 %3123
      %vm3253 = vcmask 523264
      %v3254 = vsel %vm3253, %v1796, %v2870
      %v3255 = vsel %vm3253, %v1797, %v2872
      %v3256 = vsel %vm3253, %v1798, %v2874
      %v3257 = vsel %vm3253, %v1799, %v2876
      %v3258 = vsel %vm3253, %v1800, %v2878
      %v3259 = vsel %vm3253, %v1801, %v2880
      %v3260 = vsel %vm3253, %v1802, %v2882
      %v3261 = vsel %vm3253, %v1803, %v2884
      %v3262 = vsel %vm3253, %v1804, %v2886
      %v3263 = vsel %vm3253, %v1805, %v2888
      %v3264 = vsel %vm3253, %v1806, %v2890
      %v3265 = vsel %vm3253, %v1807, %v2892
      %v3266 = vsel %vm3253, %v1808, %v2894
      %v3267 = vsel %vm3253, %v1809, %v2896
      %v3268 = vsel %vm3253, %v1810, %v2898
      %v3269 = vsel %vm3253, %v1811, %v2900
      %v3270 = vsel %vm3253, %v1812, %v2902
      %v3271 = vsel %vm3253, %v1813, %v2904
      %v3272 = vsel %vm3253, %v1814, %v2906
      %v3273 = vsel %vm3253, %v1815, %v2908
      %v3274 = vsel %vm3253, %v1816, %v2910
      %v3275 = vsel %vm3253, %v1817, %v2912
      %v3276 = vsel %vm3253, %v1818, %v2914
      %v3277 = vsel %vm3253, %v1819, %v2916
      %v3278 = vsel %vm3253, %v1820, %v2918
      %v3279 = vsel %vm3253, %v1821, %v2920
      %v3280 = vsel %vm3253, %v1822, %v2922
      %v3281 = vsel %vm3253, %v1823, %v2924
      %v3282 = vsel %vm3253, %v1824, %v2926
      %v3283 = vsel %vm3253, %v1825, %v2928
      %v3284 = vsel %vm3253, %v1826, %v2930
      %v3285 = vsel %vm3253, %v1827, %v2932
      %v3286 = vsel %vm3253, %v1828, %v2934
      %v3287 = vsel %vm3253, %v1829, %v2936
      %v3288 = vsel %vm3253, %v1830, %v2938
      %v3289 = vsel %vm3253, %v1831, %v2940
      %v3290 = vsel %vm3253, %v1832, %v2942
      %v3291 = vsel %vm3253, %v1833, %v2944
      %v3292 = vsel %vm3253, %v1834, %v2946
      %v3293 = vsel %vm3253, %v1835, %v2948
      %v3294 = vsel %vm3253, %v1836, %v2950
      %v3295 = vsel %vm3253, %v1837, %v2952
      %v3296 = vsel %vm3253, %v1838, %v2954
      %v3297 = vsel %vm3253, %v1839, %v2956
      %v3298 = vsel %vm3253, %v1840, %v2958
      %v3299 = vsel %vm3253, %v1841, %v2960
      %v3300 = vsel %vm3253, %v1842, %v2962
      %v3301 = vsel %vm3253, %v1843, %v2964
      %v3302 = vsel %vm3253, %v1844, %v2966
      %v3303 = vsel %vm3253, %v1845, %v2968
      %v3304 = vsel %vm3253, %v1846, %v2970
      %v3305 = vsel %vm3253, %v1847, %v2972
      %v3306 = vsel %vm3253, %v1848, %v2974
      %v3307 = vsel %vm3253, %v1849, %v2976
      %v3308 = vsel %vm3253, %v1850, %v2978
      %v3309 = vsel %vm3253, %v1851, %v2980
      %v3310 = vsel %vm3253, %v1852, %v2982
      %v3311 = vsel %vm3253, %v1853, %v2984
      %v3312 = vsel %vm3253, %v1854, %v2986
      %v3313 = vsel %vm3253, %v1855, %v2988
      %v3314 = vsel %vm3253, %v1856, %v2990
      %v3315 = vsel %vm3253, %v1857, %v2992
      %v3316 = vsel %vm3253, %v1858, %v2994
      %v3317 = vsel %vm3253, %v1859, %v2996
      %v3318 = vsel %vm3253, %v1860, %v2998
      %v3319 = vsel %vm3253, %v1861, %v3000
      %v3320 = vsel %vm3253, %v1862, %v3002
      %v3321 = vsel %vm3253, %v1863, %v3004
      %v3322 = vsel %vm3253, %v1864, %v3006
      %v3323 = vsel %vm3253, %v1865, %v3008
      %v3324 = vsel %vm3253, %v1866, %v3010
      %v3325 = vsel %vm3253, %v1867, %v3012
      %v3326 = vsel %vm3253, %v1868, %v3014
      %v3327 = vsel %vm3253, %v1869, %v3016
      %v3328 = vsel %vm3253, %v1870, %v3018
      %v3329 = vsel %vm3253, %v1871, %v3020
      %v3330 = vsel %vm3253, %v1872, %v3022
      %v3331 = vsel %vm3253, %v1873, %v3024
      %v3332 = vsel %vm3253, %v1874, %v3026
      %v3333 = vsel %vm3253, %v1875, %v3028
      %v3334 = vsel %vm3253, %v1876, %v3030
      %v3335 = vsel %vm3253, %v1877, %v3032
      %v3336 = vsel %vm3253, %v1878, %v3034
      %v3337 = vsel %vm3253, %v1879, %v3036
      %v3338 = vsel %vm3253, %v1880, %v3038
      %v3339 = vsel %vm3253, %v1881, %v3040
      %v3340 = vsel %vm3253, %v1882, %v3042
      %v3341 = vsel %vm3253, %v1883, %v3044
      %v3342 = vsel %vm3253, %v1884, %v3046
      %v3343 = vsel %vm3253, %v1885, %v3048
      %v3344 = vsel %vm3253, %v1886, %v3050
      %v3345 = vsel %vm3253, %v1887, %v3052
      %v3346 = vsel %vm3253, %v1888, %v3054
      %v3347 = vsel %vm3253, %v1889, %v3056
      %v3348 = vsel %vm3253, %v1890, %v3058
      %v3349 = vsel %vm3253, %v1891, %v3060
      %v3350 = vsel %vm3253, %v1892, %v3062
      %v3351 = vsel %vm3253, %v1893, %v3064
      %v3352 = vsel %vm3253, %v1894, %v3066
      %v3353 = vsel %vm3253, %v1895, %v3068
      %v3354 = vsel %vm3253, %v1896, %v3070
      %v3355 = vsel %vm3253, %v1897, %v3072
      %v3356 = vsel %vm3253, %v1898, %v3074
      %v3357 = vsel %vm3253, %v1899, %v3076
      %v3358 = vsel %vm3253, %v1900, %v3078
      %v3359 = vsel %vm3253, %v1901, %v3080
      %v3360 = vsel %vm3253, %v1902, %v3082
      %v3361 = vsel %vm3253, %v1903, %v3084
      %v3362 = vsel %vm3253, %v1904, %v3086
      %v3363 = vsel %vm3253, %v1905, %v3088
      %v3364 = vsel %vm3253, %v1906, %v3090
      %v3365 = vsel %vm3253, %v1907, %v3092
      %v3366 = vsel %vm3253, %v1908, %v3094
      %v3367 = vsel %vm3253, %v1909, %v3096
      %v3368 = vsel %vm3253, %v1910, %v3098
      %v3369 = vsel %vm3253, %v1911, %v3100
      %v3370 = vsel %vm3253, %v1912, %v3102
      %v3371 = vsel %vm3253, %v1913, %v3104
      %v3372 = vsel %vm3253, %v1914, %v3106
      %v3373 = vsel %vm3253, %v1915, %v3108
      %v3374 = vsel %vm3253, %v1916, %v3110
      %v3375 = vsel %vm3253, %v1917, %v3112
      %v3376 = vsel %vm3253, %v1918, %v3114
      %v3377 = vsel %vm3253, %v1919, %v3116
      %v3378 = vsel %vm3253, %v1920, %v3118
      %v3379 = vsel %vm3253, %v1921, %v3120
      %v3380 = vsel %vm3253, %v1922, %v3122
      %v3381 = vsel %vm3253, %v1923, %v3124
      %v3510 = vrot.slane %v883, 7
      %v3511 = vrot.slane %v884, 7
      %v3512 = vsel %vm1139, %v3510, %v3511
      %v3513 = vrot.slane %v885, 7
      %v3514 = vsel %vm1139, %v3511, %v3513
      %v3515 = vrot.slane %v886, 7
      %v3516 = vsel %vm1139, %v3513, %v3515
      %v3517 = vrot.slane %v887, 7
      %v3518 = vsel %vm1139, %v3515, %v3517
      %v3519 = vrot.slane %v888, 7
      %v3520 = vsel %vm1139, %v3517, %v3519
      %v3521 = vrot.slane %v889, 7
      %v3522 = vsel %vm1139, %v3519, %v3521
      %v3523 = vrot.slane %v890, 7
      %v3524 = vsel %vm1139, %v3521, %v3523
      %v3525 = vrot.slane %v891, 7
      %v3526 = vrot.slane %v892, 7
      %v3527 = vsel %vm1139, %v3525, %v3526
      %v3528 = vrot.slane %v893, 7
      %v3529 = vsel %vm1139, %v3526, %v3528
      %v3530 = vrot.slane %v894, 7
      %v3531 = vsel %vm1139, %v3528, %v3530
      %v3532 = vrot.slane %v895, 7
      %v3533 = vsel %vm1139, %v3530, %v3532
      %v3534 = vrot.slane %v896, 7
      %v3535 = vsel %vm1139, %v3532, %v3534
      %v3536 = vrot.slane %v897, 7
      %v3537 = vsel %vm1139, %v3534, %v3536
      %v3538 = vrot.slane %v898, 7
      %v3539 = vsel %vm1139, %v3536, %v3538
      %v3540 = vrot.slane %v899, 7
      %v3541 = vrot.slane %v900, 7
      %v3542 = vsel %vm1139, %v3540, %v3541
      %v3543 = vrot.slane %v901, 7
      %v3544 = vsel %vm1139, %v3541, %v3543
      %v3545 = vrot.slane %v902, 7
      %v3546 = vsel %vm1139, %v3543, %v3545
      %v3547 = vrot.slane %v903, 7
      %v3548 = vsel %vm1139, %v3545, %v3547
      %v3549 = vrot.slane %v904, 7
      %v3550 = vsel %vm1139, %v3547, %v3549
      %v3551 = vrot.slane %v905, 7
      %v3552 = vsel %vm1139, %v3549, %v3551
      %v3553 = vrot.slane %v906, 7
      %v3554 = vsel %vm1139, %v3551, %v3553
      %v3555 = vrot.slane %v907, 7
      %v3556 = vrot.slane %v908, 7
      %v3557 = vsel %vm1139, %v3555, %v3556
      %v3558 = vrot.slane %v909, 7
      %v3559 = vsel %vm1139, %v3556, %v3558
      %v3560 = vrot.slane %v910, 7
      %v3561 = vsel %vm1139, %v3558, %v3560
      %v3562 = vrot.slane %v911, 7
      %v3563 = vsel %vm1139, %v3560, %v3562
      %v3564 = vrot.slane %v912, 7
      %v3565 = vsel %vm1139, %v3562, %v3564
      %v3566 = vrot.slane %v913, 7
      %v3567 = vsel %vm1139, %v3564, %v3566
      %v3568 = vrot.slane %v914, 7
      %v3569 = vsel %vm1139, %v3566, %v3568
      %v3570 = vrot.slane %v915, 7
      %v3571 = vrot.slane %v916, 7
      %v3572 = vsel %vm1139, %v3570, %v3571
      %v3573 = vrot.slane %v917, 7
      %v3574 = vsel %vm1139, %v3571, %v3573
      %v3575 = vrot.slane %v918, 7
      %v3576 = vsel %vm1139, %v3573, %v3575
      %v3577 = vrot.slane %v919, 7
      %v3578 = vsel %vm1139, %v3575, %v3577
      %v3579 = vrot.slane %v920, 7
      %v3580 = vsel %vm1139, %v3577, %v3579
      %v3581 = vrot.slane %v921, 7
      %v3582 = vsel %vm1139, %v3579, %v3581
      %v3583 = vrot.slane %v922, 7
      %v3584 = vsel %vm1139, %v3581, %v3583
      %v3585 = vrot.slane %v923, 7
      %v3586 = vrot.slane %v924, 7
      %v3587 = vsel %vm1139, %v3585, %v3586
      %v3588 = vrot.slane %v925, 7
      %v3589 = vsel %vm1139, %v3586, %v3588
      %v3590 = vrot.slane %v926, 7
      %v3591 = vsel %vm1139, %v3588, %v3590
      %v3592 = vrot.slane %v927, 7
      %v3593 = vsel %vm1139, %v3590, %v3592
      %v3594 = vrot.slane %v928, 7
      %v3595 = vsel %vm1139, %v3592, %v3594
      %v3596 = vrot.slane %v929, 7
      %v3597 = vsel %vm1139, %v3594, %v3596
      %v3598 = vrot.slane %v930, 7
      %v3599 = vsel %vm1139, %v3596, %v3598
      %v3600 = vrot.slane %v931, 7
      %v3601 = vrot.slane %v932, 7
      %v3602 = vsel %vm1139, %v3600, %v3601
      %v3603 = vrot.slane %v933, 7
      %v3604 = vsel %vm1139, %v3601, %v3603
      %v3605 = vrot.slane %v934, 7
      %v3606 = vsel %vm1139, %v3603, %v3605
      %v3607 = vrot.slane %v935, 7
      %v3608 = vsel %vm1139, %v3605, %v3607
      %v3609 = vrot.slane %v936, 7
      %v3610 = vsel %vm1139, %v3607, %v3609
      %v3611 = vrot.slane %v937, 7
      %v3612 = vsel %vm1139, %v3609, %v3611
      %v3613 = vrot.slane %v938, 7
      %v3614 = vsel %vm1139, %v3611, %v3613
      %v3615 = vrot.slane %v939, 7
      %v3616 = vrot.slane %v940, 7
      %v3617 = vsel %vm1139, %v3615, %v3616
      %v3618 = vrot.slane %v941, 7
      %v3619 = vsel %vm1139, %v3616, %v3618
      %v3620 = vrot.slane %v942, 7
      %v3621 = vsel %vm1139, %v3618, %v3620
      %v3622 = vrot.slane %v943, 7
      %v3623 = vsel %vm1139, %v3620, %v3622
      %v3624 = vrot.slane %v944, 7
      %v3625 = vsel %vm1139, %v3622, %v3624
      %v3626 = vrot.slane %v945, 7
      %v3627 = vsel %vm1139, %v3624, %v3626
      %v3628 = vrot.slane %v946, 7
      %v3629 = vsel %vm1139, %v3626, %v3628
      %v3630 = vrot.slane %v947, 7
      %v3631 = vrot.slane %v948, 7
      %v3632 = vsel %vm1139, %v3630, %v3631
      %v3633 = vrot.slane %v949, 7
      %v3634 = vsel %vm1139, %v3631, %v3633
      %v3635 = vrot.slane %v950, 7
      %v3636 = vsel %vm1139, %v3633, %v3635
      %v3637 = vrot.slane %v951, 7
      %v3638 = vsel %vm1139, %v3635, %v3637
      %v3639 = vrot.slane %v952, 7
      %v3640 = vsel %vm1139, %v3637, %v3639
      %v3641 = vrot.slane %v953, 7
      %v3642 = vsel %vm1139, %v3639, %v3641
      %v3643 = vrot.slane %v954, 7
      %v3644 = vsel %vm1139, %v3641, %v3643
      %v3645 = vrot.slane %v955, 7
      %v3646 = vrot.slane %v956, 7
      %v3647 = vsel %vm1139, %v3645, %v3646
      %v3648 = vrot.slane %v957, 7
      %v3649 = vsel %vm1139, %v3646, %v3648
      %v3650 = vrot.slane %v958, 7
      %v3651 = vsel %vm1139, %v3648, %v3650
      %v3652 = vrot.slane %v959, 7
      %v3653 = vsel %vm1139, %v3650, %v3652
      %v3654 = vrot.slane %v960, 7
      %v3655 = vsel %vm1139, %v3652, %v3654
      %v3656 = vrot.slane %v961, 7
      %v3657 = vsel %vm1139, %v3654, %v3656
      %v3658 = vrot.slane %v962, 7
      %v3659 = vsel %vm1139, %v3656, %v3658
      %v3660 = vrot.slane %v963, 7
      %v3661 = vrot.slane %v964, 7
      %v3662 = vsel %vm1139, %v3660, %v3661
      %v3663 = vrot.slane %v965, 7
      %v3664 = vsel %vm1139, %v3661, %v3663
      %v3665 = vrot.slane %v966, 7
      %v3666 = vsel %vm1139, %v3663, %v3665
      %v3667 = vrot.slane %v967, 7
      %v3668 = vsel %vm1139, %v3665, %v3667
      %v3669 = vrot.slane %v968, 7
      %v3670 = vsel %vm1139, %v3667, %v3669
      %v3671 = vrot.slane %v969, 7
      %v3672 = vsel %vm1139, %v3669, %v3671
      %v3673 = vrot.slane %v970, 7
      %v3674 = vsel %vm1139, %v3671, %v3673
      %v3675 = vrot.slane %v971, 7
      %v3676 = vrot.slane %v972, 7
      %v3677 = vsel %vm1139, %v3675, %v3676
      %v3678 = vrot.slane %v973, 7
      %v3679 = vsel %vm1139, %v3676, %v3678
      %v3680 = vrot.slane %v974, 7
      %v3681 = vsel %vm1139, %v3678, %v3680
      %v3682 = vrot.slane %v975, 7
      %v3683 = vsel %vm1139, %v3680, %v3682
      %v3684 = vrot.slane %v976, 7
      %v3685 = vsel %vm1139, %v3682, %v3684
      %v3686 = vrot.slane %v977, 7
      %v3687 = vsel %vm1139, %v3684, %v3686
      %v3688 = vrot.slane %v978, 7
      %v3689 = vsel %vm1139, %v3686, %v3688
      %v3690 = vrot.slane %v979, 7
      %v3691 = vrot.slane %v980, 7
      %v3692 = vsel %vm1139, %v3690, %v3691
      %v3693 = vrot.slane %v981, 7
      %v3694 = vsel %vm1139, %v3691, %v3693
      %v3695 = vrot.slane %v982, 7
      %v3696 = vsel %vm1139, %v3693, %v3695
      %v3697 = vrot.slane %v983, 7
      %v3698 = vsel %vm1139, %v3695, %v3697
      %v3699 = vrot.slane %v984, 7
      %v3700 = vsel %vm1139, %v3697, %v3699
      %v3701 = vrot.slane %v985, 7
      %v3702 = vsel %vm1139, %v3699, %v3701
      %v3703 = vrot.slane %v986, 7
      %v3704 = vsel %vm1139, %v3701, %v3703
      %v3705 = vrot.slane %v987, 7
      %v3706 = vrot.slane %v988, 7
      %v3707 = vsel %vm1139, %v3705, %v3706
      %v3708 = vrot.slane %v989, 7
      %v3709 = vsel %vm1139, %v3706, %v3708
      %v3710 = vrot.slane %v990, 7
      %v3711 = vsel %vm1139, %v3708, %v3710
      %v3712 = vrot.slane %v991, 7
      %v3713 = vsel %vm1139, %v3710, %v3712
      %v3714 = vrot.slane %v992, 7
      %v3715 = vsel %vm1139, %v3712, %v3714
      %v3716 = vrot.slane %v993, 7
      %v3717 = vsel %vm1139, %v3714, %v3716
      %v3718 = vrot.slane %v994, 7
      %v3719 = vsel %vm1139, %v3716, %v3718
      %v3720 = vrot.slane %v995, 7
      %v3721 = vrot.slane %v996, 7
      %v3722 = vsel %vm1139, %v3720, %v3721
      %v3723 = vrot.slane %v997, 7
      %v3724 = vsel %vm1139, %v3721, %v3723
      %v3725 = vrot.slane %v998, 7
      %v3726 = vsel %vm1139, %v3723, %v3725
      %v3727 = vrot.slane %v999, 7
      %v3728 = vsel %vm1139, %v3725, %v3727
      %v3729 = vrot.slane %v1000, 7
      %v3730 = vsel %vm1139, %v3727, %v3729
      %v3731 = vrot.slane %v1001, 7
      %v3732 = vsel %vm1139, %v3729, %v3731
      %v3733 = vrot.slane %v1002, 7
      %v3734 = vsel %vm1139, %v3731, %v3733
      %v3735 = vrot.slane %v1003, 7
      %v3736 = vrot.slane %v1004, 7
      %v3737 = vsel %vm1139, %v3735, %v3736
      %v3738 = vrot.slane %v1005, 7
      %v3739 = vsel %vm1139, %v3736, %v3738
      %v3740 = vrot.slane %v1006, 7
      %v3741 = vsel %vm1139, %v3738, %v3740
      %v3742 = vrot.slane %v1007, 7
      %v3743 = vsel %vm1139, %v3740, %v3742
      %v3744 = vrot.slane %v1008, 7
      %v3745 = vsel %vm1139, %v3742, %v3744
      %v3746 = vrot.slane %v1009, 7
      %v3747 = vsel %vm1139, %v3744, %v3746
      %v3748 = vrot.slane %v1010, 7
      %v3749 = vsel %vm1139, %v3746, %v3748
      %v3878 = vsel %vm1139, %v883, %v3510
      %v3879 = vsel %vm1139, %v891, %v3525
      %v3880 = vsel %vm1139, %v899, %v3540
      %v3881 = vsel %vm1139, %v907, %v3555
      %v3882 = vsel %vm1139, %v915, %v3570
      %v3883 = vsel %vm1139, %v923, %v3585
      %v3884 = vsel %vm1139, %v931, %v3600
      %v3885 = vsel %vm1139, %v939, %v3615
      %v3886 = vsel %vm1139, %v947, %v3630
      %v3887 = vsel %vm1139, %v955, %v3645
      %v3888 = vsel %vm1139, %v963, %v3660
      %v3889 = vsel %vm1139, %v971, %v3675
      %v3890 = vsel %vm1139, %v979, %v3690
      %v3891 = vsel %vm1139, %v987, %v3705
      %v3892 = vsel %vm1139, %v995, %v3720
      %v3893 = vsel %vm1139, %v1003, %v3735
      %v3910 = vmul.f32 %v883, 0.75
      %v3911 = vmul.f32 %v884, 0.75
      %v3912 = vmul.f32 %v885, 0.75
      %v3913 = vmul.f32 %v886, 0.75
      %v3914 = vmul.f32 %v887, 0.75
      %v3915 = vmul.f32 %v888, 0.75
      %v3916 = vmul.f32 %v889, 0.75
      %v3917 = vmul.f32 %v890, 0.75
      %v3918 = vmul.f32 %v891, 0.75
      %v3919 = vmul.f32 %v892, 0.75
      %v3920 = vmul.f32 %v893, 0.75
      %v3921 = vmul.f32 %v894, 0.75
      %v3922 = vmul.f32 %v895, 0.75
      %v3923 = vmul.f32 %v896, 0.75
      %v3924 = vmul.f32 %v897, 0.75
      %v3925 = vmul.f32 %v898, 0.75
      %v3926 = vmul.f32 %v899, 0.75
      %v3927 = vmul.f32 %v900, 0.75
      %v3928 = vmul.f32 %v901, 0.75
      %v3929 = vmul.f32 %v902, 0.75
      %v3930 = vmul.f32 %v903, 0.75
      %v3931 = vmul.f32 %v904, 0.75
      %v3932 = vmul.f32 %v905, 0.75
      %v3933 = vmul.f32 %v906, 0.75
      %v3934 = vmul.f32 %v907, 0.75
      %v3935 = vmul.f32 %v908, 0.75
      %v3936 = vmul.f32 %v909, 0.75
      %v3937 = vmul.f32 %v910, 0.75
      %v3938 = vmul.f32 %v911, 0.75
      %v3939 = vmul.f32 %v912, 0.75
      %v3940 = vmul.f32 %v913, 0.75
      %v3941 = vmul.f32 %v914, 0.75
      %v3942 = vmul.f32 %v915, 0.75
      %v3943 = vmul.f32 %v916, 0.75
      %v3944 = vmul.f32 %v917, 0.75
      %v3945 = vmul.f32 %v918, 0.75
      %v3946 = vmul.f32 %v919, 0.75
      %v3947 = vmul.f32 %v920, 0.75
      %v3948 = vmul.f32 %v921, 0.75
      %v3949 = vmul.f32 %v922, 0.75
      %v3950 = vmul.f32 %v923, 0.75
      %v3951 = vmul.f32 %v924, 0.75
      %v3952 = vmul.f32 %v925, 0.75
      %v3953 = vmul.f32 %v926, 0.75
      %v3954 = vmul.f32 %v927, 0.75
      %v3955 = vmul.f32 %v928, 0.75
      %v3956 = vmul.f32 %v929, 0.75
      %v3957 = vmul.f32 %v930, 0.75
      %v3958 = vmul.f32 %v931, 0.75
      %v3959 = vmul.f32 %v932, 0.75
      %v3960 = vmul.f32 %v933, 0.75
      %v3961 = vmul.f32 %v934, 0.75
      %v3962 = vmul.f32 %v935, 0.75
      %v3963 = vmul.f32 %v936, 0.75
      %v3964 = vmul.f32 %v937, 0.75
      %v3965 = vmul.f32 %v938, 0.75
      %v3966 = vmul.f32 %v939, 0.75
      %v3967 = vmul.f32 %v940, 0.75
      %v3968 = vmul.f32 %v941, 0.75
      %v3969 = vmul.f32 %v942, 0.75
      %v3970 = vmul.f32 %v943, 0.75
      %v3971 = vmul.f32 %v944, 0.75
      %v3972 = vmul.f32 %v945, 0.75
      %v3973 = vmul.f32 %v946, 0.75
      %v3974 = vmul.f32 %v947, 0.75
      %v3975 = vmul.f32 %v948, 0.75
      %v3976 = vmul.f32 %v949, 0.75
      %v3977 = vmul.f32 %v950, 0.75
      %v3978 = vmul.f32 %v951, 0.75
      %v3979 = vmul.f32 %v952, 0.75
      %v3980 = vmul.f32 %v953, 0.75
      %v3981 = vmul.f32 %v954, 0.75
      %v3982 = vmul.f32 %v955, 0.75
      %v3983 = vmul.f32 %v956, 0.75
      %v3984 = vmul.f32 %v957, 0.75
      %v3985 = vmul.f32 %v958, 0.75
      %v3986 = vmul.f32 %v959, 0.75
      %v3987 = vmul.f32 %v960, 0.75
      %v3988 = vmul.f32 %v961, 0.75
      %v3989 = vmul.f32 %v962, 0.75
      %v3990 = vmul.f32 %v963, 0.75
      %v3991 = vmul.f32 %v964, 0.75
      %v3992 = vmul.f32 %v965, 0.75
      %v3993 = vmul.f32 %v966, 0.75
      %v3994 = vmul.f32 %v967, 0.75
      %v3995 = vmul.f32 %v968, 0.75
      %v3996 = vmul.f32 %v969, 0.75
      %v3997 = vmul.f32 %v970, 0.75
      %v3998 = vmul.f32 %v971, 0.75
      %v3999 = vmul.f32 %v972, 0.75
      %v4000 = vmul.f32 %v973, 0.75
      %v4001 = vmul.f32 %v974, 0.75
      %v4002 = vmul.f32 %v975, 0.75
      %v4003 = vmul.f32 %v976, 0.75
      %v4004 = vmul.f32 %v977, 0.75
      %v4005 = vmul.f32 %v978, 0.75
      %v4006 = vmul.f32 %v979, 0.75
      %v4007 = vmul.f32 %v980, 0.75
      %v4008 = vmul.f32 %v981, 0.75
      %v4009 = vmul.f32 %v982, 0.75
      %v4010 = vmul.f32 %v983, 0.75
      %v4011 = vmul.f32 %v984, 0.75
      %v4012 = vmul.f32 %v985, 0.75
      %v4013 = vmul.f32 %v986, 0.75
      %v4014 = vmul.f32 %v987, 0.75
      %v4015 = vmul.f32 %v988, 0.75
      %v4016 = vmul.f32 %v989, 0.75
      %v4017 = vmul.f32 %v990, 0.75
      %v4018 = vmul.f32 %v991, 0.75
      %v4019 = vmul.f32 %v992, 0.75
      %v4020 = vmul.f32 %v993, 0.75
      %v4021 = vmul.f32 %v994, 0.75
      %v4022 = vmul.f32 %v995, 0.75
      %v4023 = vmul.f32 %v996, 0.75
      %v4024 = vmul.f32 %v997, 0.75
      %v4025 = vmul.f32 %v998, 0.75
      %v4026 = vmul.f32 %v999, 0.75
      %v4027 = vmul.f32 %v1000, 0.75
      %v4028 = vmul.f32 %v1001, 0.75
      %v4029 = vmul.f32 %v1002, 0.75
      %v4030 = vmul.f32 %v1003, 0.75
      %v4031 = vmul.f32 %v1004, 0.75
      %v4032 = vmul.f32 %v1005, 0.75
      %v4033 = vmul.f32 %v1006, 0.75
      %v4034 = vmul.f32 %v1007, 0.75
      %v4035 = vmul.f32 %v1008, 0.75
      %v4036 = vmul.f32 %v1009, 0.75
      %v4037 = vmul.f32 %v1010, 0.75
      %v4038 = vmul.f32 %v3878, 0.25
      %v4039 = vmul.f32 %v3512, 0.25
      %v4040 = vmul.f32 %v3514, 0.25
      %v4041 = vmul.f32 %v3516, 0.25
      %v4042 = vmul.f32 %v3518, 0.25
      %v4043 = vmul.f32 %v3520, 0.25
      %v4044 = vmul.f32 %v3522, 0.25
      %v4045 = vmul.f32 %v3524, 0.25
      %v4046 = vmul.f32 %v3879, 0.25
      %v4047 = vmul.f32 %v3527, 0.25
      %v4048 = vmul.f32 %v3529, 0.25
      %v4049 = vmul.f32 %v3531, 0.25
      %v4050 = vmul.f32 %v3533, 0.25
      %v4051 = vmul.f32 %v3535, 0.25
      %v4052 = vmul.f32 %v3537, 0.25
      %v4053 = vmul.f32 %v3539, 0.25
      %v4054 = vmul.f32 %v3880, 0.25
      %v4055 = vmul.f32 %v3542, 0.25
      %v4056 = vmul.f32 %v3544, 0.25
      %v4057 = vmul.f32 %v3546, 0.25
      %v4058 = vmul.f32 %v3548, 0.25
      %v4059 = vmul.f32 %v3550, 0.25
      %v4060 = vmul.f32 %v3552, 0.25
      %v4061 = vmul.f32 %v3554, 0.25
      %v4062 = vmul.f32 %v3881, 0.25
      %v4063 = vmul.f32 %v3557, 0.25
      %v4064 = vmul.f32 %v3559, 0.25
      %v4065 = vmul.f32 %v3561, 0.25
      %v4066 = vmul.f32 %v3563, 0.25
      %v4067 = vmul.f32 %v3565, 0.25
      %v4068 = vmul.f32 %v3567, 0.25
      %v4069 = vmul.f32 %v3569, 0.25
      %v4070 = vmul.f32 %v3882, 0.25
      %v4071 = vmul.f32 %v3572, 0.25
      %v4072 = vmul.f32 %v3574, 0.25
      %v4073 = vmul.f32 %v3576, 0.25
      %v4074 = vmul.f32 %v3578, 0.25
      %v4075 = vmul.f32 %v3580, 0.25
      %v4076 = vmul.f32 %v3582, 0.25
      %v4077 = vmul.f32 %v3584, 0.25
      %v4078 = vmul.f32 %v3883, 0.25
      %v4079 = vmul.f32 %v3587, 0.25
      %v4080 = vmul.f32 %v3589, 0.25
      %v4081 = vmul.f32 %v3591, 0.25
      %v4082 = vmul.f32 %v3593, 0.25
      %v4083 = vmul.f32 %v3595, 0.25
      %v4084 = vmul.f32 %v3597, 0.25
      %v4085 = vmul.f32 %v3599, 0.25
      %v4086 = vmul.f32 %v3884, 0.25
      %v4087 = vmul.f32 %v3602, 0.25
      %v4088 = vmul.f32 %v3604, 0.25
      %v4089 = vmul.f32 %v3606, 0.25
      %v4090 = vmul.f32 %v3608, 0.25
      %v4091 = vmul.f32 %v3610, 0.25
      %v4092 = vmul.f32 %v3612, 0.25
      %v4093 = vmul.f32 %v3614, 0.25
      %v4094 = vmul.f32 %v3885, 0.25
      %v4095 = vmul.f32 %v3617, 0.25
      %v4096 = vmul.f32 %v3619, 0.25
      %v4097 = vmul.f32 %v3621, 0.25
      %v4098 = vmul.f32 %v3623, 0.25
      %v4099 = vmul.f32 %v3625, 0.25
      %v4100 = vmul.f32 %v3627, 0.25
      %v4101 = vmul.f32 %v3629, 0.25
      %v4102 = vmul.f32 %v3886, 0.25
      %v4103 = vmul.f32 %v3632, 0.25
      %v4104 = vmul.f32 %v3634, 0.25
      %v4105 = vmul.f32 %v3636, 0.25
      %v4106 = vmul.f32 %v3638, 0.25
      %v4107 = vmul.f32 %v3640, 0.25
      %v4108 = vmul.f32 %v3642, 0.25
      %v4109 = vmul.f32 %v3644, 0.25
      %v4110 = vmul.f32 %v3887, 0.25
      %v4111 = vmul.f32 %v3647, 0.25
      %v4112 = vmul.f32 %v3649, 0.25
      %v4113 = vmul.f32 %v3651, 0.25
      %v4114 = vmul.f32 %v3653, 0.25
      %v4115 = vmul.f32 %v3655, 0.25
      %v4116 = vmul.f32 %v3657, 0.25
      %v4117 = vmul.f32 %v3659, 0.25
      %v4118 = vmul.f32 %v3888, 0.25
      %v4119 = vmul.f32 %v3662, 0.25
      %v4120 = vmul.f32 %v3664, 0.25
      %v4121 = vmul.f32 %v3666, 0.25
      %v4122 = vmul.f32 %v3668, 0.25
      %v4123 = vmul.f32 %v3670, 0.25
      %v4124 = vmul.f32 %v3672, 0.25
      %v4125 = vmul.f32 %v3674, 0.25
      %v4126 = vmul.f32 %v3889, 0.25
      %v4127 = vmul.f32 %v3677, 0.25
      %v4128 = vmul.f32 %v3679, 0.25
      %v4129 = vmul.f32 %v3681, 0.25
      %v4130 = vmul.f32 %v3683, 0.25
      %v4131 = vmul.f32 %v3685, 0.25
      %v4132 = vmul.f32 %v3687, 0.25
      %v4133 = vmul.f32 %v3689, 0.25
      %v4134 = vmul.f32 %v3890, 0.25
      %v4135 = vmul.f32 %v3692, 0.25
      %v4136 = vmul.f32 %v3694, 0.25
      %v4137 = vmul.f32 %v3696, 0.25
      %v4138 = vmul.f32 %v3698, 0.25
      %v4139 = vmul.f32 %v3700, 0.25
      %v4140 = vmul.f32 %v3702, 0.25
      %v4141 = vmul.f32 %v3704, 0.25
      %v4142 = vmul.f32 %v3891, 0.25
      %v4143 = vmul.f32 %v3707, 0.25
      %v4144 = vmul.f32 %v3709, 0.25
      %v4145 = vmul.f32 %v3711, 0.25
      %v4146 = vmul.f32 %v3713, 0.25
      %v4147 = vmul.f32 %v3715, 0.25
      %v4148 = vmul.f32 %v3717, 0.25
      %v4149 = vmul.f32 %v3719, 0.25
      %v4150 = vmul.f32 %v3892, 0.25
      %v4151 = vmul.f32 %v3722, 0.25
      %v4152 = vmul.f32 %v3724, 0.25
      %v4153 = vmul.f32 %v3726, 0.25
      %v4154 = vmul.f32 %v3728, 0.25
      %v4155 = vmul.f32 %v3730, 0.25
      %v4156 = vmul.f32 %v3732, 0.25
      %v4157 = vmul.f32 %v3734, 0.25
      %v4158 = vmul.f32 %v3893, 0.25
      %v4159 = vmul.f32 %v3737, 0.25
      %v4160 = vmul.f32 %v3739, 0.25
      %v4161 = vmul.f32 %v3741, 0.25
      %v4162 = vmul.f32 %v3743, 0.25
      %v4163 = vmul.f32 %v3745, 0.25
      %v4164 = vmul.f32 %v3747, 0.25
      %v4165 = vmul.f32 %v3749, 0.25
      %v4166 = vadd.f32 %v3910, %v4038
      %v4167 = vadd.f32 %v3911, %v4039
      %v4168 = vadd.f32 %v3912, %v4040
      %v4169 = vadd.f32 %v3913, %v4041
      %v4170 = vadd.f32 %v3914, %v4042
      %v4171 = vadd.f32 %v3915, %v4043
      %v4172 = vadd.f32 %v3916, %v4044
      %v4173 = vadd.f32 %v3917, %v4045
      %v4174 = vadd.f32 %v3918, %v4046
      %v4175 = vadd.f32 %v3919, %v4047
      %v4176 = vadd.f32 %v3920, %v4048
      %v4177 = vadd.f32 %v3921, %v4049
      %v4178 = vadd.f32 %v3922, %v4050
      %v4179 = vadd.f32 %v3923, %v4051
      %v4180 = vadd.f32 %v3924, %v4052
      %v4181 = vadd.f32 %v3925, %v4053
      %v4182 = vadd.f32 %v3926, %v4054
      %v4183 = vadd.f32 %v3927, %v4055
      %v4184 = vadd.f32 %v3928, %v4056
      %v4185 = vadd.f32 %v3929, %v4057
      %v4186 = vadd.f32 %v3930, %v4058
      %v4187 = vadd.f32 %v3931, %v4059
      %v4188 = vadd.f32 %v3932, %v4060
      %v4189 = vadd.f32 %v3933, %v4061
      %v4190 = vadd.f32 %v3934, %v4062
      %v4191 = vadd.f32 %v3935, %v4063
      %v4192 = vadd.f32 %v3936, %v4064
      %v4193 = vadd.f32 %v3937, %v4065
      %v4194 = vadd.f32 %v3938, %v4066
      %v4195 = vadd.f32 %v3939, %v4067
      %v4196 = vadd.f32 %v3940, %v4068
      %v4197 = vadd.f32 %v3941, %v4069
      %v4198 = vadd.f32 %v3942, %v4070
      %v4199 = vadd.f32 %v3943, %v4071
      %v4200 = vadd.f32 %v3944, %v4072
      %v4201 = vadd.f32 %v3945, %v4073
      %v4202 = vadd.f32 %v3946, %v4074
      %v4203 = vadd.f32 %v3947, %v4075
      %v4204 = vadd.f32 %v3948, %v4076
      %v4205 = vadd.f32 %v3949, %v4077
      %v4206 = vadd.f32 %v3950, %v4078
      %v4207 = vadd.f32 %v3951, %v4079
      %v4208 = vadd.f32 %v3952, %v4080
      %v4209 = vadd.f32 %v3953, %v4081
      %v4210 = vadd.f32 %v3954, %v4082
      %v4211 = vadd.f32 %v3955, %v4083
      %v4212 = vadd.f32 %v3956, %v4084
      %v4213 = vadd.f32 %v3957, %v4085
      %v4214 = vadd.f32 %v3958, %v4086
      %v4215 = vadd.f32 %v3959, %v4087
      %v4216 = vadd.f32 %v3960, %v4088
      %v4217 = vadd.f32 %v3961, %v4089
      %v4218 = vadd.f32 %v3962, %v4090
      %v4219 = vadd.f32 %v3963, %v4091
      %v4220 = vadd.f32 %v3964, %v4092
      %v4221 = vadd.f32 %v3965, %v4093
      %v4222 = vadd.f32 %v3966, %v4094
      %v4223 = vadd.f32 %v3967, %v4095
      %v4224 = vadd.f32 %v3968, %v4096
      %v4225 = vadd.f32 %v3969, %v4097
      %v4226 = vadd.f32 %v3970, %v4098
      %v4227 = vadd.f32 %v3971, %v4099
      %v4228 = vadd.f32 %v3972, %v4100
      %v4229 = vadd.f32 %v3973, %v4101
      %v4230 = vadd.f32 %v3974, %v4102
      %v4231 = vadd.f32 %v3975, %v4103
      %v4232 = vadd.f32 %v3976, %v4104
      %v4233 = vadd.f32 %v3977, %v4105
      %v4234 = vadd.f32 %v3978, %v4106
      %v4235 = vadd.f32 %v3979, %v4107
      %v4236 = vadd.f32 %v3980, %v4108
      %v4237 = vadd.f32 %v3981, %v4109
      %v4238 = vadd.f32 %v3982, %v4110
      %v4239 = vadd.f32 %v3983, %v4111
      %v4240 = vadd.f32 %v3984, %v4112
      %v4241 = vadd.f32 %v3985, %v4113
      %v4242 = vadd.f32 %v3986, %v4114
      %v4243 = vadd.f32 %v3987, %v4115
      %v4244 = vadd.f32 %v3988, %v4116
      %v4245 = vadd.f32 %v3989, %v4117
      %v4246 = vadd.f32 %v3990, %v4118
      %v4247 = vadd.f32 %v3991, %v4119
      %v4248 = vadd.f32 %v3992, %v4120
      %v4249 = vadd.f32 %v3993, %v4121
      %v4250 = vadd.f32 %v3994, %v4122
      %v4251 = vadd.f32 %v3995, %v4123
      %v4252 = vadd.f32 %v3996, %v4124
      %v4253 = vadd.f32 %v3997, %v4125
      %v4254 = vadd.f32 %v3998, %v4126
      %v4255 = vadd.f32 %v3999, %v4127
      %v4256 = vadd.f32 %v4000, %v4128
      %v4257 = vadd.f32 %v4001, %v4129
      %v4258 = vadd.f32 %v4002, %v4130
      %v4259 = vadd.f32 %v4003, %v4131
      %v4260 = vadd.f32 %v4004, %v4132
      %v4261 = vadd.f32 %v4005, %v4133
      %v4262 = vadd.f32 %v4006, %v4134
      %v4263 = vadd.f32 %v4007, %v4135
      %v4264 = vadd.f32 %v4008, %v4136
      %v4265 = vadd.f32 %v4009, %v4137
      %v4266 = vadd.f32 %v4010, %v4138
      %v4267 = vadd.f32 %v4011, %v4139
      %v4268 = vadd.f32 %v4012, %v4140
      %v4269 = vadd.f32 %v4013, %v4141
      %v4270 = vadd.f32 %v4014, %v4142
      %v4271 = vadd.f32 %v4015, %v4143
      %v4272 = vadd.f32 %v4016, %v4144
      %v4273 = vadd.f32 %v4017, %v4145
      %v4274 = vadd.f32 %v4018, %v4146
      %v4275 = vadd.f32 %v4019, %v4147
      %v4276 = vadd.f32 %v4020, %v4148
      %v4277 = vadd.f32 %v4021, %v4149
      %v4278 = vadd.f32 %v4022, %v4150
      %v4279 = vadd.f32 %v4023, %v4151
      %v4280 = vadd.f32 %v4024, %v4152
      %v4281 = vadd.f32 %v4025, %v4153
      %v4282 = vadd.f32 %v4026, %v4154
      %v4283 = vadd.f32 %v4027, %v4155
      %v4284 = vadd.f32 %v4028, %v4156
      %v4285 = vadd.f32 %v4029, %v4157
      %v4286 = vadd.f32 %v4030, %v4158
      %v4287 = vadd.f32 %v4031, %v4159
      %v4288 = vadd.f32 %v4032, %v4160
      %v4289 = vadd.f32 %v4033, %v4161
      %v4290 = vadd.f32 %v4034, %v4162
      %v4291 = vadd.f32 %v4035, %v4163
      %v4292 = vadd.f32 %v4036, %v4164
      %v4293 = vadd.f32 %v4037, %v4165
      %v4294 = vmul.f32 %v883, 0.25
      %v4295 = vmul.f32 %v884, 0.25
      %v4296 = vmul.f32 %v885, 0.25
      %v4297 = vmul.f32 %v886, 0.25
      %v4298 = vmul.f32 %v887, 0.25
      %v4299 = vmul.f32 %v888, 0.25
      %v4300 = vmul.f32 %v889, 0.25
      %v4301 = vmul.f32 %v890, 0.25
      %v4302 = vmul.f32 %v3523, 0.25
      %v4303 = vmul.f32 %v891, 0.25
      %v4304 = vmul.f32 %v892, 0.25
      %v4305 = vmul.f32 %v893, 0.25
      %v4306 = vmul.f32 %v894, 0.25
      %v4307 = vmul.f32 %v895, 0.25
      %v4308 = vmul.f32 %v896, 0.25
      %v4309 = vmul.f32 %v897, 0.25
      %v4310 = vmul.f32 %v898, 0.25
      %v4311 = vmul.f32 %v3538, 0.25
      %v4312 = vmul.f32 %v899, 0.25
      %v4313 = vmul.f32 %v900, 0.25
      %v4314 = vmul.f32 %v901, 0.25
      %v4315 = vmul.f32 %v902, 0.25
      %v4316 = vmul.f32 %v903, 0.25
      %v4317 = vmul.f32 %v904, 0.25
      %v4318 = vmul.f32 %v905, 0.25
      %v4319 = vmul.f32 %v906, 0.25
      %v4320 = vmul.f32 %v3553, 0.25
      %v4321 = vmul.f32 %v907, 0.25
      %v4322 = vmul.f32 %v908, 0.25
      %v4323 = vmul.f32 %v909, 0.25
      %v4324 = vmul.f32 %v910, 0.25
      %v4325 = vmul.f32 %v911, 0.25
      %v4326 = vmul.f32 %v912, 0.25
      %v4327 = vmul.f32 %v913, 0.25
      %v4328 = vmul.f32 %v914, 0.25
      %v4329 = vmul.f32 %v3568, 0.25
      %v4330 = vmul.f32 %v915, 0.25
      %v4331 = vmul.f32 %v916, 0.25
      %v4332 = vmul.f32 %v917, 0.25
      %v4333 = vmul.f32 %v918, 0.25
      %v4334 = vmul.f32 %v919, 0.25
      %v4335 = vmul.f32 %v920, 0.25
      %v4336 = vmul.f32 %v921, 0.25
      %v4337 = vmul.f32 %v922, 0.25
      %v4338 = vmul.f32 %v3583, 0.25
      %v4339 = vmul.f32 %v923, 0.25
      %v4340 = vmul.f32 %v924, 0.25
      %v4341 = vmul.f32 %v925, 0.25
      %v4342 = vmul.f32 %v926, 0.25
      %v4343 = vmul.f32 %v927, 0.25
      %v4344 = vmul.f32 %v928, 0.25
      %v4345 = vmul.f32 %v929, 0.25
      %v4346 = vmul.f32 %v930, 0.25
      %v4347 = vmul.f32 %v3598, 0.25
      %v4348 = vmul.f32 %v931, 0.25
      %v4349 = vmul.f32 %v932, 0.25
      %v4350 = vmul.f32 %v933, 0.25
      %v4351 = vmul.f32 %v934, 0.25
      %v4352 = vmul.f32 %v935, 0.25
      %v4353 = vmul.f32 %v936, 0.25
      %v4354 = vmul.f32 %v937, 0.25
      %v4355 = vmul.f32 %v938, 0.25
      %v4356 = vmul.f32 %v3613, 0.25
      %v4357 = vmul.f32 %v939, 0.25
      %v4358 = vmul.f32 %v940, 0.25
      %v4359 = vmul.f32 %v941, 0.25
      %v4360 = vmul.f32 %v942, 0.25
      %v4361 = vmul.f32 %v943, 0.25
      %v4362 = vmul.f32 %v944, 0.25
      %v4363 = vmul.f32 %v945, 0.25
      %v4364 = vmul.f32 %v946, 0.25
      %v4365 = vmul.f32 %v3628, 0.25
      %v4366 = vmul.f32 %v947, 0.25
      %v4367 = vmul.f32 %v948, 0.25
      %v4368 = vmul.f32 %v949, 0.25
      %v4369 = vmul.f32 %v950, 0.25
      %v4370 = vmul.f32 %v951, 0.25
      %v4371 = vmul.f32 %v952, 0.25
      %v4372 = vmul.f32 %v953, 0.25
      %v4373 = vmul.f32 %v954, 0.25
      %v4374 = vmul.f32 %v3643, 0.25
      %v4375 = vmul.f32 %v955, 0.25
      %v4376 = vmul.f32 %v956, 0.25
      %v4377 = vmul.f32 %v957, 0.25
      %v4378 = vmul.f32 %v958, 0.25
      %v4379 = vmul.f32 %v959, 0.25
      %v4380 = vmul.f32 %v960, 0.25
      %v4381 = vmul.f32 %v961, 0.25
      %v4382 = vmul.f32 %v962, 0.25
      %v4383 = vmul.f32 %v3658, 0.25
      %v4384 = vmul.f32 %v963, 0.25
      %v4385 = vmul.f32 %v964, 0.25
      %v4386 = vmul.f32 %v965, 0.25
      %v4387 = vmul.f32 %v966, 0.25
      %v4388 = vmul.f32 %v967, 0.25
      %v4389 = vmul.f32 %v968, 0.25
      %v4390 = vmul.f32 %v969, 0.25
      %v4391 = vmul.f32 %v970, 0.25
      %v4392 = vmul.f32 %v3673, 0.25
      %v4393 = vmul.f32 %v971, 0.25
      %v4394 = vmul.f32 %v972, 0.25
      %v4395 = vmul.f32 %v973, 0.25
      %v4396 = vmul.f32 %v974, 0.25
      %v4397 = vmul.f32 %v975, 0.25
      %v4398 = vmul.f32 %v976, 0.25
      %v4399 = vmul.f32 %v977, 0.25
      %v4400 = vmul.f32 %v978, 0.25
      %v4401 = vmul.f32 %v3688, 0.25
      %v4402 = vmul.f32 %v979, 0.25
      %v4403 = vmul.f32 %v980, 0.25
      %v4404 = vmul.f32 %v981, 0.25
      %v4405 = vmul.f32 %v982, 0.25
      %v4406 = vmul.f32 %v983, 0.25
      %v4407 = vmul.f32 %v984, 0.25
      %v4408 = vmul.f32 %v985, 0.25
      %v4409 = vmul.f32 %v986, 0.25
      %v4410 = vmul.f32 %v3703, 0.25
      %v4411 = vmul.f32 %v987, 0.25
      %v4412 = vmul.f32 %v988, 0.25
      %v4413 = vmul.f32 %v989, 0.25
      %v4414 = vmul.f32 %v990, 0.25
      %v4415 = vmul.f32 %v991, 0.25
      %v4416 = vmul.f32 %v992, 0.25
      %v4417 = vmul.f32 %v993, 0.25
      %v4418 = vmul.f32 %v994, 0.25
      %v4419 = vmul.f32 %v3718, 0.25
      %v4420 = vmul.f32 %v995, 0.25
      %v4421 = vmul.f32 %v996, 0.25
      %v4422 = vmul.f32 %v997, 0.25
      %v4423 = vmul.f32 %v998, 0.25
      %v4424 = vmul.f32 %v999, 0.25
      %v4425 = vmul.f32 %v1000, 0.25
      %v4426 = vmul.f32 %v1001, 0.25
      %v4427 = vmul.f32 %v1002, 0.25
      %v4428 = vmul.f32 %v3733, 0.25
      %v4429 = vmul.f32 %v1003, 0.25
      %v4430 = vmul.f32 %v1004, 0.25
      %v4431 = vmul.f32 %v1005, 0.25
      %v4432 = vmul.f32 %v1006, 0.25
      %v4433 = vmul.f32 %v1007, 0.25
      %v4434 = vmul.f32 %v1008, 0.25
      %v4435 = vmul.f32 %v1009, 0.25
      %v4436 = vmul.f32 %v1010, 0.25
      %v4437 = vmul.f32 %v3748, 0.25
      %v4582 = vrot.slane %v4294, 1
      %v4583 = vrot.slane %v4295, 1
      %v4584 = vsel %vm2212, %v4582, %v4583
      %v4585 = vrot.slane %v4296, 1
      %v4586 = vsel %vm2212, %v4583, %v4585
      %v4587 = vrot.slane %v4297, 1
      %v4588 = vsel %vm2212, %v4585, %v4587
      %v4589 = vrot.slane %v4298, 1
      %v4590 = vsel %vm2212, %v4587, %v4589
      %v4591 = vrot.slane %v4299, 1
      %v4592 = vsel %vm2212, %v4589, %v4591
      %v4593 = vrot.slane %v4300, 1
      %v4594 = vsel %vm2212, %v4591, %v4593
      %v4595 = vrot.slane %v4301, 1
      %v4596 = vsel %vm2212, %v4593, %v4595
      %v4597 = vrot.slane %v4302, 1
      %v4598 = vsel %vm2212, %v4595, %v4597
      %v4599 = vrot.slane %v4303, 1
      %v4600 = vrot.slane %v4304, 1
      %v4601 = vsel %vm2212, %v4599, %v4600
      %v4602 = vrot.slane %v4305, 1
      %v4603 = vsel %vm2212, %v4600, %v4602
      %v4604 = vrot.slane %v4306, 1
      %v4605 = vsel %vm2212, %v4602, %v4604
      %v4606 = vrot.slane %v4307, 1
      %v4607 = vsel %vm2212, %v4604, %v4606
      %v4608 = vrot.slane %v4308, 1
      %v4609 = vsel %vm2212, %v4606, %v4608
      %v4610 = vrot.slane %v4309, 1
      %v4611 = vsel %vm2212, %v4608, %v4610
      %v4612 = vrot.slane %v4310, 1
      %v4613 = vsel %vm2212, %v4610, %v4612
      %v4614 = vrot.slane %v4311, 1
      %v4615 = vsel %vm2212, %v4612, %v4614
      %v4616 = vrot.slane %v4312, 1
      %v4617 = vrot.slane %v4313, 1
      %v4618 = vsel %vm2212, %v4616, %v4617
      %v4619 = vrot.slane %v4314, 1
      %v4620 = vsel %vm2212, %v4617, %v4619
      %v4621 = vrot.slane %v4315, 1
      %v4622 = vsel %vm2212, %v4619, %v4621
      %v4623 = vrot.slane %v4316, 1
      %v4624 = vsel %vm2212, %v4621, %v4623
      %v4625 = vrot.slane %v4317, 1
      %v4626 = vsel %vm2212, %v4623, %v4625
      %v4627 = vrot.slane %v4318, 1
      %v4628 = vsel %vm2212, %v4625, %v4627
      %v4629 = vrot.slane %v4319, 1
      %v4630 = vsel %vm2212, %v4627, %v4629
      %v4631 = vrot.slane %v4320, 1
      %v4632 = vsel %vm2212, %v4629, %v4631
      %v4633 = vrot.slane %v4321, 1
      %v4634 = vrot.slane %v4322, 1
      %v4635 = vsel %vm2212, %v4633, %v4634
      %v4636 = vrot.slane %v4323, 1
      %v4637 = vsel %vm2212, %v4634, %v4636
      %v4638 = vrot.slane %v4324, 1
      %v4639 = vsel %vm2212, %v4636, %v4638
      %v4640 = vrot.slane %v4325, 1
      %v4641 = vsel %vm2212, %v4638, %v4640
      %v4642 = vrot.slane %v4326, 1
      %v4643 = vsel %vm2212, %v4640, %v4642
      %v4644 = vrot.slane %v4327, 1
      %v4645 = vsel %vm2212, %v4642, %v4644
      %v4646 = vrot.slane %v4328, 1
      %v4647 = vsel %vm2212, %v4644, %v4646
      %v4648 = vrot.slane %v4329, 1
      %v4649 = vsel %vm2212, %v4646, %v4648
      %v4650 = vrot.slane %v4330, 1
      %v4651 = vrot.slane %v4331, 1
      %v4652 = vsel %vm2212, %v4650, %v4651
      %v4653 = vrot.slane %v4332, 1
      %v4654 = vsel %vm2212, %v4651, %v4653
      %v4655 = vrot.slane %v4333, 1
      %v4656 = vsel %vm2212, %v4653, %v4655
      %v4657 = vrot.slane %v4334, 1
      %v4658 = vsel %vm2212, %v4655, %v4657
      %v4659 = vrot.slane %v4335, 1
      %v4660 = vsel %vm2212, %v4657, %v4659
      %v4661 = vrot.slane %v4336, 1
      %v4662 = vsel %vm2212, %v4659, %v4661
      %v4663 = vrot.slane %v4337, 1
      %v4664 = vsel %vm2212, %v4661, %v4663
      %v4665 = vrot.slane %v4338, 1
      %v4666 = vsel %vm2212, %v4663, %v4665
      %v4667 = vrot.slane %v4339, 1
      %v4668 = vrot.slane %v4340, 1
      %v4669 = vsel %vm2212, %v4667, %v4668
      %v4670 = vrot.slane %v4341, 1
      %v4671 = vsel %vm2212, %v4668, %v4670
      %v4672 = vrot.slane %v4342, 1
      %v4673 = vsel %vm2212, %v4670, %v4672
      %v4674 = vrot.slane %v4343, 1
      %v4675 = vsel %vm2212, %v4672, %v4674
      %v4676 = vrot.slane %v4344, 1
      %v4677 = vsel %vm2212, %v4674, %v4676
      %v4678 = vrot.slane %v4345, 1
      %v4679 = vsel %vm2212, %v4676, %v4678
      %v4680 = vrot.slane %v4346, 1
      %v4681 = vsel %vm2212, %v4678, %v4680
      %v4682 = vrot.slane %v4347, 1
      %v4683 = vsel %vm2212, %v4680, %v4682
      %v4684 = vrot.slane %v4348, 1
      %v4685 = vrot.slane %v4349, 1
      %v4686 = vsel %vm2212, %v4684, %v4685
      %v4687 = vrot.slane %v4350, 1
      %v4688 = vsel %vm2212, %v4685, %v4687
      %v4689 = vrot.slane %v4351, 1
      %v4690 = vsel %vm2212, %v4687, %v4689
      %v4691 = vrot.slane %v4352, 1
      %v4692 = vsel %vm2212, %v4689, %v4691
      %v4693 = vrot.slane %v4353, 1
      %v4694 = vsel %vm2212, %v4691, %v4693
      %v4695 = vrot.slane %v4354, 1
      %v4696 = vsel %vm2212, %v4693, %v4695
      %v4697 = vrot.slane %v4355, 1
      %v4698 = vsel %vm2212, %v4695, %v4697
      %v4699 = vrot.slane %v4356, 1
      %v4700 = vsel %vm2212, %v4697, %v4699
      %v4701 = vrot.slane %v4357, 1
      %v4702 = vrot.slane %v4358, 1
      %v4703 = vsel %vm2212, %v4701, %v4702
      %v4704 = vrot.slane %v4359, 1
      %v4705 = vsel %vm2212, %v4702, %v4704
      %v4706 = vrot.slane %v4360, 1
      %v4707 = vsel %vm2212, %v4704, %v4706
      %v4708 = vrot.slane %v4361, 1
      %v4709 = vsel %vm2212, %v4706, %v4708
      %v4710 = vrot.slane %v4362, 1
      %v4711 = vsel %vm2212, %v4708, %v4710
      %v4712 = vrot.slane %v4363, 1
      %v4713 = vsel %vm2212, %v4710, %v4712
      %v4714 = vrot.slane %v4364, 1
      %v4715 = vsel %vm2212, %v4712, %v4714
      %v4716 = vrot.slane %v4365, 1
      %v4717 = vsel %vm2212, %v4714, %v4716
      %v4718 = vrot.slane %v4366, 1
      %v4719 = vrot.slane %v4367, 1
      %v4720 = vsel %vm2212, %v4718, %v4719
      %v4721 = vrot.slane %v4368, 1
      %v4722 = vsel %vm2212, %v4719, %v4721
      %v4723 = vrot.slane %v4369, 1
      %v4724 = vsel %vm2212, %v4721, %v4723
      %v4725 = vrot.slane %v4370, 1
      %v4726 = vsel %vm2212, %v4723, %v4725
      %v4727 = vrot.slane %v4371, 1
      %v4728 = vsel %vm2212, %v4725, %v4727
      %v4729 = vrot.slane %v4372, 1
      %v4730 = vsel %vm2212, %v4727, %v4729
      %v4731 = vrot.slane %v4373, 1
      %v4732 = vsel %vm2212, %v4729, %v4731
      %v4733 = vrot.slane %v4374, 1
      %v4734 = vsel %vm2212, %v4731, %v4733
      %v4735 = vrot.slane %v4375, 1
      %v4736 = vrot.slane %v4376, 1
      %v4737 = vsel %vm2212, %v4735, %v4736
      %v4738 = vrot.slane %v4377, 1
      %v4739 = vsel %vm2212, %v4736, %v4738
      %v4740 = vrot.slane %v4378, 1
      %v4741 = vsel %vm2212, %v4738, %v4740
      %v4742 = vrot.slane %v4379, 1
      %v4743 = vsel %vm2212, %v4740, %v4742
      %v4744 = vrot.slane %v4380, 1
      %v4745 = vsel %vm2212, %v4742, %v4744
      %v4746 = vrot.slane %v4381, 1
      %v4747 = vsel %vm2212, %v4744, %v4746
      %v4748 = vrot.slane %v4382, 1
      %v4749 = vsel %vm2212, %v4746, %v4748
      %v4750 = vrot.slane %v4383, 1
      %v4751 = vsel %vm2212, %v4748, %v4750
      %v4752 = vrot.slane %v4384, 1
      %v4753 = vrot.slane %v4385, 1
      %v4754 = vsel %vm2212, %v4752, %v4753
      %v4755 = vrot.slane %v4386, 1
      %v4756 = vsel %vm2212, %v4753, %v4755
      %v4757 = vrot.slane %v4387, 1
      %v4758 = vsel %vm2212, %v4755, %v4757
      %v4759 = vrot.slane %v4388, 1
      %v4760 = vsel %vm2212, %v4757, %v4759
      %v4761 = vrot.slane %v4389, 1
      %v4762 = vsel %vm2212, %v4759, %v4761
      %v4763 = vrot.slane %v4390, 1
      %v4764 = vsel %vm2212, %v4761, %v4763
      %v4765 = vrot.slane %v4391, 1
      %v4766 = vsel %vm2212, %v4763, %v4765
      %v4767 = vrot.slane %v4392, 1
      %v4768 = vsel %vm2212, %v4765, %v4767
      %v4769 = vrot.slane %v4393, 1
      %v4770 = vrot.slane %v4394, 1
      %v4771 = vsel %vm2212, %v4769, %v4770
      %v4772 = vrot.slane %v4395, 1
      %v4773 = vsel %vm2212, %v4770, %v4772
      %v4774 = vrot.slane %v4396, 1
      %v4775 = vsel %vm2212, %v4772, %v4774
      %v4776 = vrot.slane %v4397, 1
      %v4777 = vsel %vm2212, %v4774, %v4776
      %v4778 = vrot.slane %v4398, 1
      %v4779 = vsel %vm2212, %v4776, %v4778
      %v4780 = vrot.slane %v4399, 1
      %v4781 = vsel %vm2212, %v4778, %v4780
      %v4782 = vrot.slane %v4400, 1
      %v4783 = vsel %vm2212, %v4780, %v4782
      %v4784 = vrot.slane %v4401, 1
      %v4785 = vsel %vm2212, %v4782, %v4784
      %v4786 = vrot.slane %v4402, 1
      %v4787 = vrot.slane %v4403, 1
      %v4788 = vsel %vm2212, %v4786, %v4787
      %v4789 = vrot.slane %v4404, 1
      %v4790 = vsel %vm2212, %v4787, %v4789
      %v4791 = vrot.slane %v4405, 1
      %v4792 = vsel %vm2212, %v4789, %v4791
      %v4793 = vrot.slane %v4406, 1
      %v4794 = vsel %vm2212, %v4791, %v4793
      %v4795 = vrot.slane %v4407, 1
      %v4796 = vsel %vm2212, %v4793, %v4795
      %v4797 = vrot.slane %v4408, 1
      %v4798 = vsel %vm2212, %v4795, %v4797
      %v4799 = vrot.slane %v4409, 1
      %v4800 = vsel %vm2212, %v4797, %v4799
      %v4801 = vrot.slane %v4410, 1
      %v4802 = vsel %vm2212, %v4799, %v4801
      %v4803 = vrot.slane %v4411, 1
      %v4804 = vrot.slane %v4412, 1
      %v4805 = vsel %vm2212, %v4803, %v4804
      %v4806 = vrot.slane %v4413, 1
      %v4807 = vsel %vm2212, %v4804, %v4806
      %v4808 = vrot.slane %v4414, 1
      %v4809 = vsel %vm2212, %v4806, %v4808
      %v4810 = vrot.slane %v4415, 1
      %v4811 = vsel %vm2212, %v4808, %v4810
      %v4812 = vrot.slane %v4416, 1
      %v4813 = vsel %vm2212, %v4810, %v4812
      %v4814 = vrot.slane %v4417, 1
      %v4815 = vsel %vm2212, %v4812, %v4814
      %v4816 = vrot.slane %v4418, 1
      %v4817 = vsel %vm2212, %v4814, %v4816
      %v4818 = vrot.slane %v4419, 1
      %v4819 = vsel %vm2212, %v4816, %v4818
      %v4820 = vrot.slane %v4420, 1
      %v4821 = vrot.slane %v4421, 1
      %v4822 = vsel %vm2212, %v4820, %v4821
      %v4823 = vrot.slane %v4422, 1
      %v4824 = vsel %vm2212, %v4821, %v4823
      %v4825 = vrot.slane %v4423, 1
      %v4826 = vsel %vm2212, %v4823, %v4825
      %v4827 = vrot.slane %v4424, 1
      %v4828 = vsel %vm2212, %v4825, %v4827
      %v4829 = vrot.slane %v4425, 1
      %v4830 = vsel %vm2212, %v4827, %v4829
      %v4831 = vrot.slane %v4426, 1
      %v4832 = vsel %vm2212, %v4829, %v4831
      %v4833 = vrot.slane %v4427, 1
      %v4834 = vsel %vm2212, %v4831, %v4833
      %v4835 = vrot.slane %v4428, 1
      %v4836 = vsel %vm2212, %v4833, %v4835
      %v4837 = vrot.slane %v4429, 1
      %v4838 = vrot.slane %v4430, 1
      %v4839 = vsel %vm2212, %v4837, %v4838
      %v4840 = vrot.slane %v4431, 1
      %v4841 = vsel %vm2212, %v4838, %v4840
      %v4842 = vrot.slane %v4432, 1
      %v4843 = vsel %vm2212, %v4840, %v4842
      %v4844 = vrot.slane %v4433, 1
      %v4845 = vsel %vm2212, %v4842, %v4844
      %v4846 = vrot.slane %v4434, 1
      %v4847 = vsel %vm2212, %v4844, %v4846
      %v4848 = vrot.slane %v4435, 1
      %v4849 = vsel %vm2212, %v4846, %v4848
      %v4850 = vrot.slane %v4436, 1
      %v4851 = vsel %vm2212, %v4848, %v4850
      %v4852 = vrot.slane %v4437, 1
      %v4853 = vsel %vm2212, %v4850, %v4852
      %v4982 = vadd.f32 %v3910, %v4584
      %v4983 = vadd.f32 %v3911, %v4586
      %v4984 = vadd.f32 %v3912, %v4588
      %v4985 = vadd.f32 %v3913, %v4590
      %v4986 = vadd.f32 %v3914, %v4592
      %v4987 = vadd.f32 %v3915, %v4594
      %v4988 = vadd.f32 %v3916, %v4596
      %v4989 = vadd.f32 %v3917, %v4598
      %v4990 = vadd.f32 %v3918, %v4601
      %v4991 = vadd.f32 %v3919, %v4603
      %v4992 = vadd.f32 %v3920, %v4605
      %v4993 = vadd.f32 %v3921, %v4607
      %v4994 = vadd.f32 %v3922, %v4609
      %v4995 = vadd.f32 %v3923, %v4611
      %v4996 = vadd.f32 %v3924, %v4613
      %v4997 = vadd.f32 %v3925, %v4615
      %v4998 = vadd.f32 %v3926, %v4618
      %v4999 = vadd.f32 %v3927, %v4620
      %v5000 = vadd.f32 %v3928, %v4622
      %v5001 = vadd.f32 %v3929, %v4624
      %v5002 = vadd.f32 %v3930, %v4626
      %v5003 = vadd.f32 %v3931, %v4628
      %v5004 = vadd.f32 %v3932, %v4630
      %v5005 = vadd.f32 %v3933, %v4632
      %v5006 = vadd.f32 %v3934, %v4635
      %v5007 = vadd.f32 %v3935, %v4637
      %v5008 = vadd.f32 %v3936, %v4639
      %v5009 = vadd.f32 %v3937, %v4641
      %v5010 = vadd.f32 %v3938, %v4643
      %v5011 = vadd.f32 %v3939, %v4645
      %v5012 = vadd.f32 %v3940, %v4647
      %v5013 = vadd.f32 %v3941, %v4649
      %v5014 = vadd.f32 %v3942, %v4652
      %v5015 = vadd.f32 %v3943, %v4654
      %v5016 = vadd.f32 %v3944, %v4656
      %v5017 = vadd.f32 %v3945, %v4658
      %v5018 = vadd.f32 %v3946, %v4660
      %v5019 = vadd.f32 %v3947, %v4662
      %v5020 = vadd.f32 %v3948, %v4664
      %v5021 = vadd.f32 %v3949, %v4666
      %v5022 = vadd.f32 %v3950, %v4669
      %v5023 = vadd.f32 %v3951, %v4671
      %v5024 = vadd.f32 %v3952, %v4673
      %v5025 = vadd.f32 %v3953, %v4675
      %v5026 = vadd.f32 %v3954, %v4677
      %v5027 = vadd.f32 %v3955, %v4679
      %v5028 = vadd.f32 %v3956, %v4681
      %v5029 = vadd.f32 %v3957, %v4683
      %v5030 = vadd.f32 %v3958, %v4686
      %v5031 = vadd.f32 %v3959, %v4688
      %v5032 = vadd.f32 %v3960, %v4690
      %v5033 = vadd.f32 %v3961, %v4692
      %v5034 = vadd.f32 %v3962, %v4694
      %v5035 = vadd.f32 %v3963, %v4696
      %v5036 = vadd.f32 %v3964, %v4698
      %v5037 = vadd.f32 %v3965, %v4700
      %v5038 = vadd.f32 %v3966, %v4703
      %v5039 = vadd.f32 %v3967, %v4705
      %v5040 = vadd.f32 %v3968, %v4707
      %v5041 = vadd.f32 %v3969, %v4709
      %v5042 = vadd.f32 %v3970, %v4711
      %v5043 = vadd.f32 %v3971, %v4713
      %v5044 = vadd.f32 %v3972, %v4715
      %v5045 = vadd.f32 %v3973, %v4717
      %v5046 = vadd.f32 %v3974, %v4720
      %v5047 = vadd.f32 %v3975, %v4722
      %v5048 = vadd.f32 %v3976, %v4724
      %v5049 = vadd.f32 %v3977, %v4726
      %v5050 = vadd.f32 %v3978, %v4728
      %v5051 = vadd.f32 %v3979, %v4730
      %v5052 = vadd.f32 %v3980, %v4732
      %v5053 = vadd.f32 %v3981, %v4734
      %v5054 = vadd.f32 %v3982, %v4737
      %v5055 = vadd.f32 %v3983, %v4739
      %v5056 = vadd.f32 %v3984, %v4741
      %v5057 = vadd.f32 %v3985, %v4743
      %v5058 = vadd.f32 %v3986, %v4745
      %v5059 = vadd.f32 %v3987, %v4747
      %v5060 = vadd.f32 %v3988, %v4749
      %v5061 = vadd.f32 %v3989, %v4751
      %v5062 = vadd.f32 %v3990, %v4754
      %v5063 = vadd.f32 %v3991, %v4756
      %v5064 = vadd.f32 %v3992, %v4758
      %v5065 = vadd.f32 %v3993, %v4760
      %v5066 = vadd.f32 %v3994, %v4762
      %v5067 = vadd.f32 %v3995, %v4764
      %v5068 = vadd.f32 %v3996, %v4766
      %v5069 = vadd.f32 %v3997, %v4768
      %v5070 = vadd.f32 %v3998, %v4771
      %v5071 = vadd.f32 %v3999, %v4773
      %v5072 = vadd.f32 %v4000, %v4775
      %v5073 = vadd.f32 %v4001, %v4777
      %v5074 = vadd.f32 %v4002, %v4779
      %v5075 = vadd.f32 %v4003, %v4781
      %v5076 = vadd.f32 %v4004, %v4783
      %v5077 = vadd.f32 %v4005, %v4785
      %v5078 = vadd.f32 %v4006, %v4788
      %v5079 = vadd.f32 %v4007, %v4790
      %v5080 = vadd.f32 %v4008, %v4792
      %v5081 = vadd.f32 %v4009, %v4794
      %v5082 = vadd.f32 %v4010, %v4796
      %v5083 = vadd.f32 %v4011, %v4798
      %v5084 = vadd.f32 %v4012, %v4800
      %v5085 = vadd.f32 %v4013, %v4802
      %v5086 = vadd.f32 %v4014, %v4805
      %v5087 = vadd.f32 %v4015, %v4807
      %v5088 = vadd.f32 %v4016, %v4809
      %v5089 = vadd.f32 %v4017, %v4811
      %v5090 = vadd.f32 %v4018, %v4813
      %v5091 = vadd.f32 %v4019, %v4815
      %v5092 = vadd.f32 %v4020, %v4817
      %v5093 = vadd.f32 %v4021, %v4819
      %v5094 = vadd.f32 %v4022, %v4822
      %v5095 = vadd.f32 %v4023, %v4824
      %v5096 = vadd.f32 %v4024, %v4826
      %v5097 = vadd.f32 %v4025, %v4828
      %v5098 = vadd.f32 %v4026, %v4830
      %v5099 = vadd.f32 %v4027, %v4832
      %v5100 = vadd.f32 %v4028, %v4834
      %v5101 = vadd.f32 %v4029, %v4836
      %v5102 = vadd.f32 %v4030, %v4839
      %v5103 = vadd.f32 %v4031, %v4841
      %v5104 = vadd.f32 %v4032, %v4843
      %v5105 = vadd.f32 %v4033, %v4845
      %v5106 = vadd.f32 %v4034, %v4847
      %v5107 = vadd.f32 %v4035, %v4849
      %v5108 = vadd.f32 %v4036, %v4851
      %v5109 = vadd.f32 %v4037, %v4853
      %5238 = vrot.lane.b32.xlu0 %v4982, 64
      %v5239 = vpop.permute.xlu0 %5238
      %5240 = vrot.lane.b32.xlu0 %v4983, 64
      %v5241 = vpop.permute.xlu0 %5240
      %5242 = vrot.lane.b32.xlu0 %v4984, 64
      %v5243 = vpop.permute.xlu0 %5242
      %5244 = vrot.lane.b32.xlu0 %v4985, 64
      %v5245 = vpop.permute.xlu0 %5244
      %5246 = vrot.lane.b32.xlu0 %v4986, 64
      %v5247 = vpop.permute.xlu0 %5246
      %5248 = vrot.lane.b32.xlu0 %v4987, 64
      %v5249 = vpop.permute.xlu0 %5248
      %5250 = vrot.lane.b32.xlu0 %v4988, 64
      %v5251 = vpop.permute.xlu0 %5250
      %5252 = vrot.lane.b32.xlu0 %v4989, 64
      %v5253 = vpop.permute.xlu0 %5252
      %5254 = vrot.lane.b32.xlu0 %v4990, 64
      %v5255 = vpop.permute.xlu0 %5254
      %5256 = vrot.lane.b32.xlu0 %v4991, 64
      %v5257 = vpop.permute.xlu0 %5256
      %5258 = vrot.lane.b32.xlu0 %v4992, 64
      %v5259 = vpop.permute.xlu0 %5258
      %5260 = vrot.lane.b32.xlu0 %v4993, 64
      %v5261 = vpop.permute.xlu0 %5260
      %5262 = vrot.lane.b32.xlu0 %v4994, 64
      %v5263 = vpop.permute.xlu0 %5262
      %5264 = vrot.lane.b32.xlu0 %v4995, 64
      %v5265 = vpop.permute.xlu0 %5264
      %5266 = vrot.lane.b32.xlu0 %v4996, 64
      %v5267 = vpop.permute.xlu0 %5266
      %5268 = vrot.lane.b32.xlu0 %v4997, 64
      %v5269 = vpop.permute.xlu0 %5268
      %5270 = vrot.lane.b32.xlu0 %v4998, 64
      %v5271 = vpop.permute.xlu0 %5270
      %5272 = vrot.lane.b32.xlu0 %v4999, 64
      %v5273 = vpop.permute.xlu0 %5272
      %5274 = vrot.lane.b32.xlu0 %v5000, 64
      %v5275 = vpop.permute.xlu0 %5274
      %5276 = vrot.lane.b32.xlu0 %v5001, 64
      %v5277 = vpop.permute.xlu0 %5276
      %5278 = vrot.lane.b32.xlu0 %v5002, 64
      %v5279 = vpop.permute.xlu0 %5278
      %5280 = vrot.lane.b32.xlu0 %v5003, 64
      %v5281 = vpop.permute.xlu0 %5280
      %5282 = vrot.lane.b32.xlu0 %v5004, 64
      %v5283 = vpop.permute.xlu0 %5282
      %5284 = vrot.lane.b32.xlu0 %v5005, 64
      %v5285 = vpop.permute.xlu0 %5284
      %5286 = vrot.lane.b32.xlu0 %v5006, 64
      %v5287 = vpop.permute.xlu0 %5286
      %5288 = vrot.lane.b32.xlu0 %v5007, 64
      %v5289 = vpop.permute.xlu0 %5288
      %5290 = vrot.lane.b32.xlu0 %v5008, 64
      %v5291 = vpop.permute.xlu0 %5290
      %5292 = vrot.lane.b32.xlu0 %v5009, 64
      %v5293 = vpop.permute.xlu0 %5292
      %5294 = vrot.lane.b32.xlu0 %v5010, 64
      %v5295 = vpop.permute.xlu0 %5294
      %5296 = vrot.lane.b32.xlu0 %v5011, 64
      %v5297 = vpop.permute.xlu0 %5296
      %5298 = vrot.lane.b32.xlu0 %v5012, 64
      %v5299 = vpop.permute.xlu0 %5298
      %5300 = vrot.lane.b32.xlu0 %v5013, 64
      %v5301 = vpop.permute.xlu0 %5300
      %5302 = vrot.lane.b32.xlu0 %v5014, 64
      %v5303 = vpop.permute.xlu0 %5302
      %5304 = vrot.lane.b32.xlu0 %v5015, 64
      %v5305 = vpop.permute.xlu0 %5304
      %5306 = vrot.lane.b32.xlu0 %v5016, 64
      %v5307 = vpop.permute.xlu0 %5306
      %5308 = vrot.lane.b32.xlu0 %v5017, 64
      %v5309 = vpop.permute.xlu0 %5308
      %5310 = vrot.lane.b32.xlu0 %v5018, 64
      %v5311 = vpop.permute.xlu0 %5310
      %5312 = vrot.lane.b32.xlu0 %v5019, 64
      %v5313 = vpop.permute.xlu0 %5312
      %5314 = vrot.lane.b32.xlu0 %v5020, 64
      %v5315 = vpop.permute.xlu0 %5314
      %5316 = vrot.lane.b32.xlu0 %v5021, 64
      %v5317 = vpop.permute.xlu0 %5316
      %5318 = vrot.lane.b32.xlu0 %v5022, 64
      %v5319 = vpop.permute.xlu0 %5318
      %5320 = vrot.lane.b32.xlu0 %v5023, 64
      %v5321 = vpop.permute.xlu0 %5320
      %5322 = vrot.lane.b32.xlu0 %v5024, 64
      %v5323 = vpop.permute.xlu0 %5322
      %5324 = vrot.lane.b32.xlu0 %v5025, 64
      %v5325 = vpop.permute.xlu0 %5324
      %5326 = vrot.lane.b32.xlu0 %v5026, 64
      %v5327 = vpop.permute.xlu0 %5326
      %5328 = vrot.lane.b32.xlu0 %v5027, 64
      %v5329 = vpop.permute.xlu0 %5328
      %5330 = vrot.lane.b32.xlu0 %v5028, 64
      %v5331 = vpop.permute.xlu0 %5330
      %5332 = vrot.lane.b32.xlu0 %v5029, 64
      %v5333 = vpop.permute.xlu0 %5332
      %5334 = vrot.lane.b32.xlu0 %v5030, 64
      %v5335 = vpop.permute.xlu0 %5334
      %5336 = vrot.lane.b32.xlu0 %v5031, 64
      %v5337 = vpop.permute.xlu0 %5336
      %5338 = vrot.lane.b32.xlu0 %v5032, 64
      %v5339 = vpop.permute.xlu0 %5338
      %5340 = vrot.lane.b32.xlu0 %v5033, 64
      %v5341 = vpop.permute.xlu0 %5340
      %5342 = vrot.lane.b32.xlu0 %v5034, 64
      %v5343 = vpop.permute.xlu0 %5342
      %5344 = vrot.lane.b32.xlu0 %v5035, 64
      %v5345 = vpop.permute.xlu0 %5344
      %5346 = vrot.lane.b32.xlu0 %v5036, 64
      %v5347 = vpop.permute.xlu0 %5346
      %5348 = vrot.lane.b32.xlu0 %v5037, 64
      %v5349 = vpop.permute.xlu0 %5348
      %5350 = vrot.lane.b32.xlu0 %v5038, 64
      %v5351 = vpop.permute.xlu0 %5350
      %5352 = vrot.lane.b32.xlu0 %v5039, 64
      %v5353 = vpop.permute.xlu0 %5352
      %5354 = vrot.lane.b32.xlu0 %v5040, 64
      %v5355 = vpop.permute.xlu0 %5354
      %5356 = vrot.lane.b32.xlu0 %v5041, 64
      %v5357 = vpop.permute.xlu0 %5356
      %5358 = vrot.lane.b32.xlu0 %v5042, 64
      %v5359 = vpop.permute.xlu0 %5358
      %5360 = vrot.lane.b32.xlu0 %v5043, 64
      %v5361 = vpop.permute.xlu0 %5360
      %5362 = vrot.lane.b32.xlu0 %v5044, 64
      %v5363 = vpop.permute.xlu0 %5362
      %5364 = vrot.lane.b32.xlu0 %v5045, 64
      %v5365 = vpop.permute.xlu0 %5364
      %5366 = vrot.lane.b32.xlu0 %v5046, 64
      %v5367 = vpop.permute.xlu0 %5366
      %5368 = vrot.lane.b32.xlu0 %v5047, 64
      %v5369 = vpop.permute.xlu0 %5368
      %5370 = vrot.lane.b32.xlu0 %v5048, 64
      %v5371 = vpop.permute.xlu0 %5370
      %5372 = vrot.lane.b32.xlu0 %v5049, 64
      %v5373 = vpop.permute.xlu0 %5372
      %5374 = vrot.lane.b32.xlu0 %v5050, 64
      %v5375 = vpop.permute.xlu0 %5374
      %5376 = vrot.lane.b32.xlu0 %v5051, 64
      %v5377 = vpop.permute.xlu0 %5376
      %5378 = vrot.lane.b32.xlu0 %v5052, 64
      %v5379 = vpop.permute.xlu0 %5378
      %5380 = vrot.lane.b32.xlu0 %v5053, 64
      %v5381 = vpop.permute.xlu0 %5380
      %5382 = vrot.lane.b32.xlu0 %v5054, 64
      %v5383 = vpop.permute.xlu0 %5382
      %5384 = vrot.lane.b32.xlu0 %v5055, 64
      %v5385 = vpop.permute.xlu0 %5384
      %5386 = vrot.lane.b32.xlu0 %v5056, 64
      %v5387 = vpop.permute.xlu0 %5386
      %5388 = vrot.lane.b32.xlu0 %v5057, 64
      %v5389 = vpop.permute.xlu0 %5388
      %5390 = vrot.lane.b32.xlu0 %v5058, 64
      %v5391 = vpop.permute.xlu0 %5390
      %5392 = vrot.lane.b32.xlu0 %v5059, 64
      %v5393 = vpop.permute.xlu0 %5392
      %5394 = vrot.lane.b32.xlu0 %v5060, 64
      %v5395 = vpop.permute.xlu0 %5394
      %5396 = vrot.lane.b32.xlu0 %v5061, 64
      %v5397 = vpop.permute.xlu0 %5396
      %5398 = vrot.lane.b32.xlu0 %v5062, 64
      %v5399 = vpop.permute.xlu0 %5398
      %5400 = vrot.lane.b32.xlu0 %v5063, 64
      %v5401 = vpop.permute.xlu0 %5400
      %5402 = vrot.lane.b32.xlu0 %v5064, 64
      %v5403 = vpop.permute.xlu0 %5402
      %5404 = vrot.lane.b32.xlu0 %v5065, 64
      %v5405 = vpop.permute.xlu0 %5404
      %5406 = vrot.lane.b32.xlu0 %v5066, 64
      %v5407 = vpop.permute.xlu0 %5406
      %5408 = vrot.lane.b32.xlu0 %v5067, 64
      %v5409 = vpop.permute.xlu0 %5408
      %5410 = vrot.lane.b32.xlu0 %v5068, 64
      %v5411 = vpop.permute.xlu0 %5410
      %5412 = vrot.lane.b32.xlu0 %v5069, 64
      %v5413 = vpop.permute.xlu0 %5412
      %5414 = vrot.lane.b32.xlu0 %v5070, 64
      %v5415 = vpop.permute.xlu0 %5414
      %5416 = vrot.lane.b32.xlu0 %v5071, 64
      %v5417 = vpop.permute.xlu0 %5416
      %5418 = vrot.lane.b32.xlu0 %v5072, 64
      %v5419 = vpop.permute.xlu0 %5418
      %5420 = vrot.lane.b32.xlu0 %v5073, 64
      %v5421 = vpop.permute.xlu0 %5420
      %5422 = vrot.lane.b32.xlu0 %v5074, 64
      %v5423 = vpop.permute.xlu0 %5422
      %5424 = vrot.lane.b32.xlu0 %v5075, 64
      %v5425 = vpop.permute.xlu0 %5424
      %5426 = vrot.lane.b32.xlu0 %v5076, 64
      %v5427 = vpop.permute.xlu0 %5426
      %5428 = vrot.lane.b32.xlu0 %v5077, 64
      %v5429 = vpop.permute.xlu0 %5428
      %5430 = vrot.lane.b32.xlu0 %v5078, 64
      %v5431 = vpop.permute.xlu0 %5430
      %5432 = vrot.lane.b32.xlu0 %v5079, 64
      %v5433 = vpop.permute.xlu0 %5432
      %5434 = vrot.lane.b32.xlu0 %v5080, 64
      %v5435 = vpop.permute.xlu0 %5434
      %5436 = vrot.lane.b32.xlu0 %v5081, 64
      %v5437 = vpop.permute.xlu0 %5436
      %5438 = vrot.lane.b32.xlu0 %v5082, 64
      %v5439 = vpop.permute.xlu0 %5438
      %5440 = vrot.lane.b32.xlu0 %v5083, 64
      %v5441 = vpop.permute.xlu0 %5440
      %5442 = vrot.lane.b32.xlu0 %v5084, 64
      %v5443 = vpop.permute.xlu0 %5442
      %5444 = vrot.lane.b32.xlu0 %v5085, 64
      %v5445 = vpop.permute.xlu0 %5444
      %5446 = vrot.lane.b32.xlu0 %v5086, 64
      %v5447 = vpop.permute.xlu0 %5446
      %5448 = vrot.lane.b32.xlu0 %v5087, 64
      %v5449 = vpop.permute.xlu0 %5448
      %5450 = vrot.lane.b32.xlu0 %v5088, 64
      %v5451 = vpop.permute.xlu0 %5450
      %5452 = vrot.lane.b32.xlu0 %v5089, 64
      %v5453 = vpop.permute.xlu0 %5452
      %5454 = vrot.lane.b32.xlu0 %v5090, 64
      %v5455 = vpop.permute.xlu0 %5454
      %5456 = vrot.lane.b32.xlu0 %v5091, 64
      %v5457 = vpop.permute.xlu0 %5456
      %5458 = vrot.lane.b32.xlu0 %v5092, 64
      %v5459 = vpop.permute.xlu0 %5458
      %5460 = vrot.lane.b32.xlu0 %v5093, 64
      %v5461 = vpop.permute.xlu0 %5460
      %5462 = vrot.lane.b32.xlu0 %v5094, 64
      %v5463 = vpop.permute.xlu0 %5462
      %5464 = vrot.lane.b32.xlu0 %v5095, 64
      %v5465 = vpop.permute.xlu0 %5464
      %5466 = vrot.lane.b32.xlu0 %v5096, 64
      %v5467 = vpop.permute.xlu0 %5466
      %5468 = vrot.lane.b32.xlu0 %v5097, 64
      %v5469 = vpop.permute.xlu0 %5468
      %5470 = vrot.lane.b32.xlu0 %v5098, 64
      %v5471 = vpop.permute.xlu0 %5470
      %5472 = vrot.lane.b32.xlu0 %v5099, 64
      %v5473 = vpop.permute.xlu0 %5472
      %5474 = vrot.lane.b32.xlu0 %v5100, 64
      %v5475 = vpop.permute.xlu0 %5474
      %5476 = vrot.lane.b32.xlu0 %v5101, 64
      %v5477 = vpop.permute.xlu0 %5476
      %5478 = vrot.lane.b32.xlu0 %v5102, 64
      %v5479 = vpop.permute.xlu0 %5478
      %5480 = vrot.lane.b32.xlu0 %v5103, 64
      %v5481 = vpop.permute.xlu0 %5480
      %5482 = vrot.lane.b32.xlu0 %v5104, 64
      %v5483 = vpop.permute.xlu0 %5482
      %5484 = vrot.lane.b32.xlu0 %v5105, 64
      %v5485 = vpop.permute.xlu0 %5484
      %5486 = vrot.lane.b32.xlu0 %v5106, 64
      %v5487 = vpop.permute.xlu0 %5486
      %5488 = vrot.lane.b32.xlu0 %v5107, 64
      %v5489 = vpop.permute.xlu0 %5488
      %5490 = vrot.lane.b32.xlu0 %v5108, 64
      %v5491 = vpop.permute.xlu0 %5490
      %5492 = vrot.lane.b32.xlu0 %v5109, 64
      %v5493 = vpop.permute.xlu0 %5492
      %v5622 = vsel %vm3253, %v4166, %v5239
      %v5623 = vsel %vm3253, %v4167, %v5241
      %v5624 = vsel %vm3253, %v4168, %v5243
      %v5625 = vsel %vm3253, %v4169, %v5245
      %v5626 = vsel %vm3253, %v4170, %v5247
      %v5627 = vsel %vm3253, %v4171, %v5249
      %v5628 = vsel %vm3253, %v4172, %v5251
      %v5629 = vsel %vm3253, %v4173, %v5253
      %v5630 = vsel %vm3253, %v4174, %v5255
      %v5631 = vsel %vm3253, %v4175, %v5257
      %v5632 = vsel %vm3253, %v4176, %v5259
      %v5633 = vsel %vm3253, %v4177, %v5261
      %v5634 = vsel %vm3253, %v4178, %v5263
      %v5635 = vsel %vm3253, %v4179, %v5265
      %v5636 = vsel %vm3253, %v4180, %v5267
      %v5637 = vsel %vm3253, %v4181, %v5269
      %v5638 = vsel %vm3253, %v4182, %v5271
      %v5639 = vsel %vm3253, %v4183, %v5273
      %v5640 = vsel %vm3253, %v4184, %v5275
      %v5641 = vsel %vm3253, %v4185, %v5277
      %v5642 = vsel %vm3253, %v4186, %v5279
      %v5643 = vsel %vm3253, %v4187, %v5281
      %v5644 = vsel %vm3253, %v4188, %v5283
      %v5645 = vsel %vm3253, %v4189, %v5285
      %v5646 = vsel %vm3253, %v4190, %v5287
      %v5647 = vsel %vm3253, %v4191, %v5289
      %v5648 = vsel %vm3253, %v4192, %v5291
      %v5649 = vsel %vm3253, %v4193, %v5293
      %v5650 = vsel %vm3253, %v4194, %v5295
      %v5651 = vsel %vm3253, %v4195, %v5297
      %v5652 = vsel %vm3253, %v4196, %v5299
      %v5653 = vsel %vm3253, %v4197, %v5301
      %v5654 = vsel %vm3253, %v4198, %v5303
      %v5655 = vsel %vm3253, %v4199, %v5305
      %v5656 = vsel %vm3253, %v4200, %v5307
      %v5657 = vsel %vm3253, %v4201, %v5309
      %v5658 = vsel %vm3253, %v4202, %v5311
      %v5659 = vsel %vm3253, %v4203, %v5313
      %v5660 = vsel %vm3253, %v4204, %v5315
      %v5661 = vsel %vm3253, %v4205, %v5317
      %v5662 = vsel %vm3253, %v4206, %v5319
      %v5663 = vsel %vm3253, %v4207, %v5321
      %v5664 = vsel %vm3253, %v4208, %v5323
      %v5665 = vsel %vm3253, %v4209, %v5325
      %v5666 = vsel %vm3253, %v4210, %v5327
      %v5667 = vsel %vm3253, %v4211, %v5329
      %v5668 = vsel %vm3253, %v4212, %v5331
      %v5669 = vsel %vm3253, %v4213, %v5333
      %v5670 = vsel %vm3253, %v4214, %v5335
      %v5671 = vsel %vm3253, %v4215, %v5337
      %v5672 = vsel %vm3253, %v4216, %v5339
      %v5673 = vsel %vm3253, %v4217, %v5341
      %v5674 = vsel %vm3253, %v4218, %v5343
      %v5675 = vsel %vm3253, %v4219, %v5345
      %v5676 = vsel %vm3253, %v4220, %v5347
      %v5677 = vsel %vm3253, %v4221, %v5349
      %v5678 = vsel %vm3253, %v4222, %v5351
      %v5679 = vsel %vm3253, %v4223, %v5353
      %v5680 = vsel %vm3253, %v4224, %v5355
      %v5681 = vsel %vm3253, %v4225, %v5357
      %v5682 = vsel %vm3253, %v4226, %v5359
      %v5683 = vsel %vm3253, %v4227, %v5361
      %v5684 = vsel %vm3253, %v4228, %v5363
      %v5685 = vsel %vm3253, %v4229, %v5365
      %v5686 = vsel %vm3253, %v4230, %v5367
      %v5687 = vsel %vm3253, %v4231, %v5369
      %v5688 = vsel %vm3253, %v4232, %v5371
      %v5689 = vsel %vm3253, %v4233, %v5373
      %v5690 = vsel %vm3253, %v4234, %v5375
      %v5691 = vsel %vm3253, %v4235, %v5377
      %v5692 = vsel %vm3253, %v4236, %v5379
      %v5693 = vsel %vm3253, %v4237, %v5381
      %v5694 = vsel %vm3253, %v4238, %v5383
      %v5695 = vsel %vm3253, %v4239, %v5385
      %v5696 = vsel %vm3253, %v4240, %v5387
      %v5697 = vsel %vm3253, %v4241, %v5389
      %v5698 = vsel %vm3253, %v4242, %v5391
      %v5699 = vsel %vm3253, %v4243, %v5393
      %v5700 = vsel %vm3253, %v4244, %v5395
      %v5701 = vsel %vm3253, %v4245, %v5397
      %v5702 = vsel %vm3253, %v4246, %v5399
      %v5703 = vsel %vm3253, %v4247, %v5401
      %v5704 = vsel %vm3253, %v4248, %v5403
      %v5705 = vsel %vm3253, %v4249, %v5405
      %v5706 = vsel %vm3253, %v4250, %v5407
      %v5707 = vsel %vm3253, %v4251, %v5409
      %v5708 = vsel %vm3253, %v4252, %v5411
      %v5709 = vsel %vm3253, %v4253, %v5413
      %v5710 = vsel %vm3253, %v4254, %v5415
      %v5711 = vsel %vm3253, %v4255, %v5417
      %v5712 = vsel %vm3253, %v4256, %v5419
      %v5713 = vsel %vm3253, %v4257, %v5421
      %v5714 = vsel %vm3253, %v4258, %v5423
      %v5715 = vsel %vm3253, %v4259, %v5425
      %v5716 = vsel %vm3253, %v4260, %v5427
      %v5717 = vsel %vm3253, %v4261, %v5429
      %v5718 = vsel %vm3253, %v4262, %v5431
      %v5719 = vsel %vm3253, %v4263, %v5433
      %v5720 = vsel %vm3253, %v4264, %v5435
      %v5721 = vsel %vm3253, %v4265, %v5437
      %v5722 = vsel %vm3253, %v4266, %v5439
      %v5723 = vsel %vm3253, %v4267, %v5441
      %v5724 = vsel %vm3253, %v4268, %v5443
      %v5725 = vsel %vm3253, %v4269, %v5445
      %v5726 = vsel %vm3253, %v4270, %v5447
      %v5727 = vsel %vm3253, %v4271, %v5449
      %v5728 = vsel %vm3253, %v4272, %v5451
      %v5729 = vsel %vm3253, %v4273, %v5453
      %v5730 = vsel %vm3253, %v4274, %v5455
      %v5731 = vsel %vm3253, %v4275, %v5457
      %v5732 = vsel %vm3253, %v4276, %v5459
      %v5733 = vsel %vm3253, %v4277, %v5461
      %v5734 = vsel %vm3253, %v4278, %v5463
      %v5735 = vsel %vm3253, %v4279, %v5465
      %v5736 = vsel %vm3253, %v4280, %v5467
      %v5737 = vsel %vm3253, %v4281, %v5469
      %v5738 = vsel %vm3253, %v4282, %v5471
      %v5739 = vsel %vm3253, %v4283, %v5473
      %v5740 = vsel %vm3253, %v4284, %v5475
      %v5741 = vsel %vm3253, %v4285, %v5477
      %v5742 = vsel %vm3253, %v4286, %v5479
      %v5743 = vsel %vm3253, %v4287, %v5481
      %v5744 = vsel %vm3253, %v4288, %v5483
      %v5745 = vsel %vm3253, %v4289, %v5485
      %v5746 = vsel %vm3253, %v4290, %v5487
      %v5747 = vsel %vm3253, %v4291, %v5489
      %v5748 = vsel %vm3253, %v4292, %v5491
      %v5749 = vsel %vm3253, %v4293, %v5493
      %5750 = vst [vmem:[%s337] sm:$0xff] %v3254
      %5751 = vst [vmem:[%s337 + $0x8] sm:$0xff] %v3255
      %5752 = vst [vmem:[%s337 + $0x10] sm:$0xff] %v3256
      %5753 = vst [vmem:[%s337 + $0x18] sm:$0xff] %v3257
      %5754 = vst [vmem:[%s337 + $0x20] sm:$0xff] %v3258
      %5755 = vst [vmem:[%s337 + $0x28] sm:$0xff] %v3259
      %5756 = vst [vmem:[%s337 + $0x30] sm:$0xff] %v3260
      %5757 = vst [vmem:[%s337 + $0x38] sm:$0xff] %v3261
      %5758 = vst [vmem:[%s337 + $0x80] sm:$0xff] %v3262
      %5759 = vst [vmem:[%s337 + $0x88] sm:$0xff] %v3263
      %5760 = vst [vmem:[%s337 + $0x90] sm:$0xff] %v3264
      %5761 = vst [vmem:[%s337 + $0x98] sm:$0xff] %v3265
      %5762 = vst [vmem:[%s337 + $0xa0] sm:$0xff] %v3266
      %5763 = vst [vmem:[%s337 + $0xa8] sm:$0xff] %v3267
      %5764 = vst [vmem:[%s337 + $0xb0] sm:$0xff] %v3268
      %5765 = vst [vmem:[%s337 + $0xb8] sm:$0xff] %v3269
      %5766 = vst [vmem:[%s337 + $0x100] sm:$0xff] %v3270
      %5767 = vst [vmem:[%s337 + $0x108] sm:$0xff] %v3271
      %5768 = vst [vmem:[%s337 + $0x110] sm:$0xff] %v3272
      %5769 = vst [vmem:[%s337 + $0x118] sm:$0xff] %v3273
      %5770 = vst [vmem:[%s337 + $0x120] sm:$0xff] %v3274
      %5771 = vst [vmem:[%s337 + $0x128] sm:$0xff] %v3275
      %5772 = vst [vmem:[%s337 + $0x130] sm:$0xff] %v3276
      %5773 = vst [vmem:[%s337 + $0x138] sm:$0xff] %v3277
      %5774 = vst [vmem:[%s337 + $0x180] sm:$0xff] %v3278
      %5775 = vst [vmem:[%s337 + $0x188] sm:$0xff] %v3279
      %5776 = vst [vmem:[%s337 + $0x190] sm:$0xff] %v3280
      %5777 = vst [vmem:[%s337 + $0x198] sm:$0xff] %v3281
      %5778 = vst [vmem:[%s337 + $0x1a0] sm:$0xff] %v3282
      %5779 = vst [vmem:[%s337 + $0x1a8] sm:$0xff] %v3283
      %5780 = vst [vmem:[%s337 + $0x1b0] sm:$0xff] %v3284
      %5781 = vst [vmem:[%s337 + $0x1b8] sm:$0xff] %v3285
      %5782 = vst [vmem:[%s337 + $0x200] sm:$0xff] %v3286
      %5783 = vst [vmem:[%s337 + $0x208] sm:$0xff] %v3287
      %5784 = vst [vmem:[%s337 + $0x210] sm:$0xff] %v3288
      %5785 = vst [vmem:[%s337 + $0x218] sm:$0xff] %v3289
      %5786 = vst [vmem:[%s337 + $0x220] sm:$0xff] %v3290
      %5787 = vst [vmem:[%s337 + $0x228] sm:$0xff] %v3291
      %5788 = vst [vmem:[%s337 + $0x230] sm:$0xff] %v3292
      %5789 = vst [vmem:[%s337 + $0x238] sm:$0xff] %v3293
      %5790 = vst [vmem:[%s337 + $0x280] sm:$0xff] %v3294
      %5791 = vst [vmem:[%s337 + $0x288] sm:$0xff] %v3295
      %5792 = vst [vmem:[%s337 + $0x290] sm:$0xff] %v3296
      %5793 = vst [vmem:[%s337 + $0x298] sm:$0xff] %v3297
      %5794 = vst [vmem:[%s337 + $0x2a0] sm:$0xff] %v3298
      %5795 = vst [vmem:[%s337 + $0x2a8] sm:$0xff] %v3299
      %5796 = vst [vmem:[%s337 + $0x2b0] sm:$0xff] %v3300
      %5797 = vst [vmem:[%s337 + $0x2b8] sm:$0xff] %v3301
      %5798 = vst [vmem:[%s337 + $0x300] sm:$0xff] %v3302
      %5799 = vst [vmem:[%s337 + $0x308] sm:$0xff] %v3303
      %5800 = vst [vmem:[%s337 + $0x310] sm:$0xff] %v3304
      %5801 = vst [vmem:[%s337 + $0x318] sm:$0xff] %v3305
      %5802 = vst [vmem:[%s337 + $0x320] sm:$0xff] %v3306
      %5803 = vst [vmem:[%s337 + $0x328] sm:$0xff] %v3307
      %5804 = vst [vmem:[%s337 + $0x330] sm:$0xff] %v3308
      %5805 = vst [vmem:[%s337 + $0x338] sm:$0xff] %v3309
      %5806 = vst [vmem:[%s337 + $0x380] sm:$0xff] %v3310
      %5807 = vst [vmem:[%s337 + $0x388] sm:$0xff] %v3311
      %5808 = vst [vmem:[%s337 + $0x390] sm:$0xff] %v3312
      %5809 = vst [vmem:[%s337 + $0x398] sm:$0xff] %v3313
      %5810 = vst [vmem:[%s337 + $0x3a0] sm:$0xff] %v3314
      %5811 = vst [vmem:[%s337 + $0x3a8] sm:$0xff] %v3315
      %5812 = vst [vmem:[%s337 + $0x3b0] sm:$0xff] %v3316
      %5813 = vst [vmem:[%s337 + $0x3b8] sm:$0xff] %v3317
      %5814 = vst [vmem:[%s337 + $0x400] sm:$0xff] %v3318
      %5815 = vst [vmem:[%s337 + $0x408] sm:$0xff] %v3319
      %5816 = vst [vmem:[%s337 + $0x410] sm:$0xff] %v3320
      %5817 = vst [vmem:[%s337 + $0x418] sm:$0xff] %v3321
      %5818 = vst [vmem:[%s337 + $0x420] sm:$0xff] %v3322
      %5819 = vst [vmem:[%s337 + $0x428] sm:$0xff] %v3323
      %5820 = vst [vmem:[%s337 + $0x430] sm:$0xff] %v3324
      %5821 = vst [vmem:[%s337 + $0x438] sm:$0xff] %v3325
      %5822 = vst [vmem:[%s337 + $0x480] sm:$0xff] %v3326
      %5823 = vst [vmem:[%s337 + $0x488] sm:$0xff] %v3327
      %5824 = vst [vmem:[%s337 + $0x490] sm:$0xff] %v3328
      %5825 = vst [vmem:[%s337 + $0x498] sm:$0xff] %v3329
      %5826 = vst [vmem:[%s337 + $0x4a0] sm:$0xff] %v3330
      %5827 = vst [vmem:[%s337 + $0x4a8] sm:$0xff] %v3331
      %5828 = vst [vmem:[%s337 + $0x4b0] sm:$0xff] %v3332
      %5829 = vst [vmem:[%s337 + $0x4b8] sm:$0xff] %v3333
      %5830 = vst [vmem:[%s337 + $0x500] sm:$0xff] %v3334
      %5831 = vst [vmem:[%s337 + $0x508] sm:$0xff] %v3335
      %5832 = vst [vmem:[%s337 + $0x510] sm:$0xff] %v3336
      %5833 = vst [vmem:[%s337 + $0x518] sm:$0xff] %v3337
      %5834 = vst [vmem:[%s337 + $0x520] sm:$0xff] %v3338
      %5835 = vst [vmem:[%s337 + $0x528] sm:$0xff] %v3339
      %5836 = vst [vmem:[%s337 + $0x530] sm:$0xff] %v3340
      %5837 = vst [vmem:[%s337 + $0x538] sm:$0xff] %v3341
      %5838 = vst [vmem:[%s337 + $0x580] sm:$0xff] %v3342
      %5839 = vst [vmem:[%s337 + $0x588] sm:$0xff] %v3343
      %5840 = vst [vmem:[%s337 + $0x590] sm:$0xff] %v3344
      %5841 = vst [vmem:[%s337 + $0x598] sm:$0xff] %v3345
      %5842 = vst [vmem:[%s337 + $0x5a0] sm:$0xff] %v3346
      %5843 = vst [vmem:[%s337 + $0x5a8] sm:$0xff] %v3347
      %5844 = vst [vmem:[%s337 + $0x5b0] sm:$0xff] %v3348
      %5845 = vst [vmem:[%s337 + $0x5b8] sm:$0xff] %v3349
      %5846 = vst [vmem:[%s337 + $0x600] sm:$0xff] %v3350
      %5847 = vst [vmem:[%s337 + $0x608] sm:$0xff] %v3351
      %5848 = vst [vmem:[%s337 + $0x610] sm:$0xff] %v3352
      %5849 = vst [vmem:[%s337 + $0x618] sm:$0xff] %v3353
      %5850 = vst [vmem:[%s337 + $0x620] sm:$0xff] %v3354
      %5851 = vst [vmem:[%s337 + $0x628] sm:$0xff] %v3355
      %5852 = vst [vmem:[%s337 + $0x630] sm:$0xff] %v3356
      %5853 = vst [vmem:[%s337 + $0x638] sm:$0xff] %v3357
      %5854 = vst [vmem:[%s337 + $0x680] sm:$0xff] %v3358
      %5855 = vst [vmem:[%s337 + $0x688] sm:$0xff] %v3359
      %5856 = vst [vmem:[%s337 + $0x690] sm:$0xff] %v3360
      %5857 = vst [vmem:[%s337 + $0x698] sm:$0xff] %v3361
      %5858 = vst [vmem:[%s337 + $0x6a0] sm:$0xff] %v3362
      %5859 = vst [vmem:[%s337 + $0x6a8] sm:$0xff] %v3363
      %5860 = vst [vmem:[%s337 + $0x6b0] sm:$0xff] %v3364
      %5861 = vst [vmem:[%s337 + $0x6b8] sm:$0xff] %v3365
      %5862 = vst [vmem:[%s337 + $0x700] sm:$0xff] %v3366
      %5863 = vst [vmem:[%s337 + $0x708] sm:$0xff] %v3367
      %5864 = vst [vmem:[%s337 + $0x710] sm:$0xff] %v3368
      %5865 = vst [vmem:[%s337 + $0x718] sm:$0xff] %v3369
      %5866 = vst [vmem:[%s337 + $0x720] sm:$0xff] %v3370
      %5867 = vst [vmem:[%s337 + $0x728] sm:$0xff] %v3371
      %5868 = vst [vmem:[%s337 + $0x730] sm:$0xff] %v3372
      %5869 = vst [vmem:[%s337 + $0x738] sm:$0xff] %v3373
      %5870 = vst [vmem:[%s337 + $0x780] sm:$0xff] %v3374
      %5871 = vst [vmem:[%s337 + $0x788] sm:$0xff] %v3375
      %5872 = vst [vmem:[%s337 + $0x790] sm:$0xff] %v3376
      %5873 = vst [vmem:[%s337 + $0x798] sm:$0xff] %v3377
      %5874 = vst [vmem:[%s337 + $0x7a0] sm:$0xff] %v3378
      %5875 = vst [vmem:[%s337 + $0x7a8] sm:$0xff] %v3379
      %5876 = vst [vmem:[%s337 + $0x7b0] sm:$0xff] %v3380
      %5877 = vst [vmem:[%s337 + $0x7b8] sm:$0xff] %v3381
      %s5878 = scalar_lea.vmem %s337, 64
      %5879 = vst [vmem:[%s5878] sm:$0xff] %v5622
      %5880 = vst [vmem:[%s5878 + $0x8] sm:$0xff] %v5623
      %5881 = vst [vmem:[%s5878 + $0x10] sm:$0xff] %v5624
      %5882 = vst [vmem:[%s5878 + $0x18] sm:$0xff] %v5625
      %5883 = vst [vmem:[%s5878 + $0x20] sm:$0xff] %v5626
      %5884 = vst [vmem:[%s5878 + $0x28] sm:$0xff] %v5627
      %5885 = vst [vmem:[%s5878 + $0x30] sm:$0xff] %v5628
      %5886 = vst [vmem:[%s5878 + $0x38] sm:$0xff] %v5629
      %5887 = vst [vmem:[%s5878 + $0x80] sm:$0xff] %v5630
      %5888 = vst [vmem:[%s5878 + $0x88] sm:$0xff] %v5631
      %5889 = vst [vmem:[%s5878 + $0x90] sm:$0xff] %v5632
      %5890 = vst [vmem:[%s5878 + $0x98] sm:$0xff] %v5633
      %5891 = vst [vmem:[%s5878 + $0xa0] sm:$0xff] %v5634
      %5892 = vst [vmem:[%s5878 + $0xa8] sm:$0xff] %v5635
      %5893 = vst [vmem:[%s5878 + $0xb0] sm:$0xff] %v5636
      %5894 = vst [vmem:[%s5878 + $0xb8] sm:$0xff] %v5637
      %5895 = vst [vmem:[%s5878 + $0x100] sm:$0xff] %v5638
      %5896 = vst [vmem:[%s5878 + $0x108] sm:$0xff] %v5639
      %5897 = vst [vmem:[%s5878 + $0x110] sm:$0xff] %v5640
      %5898 = vst [vmem:[%s5878 + $0x118] sm:$0xff] %v5641
      %5899 = vst [vmem:[%s5878 + $0x120] sm:$0xff] %v5642
      %5900 = vst [vmem:[%s5878 + $0x128] sm:$0xff] %v5643
      %5901 = vst [vmem:[%s5878 + $0x130] sm:$0xff] %v5644
      %5902 = vst [vmem:[%s5878 + $0x138] sm:$0xff] %v5645
      %5903 = vst [vmem:[%s5878 + $0x180] sm:$0xff] %v5646
      %5904 = vst [vmem:[%s5878 + $0x188] sm:$0xff] %v5647
      %5905 = vst [vmem:[%s5878 + $0x190] sm:$0xff] %v5648
      %5906 = vst [vmem:[%s5878 + $0x198] sm:$0xff] %v5649
      %5907 = vst [vmem:[%s5878 + $0x1a0] sm:$0xff] %v5650
      %5908 = vst [vmem:[%s5878 + $0x1a8] sm:$0xff] %v5651
      %5909 = vst [vmem:[%s5878 + $0x1b0] sm:$0xff] %v5652
      %5910 = vst [vmem:[%s5878 + $0x1b8] sm:$0xff] %v5653
      %5911 = vst [vmem:[%s5878 + $0x200] sm:$0xff] %v5654
      %5912 = vst [vmem:[%s5878 + $0x208] sm:$0xff] %v5655
      %5913 = vst [vmem:[%s5878 + $0x210] sm:$0xff] %v5656
      %5914 = vst [vmem:[%s5878 + $0x218] sm:$0xff] %v5657
      %5915 = vst [vmem:[%s5878 + $0x220] sm:$0xff] %v5658
      %5916 = vst [vmem:[%s5878 + $0x228] sm:$0xff] %v5659
      %5917 = vst [vmem:[%s5878 + $0x230] sm:$0xff] %v5660
      %5918 = vst [vmem:[%s5878 + $0x238] sm:$0xff] %v5661
      %5919 = vst [vmem:[%s5878 + $0x280] sm:$0xff] %v5662
      %5920 = vst [vmem:[%s5878 + $0x288] sm:$0xff] %v5663
      %5921 = vst [vmem:[%s5878 + $0x290] sm:$0xff] %v5664
      %5922 = vst [vmem:[%s5878 + $0x298] sm:$0xff] %v5665
      %5923 = vst [vmem:[%s5878 + $0x2a0] sm:$0xff] %v5666
      %5924 = vst [vmem:[%s5878 + $0x2a8] sm:$0xff] %v5667
      %5925 = vst [vmem:[%s5878 + $0x2b0] sm:$0xff] %v5668
      %5926 = vst [vmem:[%s5878 + $0x2b8] sm:$0xff] %v5669
      %5927 = vst [vmem:[%s5878 + $0x300] sm:$0xff] %v5670
      %5928 = vst [vmem:[%s5878 + $0x308] sm:$0xff] %v5671
      %5929 = vst [vmem:[%s5878 + $0x310] sm:$0xff] %v5672
      %5930 = vst [vmem:[%s5878 + $0x318] sm:$0xff] %v5673
      %5931 = vst [vmem:[%s5878 + $0x320] sm:$0xff] %v5674
      %5932 = vst [vmem:[%s5878 + $0x328] sm:$0xff] %v5675
      %5933 = vst [vmem:[%s5878 + $0x330] sm:$0xff] %v5676
      %5934 = vst [vmem:[%s5878 + $0x338] sm:$0xff] %v5677
      %5935 = vst [vmem:[%s5878 + $0x380] sm:$0xff] %v5678
      %5936 = vst [vmem:[%s5878 + $0x388] sm:$0xff] %v5679
      %5937 = vst [vmem:[%s5878 + $0x390] sm:$0xff] %v5680
      %5938 = vst [vmem:[%s5878 + $0x398] sm:$0xff] %v5681
      %5939 = vst [vmem:[%s5878 + $0x3a0] sm:$0xff] %v5682
      %5940 = vst [vmem:[%s5878 + $0x3a8] sm:$0xff] %v5683
      %5941 = vst [vmem:[%s5878 + $0x3b0] sm:$0xff] %v5684
      %5942 = vst [vmem:[%s5878 + $0x3b8] sm:$0xff] %v5685
      %5943 = vst [vmem:[%s5878 + $0x400] sm:$0xff] %v5686
      %5944 = vst [vmem:[%s5878 + $0x408] sm:$0xff] %v5687
      %5945 = vst [vmem:[%s5878 + $0x410] sm:$0xff] %v5688
      %5946 = vst [vmem:[%s5878 + $0x418] sm:$0xff] %v5689
      %5947 = vst [vmem:[%s5878 + $0x420] sm:$0xff] %v5690
      %5948 = vst [vmem:[%s5878 + $0x428] sm:$0xff] %v5691
      %5949 = vst [vmem:[%s5878 + $0x430] sm:$0xff] %v5692
      %5950 = vst [vmem:[%s5878 + $0x438] sm:$0xff] %v5693
      %5951 = vst [vmem:[%s5878 + $0x480] sm:$0xff] %v5694
      %5952 = vst [vmem:[%s5878 + $0x488] sm:$0xff] %v5695
      %5953 = vst [vmem:[%s5878 + $0x490] sm:$0xff] %v5696
      %5954 = vst [vmem:[%s5878 + $0x498] sm:$0xff] %v5697
      %5955 = vst [vmem:[%s5878 + $0x4a0] sm:$0xff] %v5698
      %5956 = vst [vmem:[%s5878 + $0x4a8] sm:$0xff] %v5699
      %5957 = vst [vmem:[%s5878 + $0x4b0] sm:$0xff] %v5700
      %5958 = vst [vmem:[%s5878 + $0x4b8] sm:$0xff] %v5701
      %5959 = vst [vmem:[%s5878 + $0x500] sm:$0xff] %v5702
      %5960 = vst [vmem:[%s5878 + $0x508] sm:$0xff] %v5703
      %5961 = vst [vmem:[%s5878 + $0x510] sm:$0xff] %v5704
      %5962 = vst [vmem:[%s5878 + $0x518] sm:$0xff] %v5705
      %5963 = vst [vmem:[%s5878 + $0x520] sm:$0xff] %v5706
      %5964 = vst [vmem:[%s5878 + $0x528] sm:$0xff] %v5707
      %5965 = vst [vmem:[%s5878 + $0x530] sm:$0xff] %v5708
      %5966 = vst [vmem:[%s5878 + $0x538] sm:$0xff] %v5709
      %5967 = vst [vmem:[%s5878 + $0x580] sm:$0xff] %v5710
      %5968 = vst [vmem:[%s5878 + $0x588] sm:$0xff] %v5711
      %5969 = vst [vmem:[%s5878 + $0x590] sm:$0xff] %v5712
      %5970 = vst [vmem:[%s5878 + $0x598] sm:$0xff] %v5713
      %5971 = vst [vmem:[%s5878 + $0x5a0] sm:$0xff] %v5714
      %5972 = vst [vmem:[%s5878 + $0x5a8] sm:$0xff] %v5715
      %5973 = vst [vmem:[%s5878 + $0x5b0] sm:$0xff] %v5716
      %5974 = vst [vmem:[%s5878 + $0x5b8] sm:$0xff] %v5717
      %5975 = vst [vmem:[%s5878 + $0x600] sm:$0xff] %v5718
      %5976 = vst [vmem:[%s5878 + $0x608] sm:$0xff] %v5719
      %5977 = vst [vmem:[%s5878 + $0x610] sm:$0xff] %v5720
      %5978 = vst [vmem:[%s5878 + $0x618] sm:$0xff] %v5721
      %5979 = vst [vmem:[%s5878 + $0x620] sm:$0xff] %v5722
      %5980 = vst [vmem:[%s5878 + $0x628] sm:$0xff] %v5723
      %5981 = vst [vmem:[%s5878 + $0x630] sm:$0xff] %v5724
      %5982 = vst [vmem:[%s5878 + $0x638] sm:$0xff] %v5725
      %5983 = vst [vmem:[%s5878 + $0x680] sm:$0xff] %v5726
      %5984 = vst [vmem:[%s5878 + $0x688] sm:$0xff] %v5727
      %5985 = vst [vmem:[%s5878 + $0x690] sm:$0xff] %v5728
      %5986 = vst [vmem:[%s5878 + $0x698] sm:$0xff] %v5729
      %5987 = vst [vmem:[%s5878 + $0x6a0] sm:$0xff] %v5730
      %5988 = vst [vmem:[%s5878 + $0x6a8] sm:$0xff] %v5731
      %5989 = vst [vmem:[%s5878 + $0x6b0] sm:$0xff] %v5732
      %5990 = vst [vmem:[%s5878 + $0x6b8] sm:$0xff] %v5733
      %5991 = vst [vmem:[%s5878 + $0x700] sm:$0xff] %v5734
      %5992 = vst [vmem:[%s5878 + $0x708] sm:$0xff] %v5735
      %5993 = vst [vmem:[%s5878 + $0x710] sm:$0xff] %v5736
      %5994 = vst [vmem:[%s5878 + $0x718] sm:$0xff] %v5737
      %5995 = vst [vmem:[%s5878 + $0x720] sm:$0xff] %v5738
      %5996 = vst [vmem:[%s5878 + $0x728] sm:$0xff] %v5739
      %5997 = vst [vmem:[%s5878 + $0x730] sm:$0xff] %v5740
      %5998 = vst [vmem:[%s5878 + $0x738] sm:$0xff] %v5741
      %5999 = vst [vmem:[%s5878 + $0x780] sm:$0xff] %v5742
      %6000 = vst [vmem:[%s5878 + $0x788] sm:$0xff] %v5743
      %6001 = vst [vmem:[%s5878 + $0x790] sm:$0xff] %v5744
      %6002 = vst [vmem:[%s5878 + $0x798] sm:$0xff] %v5745
      %6003 = vst [vmem:[%s5878 + $0x7a0] sm:$0xff] %v5746
      %6004 = vst [vmem:[%s5878 + $0x7a8] sm:$0xff] %v5747
      %6005 = vst [vmem:[%s5878 + $0x7b0] sm:$0xff] %v5748
      %6006 = vst [vmem:[%s5878 + $0x7b8] sm:$0xff] %v5749
      %s6007 = smul.u32 16, %s19
      %p6008 = scmp.lt.s32.totalorder %s18, 1
      %s6009 = scalar_select %p6008, %s18, 1
      %p6010 = scmp.lt.s32.totalorder %s6007, 15
      %s6011 = scalar_select %p6010, %s6007, 15
      %s6012 = smul.addr %s6011, 16
      %s6013 = smul.addr %s6009, 256
      %s6014 = sadd.s32 %s6012, %s6013
      %s6015 = smul.addr %s6014, 8
      %s6016 = scalar_lea.vmem %s3, %s6015
      // Predicated region
      $region33: #{_lambda_.9} parent=31 // pred_check
        %p6017 = pneg %p146
      $region34: #{_lambda_.9} parent=31 // pred_check_branch
        %6019 = sbr.rel (%p6017) target = $region36
      $region35: #{_lambda_.9} parent=31 // pred_region
        %s6020 = smul.u32 16, %s19
      $region36: #{_lambda_.9} parent=31 // pred_fallthru
        _
    $region32: #{_lambda_.9} parent=5 // pred_fallthru
      _
    %p6021 = scmp.le.s32.totalorder 2, %s9
    // Predicated region
    $region37: #{_lambda_.9} parent=5 // pred_check
      %p6022 = pneg %p6021
    $region38: #{_lambda_.9} parent=5 // pred_check_branch
      %6024 = sbr.rel (%p6022) target = $region40
    $region39: #{_lambda_.9} parent=5 // pred_region
      %s6025 = ssub.s32 %s9, 2
      // Predicated region
      $region41: #{_lambda_.9} parent=39 // pred_check
        %p6026 = pneg %p152
      $region42: #{_lambda_.9} parent=39 // pred_check_branch
        %6028 = sbr.rel (%p6026) target = $region44
      $region43: #{_lambda_.9} parent=39 // pred_region
        %s6029 = smul.u32 16, %s21
        %p6030 = scmp.lt.s32.totalorder %s20, 1
        %s6031 = scalar_select %p6030, %s20, 1
        %p6032 = scmp.lt.s32.totalorder %s6029, 15
        %s6033 = scalar_select %p6032, %s6029, 15
        %s6034 = smul.addr %s6033, 16
        %s6035 = smul.addr %s6031, 256
        %s6036 = sadd.s32 %s6034, %s6035
        %s6037 = smul.addr %s6036, 8
        %s6038 = scalar_lea.vmem %s3, %s6037
      $region44: #{_lambda_.9} parent=39 // pred_fallthru
        _
    $region40: #{_lambda_.9} parent=5 // pred_fallthru
      _
  $region6: #{_lambda_.9} parent=0 // loop_footer
    %s13 = sadd.s32 1, %s9
  $region7: #{_lambda_.9} parent=0 // loop_footer_branch
    %8 = sbr.rel target = $region3
  $region8: #{_lambda_.9} parent=0 // loop_exit
    _

</llo_original>
